<compile_context>
chip_gen: v7x
topology: tpu7x:2x2x1
jax: 0.10.0
libtpu: 0.0.40
codegen_flags: <defaults>
</compile_context>

<pallas_src>
import functools

import jax
import jax.numpy as jnp
from jax import lax
from jax.experimental import pallas as pl
from jax.experimental.pallas import tpu as pltpu


def _dcnn_fused_kernel(x_ref, mask_ref, w1_ref, b1_ref, w2_ref, b2_ref,
                       w3_ref, b3_ref, w4_ref, b4_ref, o_ref,
                       pad_ref, stage_ref, *, H, W, C, nb):
    """Fused dCNN forward for nb batch images (lane-concatenated).

    x_ref    : (nb, 1, PADF) f32   zero-padded inputs, row-major flattened,
                                   PADF = (H+2)*(W+2) + 2 (tail keeps the
                                   (dy=2,dx=2) tap slice in-bounds)
    mask_ref : (1, nb*HWs) f32     1.0 on real pixels, 0.0 on wrap columns
    w1_ref   : (C, 9)   f32        layer-1 weights [cout, tap]
    b1..b3   : (C, 1)   f32        biases
    w2,w3    : (C, 9*C) bf16       grouped weights [cout, tap*C + cin]
    w4_ref   : (8, 9*C) bf16       layer-4 grouped weights in row 0, rest 0
    b4_ref   : (1, 1)   f32
    o_ref    : (nb, 1, HWs) f32    flattened-row outputs (wrap cols dropped
                                   by the wrapper)
    pad_ref  : (C, nb*PADF)   VMEM scratch — halo'd activations of cur. layer
    stage_ref: (9*C, nb*HWs)  VMEM scratch — stacked shifted taps (K axis)
    """
    Wp = W + 2
    HWs = H * Wp
    PADF = (H + 2) * Wp + 2
    taps = [dy * Wp + dx for dy in range(3) for dx in range(3)]

    # Zero only the never-written halo strips (top halo row + first left halo,
    # bottom halo row remainder + 2-elem tail).  The interior slab and the two
    # wrap columns per row are fully rewritten (and wrap-masked) every layer,
    # so nothing else needs initialization — and this stays correct even when
    # grid steps are sharded across TensorCores.
    halo = jnp.zeros((C, Wp + 1), dtype=pad_ref.dtype)
    for b in range(nb):
        base = b * PADF
        pad_ref[:, base:base + Wp + 1] = halo
        pad_ref[:, base + Wp + 1 + HWs:base + PADF] = halo

    mask = mask_ref[...]                       # (1, nb*HWs) f32
    xs = [x_ref[b] for b in range(nb)]         # each (1, PADF) f32

    # ---- layer 1: Conv(1 -> 64) + ReLU  (VPU: 9 broadcast FMAs, Cin = 1) ---
    for b in range(nb):
        xb = xs[b]
        acc = w1_ref[:, 0:1] * xb[:, 0:HWs]                     # init = tap 0
        for k in range(1, 9):
            t = taps[k]
            acc = acc + w1_ref[:, k:k + 1] * xb[:, t:t + HWs]
        acc = jnp.maximum(acc + b1_ref[...], 0.0)
        off = b * PADF + Wp + 1
        pad_ref[:, off:off + HWs] = (
            (acc * mask[:, 0:HWs]).astype(pad_ref.dtype))

    # Stage the 9 shifted tap slices of the current activation into the K axis
    # of the staging buffer: row block k holds tap k's C channels.
    def stage_taps():
        for b in range(nb):
            base = b * PADF
            col = b * HWs
            for k in range(9):
                t = base + taps[k]
                stage_ref[k * C:(k + 1) * C, col:col + HWs] = (
                    pad_ref[:, t:t + HWs])

    # ---- layers 2, 3: Conv(64 -> 64) + ReLU as ONE K=9*C MXU matmul each ---
    for w_ref, b_ref in ((w2_ref, b2_ref), (w3_ref, b3_ref)):
        stage_taps()
        acc = jnp.dot(w_ref[...], stage_ref[...],
                      preferred_element_type=jnp.float32)       # (C, nb*HWs)
        acc = jnp.maximum(acc + b_ref[...], 0.0)
        act = (acc * mask).astype(pad_ref.dtype)
        for b in range(nb):
            off = b * PADF + Wp + 1
            pad_ref[:, off:off + HWs] = act[:, b * HWs:(b + 1) * HWs]

    # ---- layer 4: Conv(64 -> 1) as one (8, 9*C) x (9*C, nb*HWs) MXU matmul -
    # (weight rows 1..7 are zeros; only row 0 is the real output channel)
    stage_taps()
    y4 = jnp.dot(w4_ref[...], stage_ref[...],
                 preferred_element_type=jnp.float32)            # (8, nb*HWs)
    y = y4[0:1, :] + b4_ref[...]                                # (1, nb*HWs)

    # fused residual  x + model(x)   (identity path kept in f32)
    for b in range(nb):
        o_ref[b] = (y[:, b * HWs:(b + 1) * HWs]
                    + xs[b][:, Wp + 1:Wp + 1 + HWs]).astype(o_ref.dtype)


def dcnn_forward(x_nchw, params, *, act_dtype=jnp.bfloat16, lane_budget=2048):
    """dCNN forward: x + model(x).  x_nchw: (N, 1, H, W) float32."""
    N, cin, H, W = x_nchw.shape
    assert cin == 1, "dCNN expects a single input channel"
    C = 64
    Hp, Wp = H + 2, W + 2
    HWs = H * Wp
    PADF = Hp * Wp + 2

    # Fold as many whole images as fit into one grid step (lane axis).
    nb = 1
    for d in range(1, N + 1):
        if N % d == 0 and d * HWs <= lane_budget:
            nb = d
    grid = (N // nb,)

    # Pad only the tiny 1-channel input; flatten rows and add a 2-elem tail.
    xp = jnp.pad(x_nchw.reshape(N, H, W), ((0, 0), (1, 1), (1, 1)))
    xf = jnp.pad(xp.reshape(N, Hp * Wp), ((0, 0), (0, 2))).reshape(N, 1, PADF)

    # Grid-invariant wrap-column mask, computed once here (not per step).
    lanes = jnp.arange(nb * HWs, dtype=jnp.int32)
    mask = ((lanes % Wp) < W).astype(jnp.float32).reshape(1, nb * HWs)

    (w1, b1), (w2, b2), (w3, b3), (w4, b4) = params
    # Re-layout weights: layer-1 as [cout, tap]; layers 2/3 grouped over all 9
    # taps on the contraction axis [cout, tap*C + cin]; layer 4 grouped and
    # padded to 8 output rows for a sublane-friendly MXU matmul.
    w1m = w1.reshape(9, C).T.astype(jnp.float32)                       # (C, 9)
    w2g = jnp.transpose(w2.reshape(9, C, C), (2, 0, 1)).reshape(C, 9 * C)
    w3g = jnp.transpose(w3.reshape(9, C, C), (2, 0, 1)).reshape(C, 9 * C)
    w2g = w2g.astype(act_dtype)
    w3g = w3g.astype(act_dtype)
    w4g = jnp.zeros((8, 9 * C), act_dtype).at[0].set(
        w4.reshape(9 * C).astype(act_dtype))
    b1m, b2m, b3m = (b.reshape(C, 1) for b in (b1, b2, b3))
    b4m = b4.reshape(1, 1)

    kernel = functools.partial(_dcnn_fused_kernel, H=H, W=W, C=C, nb=nb)
    const2 = lambda n: (0, 0)

    out = pl.pallas_call(
        kernel,
        out_shape=jax.ShapeDtypeStruct((N, 1, HWs), jnp.float32),
        grid=grid,
        in_specs=[
            pl.BlockSpec((nb, 1, PADF), lambda n: (n, 0, 0)),   # x
            pl.BlockSpec((1, nb * HWs), const2),                # wrap mask
            pl.BlockSpec((C, 9), const2),                       # w1
            pl.BlockSpec((C, 1), const2),                       # b1
            pl.BlockSpec((C, 9 * C), const2),                   # w2 grouped
            pl.BlockSpec((C, 1), const2),                       # b2
            pl.BlockSpec((C, 9 * C), const2),                   # w3 grouped
            pl.BlockSpec((C, 1), const2),                       # b3
            pl.BlockSpec((8, 9 * C), const2),                   # w4 grouped
            pl.BlockSpec((1, 1), const2),                       # b4
        ],
        out_specs=pl.BlockSpec((nb, 1, HWs), lambda n: (n, 0, 0)),
        scratch_shapes=[
            pltpu.VMEM((C, nb * PADF), act_dtype),              # halo'd acts
            pltpu.VMEM((9 * C, nb * HWs), act_dtype),           # tap staging
        ],
        compiler_params=pltpu.CompilerParams(
            dimension_semantics=("parallel",)),
    )(xf, mask, w1m, b1m, w2g, b2m, w3g, b3m, w4g, b4m)

    # Drop the 2 wrap columns per row; restore NCHW.
    y = out.reshape(N, H, Wp)[:, :, :W]
    return y.reshape(N, 1, H, W)


def init_dcnn_params(key):
    """Deterministic synthetic params matching nn.init.normal_(w, 0, 0.01), bias=0."""
    channels = [(1, 64), (64, 64), (64, 64), (64, 1)]
    params = []
    for i, (cin, cout) in enumerate(channels):
        k = jax.random.fold_in(key, i)
        w = 0.01 * jax.random.normal(k, (3, 3, cin, cout), jnp.float32)
        b = jnp.zeros((cout,), jnp.float32)
        params.append((w, b))
    return params


def dcnn_reference(x_nchw, params):
    """Pure-JAX reference (lax conv, f32) for the correctness check."""
    x = jnp.transpose(x_nchw, (0, 2, 3, 1))
    h = x
    for i, (w, b) in enumerate(params):
        h = lax.conv_general_dilated(
            h, w, window_strides=(1, 1), padding="SAME",
            dimension_numbers=("NHWC", "HWIO", "NHWC"),
            precision=lax.Precision.HIGHEST,
        ) + b
        if i < 3:
            h = jnp.maximum(h, 0.0)
    y = x + h
    return jnp.transpose(y, (0, 3, 1, 2))


if __name__ == "__main__":
    key = jax.random.PRNGKey(0)
    k_x, k_p = jax.random.split(key)

    N, C_in, H, W = 2, 1, 16, 16  # dCNN expects a single input channel
    x = jax.random.normal(k_x, (N, C_in, H, W), jnp.float32)
    params = init_dcnn_params(k_p)

    y = jax.jit(dcnn_forward)(x, params)
    y = jax.block_until_ready(y)

    y_ref = dcnn_reference(x, params)
    assert y.shape == (N, C_in, H, W)
    assert jnp.allclose(y, y_ref, rtol=1e-3, atol=1e-3), (
        float(jnp.max(jnp.abs(y - y_ref)))
    )

    print("KERNEL_OK")
</pallas_src>

<mosaic_0001>
module attributes {stable_mosaic.version = 11 : i64} {
  func.func @_dcnn_fused_kernel(%arg0: i32, %arg1: memref<2x1x326xf32, #tpu.memory_space<vmem>>, %arg2: memref<1x576xf32, #tpu.memory_space<vmem>>, %arg3: memref<64x9xf32, #tpu.memory_space<vmem>>, %arg4: memref<64x1xf32, #tpu.memory_space<vmem>>, %arg5: memref<64x576xbf16, #tpu.memory_space<vmem>>, %arg6: memref<64x1xf32, #tpu.memory_space<vmem>>, %arg7: memref<64x576xbf16, #tpu.memory_space<vmem>>, %arg8: memref<64x1xf32, #tpu.memory_space<vmem>>, %arg9: memref<8x576xbf16, #tpu.memory_space<vmem>>, %arg10: memref<1x1xf32, #tpu.memory_space<vmem>>, %arg11: memref<2x1x288xf32, #tpu.memory_space<vmem>>, %arg12: memref<64x652xbf16, #tpu.memory_space<vmem>>, %arg13: memref<576x576xbf16, #tpu.memory_space<vmem>>) attributes {dimension_semantics = [#tpu.dimension_semantics<parallel>], iteration_bounds = array<i64: 1>, scalar_prefetch = 0 : i64, scratch_operands = 2 : i64, tpu.core_type = #tpu.core_type<tc>, window_params = [{transform_indices = @transform_0, window_bounds = array<i64: 2, 1, 326>}, {pipeline_mode = #tpu.pipeline_mode<synchronous>, transform_indices = @transform_1, window_bounds = array<i64: 1, 576>}, {pipeline_mode = #tpu.pipeline_mode<synchronous>, transform_indices = @transform_2, window_bounds = array<i64: 64, 9>}, {pipeline_mode = #tpu.pipeline_mode<synchronous>, transform_indices = @transform_3, window_bounds = array<i64: 64, 1>}, {pipeline_mode = #tpu.pipeline_mode<synchronous>, transform_indices = @transform_4, window_bounds = array<i64: 64, 576>}, {pipeline_mode = #tpu.pipeline_mode<synchronous>, transform_indices = @transform_5, window_bounds = array<i64: 64, 1>}, {pipeline_mode = #tpu.pipeline_mode<synchronous>, transform_indices = @transform_6, window_bounds = array<i64: 64, 576>}, {pipeline_mode = #tpu.pipeline_mode<synchronous>, transform_indices = @transform_7, window_bounds = array<i64: 64, 1>}, {pipeline_mode = #tpu.pipeline_mode<synchronous>, transform_indices = @transform_8, window_bounds = array<i64: 8, 576>}, {pipeline_mode = #tpu.pipeline_mode<synchronous>, transform_indices = @transform_9, window_bounds = array<i64: 1, 1>}, {transform_indices = @transform_10, window_bounds = array<i64: 2, 1, 288>}]} {
    %cst = arith.constant 0.000000e+00 : bf16
    %0 = vector.broadcast %cst : bf16 to vector<64x19xbf16>
    %c0 = arith.constant 0 : index
    %c0_0 = arith.constant 0 : index
    %1 = vector.load %arg12[%c0, %c0_0] : memref<64x652xbf16, #tpu.memory_space<vmem>>, vector<64x19xbf16>
    tpu.vector_store %arg12[%c0, %c0_0], %0 {strides = array<i32>} : memref<64x652xbf16, #tpu.memory_space<vmem>>, vector<64x19xbf16>,
    %c0_1 = arith.constant 0 : index
    %c307 = arith.constant 307 : index
    %2 = vector.load %arg12[%c0_1, %c307] : memref<64x652xbf16, #tpu.memory_space<vmem>>, vector<64x19xbf16>
    tpu.vector_store %arg12[%c0_1, %c307], %0 {strides = array<i32>} : memref<64x652xbf16, #tpu.memory_space<vmem>>, vector<64x19xbf16>,
    %c0_2 = arith.constant 0 : index
    %c326 = arith.constant 326 : index
    %3 = vector.load %arg12[%c0_2, %c326] : memref<64x652xbf16, #tpu.memory_space<vmem>>, vector<64x19xbf16>
    tpu.vector_store %arg12[%c0_2, %c326], %0 {strides = array<i32>} : memref<64x652xbf16, #tpu.memory_space<vmem>>, vector<64x19xbf16>,
    %c0_3 = arith.constant 0 : index
    %c633 = arith.constant 633 : index
    %4 = vector.load %arg12[%c0_3, %c633] : memref<64x652xbf16, #tpu.memory_space<vmem>>, vector<64x19xbf16>
    tpu.vector_store %arg12[%c0_3, %c633], %0 {strides = array<i32>} : memref<64x652xbf16, #tpu.memory_space<vmem>>, vector<64x19xbf16>,
    %c0_4 = arith.constant 0 : index
    %c0_5 = arith.constant 0 : index
    %5 = vector.load %arg2[%c0_4, %c0_5] : memref<1x576xf32, #tpu.memory_space<vmem>>, vector<1x576xf32>
    %c0_6 = arith.constant 0 : index
    %c0_7 = arith.constant 0 : index
    %c0_8 = arith.constant 0 : index
    %6 = vector.load %arg1[%c0_6, %c0_7, %c0_8] : memref<2x1x326xf32, #tpu.memory_space<vmem>>, vector<1x1x326xf32>
    %7 = vector.shape_cast %6 : vector<1x1x326xf32> to vector<1x326xf32>
    %c1 = arith.constant 1 : index
    %c0_9 = arith.constant 0 : index
    %c0_10 = arith.constant 0 : index
    %8 = vector.load %arg1[%c1, %c0_9, %c0_10] : memref<2x1x326xf32, #tpu.memory_space<vmem>>, vector<1x1x326xf32>
    %9 = vector.shape_cast %8 : vector<1x1x326xf32> to vector<1x326xf32>
    %c0_11 = arith.constant 0 : index
    %c0_12 = arith.constant 0 : index
    %10 = vector.load %arg3[%c0_11, %c0_12] : memref<64x9xf32, #tpu.memory_space<vmem>>, vector<64x1xf32>
    %11 = vector.extract_strided_slice %7 {offsets = [0, 0], sizes = [1, 288], strides = [1, 1]} : vector<1x326xf32> to vector<1x288xf32>
    %12 = vector.broadcast %10 : vector<64x1xf32> to vector<64x288xf32>
    %13 = vector.broadcast %11 : vector<1x288xf32> to vector<64x288xf32>
    %14 = arith.mulf %12, %13 : vector<64x288xf32>
    %c0_13 = arith.constant 0 : index
    %c1_14 = arith.constant 1 : index
    %15 = vector.load %arg3[%c0_13, %c1_14] : memref<64x9xf32, #tpu.memory_space<vmem>>, vector<64x1xf32>
    %16 = vector.extract_strided_slice %7 {offsets = [0, 1], sizes = [1, 288], strides = [1, 1]} : vector<1x326xf32> to vector<1x288xf32>
    %17 = vector.broadcast %15 : vector<64x1xf32> to vector<64x288xf32>
    %18 = vector.broadcast %16 : vector<1x288xf32> to vector<64x288xf32>
    %19 = arith.mulf %17, %18 : vector<64x288xf32>
    %20 = arith.addf %14, %19 : vector<64x288xf32>
    %c0_15 = arith.constant 0 : index
    %c2 = arith.constant 2 : index
    %21 = vector.load %arg3[%c0_15, %c2] : memref<64x9xf32, #tpu.memory_space<vmem>>, vector<64x1xf32>
    %22 = vector.extract_strided_slice %7 {offsets = [0, 2], sizes = [1, 288], strides = [1, 1]} : vector<1x326xf32> to vector<1x288xf32>
    %23 = vector.broadcast %21 : vector<64x1xf32> to vector<64x288xf32>
    %24 = vector.broadcast %22 : vector<1x288xf32> to vector<64x288xf32>
    %25 = arith.mulf %23, %24 : vector<64x288xf32>
    %26 = arith.addf %20, %25 : vector<64x288xf32>
    %c0_16 = arith.constant 0 : index
    %c3 = arith.constant 3 : index
    %27 = vector.load %arg3[%c0_16, %c3] : memref<64x9xf32, #tpu.memory_space<vmem>>, vector<64x1xf32>
    %28 = vector.extract_strided_slice %7 {offsets = [0, 18], sizes = [1, 288], strides = [1, 1]} : vector<1x326xf32> to vector<1x288xf32>
    %29 = vector.broadcast %27 : vector<64x1xf32> to vector<64x288xf32>
    %30 = vector.broadcast %28 : vector<1x288xf32> to vector<64x288xf32>
    %31 = arith.mulf %29, %30 : vector<64x288xf32>
    %32 = arith.addf %26, %31 : vector<64x288xf32>
    %c0_17 = arith.constant 0 : index
    %c4 = arith.constant 4 : index
    %33 = vector.load %arg3[%c0_17, %c4] : memref<64x9xf32, #tpu.memory_space<vmem>>, vector<64x1xf32>
    %34 = vector.extract_strided_slice %7 {offsets = [0, 19], sizes = [1, 288], strides = [1, 1]} : vector<1x326xf32> to vector<1x288xf32>
    %35 = vector.broadcast %33 : vector<64x1xf32> to vector<64x288xf32>
    %36 = vector.broadcast %34 : vector<1x288xf32> to vector<64x288xf32>
    %37 = arith.mulf %35, %36 : vector<64x288xf32>
    %38 = arith.addf %32, %37 : vector<64x288xf32>
    %c0_18 = arith.constant 0 : index
    %c5 = arith.constant 5 : index
    %39 = vector.load %arg3[%c0_18, %c5] : memref<64x9xf32, #tpu.memory_space<vmem>>, vector<64x1xf32>
    %40 = vector.extract_strided_slice %7 {offsets = [0, 20], sizes = [1, 288], strides = [1, 1]} : vector<1x326xf32> to vector<1x288xf32>
    %41 = vector.broadcast %39 : vector<64x1xf32> to vector<64x288xf32>
    %42 = vector.broadcast %40 : vector<1x288xf32> to vector<64x288xf32>
    %43 = arith.mulf %41, %42 : vector<64x288xf32>
    %44 = arith.addf %38, %43 : vector<64x288xf32>
    %c0_19 = arith.constant 0 : index
    %c6 = arith.constant 6 : index
    %45 = vector.load %arg3[%c0_19, %c6] : memref<64x9xf32, #tpu.memory_space<vmem>>, vector<64x1xf32>
    %46 = vector.extract_strided_slice %7 {offsets = [0, 36], sizes = [1, 288], strides = [1, 1]} : vector<1x326xf32> to vector<1x288xf32>
    %47 = vector.broadcast %45 : vector<64x1xf32> to vector<64x288xf32>
    %48 = vector.broadcast %46 : vector<1x288xf32> to vector<64x288xf32>
    %49 = arith.mulf %47, %48 : vector<64x288xf32>
    %50 = arith.addf %44, %49 : vector<64x288xf32>
    %c0_20 = arith.constant 0 : index
    %c7 = arith.constant 7 : index
    %51 = vector.load %arg3[%c0_20, %c7] : memref<64x9xf32, #tpu.memory_space<vmem>>, vector<64x1xf32>
    %52 = vector.extract_strided_slice %7 {offsets = [0, 37], sizes = [1, 288], strides = [1, 1]} : vector<1x326xf32> to vector<1x288xf32>
    %53 = vector.broadcast %51 : vector<64x1xf32> to vector<64x288xf32>
    %54 = vector.broadcast %52 : vector<1x288xf32> to vector<64x288xf32>
    %55 = arith.mulf %53, %54 : vector<64x288xf32>
    %56 = arith.addf %50, %55 : vector<64x288xf32>
    %c0_21 = arith.constant 0 : index
    %c8 = arith.constant 8 : index
    %57 = vector.load %arg3[%c0_21, %c8] : memref<64x9xf32, #tpu.memory_space<vmem>>, vector<64x1xf32>
    %58 = vector.extract_strided_slice %7 {offsets = [0, 38], sizes = [1, 288], strides = [1, 1]} : vector<1x326xf32> to vector<1x288xf32>
    %59 = vector.broadcast %57 : vector<64x1xf32> to vector<64x288xf32>
    %60 = vector.broadcast %58 : vector<1x288xf32> to vector<64x288xf32>
    %61 = arith.mulf %59, %60 : vector<64x288xf32>
    %62 = arith.addf %56, %61 : vector<64x288xf32>
    %c0_22 = arith.constant 0 : index
    %c0_23 = arith.constant 0 : index
    %63 = vector.load %arg4[%c0_22, %c0_23] : memref<64x1xf32, #tpu.memory_space<vmem>>, vector<64x1xf32>
    %64 = vector.broadcast %63 : vector<64x1xf32> to vector<64x288xf32>
    %65 = arith.addf %62, %64 : vector<64x288xf32>
    %cst_24 = arith.constant 0.000000e+00 : f32
    %66 = vector.broadcast %cst_24 : f32 to vector<64x288xf32>
    %67 = arith.maximumf %65, %66 : vector<64x288xf32>
    %68 = vector.extract_strided_slice %5 {offsets = [0, 0], sizes = [1, 288], strides = [1, 1]} : vector<1x576xf32> to vector<1x288xf32>
    %69 = vector.broadcast %68 : vector<1x288xf32> to vector<64x288xf32>
    %70 = arith.mulf %67, %69 : vector<64x288xf32>
    %71 = arith.truncf %70 : vector<64x288xf32> to vector<64x288xbf16>
    %c0_25 = arith.constant 0 : index
    %c19 = arith.constant 19 : index
    %72 = vector.load %arg12[%c0_25, %c19] : memref<64x652xbf16, #tpu.memory_space<vmem>>, vector<64x288xbf16>
    tpu.vector_store %arg12[%c0_25, %c19], %71 {strides = array<i32>} : memref<64x652xbf16, #tpu.memory_space<vmem>>, vector<64x288xbf16>,
    %c0_26 = arith.constant 0 : index
    %c0_27 = arith.constant 0 : index
    %73 = vector.load %arg3[%c0_26, %c0_27] : memref<64x9xf32, #tpu.memory_space<vmem>>, vector<64x1xf32>
    %74 = vector.extract_strided_slice %9 {offsets = [0, 0], sizes = [1, 288], strides = [1, 1]} : vector<1x326xf32> to vector<1x288xf32>
    %75 = vector.broadcast %73 : vector<64x1xf32> to vector<64x288xf32>
    %76 = vector.broadcast %74 : vector<1x288xf32> to vector<64x288xf32>
    %77 = arith.mulf %75, %76 : vector<64x288xf32>
    %c0_28 = arith.constant 0 : index
    %c1_29 = arith.constant 1 : index
    %78 = vector.load %arg3[%c0_28, %c1_29] : memref<64x9xf32, #tpu.memory_space<vmem>>, vector<64x1xf32>
    %79 = vector.extract_strided_slice %9 {offsets = [0, 1], sizes = [1, 288], strides = [1, 1]} : vector<1x326xf32> to vector<1x288xf32>
    %80 = vector.broadcast %78 : vector<64x1xf32> to vector<64x288xf32>
    %81 = vector.broadcast %79 : vector<1x288xf32> to vector<64x288xf32>
    %82 = arith.mulf %80, %81 : vector<64x288xf32>
    %83 = arith.addf %77, %82 : vector<64x288xf32>
    %c0_30 = arith.constant 0 : index
    %c2_31 = arith.constant 2 : index
    %84 = vector.load %arg3[%c0_30, %c2_31] : memref<64x9xf32, #tpu.memory_space<vmem>>, vector<64x1xf32>
    %85 = vector.extract_strided_slice %9 {offsets = [0, 2], sizes = [1, 288], strides = [1, 1]} : vector<1x326xf32> to vector<1x288xf32>
    %86 = vector.broadcast %84 : vector<64x1xf32> to vector<64x288xf32>
    %87 = vector.broadcast %85 : vector<1x288xf32> to vector<64x288xf32>
    %88 = arith.mulf %86, %87 : vector<64x288xf32>
    %89 = arith.addf %83, %88 : vector<64x288xf32>
    %c0_32 = arith.constant 0 : index
    %c3_33 = arith.constant 3 : index
    %90 = vector.load %arg3[%c0_32, %c3_33] : memref<64x9xf32, #tpu.memory_space<vmem>>, vector<64x1xf32>
    %91 = vector.extract_strided_slice %9 {offsets = [0, 18], sizes = [1, 288], strides = [1, 1]} : vector<1x326xf32> to vector<1x288xf32>
    %92 = vector.broadcast %90 : vector<64x1xf32> to vector<64x288xf32>
    %93 = vector.broadcast %91 : vector<1x288xf32> to vector<64x288xf32>
    %94 = arith.mulf %92, %93 : vector<64x288xf32>
    %95 = arith.addf %89, %94 : vector<64x288xf32>
    %c0_34 = arith.constant 0 : index
    %c4_35 = arith.constant 4 : index
    %96 = vector.load %arg3[%c0_34, %c4_35] : memref<64x9xf32, #tpu.memory_space<vmem>>, vector<64x1xf32>
    %97 = vector.extract_strided_slice %9 {offsets = [0, 19], sizes = [1, 288], strides = [1, 1]} : vector<1x326xf32> to vector<1x288xf32>
    %98 = vector.broadcast %96 : vector<64x1xf32> to vector<64x288xf32>
    %99 = vector.broadcast %97 : vector<1x288xf32> to vector<64x288xf32>
    %100 = arith.mulf %98, %99 : vector<64x288xf32>
    %101 = arith.addf %95, %100 : vector<64x288xf32>
    %c0_36 = arith.constant 0 : index
    %c5_37 = arith.constant 5 : index
    %102 = vector.load %arg3[%c0_36, %c5_37] : memref<64x9xf32, #tpu.memory_space<vmem>>, vector<64x1xf32>
    %103 = vector.extract_strided_slice %9 {offsets = [0, 20], sizes = [1, 288], strides = [1, 1]} : vector<1x326xf32> to vector<1x288xf32>
    %104 = vector.broadcast %102 : vector<64x1xf32> to vector<64x288xf32>
    %105 = vector.broadcast %103 : vector<1x288xf32> to vector<64x288xf32>
    %106 = arith.mulf %104, %105 : vector<64x288xf32>
    %107 = arith.addf %101, %106 : vector<64x288xf32>
    %c0_38 = arith.constant 0 : index
    %c6_39 = arith.constant 6 : index
    %108 = vector.load %arg3[%c0_38, %c6_39] : memref<64x9xf32, #tpu.memory_space<vmem>>, vector<64x1xf32>
    %109 = vector.extract_strided_slice %9 {offsets = [0, 36], sizes = [1, 288], strides = [1, 1]} : vector<1x326xf32> to vector<1x288xf32>
    %110 = vector.broadcast %108 : vector<64x1xf32> to vector<64x288xf32>
    %111 = vector.broadcast %109 : vector<1x288xf32> to vector<64x288xf32>
    %112 = arith.mulf %110, %111 : vector<64x288xf32>
    %113 = arith.addf %107, %112 : vector<64x288xf32>
    %c0_40 = arith.constant 0 : index
    %c7_41 = arith.constant 7 : index
    %114 = vector.load %arg3[%c0_40, %c7_41] : memref<64x9xf32, #tpu.memory_space<vmem>>, vector<64x1xf32>
    %115 = vector.extract_strided_slice %9 {offsets = [0, 37], sizes = [1, 288], strides = [1, 1]} : vector<1x326xf32> to vector<1x288xf32>
    %116 = vector.broadcast %114 : vector<64x1xf32> to vector<64x288xf32>
    %117 = vector.broadcast %115 : vector<1x288xf32> to vector<64x288xf32>
    %118 = arith.mulf %116, %117 : vector<64x288xf32>
    %119 = arith.addf %113, %118 : vector<64x288xf32>
    %c0_42 = arith.constant 0 : index
    %c8_43 = arith.constant 8 : index
    %120 = vector.load %arg3[%c0_42, %c8_43] : memref<64x9xf32, #tpu.memory_space<vmem>>, vector<64x1xf32>
    %121 = vector.extract_strided_slice %9 {offsets = [0, 38], sizes = [1, 288], strides = [1, 1]} : vector<1x326xf32> to vector<1x288xf32>
    %122 = vector.broadcast %120 : vector<64x1xf32> to vector<64x288xf32>
    %123 = vector.broadcast %121 : vector<1x288xf32> to vector<64x288xf32>
    %124 = arith.mulf %122, %123 : vector<64x288xf32>
    %125 = arith.addf %119, %124 : vector<64x288xf32>
    %c0_44 = arith.constant 0 : index
    %c0_45 = arith.constant 0 : index
    %126 = vector.load %arg4[%c0_44, %c0_45] : memref<64x1xf32, #tpu.memory_space<vmem>>, vector<64x1xf32>
    %127 = vector.broadcast %126 : vector<64x1xf32> to vector<64x288xf32>
    %128 = arith.addf %125, %127 : vector<64x288xf32>
    %cst_46 = arith.constant 0.000000e+00 : f32
    %129 = vector.broadcast %cst_46 : f32 to vector<64x288xf32>
    %130 = arith.maximumf %128, %129 : vector<64x288xf32>
    %131 = vector.extract_strided_slice %5 {offsets = [0, 0], sizes = [1, 288], strides = [1, 1]} : vector<1x576xf32> to vector<1x288xf32>
    %132 = vector.broadcast %131 : vector<1x288xf32> to vector<64x288xf32>
    %133 = arith.mulf %130, %132 : vector<64x288xf32>
    %134 = arith.truncf %133 : vector<64x288xf32> to vector<64x288xbf16>
    %c0_47 = arith.constant 0 : index
    %c345 = arith.constant 345 : index
    %135 = vector.load %arg12[%c0_47, %c345] : memref<64x652xbf16, #tpu.memory_space<vmem>>, vector<64x288xbf16>
    tpu.vector_store %arg12[%c0_47, %c345], %134 {strides = array<i32>} : memref<64x652xbf16, #tpu.memory_space<vmem>>, vector<64x288xbf16>,
    %c0_48 = arith.constant 0 : index
    %c0_49 = arith.constant 0 : index
    %136 = vector.load %arg12[%c0_48, %c0_49] : memref<64x652xbf16, #tpu.memory_space<vmem>>, vector<64x288xbf16>
    %c0_50 = arith.constant 0 : index
    %c0_51 = arith.constant 0 : index
    %137 = vector.load %arg13[%c0_50, %c0_51] : memref<576x576xbf16, #tpu.memory_space<vmem>>, vector<64x288xbf16>
    tpu.vector_store %arg13[%c0_50, %c0_51], %136 {strides = array<i32>} : memref<576x576xbf16, #tpu.memory_space<vmem>>, vector<64x288xbf16>,
    %c0_52 = arith.constant 0 : index
    %c1_53 = arith.constant 1 : index
    %138 = vector.load %arg12[%c0_52, %c1_53] : memref<64x652xbf16, #tpu.memory_space<vmem>>, vector<64x288xbf16>
    %c64 = arith.constant 64 : index
    %c0_54 = arith.constant 0 : index
    %139 = vector.load %arg13[%c64, %c0_54] : memref<576x576xbf16, #tpu.memory_space<vmem>>, vector<64x288xbf16>
    tpu.vector_store %arg13[%c64, %c0_54], %138 {strides = array<i32>} : memref<576x576xbf16, #tpu.memory_space<vmem>>, vector<64x288xbf16>,
    %c0_55 = arith.constant 0 : index
    %c2_56 = arith.constant 2 : index
    %140 = vector.load %arg12[%c0_55, %c2_56] : memref<64x652xbf16, #tpu.memory_space<vmem>>, vector<64x288xbf16>
    %c128 = arith.constant 128 : index
    %c0_57 = arith.constant 0 : index
    %141 = vector.load %arg13[%c128, %c0_57] : memref<576x576xbf16, #tpu.memory_space<vmem>>, vector<64x288xbf16>
    tpu.vector_store %arg13[%c128, %c0_57], %140 {strides = array<i32>} : memref<576x576xbf16, #tpu.memory_space<vmem>>, vector<64x288xbf16>,
    %c0_58 = arith.constant 0 : index
    %c18 = arith.constant 18 : index
    %142 = vector.load %arg12[%c0_58, %c18] : memref<64x652xbf16, #tpu.memory_space<vmem>>, vector<64x288xbf16>
    %c192 = arith.constant 192 : index
    %c0_59 = arith.constant 0 : index
    %143 = vector.load %arg13[%c192, %c0_59] : memref<576x576xbf16, #tpu.memory_space<vmem>>, vector<64x288xbf16>
    tpu.vector_store %arg13[%c192, %c0_59], %142 {strides = array<i32>} : memref<576x576xbf16, #tpu.memory_space<vmem>>, vector<64x288xbf16>,
    %c0_60 = arith.constant 0 : index
    %c19_61 = arith.constant 19 : index
    %144 = vector.load %arg12[%c0_60, %c19_61] : memref<64x652xbf16, #tpu.memory_space<vmem>>, vector<64x288xbf16>
    %c256 = arith.constant 256 : index
    %c0_62 = arith.constant 0 : index
    %145 = vector.load %arg13[%c256, %c0_62] : memref<576x576xbf16, #tpu.memory_space<vmem>>, vector<64x288xbf16>
    tpu.vector_store %arg13[%c256, %c0_62], %144 {strides = array<i32>} : memref<576x576xbf16, #tpu.memory_space<vmem>>, vector<64x288xbf16>,
    %c0_63 = arith.constant 0 : index
    %c20 = arith.constant 20 : index
    %146 = vector.load %arg12[%c0_63, %c20] : memref<64x652xbf16, #tpu.memory_space<vmem>>, vector<64x288xbf16>
    %c320 = arith.constant 320 : index
    %c0_64 = arith.constant 0 : index
    %147 = vector.load %arg13[%c320, %c0_64] : memref<576x576xbf16, #tpu.memory_space<vmem>>, vector<64x288xbf16>
    tpu.vector_store %arg13[%c320, %c0_64], %146 {strides = array<i32>} : memref<576x576xbf16, #tpu.memory_space<vmem>>, vector<64x288xbf16>,
    %c0_65 = arith.constant 0 : index
    %c36 = arith.constant 36 : index
    %148 = vector.load %arg12[%c0_65, %c36] : memref<64x652xbf16, #tpu.memory_space<vmem>>, vector<64x288xbf16>
    %c384 = arith.constant 384 : index
    %c0_66 = arith.constant 0 : index
    %149 = vector.load %arg13[%c384, %c0_66] : memref<576x576xbf16, #tpu.memory_space<vmem>>, vector<64x288xbf16>
    tpu.vector_store %arg13[%c384, %c0_66], %148 {strides = array<i32>} : memref<576x576xbf16, #tpu.memory_space<vmem>>, vector<64x288xbf16>,
    %c0_67 = arith.constant 0 : index
    %c37 = arith.constant 37 : index
    %150 = vector.load %arg12[%c0_67, %c37] : memref<64x652xbf16, #tpu.memory_space<vmem>>, vector<64x288xbf16>
    %c448 = arith.constant 448 : index
    %c0_68 = arith.constant 0 : index
    %151 = vector.load %arg13[%c448, %c0_68] : memref<576x576xbf16, #tpu.memory_space<vmem>>, vector<64x288xbf16>
    tpu.vector_store %arg13[%c448, %c0_68], %150 {strides = array<i32>} : memref<576x576xbf16, #tpu.memory_space<vmem>>, vector<64x288xbf16>,
    %c0_69 = arith.constant 0 : index
    %c38 = arith.constant 38 : index
    %152 = vector.load %arg12[%c0_69, %c38] : memref<64x652xbf16, #tpu.memory_space<vmem>>, vector<64x288xbf16>
    %c512 = arith.constant 512 : index
    %c0_70 = arith.constant 0 : index
    %153 = vector.load %arg13[%c512, %c0_70] : memref<576x576xbf16, #tpu.memory_space<vmem>>, vector<64x288xbf16>
    tpu.vector_store %arg13[%c512, %c0_70], %152 {strides = array<i32>} : memref<576x576xbf16, #tpu.memory_space<vmem>>, vector<64x288xbf16>,
    %c0_71 = arith.constant 0 : index
    %c326_72 = arith.constant 326 : index
    %154 = vector.load %arg12[%c0_71, %c326_72] : memref<64x652xbf16, #tpu.memory_space<vmem>>, vector<64x288xbf16>
    %c0_73 = arith.constant 0 : index
    %c288 = arith.constant 288 : index
    %155 = vector.load %arg13[%c0_73, %c288] : memref<576x576xbf16, #tpu.memory_space<vmem>>, vector<64x288xbf16>
    tpu.vector_store %arg13[%c0_73, %c288], %154 {strides = array<i32>} : memref<576x576xbf16, #tpu.memory_space<vmem>>, vector<64x288xbf16>,
    %c0_74 = arith.constant 0 : index
    %c327 = arith.constant 327 : index
    %156 = vector.load %arg12[%c0_74, %c327] : memref<64x652xbf16, #tpu.memory_space<vmem>>, vector<64x288xbf16>
    %c64_75 = arith.constant 64 : index
    %c288_76 = arith.constant 288 : index
    %157 = vector.load %arg13[%c64_75, %c288_76] : memref<576x576xbf16, #tpu.memory_space<vmem>>, vector<64x288xbf16>
    tpu.vector_store %arg13[%c64_75, %c288_76], %156 {strides = array<i32>} : memref<576x576xbf16, #tpu.memory_space<vmem>>, vector<64x288xbf16>,
    %c0_77 = arith.constant 0 : index
    %c328 = arith.constant 328 : index
    %158 = vector.load %arg12[%c0_77, %c328] : memref<64x652xbf16, #tpu.memory_space<vmem>>, vector<64x288xbf16>
    %c128_78 = arith.constant 128 : index
    %c288_79 = arith.constant 288 : index
    %159 = vector.load %arg13[%c128_78, %c288_79] : memref<576x576xbf16, #tpu.memory_space<vmem>>, vector<64x288xbf16>
    tpu.vector_store %arg13[%c128_78, %c288_79], %158 {strides = array<i32>} : memref<576x576xbf16, #tpu.memory_space<vmem>>, vector<64x288xbf16>,
    %c0_80 = arith.constant 0 : index
    %c344 = arith.constant 344 : index
    %160 = vector.load %arg12[%c0_80, %c344] : memref<64x652xbf16, #tpu.memory_space<vmem>>, vector<64x288xbf16>
    %c192_81 = arith.constant 192 : index
    %c288_82 = arith.constant 288 : index
    %161 = vector.load %arg13[%c192_81, %c288_82] : memref<576x576xbf16, #tpu.memory_space<vmem>>, vector<64x288xbf16>
    tpu.vector_store %arg13[%c192_81, %c288_82], %160 {strides = array<i32>} : memref<576x576xbf16, #tpu.memory_space<vmem>>, vector<64x288xbf16>,
    %c0_83 = arith.constant 0 : index
    %c345_84 = arith.constant 345 : index
    %162 = vector.load %arg12[%c0_83, %c345_84] : memref<64x652xbf16, #tpu.memory_space<vmem>>, vector<64x288xbf16>
    %c256_85 = arith.constant 256 : index
    %c288_86 = arith.constant 288 : index
    %163 = vector.load %arg13[%c256_85, %c288_86] : memref<576x576xbf16, #tpu.memory_space<vmem>>, vector<64x288xbf16>
    tpu.vector_store %arg13[%c256_85, %c288_86], %162 {strides = array<i32>} : memref<576x576xbf16, #tpu.memory_space<vmem>>, vector<64x288xbf16>,
    %c0_87 = arith.constant 0 : index
    %c346 = arith.constant 346 : index
    %164 = vector.load %arg12[%c0_87, %c346] : memref<64x652xbf16, #tpu.memory_space<vmem>>, vector<64x288xbf16>
    %c320_88 = arith.constant 320 : index
    %c288_89 = arith.constant 288 : index
    %165 = vector.load %arg13[%c320_88, %c288_89] : memref<576x576xbf16, #tpu.memory_space<vmem>>, vector<64x288xbf16>
    tpu.vector_store %arg13[%c320_88, %c288_89], %164 {strides = array<i32>} : memref<576x576xbf16, #tpu.memory_space<vmem>>, vector<64x288xbf16>,
    %c0_90 = arith.constant 0 : index
    %c362 = arith.constant 362 : index
    %166 = vector.load %arg12[%c0_90, %c362] : memref<64x652xbf16, #tpu.memory_space<vmem>>, vector<64x288xbf16>
    %c384_91 = arith.constant 384 : index
    %c288_92 = arith.constant 288 : index
    %167 = vector.load %arg13[%c384_91, %c288_92] : memref<576x576xbf16, #tpu.memory_space<vmem>>, vector<64x288xbf16>
    tpu.vector_store %arg13[%c384_91, %c288_92], %166 {strides = array<i32>} : memref<576x576xbf16, #tpu.memory_space<vmem>>, vector<64x288xbf16>,
    %c0_93 = arith.constant 0 : index
    %c363 = arith.constant 363 : index
    %168 = vector.load %arg12[%c0_93, %c363] : memref<64x652xbf16, #tpu.memory_space<vmem>>, vector<64x288xbf16>
    %c448_94 = arith.constant 448 : index
    %c288_95 = arith.constant 288 : index
    %169 = vector.load %arg13[%c448_94, %c288_95] : memref<576x576xbf16, #tpu.memory_space<vmem>>, vector<64x288xbf16>
    tpu.vector_store %arg13[%c448_94, %c288_95], %168 {strides = array<i32>} : memref<576x576xbf16, #tpu.memory_space<vmem>>, vector<64x288xbf16>,
    %c0_96 = arith.constant 0 : index
    %c364 = arith.constant 364 : index
    %170 = vector.load %arg12[%c0_96, %c364] : memref<64x652xbf16, #tpu.memory_space<vmem>>, vector<64x288xbf16>
    %c512_97 = arith.constant 512 : index
    %c288_98 = arith.constant 288 : index
    %171 = vector.load %arg13[%c512_97, %c288_98] : memref<576x576xbf16, #tpu.memory_space<vmem>>, vector<64x288xbf16>
    tpu.vector_store %arg13[%c512_97, %c288_98], %170 {strides = array<i32>} : memref<576x576xbf16, #tpu.memory_space<vmem>>, vector<64x288xbf16>,
    %c0_99 = arith.constant 0 : index
    %c0_100 = arith.constant 0 : index
    %172 = vector.load %arg5[%c0_99, %c0_100] : memref<64x576xbf16, #tpu.memory_space<vmem>>, vector<64x576xbf16>
    %c0_101 = arith.constant 0 : index
    %c0_102 = arith.constant 0 : index
    %173 = vector.load %arg13[%c0_101, %c0_102] : memref<576x576xbf16, #tpu.memory_space<vmem>>, vector<576x576xbf16>
    %cst_103 = arith.constant dense<0.000000e+00> : vector<64x576xf32>
    %174 = tpu.matmul %172, %173, %cst_103 {dimension_numbers = #tpu.dot_dimension_numbers<[1], [0], [0], [1], [0, 0, 1, 1], [], []>} : vector<64x576xbf16>, vector<576x576xbf16>, vector<64x576xf32> -> vector<64x576xf32>
    %c0_104 = arith.constant 0 : index
    %c0_105 = arith.constant 0 : index
    %175 = vector.load %arg6[%c0_104, %c0_105] : memref<64x1xf32, #tpu.memory_space<vmem>>, vector<64x1xf32>
    %176 = vector.broadcast %175 : vector<64x1xf32> to vector<64x576xf32>
    %177 = arith.addf %174, %176 : vector<64x576xf32>
    %cst_106 = arith.constant 0.000000e+00 : f32
    %178 = vector.broadcast %cst_106 : f32 to vector<64x576xf32>
    %179 = arith.maximumf %177, %178 : vector<64x576xf32>
    %180 = vector.broadcast %5 : vector<1x576xf32> to vector<64x576xf32>
    %181 = arith.mulf %179, %180 : vector<64x576xf32>
    %182 = arith.truncf %181 : vector<64x576xf32> to vector<64x576xbf16>
    %183 = vector.extract_strided_slice %182 {offsets = [0, 0], sizes = [64, 288], strides = [1, 1]} : vector<64x576xbf16> to vector<64x288xbf16>
    %c0_107 = arith.constant 0 : index
    %c19_108 = arith.constant 19 : index
    %184 = vector.load %arg12[%c0_107, %c19_108] : memref<64x652xbf16, #tpu.memory_space<vmem>>, vector<64x288xbf16>
    tpu.vector_store %arg12[%c0_107, %c19_108], %183 {strides = array<i32>} : memref<64x652xbf16, #tpu.memory_space<vmem>>, vector<64x288xbf16>,
    %185 = vector.extract_strided_slice %182 {offsets = [0, 288], sizes = [64, 288], strides = [1, 1]} : vector<64x576xbf16> to vector<64x288xbf16>
    %c0_109 = arith.constant 0 : index
    %c345_110 = arith.constant 345 : index
    %186 = vector.load %arg12[%c0_109, %c345_110] : memref<64x652xbf16, #tpu.memory_space<vmem>>, vector<64x288xbf16>
    tpu.vector_store %arg12[%c0_109, %c345_110], %185 {strides = array<i32>} : memref<64x652xbf16, #tpu.memory_space<vmem>>, vector<64x288xbf16>,
    %c0_111 = arith.constant 0 : index
    %c0_112 = arith.constant 0 : index
    %187 = vector.load %arg12[%c0_111, %c0_112] : memref<64x652xbf16, #tpu.memory_space<vmem>>, vector<64x288xbf16>
    %c0_113 = arith.constant 0 : index
    %c0_114 = arith.constant 0 : index
    %188 = vector.load %arg13[%c0_113, %c0_114] : memref<576x576xbf16, #tpu.memory_space<vmem>>, vector<64x288xbf16>
    tpu.vector_store %arg13[%c0_113, %c0_114], %187 {strides = array<i32>} : memref<576x576xbf16, #tpu.memory_space<vmem>>, vector<64x288xbf16>,
    %c0_115 = arith.constant 0 : index
    %c1_116 = arith.constant 1 : index
    %189 = vector.load %arg12[%c0_115, %c1_116] : memref<64x652xbf16, #tpu.memory_space<vmem>>, vector<64x288xbf16>
    %c64_117 = arith.constant 64 : index
    %c0_118 = arith.constant 0 : index
    %190 = vector.load %arg13[%c64_117, %c0_118] : memref<576x576xbf16, #tpu.memory_space<vmem>>, vector<64x288xbf16>
    tpu.vector_store %arg13[%c64_117, %c0_118], %189 {strides = array<i32>} : memref<576x576xbf16, #tpu.memory_space<vmem>>, vector<64x288xbf16>,
    %c0_119 = arith.constant 0 : index
    %c2_120 = arith.constant 2 : index
    %191 = vector.load %arg12[%c0_119, %c2_120] : memref<64x652xbf16, #tpu.memory_space<vmem>>, vector<64x288xbf16>
    %c128_121 = arith.constant 128 : index
    %c0_122 = arith.constant 0 : index
    %192 = vector.load %arg13[%c128_121, %c0_122] : memref<576x576xbf16, #tpu.memory_space<vmem>>, vector<64x288xbf16>
    tpu.vector_store %arg13[%c128_121, %c0_122], %191 {strides = array<i32>} : memref<576x576xbf16, #tpu.memory_space<vmem>>, vector<64x288xbf16>,
    %c0_123 = arith.constant 0 : index
    %c18_124 = arith.constant 18 : index
    %193 = vector.load %arg12[%c0_123, %c18_124] : memref<64x652xbf16, #tpu.memory_space<vmem>>, vector<64x288xbf16>
    %c192_125 = arith.constant 192 : index
    %c0_126 = arith.constant 0 : index
    %194 = vector.load %arg13[%c192_125, %c0_126] : memref<576x576xbf16, #tpu.memory_space<vmem>>, vector<64x288xbf16>
    tpu.vector_store %arg13[%c192_125, %c0_126], %193 {strides = array<i32>} : memref<576x576xbf16, #tpu.memory_space<vmem>>, vector<64x288xbf16>,
    %c0_127 = arith.constant 0 : index
    %c19_128 = arith.constant 19 : index
    %195 = vector.load %arg12[%c0_127, %c19_128] : memref<64x652xbf16, #tpu.memory_space<vmem>>, vector<64x288xbf16>
    %c256_129 = arith.constant 256 : index
    %c0_130 = arith.constant 0 : index
    %196 = vector.load %arg13[%c256_129, %c0_130] : memref<576x576xbf16, #tpu.memory_space<vmem>>, vector<64x288xbf16>
    tpu.vector_store %arg13[%c256_129, %c0_130], %195 {strides = array<i32>} : memref<576x576xbf16, #tpu.memory_space<vmem>>, vector<64x288xbf16>,
    %c0_131 = arith.constant 0 : index
    %c20_132 = arith.constant 20 : index
    %197 = vector.load %arg12[%c0_131, %c20_132] : memref<64x652xbf16, #tpu.memory_space<vmem>>, vector<64x288xbf16>
    %c320_133 = arith.constant 320 : index
    %c0_134 = arith.constant 0 : index
    %198 = vector.load %arg13[%c320_133, %c0_134] : memref<576x576xbf16, #tpu.memory_space<vmem>>, vector<64x288xbf16>
    tpu.vector_store %arg13[%c320_133, %c0_134], %197 {strides = array<i32>} : memref<576x576xbf16, #tpu.memory_space<vmem>>, vector<64x288xbf16>,
    %c0_135 = arith.constant 0 : index
    %c36_136 = arith.constant 36 : index
    %199 = vector.load %arg12[%c0_135, %c36_136] : memref<64x652xbf16, #tpu.memory_space<vmem>>, vector<64x288xbf16>
    %c384_137 = arith.constant 384 : index
    %c0_138 = arith.constant 0 : index
    %200 = vector.load %arg13[%c384_137, %c0_138] : memref<576x576xbf16, #tpu.memory_space<vmem>>, vector<64x288xbf16>
    tpu.vector_store %arg13[%c384_137, %c0_138], %199 {strides = array<i32>} : memref<576x576xbf16, #tpu.memory_space<vmem>>, vector<64x288xbf16>,
    %c0_139 = arith.constant 0 : index
    %c37_140 = arith.constant 37 : index
    %201 = vector.load %arg12[%c0_139, %c37_140] : memref<64x652xbf16, #tpu.memory_space<vmem>>, vector<64x288xbf16>
    %c448_141 = arith.constant 448 : index
    %c0_142 = arith.constant 0 : index
    %202 = vector.load %arg13[%c448_141, %c0_142] : memref<576x576xbf16, #tpu.memory_space<vmem>>, vector<64x288xbf16>
    tpu.vector_store %arg13[%c448_141, %c0_142], %201 {strides = array<i32>} : memref<576x576xbf16, #tpu.memory_space<vmem>>, vector<64x288xbf16>,
    %c0_143 = arith.constant 0 : index
    %c38_144 = arith.constant 38 : index
    %203 = vector.load %arg12[%c0_143, %c38_144] : memref<64x652xbf16, #tpu.memory_space<vmem>>, vector<64x288xbf16>
    %c512_145 = arith.constant 512 : index
    %c0_146 = arith.constant 0 : index
    %204 = vector.load %arg13[%c512_145, %c0_146] : memref<576x576xbf16, #tpu.memory_space<vmem>>, vector<64x288xbf16>
    tpu.vector_store %arg13[%c512_145, %c0_146], %203 {strides = array<i32>} : memref<576x576xbf16, #tpu.memory_space<vmem>>, vector<64x288xbf16>,
    %c0_147 = arith.constant 0 : index
    %c326_148 = arith.constant 326 : index
    %205 = vector.load %arg12[%c0_147, %c326_148] : memref<64x652xbf16, #tpu.memory_space<vmem>>, vector<64x288xbf16>
    %c0_149 = arith.constant 0 : index
    %c288_150 = arith.constant 288 : index
    %206 = vector.load %arg13[%c0_149, %c288_150] : memref<576x576xbf16, #tpu.memory_space<vmem>>, vector<64x288xbf16>
    tpu.vector_store %arg13[%c0_149, %c288_150], %205 {strides = array<i32>} : memref<576x576xbf16, #tpu.memory_space<vmem>>, vector<64x288xbf16>,
    %c0_151 = arith.constant 0 : index
    %c327_152 = arith.constant 327 : index
    %207 = vector.load %arg12[%c0_151, %c327_152] : memref<64x652xbf16, #tpu.memory_space<vmem>>, vector<64x288xbf16>
    %c64_153 = arith.constant 64 : index
    %c288_154 = arith.constant 288 : index
    %208 = vector.load %arg13[%c64_153, %c288_154] : memref<576x576xbf16, #tpu.memory_space<vmem>>, vector<64x288xbf16>
    tpu.vector_store %arg13[%c64_153, %c288_154], %207 {strides = array<i32>} : memref<576x576xbf16, #tpu.memory_space<vmem>>, vector<64x288xbf16>,
    %c0_155 = arith.constant 0 : index
    %c328_156 = arith.constant 328 : index
    %209 = vector.load %arg12[%c0_155, %c328_156] : memref<64x652xbf16, #tpu.memory_space<vmem>>, vector<64x288xbf16>
    %c128_157 = arith.constant 128 : index
    %c288_158 = arith.constant 288 : index
    %210 = vector.load %arg13[%c128_157, %c288_158] : memref<576x576xbf16, #tpu.memory_space<vmem>>, vector<64x288xbf16>
    tpu.vector_store %arg13[%c128_157, %c288_158], %209 {strides = array<i32>} : memref<576x576xbf16, #tpu.memory_space<vmem>>, vector<64x288xbf16>,
    %c0_159 = arith.constant 0 : index
    %c344_160 = arith.constant 344 : index
    %211 = vector.load %arg12[%c0_159, %c344_160] : memref<64x652xbf16, #tpu.memory_space<vmem>>, vector<64x288xbf16>
    %c192_161 = arith.constant 192 : index
    %c288_162 = arith.constant 288 : index
    %212 = vector.load %arg13[%c192_161, %c288_162] : memref<576x576xbf16, #tpu.memory_space<vmem>>, vector<64x288xbf16>
    tpu.vector_store %arg13[%c192_161, %c288_162], %211 {strides = array<i32>} : memref<576x576xbf16, #tpu.memory_space<vmem>>, vector<64x288xbf16>,
    %c0_163 = arith.constant 0 : index
    %c345_164 = arith.constant 345 : index
    %213 = vector.load %arg12[%c0_163, %c345_164] : memref<64x652xbf16, #tpu.memory_space<vmem>>, vector<64x288xbf16>
    %c256_165 = arith.constant 256 : index
    %c288_166 = arith.constant 288 : index
    %214 = vector.load %arg13[%c256_165, %c288_166] : memref<576x576xbf16, #tpu.memory_space<vmem>>, vector<64x288xbf16>
    tpu.vector_store %arg13[%c256_165, %c288_166], %213 {strides = array<i32>} : memref<576x576xbf16, #tpu.memory_space<vmem>>, vector<64x288xbf16>,
    %c0_167 = arith.constant 0 : index
    %c346_168 = arith.constant 346 : index
    %215 = vector.load %arg12[%c0_167, %c346_168] : memref<64x652xbf16, #tpu.memory_space<vmem>>, vector<64x288xbf16>
    %c320_169 = arith.constant 320 : index
    %c288_170 = arith.constant 288 : index
    %216 = vector.load %arg13[%c320_169, %c288_170] : memref<576x576xbf16, #tpu.memory_space<vmem>>, vector<64x288xbf16>
    tpu.vector_store %arg13[%c320_169, %c288_170], %215 {strides = array<i32>} : memref<576x576xbf16, #tpu.memory_space<vmem>>, vector<64x288xbf16>,
    %c0_171 = arith.constant 0 : index
    %c362_172 = arith.constant 362 : index
    %217 = vector.load %arg12[%c0_171, %c362_172] : memref<64x652xbf16, #tpu.memory_space<vmem>>, vector<64x288xbf16>
    %c384_173 = arith.constant 384 : index
    %c288_174 = arith.constant 288 : index
    %218 = vector.load %arg13[%c384_173, %c288_174] : memref<576x576xbf16, #tpu.memory_space<vmem>>, vector<64x288xbf16>
    tpu.vector_store %arg13[%c384_173, %c288_174], %217 {strides = array<i32>} : memref<576x576xbf16, #tpu.memory_space<vmem>>, vector<64x288xbf16>,
    %c0_175 = arith.constant 0 : index
    %c363_176 = arith.constant 363 : index
    %219 = vector.load %arg12[%c0_175, %c363_176] : memref<64x652xbf16, #tpu.memory_space<vmem>>, vector<64x288xbf16>
    %c448_177 = arith.constant 448 : index
    %c288_178 = arith.constant 288 : index
    %220 = vector.load %arg13[%c448_177, %c288_178] : memref<576x576xbf16, #tpu.memory_space<vmem>>, vector<64x288xbf16>
    tpu.vector_store %arg13[%c448_177, %c288_178], %219 {strides = array<i32>} : memref<576x576xbf16, #tpu.memory_space<vmem>>, vector<64x288xbf16>,
    %c0_179 = arith.constant 0 : index
    %c364_180 = arith.constant 364 : index
    %221 = vector.load %arg12[%c0_179, %c364_180] : memref<64x652xbf16, #tpu.memory_space<vmem>>, vector<64x288xbf16>
    %c512_181 = arith.constant 512 : index
    %c288_182 = arith.constant 288 : index
    %222 = vector.load %arg13[%c512_181, %c288_182] : memref<576x576xbf16, #tpu.memory_space<vmem>>, vector<64x288xbf16>
    tpu.vector_store %arg13[%c512_181, %c288_182], %221 {strides = array<i32>} : memref<576x576xbf16, #tpu.memory_space<vmem>>, vector<64x288xbf16>,
    %c0_183 = arith.constant 0 : index
    %c0_184 = arith.constant 0 : index
    %223 = vector.load %arg7[%c0_183, %c0_184] : memref<64x576xbf16, #tpu.memory_space<vmem>>, vector<64x576xbf16>
    %c0_185 = arith.constant 0 : index
    %c0_186 = arith.constant 0 : index
    %224 = vector.load %arg13[%c0_185, %c0_186] : memref<576x576xbf16, #tpu.memory_space<vmem>>, vector<576x576xbf16>
    %cst_187 = arith.constant dense<0.000000e+00> : vector<64x576xf32>
    %225 = tpu.matmul %223, %224, %cst_187 {dimension_numbers = #tpu.dot_dimension_numbers<[1], [0], [0], [1], [0, 0, 1, 1], [], []>} : vector<64x576xbf16>, vector<576x576xbf16>, vector<64x576xf32> -> vector<64x576xf32>
    %c0_188 = arith.constant 0 : index
    %c0_189 = arith.constant 0 : index
    %226 = vector.load %arg8[%c0_188, %c0_189] : memref<64x1xf32, #tpu.memory_space<vmem>>, vector<64x1xf32>
    %227 = vector.broadcast %226 : vector<64x1xf32> to vector<64x576xf32>
    %228 = arith.addf %225, %227 : vector<64x576xf32>
    %cst_190 = arith.constant 0.000000e+00 : f32
    %229 = vector.broadcast %cst_190 : f32 to vector<64x576xf32>
    %230 = arith.maximumf %228, %229 : vector<64x576xf32>
    %231 = vector.broadcast %5 : vector<1x576xf32> to vector<64x576xf32>
    %232 = arith.mulf %230, %231 : vector<64x576xf32>
    %233 = arith.truncf %232 : vector<64x576xf32> to vector<64x576xbf16>
    %234 = vector.extract_strided_slice %233 {offsets = [0, 0], sizes = [64, 288], strides = [1, 1]} : vector<64x576xbf16> to vector<64x288xbf16>
    %c0_191 = arith.constant 0 : index
    %c19_192 = arith.constant 19 : index
    %235 = vector.load %arg12[%c0_191, %c19_192] : memref<64x652xbf16, #tpu.memory_space<vmem>>, vector<64x288xbf16>
    tpu.vector_store %arg12[%c0_191, %c19_192], %234 {strides = array<i32>} : memref<64x652xbf16, #tpu.memory_space<vmem>>, vector<64x288xbf16>,
    %236 = vector.extract_strided_slice %233 {offsets = [0, 288], sizes = [64, 288], strides = [1, 1]} : vector<64x576xbf16> to vector<64x288xbf16>
    %c0_193 = arith.constant 0 : index
    %c345_194 = arith.constant 345 : index
    %237 = vector.load %arg12[%c0_193, %c345_194] : memref<64x652xbf16, #tpu.memory_space<vmem>>, vector<64x288xbf16>
    tpu.vector_store %arg12[%c0_193, %c345_194], %236 {strides = array<i32>} : memref<64x652xbf16, #tpu.memory_space<vmem>>, vector<64x288xbf16>,
    %c0_195 = arith.constant 0 : index
    %c0_196 = arith.constant 0 : index
    %238 = vector.load %arg12[%c0_195, %c0_196] : memref<64x652xbf16, #tpu.memory_space<vmem>>, vector<64x288xbf16>
    %c0_197 = arith.constant 0 : index
    %c0_198 = arith.constant 0 : index
    %239 = vector.load %arg13[%c0_197, %c0_198] : memref<576x576xbf16, #tpu.memory_space<vmem>>, vector<64x288xbf16>
    tpu.vector_store %arg13[%c0_197, %c0_198], %238 {strides = array<i32>} : memref<576x576xbf16, #tpu.memory_space<vmem>>, vector<64x288xbf16>,
    %c0_199 = arith.constant 0 : index
    %c1_200 = arith.constant 1 : index
    %240 = vector.load %arg12[%c0_199, %c1_200] : memref<64x652xbf16, #tpu.memory_space<vmem>>, vector<64x288xbf16>
    %c64_201 = arith.constant 64 : index
    %c0_202 = arith.constant 0 : index
    %241 = vector.load %arg13[%c64_201, %c0_202] : memref<576x576xbf16, #tpu.memory_space<vmem>>, vector<64x288xbf16>
    tpu.vector_store %arg13[%c64_201, %c0_202], %240 {strides = array<i32>} : memref<576x576xbf16, #tpu.memory_space<vmem>>, vector<64x288xbf16>,
    %c0_203 = arith.constant 0 : index
    %c2_204 = arith.constant 2 : index
    %242 = vector.load %arg12[%c0_203, %c2_204] : memref<64x652xbf16, #tpu.memory_space<vmem>>, vector<64x288xbf16>
    %c128_205 = arith.constant 128 : index
    %c0_206 = arith.constant 0 : index
    %243 = vector.load %arg13[%c128_205, %c0_206] : memref<576x576xbf16, #tpu.memory_space<vmem>>, vector<64x288xbf16>
    tpu.vector_store %arg13[%c128_205, %c0_206], %242 {strides = array<i32>} : memref<576x576xbf16, #tpu.memory_space<vmem>>, vector<64x288xbf16>,
    %c0_207 = arith.constant 0 : index
    %c18_208 = arith.constant 18 : index
    %244 = vector.load %arg12[%c0_207, %c18_208] : memref<64x652xbf16, #tpu.memory_space<vmem>>, vector<64x288xbf16>
    %c192_209 = arith.constant 192 : index
    %c0_210 = arith.constant 0 : index
    %245 = vector.load %arg13[%c192_209, %c0_210] : memref<576x576xbf16, #tpu.memory_space<vmem>>, vector<64x288xbf16>
    tpu.vector_store %arg13[%c192_209, %c0_210], %244 {strides = array<i32>} : memref<576x576xbf16, #tpu.memory_space<vmem>>, vector<64x288xbf16>,
    %c0_211 = arith.constant 0 : index
    %c19_212 = arith.constant 19 : index
    %246 = vector.load %arg12[%c0_211, %c19_212] : memref<64x652xbf16, #tpu.memory_space<vmem>>, vector<64x288xbf16>
    %c256_213 = arith.constant 256 : index
    %c0_214 = arith.constant 0 : index
    %247 = vector.load %arg13[%c256_213, %c0_214] : memref<576x576xbf16, #tpu.memory_space<vmem>>, vector<64x288xbf16>
    tpu.vector_store %arg13[%c256_213, %c0_214], %246 {strides = array<i32>} : memref<576x576xbf16, #tpu.memory_space<vmem>>, vector<64x288xbf16>,
    %c0_215 = arith.constant 0 : index
    %c20_216 = arith.constant 20 : index
    %248 = vector.load %arg12[%c0_215, %c20_216] : memref<64x652xbf16, #tpu.memory_space<vmem>>, vector<64x288xbf16>
    %c320_217 = arith.constant 320 : index
    %c0_218 = arith.constant 0 : index
    %249 = vector.load %arg13[%c320_217, %c0_218] : memref<576x576xbf16, #tpu.memory_space<vmem>>, vector<64x288xbf16>
    tpu.vector_store %arg13[%c320_217, %c0_218], %248 {strides = array<i32>} : memref<576x576xbf16, #tpu.memory_space<vmem>>, vector<64x288xbf16>,
    %c0_219 = arith.constant 0 : index
    %c36_220 = arith.constant 36 : index
    %250 = vector.load %arg12[%c0_219, %c36_220] : memref<64x652xbf16, #tpu.memory_space<vmem>>, vector<64x288xbf16>
    %c384_221 = arith.constant 384 : index
    %c0_222 = arith.constant 0 : index
    %251 = vector.load %arg13[%c384_221, %c0_222] : memref<576x576xbf16, #tpu.memory_space<vmem>>, vector<64x288xbf16>
    tpu.vector_store %arg13[%c384_221, %c0_222], %250 {strides = array<i32>} : memref<576x576xbf16, #tpu.memory_space<vmem>>, vector<64x288xbf16>,
    %c0_223 = arith.constant 0 : index
    %c37_224 = arith.constant 37 : index
    %252 = vector.load %arg12[%c0_223, %c37_224] : memref<64x652xbf16, #tpu.memory_space<vmem>>, vector<64x288xbf16>
    %c448_225 = arith.constant 448 : index
    %c0_226 = arith.constant 0 : index
    %253 = vector.load %arg13[%c448_225, %c0_226] : memref<576x576xbf16, #tpu.memory_space<vmem>>, vector<64x288xbf16>
    tpu.vector_store %arg13[%c448_225, %c0_226], %252 {strides = array<i32>} : memref<576x576xbf16, #tpu.memory_space<vmem>>, vector<64x288xbf16>,
    %c0_227 = arith.constant 0 : index
    %c38_228 = arith.constant 38 : index
    %254 = vector.load %arg12[%c0_227, %c38_228] : memref<64x652xbf16, #tpu.memory_space<vmem>>, vector<64x288xbf16>
    %c512_229 = arith.constant 512 : index
    %c0_230 = arith.constant 0 : index
    %255 = vector.load %arg13[%c512_229, %c0_230] : memref<576x576xbf16, #tpu.memory_space<vmem>>, vector<64x288xbf16>
    tpu.vector_store %arg13[%c512_229, %c0_230], %254 {strides = array<i32>} : memref<576x576xbf16, #tpu.memory_space<vmem>>, vector<64x288xbf16>,
    %c0_231 = arith.constant 0 : index
    %c326_232 = arith.constant 326 : index
    %256 = vector.load %arg12[%c0_231, %c326_232] : memref<64x652xbf16, #tpu.memory_space<vmem>>, vector<64x288xbf16>
    %c0_233 = arith.constant 0 : index
    %c288_234 = arith.constant 288 : index
    %257 = vector.load %arg13[%c0_233, %c288_234] : memref<576x576xbf16, #tpu.memory_space<vmem>>, vector<64x288xbf16>
    tpu.vector_store %arg13[%c0_233, %c288_234], %256 {strides = array<i32>} : memref<576x576xbf16, #tpu.memory_space<vmem>>, vector<64x288xbf16>,
    %c0_235 = arith.constant 0 : index
    %c327_236 = arith.constant 327 : index
    %258 = vector.load %arg12[%c0_235, %c327_236] : memref<64x652xbf16, #tpu.memory_space<vmem>>, vector<64x288xbf16>
    %c64_237 = arith.constant 64 : index
    %c288_238 = arith.constant 288 : index
    %259 = vector.load %arg13[%c64_237, %c288_238] : memref<576x576xbf16, #tpu.memory_space<vmem>>, vector<64x288xbf16>
    tpu.vector_store %arg13[%c64_237, %c288_238], %258 {strides = array<i32>} : memref<576x576xbf16, #tpu.memory_space<vmem>>, vector<64x288xbf16>,
    %c0_239 = arith.constant 0 : index
    %c328_240 = arith.constant 328 : index
    %260 = vector.load %arg12[%c0_239, %c328_240] : memref<64x652xbf16, #tpu.memory_space<vmem>>, vector<64x288xbf16>
    %c128_241 = arith.constant 128 : index
    %c288_242 = arith.constant 288 : index
    %261 = vector.load %arg13[%c128_241, %c288_242] : memref<576x576xbf16, #tpu.memory_space<vmem>>, vector<64x288xbf16>
    tpu.vector_store %arg13[%c128_241, %c288_242], %260 {strides = array<i32>} : memref<576x576xbf16, #tpu.memory_space<vmem>>, vector<64x288xbf16>,
    %c0_243 = arith.constant 0 : index
    %c344_244 = arith.constant 344 : index
    %262 = vector.load %arg12[%c0_243, %c344_244] : memref<64x652xbf16, #tpu.memory_space<vmem>>, vector<64x288xbf16>
    %c192_245 = arith.constant 192 : index
    %c288_246 = arith.constant 288 : index
    %263 = vector.load %arg13[%c192_245, %c288_246] : memref<576x576xbf16, #tpu.memory_space<vmem>>, vector<64x288xbf16>
    tpu.vector_store %arg13[%c192_245, %c288_246], %262 {strides = array<i32>} : memref<576x576xbf16, #tpu.memory_space<vmem>>, vector<64x288xbf16>,
    %c0_247 = arith.constant 0 : index
    %c345_248 = arith.constant 345 : index
    %264 = vector.load %arg12[%c0_247, %c345_248] : memref<64x652xbf16, #tpu.memory_space<vmem>>, vector<64x288xbf16>
    %c256_249 = arith.constant 256 : index
    %c288_250 = arith.constant 288 : index
    %265 = vector.load %arg13[%c256_249, %c288_250] : memref<576x576xbf16, #tpu.memory_space<vmem>>, vector<64x288xbf16>
    tpu.vector_store %arg13[%c256_249, %c288_250], %264 {strides = array<i32>} : memref<576x576xbf16, #tpu.memory_space<vmem>>, vector<64x288xbf16>,
    %c0_251 = arith.constant 0 : index
    %c346_252 = arith.constant 346 : index
    %266 = vector.load %arg12[%c0_251, %c346_252] : memref<64x652xbf16, #tpu.memory_space<vmem>>, vector<64x288xbf16>
    %c320_253 = arith.constant 320 : index
    %c288_254 = arith.constant 288 : index
    %267 = vector.load %arg13[%c320_253, %c288_254] : memref<576x576xbf16, #tpu.memory_space<vmem>>, vector<64x288xbf16>
    tpu.vector_store %arg13[%c320_253, %c288_254], %266 {strides = array<i32>} : memref<576x576xbf16, #tpu.memory_space<vmem>>, vector<64x288xbf16>,
    %c0_255 = arith.constant 0 : index
    %c362_256 = arith.constant 362 : index
    %268 = vector.load %arg12[%c0_255, %c362_256] : memref<64x652xbf16, #tpu.memory_space<vmem>>, vector<64x288xbf16>
    %c384_257 = arith.constant 384 : index
    %c288_258 = arith.constant 288 : index
    %269 = vector.load %arg13[%c384_257, %c288_258] : memref<576x576xbf16, #tpu.memory_space<vmem>>, vector<64x288xbf16>
    tpu.vector_store %arg13[%c384_257, %c288_258], %268 {strides = array<i32>} : memref<576x576xbf16, #tpu.memory_space<vmem>>, vector<64x288xbf16>,
    %c0_259 = arith.constant 0 : index
    %c363_260 = arith.constant 363 : index
    %270 = vector.load %arg12[%c0_259, %c363_260] : memref<64x652xbf16, #tpu.memory_space<vmem>>, vector<64x288xbf16>
    %c448_261 = arith.constant 448 : index
    %c288_262 = arith.constant 288 : index
    %271 = vector.load %arg13[%c448_261, %c288_262] : memref<576x576xbf16, #tpu.memory_space<vmem>>, vector<64x288xbf16>
    tpu.vector_store %arg13[%c448_261, %c288_262], %270 {strides = array<i32>} : memref<576x576xbf16, #tpu.memory_space<vmem>>, vector<64x288xbf16>,
    %c0_263 = arith.constant 0 : index
    %c364_264 = arith.constant 364 : index
    %272 = vector.load %arg12[%c0_263, %c364_264] : memref<64x652xbf16, #tpu.memory_space<vmem>>, vector<64x288xbf16>
    %c512_265 = arith.constant 512 : index
    %c288_266 = arith.constant 288 : index
    %273 = vector.load %arg13[%c512_265, %c288_266] : memref<576x576xbf16, #tpu.memory_space<vmem>>, vector<64x288xbf16>
    tpu.vector_store %arg13[%c512_265, %c288_266], %272 {strides = array<i32>} : memref<576x576xbf16, #tpu.memory_space<vmem>>, vector<64x288xbf16>,
    %c0_267 = arith.constant 0 : index
    %c0_268 = arith.constant 0 : index
    %274 = vector.load %arg9[%c0_267, %c0_268] : memref<8x576xbf16, #tpu.memory_space<vmem>>, vector<8x576xbf16>
    %c0_269 = arith.constant 0 : index
    %c0_270 = arith.constant 0 : index
    %275 = vector.load %arg13[%c0_269, %c0_270] : memref<576x576xbf16, #tpu.memory_space<vmem>>, vector<576x576xbf16>
    %cst_271 = arith.constant dense<0.000000e+00> : vector<8x576xf32>
    %276 = tpu.matmul %274, %275, %cst_271 {dimension_numbers = #tpu.dot_dimension_numbers<[1], [0], [0], [1], [0, 0, 1, 1], [], []>} : vector<8x576xbf16>, vector<576x576xbf16>, vector<8x576xf32> -> vector<8x576xf32>
    %277 = vector.extract_strided_slice %276 {offsets = [0, 0], sizes = [1, 576], strides = [1, 1]} : vector<8x576xf32> to vector<1x576xf32>
    %c0_272 = arith.constant 0 : index
    %c0_273 = arith.constant 0 : index
    %278 = vector.load %arg10[%c0_272, %c0_273] : memref<1x1xf32, #tpu.memory_space<vmem>>, vector<1x1xf32>
    %279 = vector.broadcast %278 : vector<1x1xf32> to vector<1x576xf32>
    %280 = arith.addf %277, %279 : vector<1x576xf32>
    %281 = vector.extract_strided_slice %280 {offsets = [0, 0], sizes = [1, 288], strides = [1, 1]} : vector<1x576xf32> to vector<1x288xf32>
    %282 = vector.extract_strided_slice %7 {offsets = [0, 19], sizes = [1, 288], strides = [1, 1]} : vector<1x326xf32> to vector<1x288xf32>
    %283 = arith.addf %281, %282 : vector<1x288xf32>
    %c0_274 = arith.constant 0 : index
    %c0_275 = arith.constant 0 : index
    %c0_276 = arith.constant 0 : index
    %284 = vector.load %arg11[%c0_274, %c0_275, %c0_276] : memref<2x1x288xf32, #tpu.memory_space<vmem>>, vector<1x1x288xf32>
    %285 = vector.shape_cast %284 : vector<1x1x288xf32> to vector<1x288xf32>
    %286 = vector.shape_cast %283 : vector<1x288xf32> to vector<1x1x288xf32>
    tpu.vector_store %arg11[%c0_274, %c0_275, %c0_276], %286 {strides = array<i32>} : memref<2x1x288xf32, #tpu.memory_space<vmem>>, vector<1x1x288xf32>,
    %287 = vector.extract_strided_slice %280 {offsets = [0, 288], sizes = [1, 288], strides = [1, 1]} : vector<1x576xf32> to vector<1x288xf32>
    %288 = vector.extract_strided_slice %9 {offsets = [0, 19], sizes = [1, 288], strides = [1, 1]} : vector<1x326xf32> to vector<1x288xf32>
    %289 = arith.addf %287, %288 : vector<1x288xf32>
    %c1_277 = arith.constant 1 : index
    %c0_278 = arith.constant 0 : index
    %c0_279 = arith.constant 0 : index
    %290 = vector.load %arg11[%c1_277, %c0_278, %c0_279] : memref<2x1x288xf32, #tpu.memory_space<vmem>>, vector<1x1x288xf32>
    %291 = vector.shape_cast %290 : vector<1x1x288xf32> to vector<1x288xf32>
    %292 = vector.shape_cast %289 : vector<1x288xf32> to vector<1x1x288xf32>
    tpu.vector_store %arg11[%c1_277, %c0_278, %c0_279], %292 {strides = array<i32>} : memref<2x1x288xf32, #tpu.memory_space<vmem>>, vector<1x1x288xf32>,
    return
  }
  func.func @transform_0(%arg0: i32) -> (i32, i32, i32) {
    %c0_i32 = arith.constant 0 : i32
    %c0_i32_0 = arith.constant 0 : i32
    %c0_i32_1 = arith.constant 0 : i32
    return %arg0, %c0_i32, %c0_i32_0 : i32, i32, i32
  }
  func.func @transform_1(%arg0: i32) -> (i32, i32) {
    %c0_i32 = arith.constant 0 : i32
    %c0_i32_0 = arith.constant 0 : i32
    %c0_i32_1 = arith.constant 0 : i32
    return %c0_i32, %c0_i32_0 : i32, i32
  }
  func.func @transform_2(%arg0: i32) -> (i32, i32) {
    %c0_i32 = arith.constant 0 : i32
    %c0_i32_0 = arith.constant 0 : i32
    %c0_i32_1 = arith.constant 0 : i32
    return %c0_i32, %c0_i32_0 : i32, i32
  }
  func.func @transform_3(%arg0: i32) -> (i32, i32) {
    %c0_i32 = arith.constant 0 : i32
    %c0_i32_0 = arith.constant 0 : i32
    %c0_i32_1 = arith.constant 0 : i32
    return %c0_i32, %c0_i32_0 : i32, i32
  }
  func.func @transform_4(%arg0: i32) -> (i32, i32) {
    %c0_i32 = arith.constant 0 : i32
    %c0_i32_0 = arith.constant 0 : i32
    %c0_i32_1 = arith.constant 0 : i32
    return %c0_i32, %c0_i32_0 : i32, i32
  }
  func.func @transform_5(%arg0: i32) -> (i32, i32) {
    %c0_i32 = arith.constant 0 : i32
    %c0_i32_0 = arith.constant 0 : i32
    %c0_i32_1 = arith.constant 0 : i32
    return %c0_i32, %c0_i32_0 : i32, i32
  }
  func.func @transform_6(%arg0: i32) -> (i32, i32) {
    %c0_i32 = arith.constant 0 : i32
    %c0_i32_0 = arith.constant 0 : i32
    %c0_i32_1 = arith.constant 0 : i32
    return %c0_i32, %c0_i32_0 : i32, i32
  }
  func.func @transform_7(%arg0: i32) -> (i32, i32) {
    %c0_i32 = arith.constant 0 : i32
    %c0_i32_0 = arith.constant 0 : i32
    %c0_i32_1 = arith.constant 0 : i32
    return %c0_i32, %c0_i32_0 : i32, i32
  }
  func.func @transform_8(%arg0: i32) -> (i32, i32) {
    %c0_i32 = arith.constant 0 : i32
    %c0_i32_0 = arith.constant 0 : i32
    %c0_i32_1 = arith.constant 0 : i32
    return %c0_i32, %c0_i32_0 : i32, i32
  }
  func.func @transform_9(%arg0: i32) -> (i32, i32) {
    %c0_i32 = arith.constant 0 : i32
    %c0_i32_0 = arith.constant 0 : i32
    %c0_i32_1 = arith.constant 0 : i32
    return %c0_i32, %c0_i32_0 : i32, i32
  }
  func.func @transform_10(%arg0: i32) -> (i32, i32, i32) {
    %c0_i32 = arith.constant 0 : i32
    %c0_i32_0 = arith.constant 0 : i32
    %c0_i32_1 = arith.constant 0 : i32
    return %arg0, %c0_i32, %c0_i32_0 : i32, i32, i32
  }
}

</mosaic_0001>

<llo_original>
// kernel: dcnn_forward.1
$region0: #{dcnn_forward.1}
  #allocation0 [shape = 'u32[]', space=smem, size = 0x4, offset = 0x4, fixed_abs, tag = 'smem constant byte address 0x4 - core index']
  #allocation1 [shape = 'u32[144,128]{1,0:T(1,128)}', space=vmem, size = 0x12000, scoped, tag = 'internal scratch']
  #allocation2 [shape = 'bf16[64,652]{1,0:T(16,128)(2,1)}', space=vmem, size = 0x18000, scoped, tag = 'scratch operand']
  #allocation3 [shape = 'bf16[576,576]{1,0:T(16,128)(2,1)}', space=vmem, size = 0xb4000, scoped, tag = 'scratch operand']
  #allocation4 [shape = 'f32[1,1]{1,0:T(1,128)S(1)}', space=vmem, size = 0x200, scoped, tag = 'scoped memory for dcnn_forward.1']
  %s0 = inlined_call_operand.vmem [shape: f32[2,1,326], index: 0, kind: input, shape index: {}]
  %s1 = inlined_call_operand.vmem [shape: f32[1,576], index: 1, kind: input, shape index: {}]
  %s2 = inlined_call_operand.vmem [shape: f32[64,9], index: 2, kind: input, shape index: {}]
  %s3 = inlined_call_operand.vmem [shape: f32[64,1], index: 3, kind: input, shape index: {}]
  %s4 = inlined_call_operand.vmem [shape: bf16[64,576], index: 4, kind: input, shape index: {}]
  %s5 = inlined_call_operand.vmem [shape: f32[64,1], index: 5, kind: input, shape index: {}]
  %s6 = inlined_call_operand.vmem [shape: bf16[64,576], index: 6, kind: input, shape index: {}]
  %s7 = inlined_call_operand.vmem [shape: f32[64,1], index: 7, kind: input, shape index: {}]
  %s8 = inlined_call_operand.vmem [shape: bf16[8,576], index: 8, kind: input, shape index: {}]
  %s9 = inlined_call_operand.<no memory space> [shape: f32[1,1], index: 9, kind: input, shape index: {}]
  %s10 = inlined_call_operand.vmem [shape: f32[2,1,288], index: 10, kind: output, shape index: {}]
  %s11 = sld [smem:[#allocation0]]
  $region50: #{dcnn_forward.1} parent=0
    _
  %s13 = ssub.s32 1, %s11
  %s14 = scalar_select 0, %s13, %s11
  %v15 = vstv %s9
  %16 = vst [vmem:[#allocation4] sm:$0x1] %v15
  // Predicated region
  $region2: #{dcnn_forward.1} parent=0 // pred_check
    _
  $region3: #{dcnn_forward.1} parent=0 // pred_check_branch
    %18 = sbr.rel (0) target = $region5
  $region4: #{dcnn_forward.1} parent=0 // pred_region
    _
  $region5: #{dcnn_forward.1} parent=0 // pred_fallthru
    _
  // Predicated region
  $region6: #{dcnn_forward.1} parent=0 // pred_check
    _
  $region7: #{dcnn_forward.1} parent=0 // pred_check_branch
    %20 = sbr.rel (0) target = $region9
  $region8: #{dcnn_forward.1} parent=0 // pred_region
    _
  $region9: #{dcnn_forward.1} parent=0 // pred_fallthru
    _
  // Predicated region
  $region10: #{dcnn_forward.1} parent=0 // pred_check
    _
  $region11: #{dcnn_forward.1} parent=0 // pred_check_branch
    %22 = sbr.rel (0) target = $region13
  $region12: #{dcnn_forward.1} parent=0 // pred_region
    _
  $region13: #{dcnn_forward.1} parent=0 // pred_fallthru
    _
  // Predicated region
  $region14: #{dcnn_forward.1} parent=0 // pred_check
    _
  $region15: #{dcnn_forward.1} parent=0 // pred_check_branch
    %24 = sbr.rel (0) target = $region17
  $region16: #{dcnn_forward.1} parent=0 // pred_region
    _
  $region17: #{dcnn_forward.1} parent=0 // pred_fallthru
    _
  // Predicated region
  $region18: #{dcnn_forward.1} parent=0 // pred_check
    _
  $region19: #{dcnn_forward.1} parent=0 // pred_check_branch
    %26 = sbr.rel (0) target = $region21
  $region20: #{dcnn_forward.1} parent=0 // pred_region
    _
  $region21: #{dcnn_forward.1} parent=0 // pred_fallthru
    _
  // Predicated region
  $region22: #{dcnn_forward.1} parent=0 // pred_check
    _
  $region23: #{dcnn_forward.1} parent=0 // pred_check_branch
    %28 = sbr.rel (0) target = $region25
  $region24: #{dcnn_forward.1} parent=0 // pred_region
    _
  $region25: #{dcnn_forward.1} parent=0 // pred_fallthru
    _
  // Predicated region
  $region26: #{dcnn_forward.1} parent=0 // pred_check
    _
  $region27: #{dcnn_forward.1} parent=0 // pred_check_branch
    %30 = sbr.rel (0) target = $region29
  $region28: #{dcnn_forward.1} parent=0 // pred_region
    _
  $region29: #{dcnn_forward.1} parent=0 // pred_fallthru
    _
  // Predicated region
  $region30: #{dcnn_forward.1} parent=0 // pred_check
    _
  $region31: #{dcnn_forward.1} parent=0 // pred_check_branch
    %32 = sbr.rel (0) target = $region33
  $region32: #{dcnn_forward.1} parent=0 // pred_region
    _
  $region33: #{dcnn_forward.1} parent=0 // pred_fallthru
    _
  // Predicated region
  $region34: #{dcnn_forward.1} parent=0 // pred_check
    _
  $region35: #{dcnn_forward.1} parent=0 // pred_check_branch
    %34 = sbr.rel (0) target = $region37
  $region36: #{dcnn_forward.1} parent=0 // pred_region
    _
  $region37: #{dcnn_forward.1} parent=0 // pred_fallthru
    _
  // Predicated region
  $region38: #{dcnn_forward.1} parent=0 // pred_check
    _
  $region39: #{dcnn_forward.1} parent=0 // pred_check_branch
    %36 = sbr.rel (0) target = $region41
  $region40: #{dcnn_forward.1} parent=0 // pred_region
    _
  $region41: #{dcnn_forward.1} parent=0 // pred_fallthru
    _
  %vm38 = vcmask 154624
  %39 = vst.msk [vmem:[#allocation2] sm:$0xff] %vm38, 0
  %40 = vst.msk [vmem:[#allocation2 + $0x30] sm:$0xff] %vm38, 0
  %41 = vst.msk [vmem:[#allocation2 + $0x60] sm:$0xff] %vm38, 0
  %42 = vst.msk [vmem:[#allocation2 + $0x90] sm:$0xff] %vm38, 0
  %vm43 = vcmask 572824
  %44 = vst.msk [vmem:[#allocation2 + $0x10] sm:$0xff] %vm43, 0
  %45 = vst.msk [vmem:[#allocation2 + $0x40] sm:$0xff] %vm43, 0
  %46 = vst.msk [vmem:[#allocation2 + $0x70] sm:$0xff] %vm43, 0
  %47 = vst.msk [vmem:[#allocation2 + $0xa0] sm:$0xff] %vm43, 0
  %vm48 = vcmask 728624
  %49 = vst.msk [vmem:[#allocation2 + $0x10] sm:$0xff] %vm48, 0
  %50 = vst.msk [vmem:[#allocation2 + $0x40] sm:$0xff] %vm48, 0
  %51 = vst.msk [vmem:[#allocation2 + $0x70] sm:$0xff] %vm48, 0
  %52 = vst.msk [vmem:[#allocation2 + $0xa0] sm:$0xff] %vm48, 0
  %vm53 = vcmask 1048520
  %54 = vst.msk [vmem:[#allocation2 + $0x20] sm:$0xff] %vm53, 0
  %vm55 = vcmask 97280
  %56 = vst.msk [vmem:[#allocation2 + $0x28] sm:$0xff] %vm55, 0
  %57 = vst.msk [vmem:[#allocation2 + $0x50] sm:$0xff] %vm53, 0
  %58 = vst.msk [vmem:[#allocation2 + $0x58] sm:$0xff] %vm55, 0
  %59 = vst.msk [vmem:[#allocation2 + $0x80] sm:$0xff] %vm53, 0
  %60 = vst.msk [vmem:[#allocation2 + $0x88] sm:$0xff] %vm55, 0
  %61 = vst.msk [vmem:[#allocation2 + $0xb0] sm:$0xff] %vm53, 0
  %62 = vst.msk [vmem:[#allocation2 + $0xb8] sm:$0xff] %vm55, 0
  %v63 = vld [vmem:[%s1] sm:$0x1f]
  %v64 = vld [vmem:[%s0] sm:$0x7]
  %s65 = scalar_lea.vmem %s0, 3
  %v66 = vld [vmem:[%s65] sm:$0x7]
  %v67 = vld [vmem:[%s2] sm:$0xff]
  %v68 = vld [vmem:[%s2 + $0x8] sm:$0xff]
  %v69 = vld [vmem:[%s2 + $0x10] sm:$0xff]
  %v70 = vld [vmem:[%s2 + $0x18] sm:$0xff]
  %v71 = vld [vmem:[%s2 + $0x20] sm:$0xff]
  %v72 = vld [vmem:[%s2 + $0x28] sm:$0xff]
  %v73 = vld [vmem:[%s2 + $0x30] sm:$0xff]
  %v74 = vld [vmem:[%s2 + $0x38] sm:$0xff]
  %76 = vset.pattern.permute.xlu0 0
  %77 = vperm.xlu0 %76, %v67
  %v78 = vpop.permute.xlu0 %77
  %81 = vset.pattern.permute.xlu0 0
  %82 = vperm.xlu0 %81, %v68
  %v83 = vpop.permute.xlu0 %82
  %86 = vset.pattern.permute.xlu0 0
  %87 = vperm.xlu0 %86, %v69
  %v88 = vpop.permute.xlu0 %87
  %91 = vset.pattern.permute.xlu0 0
  %92 = vperm.xlu0 %91, %v70
  %v93 = vpop.permute.xlu0 %92
  %96 = vset.pattern.permute.xlu0 0
  %97 = vperm.xlu0 %96, %v71
  %v98 = vpop.permute.xlu0 %97
  %101 = vset.pattern.permute.xlu0 0
  %102 = vperm.xlu0 %101, %v72
  %v103 = vpop.permute.xlu0 %102
  %106 = vset.pattern.permute.xlu0 0
  %107 = vperm.xlu0 %106, %v73
  %v108 = vpop.permute.xlu0 %107
  %111 = vset.pattern.permute.xlu0 0
  %112 = vperm.xlu0 %111, %v74
  %v113 = vpop.permute.xlu0 %112
  %v116 = vlaneseq
  %v117 = vshrl.u32 %v116, 7
  %v118 = vsub.s32 0, %v117
  %v119 = vrot.slane %v64, %v118
  %v120 = vlaneseq
  %v121 = vshrl.u32 %v120, 7
  %v122 = vsub.s32 1, %v121
  %v123 = vrot.slane %v64, %v122
  %v124 = vlaneseq
  %v125 = vshrl.u32 %v124, 7
  %v126 = vsub.s32 2, %v125
  %v127 = vrot.slane %v64, %v126
  %v131 = vmul.f32 %v78, %v119
  %v132 = vmul.f32 %v78, %v123
  %v133 = vmul.f32 %v78, %v127
  %v134 = vmul.f32 %v83, %v119
  %v135 = vmul.f32 %v83, %v123
  %v136 = vmul.f32 %v83, %v127
  %v137 = vmul.f32 %v88, %v119
  %v138 = vmul.f32 %v88, %v123
  %v139 = vmul.f32 %v88, %v127
  %v140 = vmul.f32 %v93, %v119
  %v141 = vmul.f32 %v93, %v123
  %v142 = vmul.f32 %v93, %v127
  %v143 = vmul.f32 %v98, %v119
  %v144 = vmul.f32 %v98, %v123
  %v145 = vmul.f32 %v98, %v127
  %v146 = vmul.f32 %v103, %v119
  %v147 = vmul.f32 %v103, %v123
  %v148 = vmul.f32 %v103, %v127
  %v149 = vmul.f32 %v108, %v119
  %v150 = vmul.f32 %v108, %v123
  %v151 = vmul.f32 %v108, %v127
  %v152 = vmul.f32 %v113, %v119
  %v153 = vmul.f32 %v113, %v123
  %v154 = vmul.f32 %v113, %v127
  %155 = vset.pattern.permute.xlu0 1
  %156 = vperm.xlu0 %155, %v67
  %v157 = vpop.permute.xlu0 %156
  %159 = vset.pattern.permute.xlu0 1
  %160 = vperm.xlu0 %159, %v68
  %v161 = vpop.permute.xlu0 %160
  %163 = vset.pattern.permute.xlu0 1
  %164 = vperm.xlu0 %163, %v69
  %v165 = vpop.permute.xlu0 %164
  %167 = vset.pattern.permute.xlu0 1
  %168 = vperm.xlu0 %167, %v70
  %v169 = vpop.permute.xlu0 %168
  %171 = vset.pattern.permute.xlu0 1
  %172 = vperm.xlu0 %171, %v71
  %v173 = vpop.permute.xlu0 %172
  %175 = vset.pattern.permute.xlu0 1
  %176 = vperm.xlu0 %175, %v72
  %v177 = vpop.permute.xlu0 %176
  %179 = vset.pattern.permute.xlu0 1
  %180 = vperm.xlu0 %179, %v73
  %v181 = vpop.permute.xlu0 %180
  %183 = vset.pattern.permute.xlu0 1
  %184 = vperm.xlu0 %183, %v74
  %v185 = vpop.permute.xlu0 %184
  %v187 = vmul.f32 %v157, %v119
  %v188 = vmul.f32 %v157, %v123
  %v189 = vmul.f32 %v157, %v127
  %v190 = vmul.f32 %v161, %v119
  %v191 = vmul.f32 %v161, %v123
  %v192 = vmul.f32 %v161, %v127
  %v193 = vmul.f32 %v165, %v119
  %v194 = vmul.f32 %v165, %v123
  %v195 = vmul.f32 %v165, %v127
  %v196 = vmul.f32 %v169, %v119
  %v197 = vmul.f32 %v169, %v123
  %v198 = vmul.f32 %v169, %v127
  %v199 = vmul.f32 %v173, %v119
  %v200 = vmul.f32 %v173, %v123
  %v201 = vmul.f32 %v173, %v127
  %v202 = vmul.f32 %v177, %v119
  %v203 = vmul.f32 %v177, %v123
  %v204 = vmul.f32 %v177, %v127
  %v205 = vmul.f32 %v181, %v119
  %v206 = vmul.f32 %v181, %v123
  %v207 = vmul.f32 %v181, %v127
  %v208 = vmul.f32 %v185, %v119
  %v209 = vmul.f32 %v185, %v123
  %v210 = vmul.f32 %v185, %v127
  %235 = vrot.lane.b32.xlu0 %v187, 127
  %v236 = vpop.permute.xlu0 %235
  %237 = vrot.lane.b32.xlu0 %v188, 127
  %v238 = vpop.permute.xlu0 %237
  %239 = vrot.lane.b32.xlu0 %v189, 127
  %v240 = vpop.permute.xlu0 %239
  %241 = vrot.lane.b32.xlu0 %v190, 127
  %v242 = vpop.permute.xlu0 %241
  %243 = vrot.lane.b32.xlu0 %v191, 127
  %v244 = vpop.permute.xlu0 %243
  %245 = vrot.lane.b32.xlu0 %v192, 127
  %v246 = vpop.permute.xlu0 %245
  %247 = vrot.lane.b32.xlu0 %v193, 127
  %v248 = vpop.permute.xlu0 %247
  %249 = vrot.lane.b32.xlu0 %v194, 127
  %v250 = vpop.permute.xlu0 %249
  %251 = vrot.lane.b32.xlu0 %v195, 127
  %v252 = vpop.permute.xlu0 %251
  %253 = vrot.lane.b32.xlu0 %v196, 127
  %v254 = vpop.permute.xlu0 %253
  %255 = vrot.lane.b32.xlu0 %v197, 127
  %v256 = vpop.permute.xlu0 %255
  %257 = vrot.lane.b32.xlu0 %v198, 127
  %v258 = vpop.permute.xlu0 %257
  %259 = vrot.lane.b32.xlu0 %v199, 127
  %v260 = vpop.permute.xlu0 %259
  %261 = vrot.lane.b32.xlu0 %v200, 127
  %v262 = vpop.permute.xlu0 %261
  %263 = vrot.lane.b32.xlu0 %v201, 127
  %v264 = vpop.permute.xlu0 %263
  %265 = vrot.lane.b32.xlu0 %v202, 127
  %v266 = vpop.permute.xlu0 %265
  %267 = vrot.lane.b32.xlu0 %v203, 127
  %v268 = vpop.permute.xlu0 %267
  %269 = vrot.lane.b32.xlu0 %v204, 127
  %v270 = vpop.permute.xlu0 %269
  %271 = vrot.lane.b32.xlu0 %v205, 127
  %v272 = vpop.permute.xlu0 %271
  %273 = vrot.lane.b32.xlu0 %v206, 127
  %v274 = vpop.permute.xlu0 %273
  %275 = vrot.lane.b32.xlu0 %v207, 127
  %v276 = vpop.permute.xlu0 %275
  %277 = vrot.lane.b32.xlu0 %v208, 127
  %v278 = vpop.permute.xlu0 %277
  %279 = vrot.lane.b32.xlu0 %v209, 127
  %v280 = vpop.permute.xlu0 %279
  %281 = vrot.lane.b32.xlu0 %v210, 127
  %v282 = vpop.permute.xlu0 %281
  %vm283 = vcmask 1039360
  %v284 = vsel %vm283, %v236, %v238
  %v285 = vsel %vm283, %v238, %v240
  %v286 = vsel %vm283, %v242, %v244
  %v287 = vsel %vm283, %v244, %v246
  %v288 = vsel %vm283, %v248, %v250
  %v289 = vsel %vm283, %v250, %v252
  %v290 = vsel %vm283, %v254, %v256
  %v291 = vsel %vm283, %v256, %v258
  %v292 = vsel %vm283, %v260, %v262
  %v293 = vsel %vm283, %v262, %v264
  %v294 = vsel %vm283, %v266, %v268
  %v295 = vsel %vm283, %v268, %v270
  %v296 = vsel %vm283, %v272, %v274
  %v297 = vsel %vm283, %v274, %v276
  %v298 = vsel %vm283, %v278, %v280
  %v299 = vsel %vm283, %v280, %v282
  %v324 = vadd.f32 %v131, %v284
  %v325 = vadd.f32 %v132, %v285
  %v326 = vadd.f32 %v133, %v240
  %v327 = vadd.f32 %v134, %v286
  %v328 = vadd.f32 %v135, %v287
  %v329 = vadd.f32 %v136, %v246
  %v330 = vadd.f32 %v137, %v288
  %v331 = vadd.f32 %v138, %v289
  %v332 = vadd.f32 %v139, %v252
  %v333 = vadd.f32 %v140, %v290
  %v334 = vadd.f32 %v141, %v291
  %v335 = vadd.f32 %v142, %v258
  %v336 = vadd.f32 %v143, %v292
  %v337 = vadd.f32 %v144, %v293
  %v338 = vadd.f32 %v145, %v264
  %v339 = vadd.f32 %v146, %v294
  %v340 = vadd.f32 %v147, %v295
  %v341 = vadd.f32 %v148, %v270
  %v342 = vadd.f32 %v149, %v296
  %v343 = vadd.f32 %v150, %v297
  %v344 = vadd.f32 %v151, %v276
  %v345 = vadd.f32 %v152, %v298
  %v346 = vadd.f32 %v153, %v299
  %v347 = vadd.f32 %v154, %v282
  %348 = vset.pattern.permute.xlu0 2
  %349 = vperm.xlu0 %348, %v67
  %v350 = vpop.permute.xlu0 %349
  %352 = vset.pattern.permute.xlu0 2
  %353 = vperm.xlu0 %352, %v68
  %v354 = vpop.permute.xlu0 %353
  %356 = vset.pattern.permute.xlu0 2
  %357 = vperm.xlu0 %356, %v69
  %v358 = vpop.permute.xlu0 %357
  %360 = vset.pattern.permute.xlu0 2
  %361 = vperm.xlu0 %360, %v70
  %v362 = vpop.permute.xlu0 %361
  %364 = vset.pattern.permute.xlu0 2
  %365 = vperm.xlu0 %364, %v71
  %v366 = vpop.permute.xlu0 %365
  %368 = vset.pattern.permute.xlu0 2
  %369 = vperm.xlu0 %368, %v72
  %v370 = vpop.permute.xlu0 %369
  %372 = vset.pattern.permute.xlu0 2
  %373 = vperm.xlu0 %372, %v73
  %v374 = vpop.permute.xlu0 %373
  %376 = vset.pattern.permute.xlu0 2
  %377 = vperm.xlu0 %376, %v74
  %v378 = vpop.permute.xlu0 %377
  %v380 = vmul.f32 %v350, %v119
  %v381 = vmul.f32 %v350, %v123
  %v382 = vmul.f32 %v350, %v127
  %v383 = vmul.f32 %v354, %v119
  %v384 = vmul.f32 %v354, %v123
  %v385 = vmul.f32 %v354, %v127
  %v386 = vmul.f32 %v358, %v119
  %v387 = vmul.f32 %v358, %v123
  %v388 = vmul.f32 %v358, %v127
  %v389 = vmul.f32 %v362, %v119
  %v390 = vmul.f32 %v362, %v123
  %v391 = vmul.f32 %v362, %v127
  %v392 = vmul.f32 %v366, %v119
  %v393 = vmul.f32 %v366, %v123
  %v394 = vmul.f32 %v366, %v127
  %v395 = vmul.f32 %v370, %v119
  %v396 = vmul.f32 %v370, %v123
  %v397 = vmul.f32 %v370, %v127
  %v398 = vmul.f32 %v374, %v119
  %v399 = vmul.f32 %v374, %v123
  %v400 = vmul.f32 %v374, %v127
  %v401 = vmul.f32 %v378, %v119
  %v402 = vmul.f32 %v378, %v123
  %v403 = vmul.f32 %v378, %v127
  %428 = vrot.lane.b32.xlu0 %v380, 126
  %v429 = vpop.permute.xlu0 %428
  %430 = vrot.lane.b32.xlu0 %v381, 126
  %v431 = vpop.permute.xlu0 %430
  %432 = vrot.lane.b32.xlu0 %v382, 126
  %v433 = vpop.permute.xlu0 %432
  %434 = vrot.lane.b32.xlu0 %v383, 126
  %v435 = vpop.permute.xlu0 %434
  %436 = vrot.lane.b32.xlu0 %v384, 126
  %v437 = vpop.permute.xlu0 %436
  %438 = vrot.lane.b32.xlu0 %v385, 126
  %v439 = vpop.permute.xlu0 %438
  %440 = vrot.lane.b32.xlu0 %v386, 126
  %v441 = vpop.permute.xlu0 %440
  %442 = vrot.lane.b32.xlu0 %v387, 126
  %v443 = vpop.permute.xlu0 %442
  %444 = vrot.lane.b32.xlu0 %v388, 126
  %v445 = vpop.permute.xlu0 %444
  %446 = vrot.lane.b32.xlu0 %v389, 126
  %v447 = vpop.permute.xlu0 %446
  %448 = vrot.lane.b32.xlu0 %v390, 126
  %v449 = vpop.permute.xlu0 %448
  %450 = vrot.lane.b32.xlu0 %v391, 126
  %v451 = vpop.permute.xlu0 %450
  %452 = vrot.lane.b32.xlu0 %v392, 126
  %v453 = vpop.permute.xlu0 %452
  %454 = vrot.lane.b32.xlu0 %v393, 126
  %v455 = vpop.permute.xlu0 %454
  %456 = vrot.lane.b32.xlu0 %v394, 126
  %v457 = vpop.permute.xlu0 %456
  %458 = vrot.lane.b32.xlu0 %v395, 126
  %v459 = vpop.permute.xlu0 %458
  %460 = vrot.lane.b32.xlu0 %v396, 126
  %v461 = vpop.permute.xlu0 %460
  %462 = vrot.lane.b32.xlu0 %v397, 126
  %v463 = vpop.permute.xlu0 %462
  %464 = vrot.lane.b32.xlu0 %v398, 126
  %v465 = vpop.permute.xlu0 %464
  %466 = vrot.lane.b32.xlu0 %v399, 126
  %v467 = vpop.permute.xlu0 %466
  %468 = vrot.lane.b32.xlu0 %v400, 126
  %v469 = vpop.permute.xlu0 %468
  %470 = vrot.lane.b32.xlu0 %v401, 126
  %v471 = vpop.permute.xlu0 %470
  %472 = vrot.lane.b32.xlu0 %v402, 126
  %v473 = vpop.permute.xlu0 %472
  %474 = vrot.lane.b32.xlu0 %v403, 126
  %v475 = vpop.permute.xlu0 %474
  %vm476 = vcmask 1031168
  %v477 = vsel %vm476, %v429, %v431
  %v478 = vsel %vm476, %v431, %v433
  %v479 = vsel %vm476, %v435, %v437
  %v480 = vsel %vm476, %v437, %v439
  %v481 = vsel %vm476, %v441, %v443
  %v482 = vsel %vm476, %v443, %v445
  %v483 = vsel %vm476, %v447, %v449
  %v484 = vsel %vm476, %v449, %v451
  %v485 = vsel %vm476, %v453, %v455
  %v486 = vsel %vm476, %v455, %v457
  %v487 = vsel %vm476, %v459, %v461
  %v488 = vsel %vm476, %v461, %v463
  %v489 = vsel %vm476, %v465, %v467
  %v490 = vsel %vm476, %v467, %v469
  %v491 = vsel %vm476, %v471, %v473
  %v492 = vsel %vm476, %v473, %v475
  %v517 = vadd.f32 %v324, %v477
  %v518 = vadd.f32 %v325, %v478
  %v519 = vadd.f32 %v326, %v433
  %v520 = vadd.f32 %v327, %v479
  %v521 = vadd.f32 %v328, %v480
  %v522 = vadd.f32 %v329, %v439
  %v523 = vadd.f32 %v330, %v481
  %v524 = vadd.f32 %v331, %v482
  %v525 = vadd.f32 %v332, %v445
  %v526 = vadd.f32 %v333, %v483
  %v527 = vadd.f32 %v334, %v484
  %v528 = vadd.f32 %v335, %v451
  %v529 = vadd.f32 %v336, %v485
  %v530 = vadd.f32 %v337, %v486
  %v531 = vadd.f32 %v338, %v457
  %v532 = vadd.f32 %v339, %v487
  %v533 = vadd.f32 %v340, %v488
  %v534 = vadd.f32 %v341, %v463
  %v535 = vadd.f32 %v342, %v489
  %v536 = vadd.f32 %v343, %v490
  %v537 = vadd.f32 %v344, %v469
  %v538 = vadd.f32 %v345, %v491
  %v539 = vadd.f32 %v346, %v492
  %v540 = vadd.f32 %v347, %v475
  %541 = vset.pattern.permute.xlu0 3
  %542 = vperm.xlu0 %541, %v67
  %v543 = vpop.permute.xlu0 %542
  %545 = vset.pattern.permute.xlu0 3
  %546 = vperm.xlu0 %545, %v68
  %v547 = vpop.permute.xlu0 %546
  %549 = vset.pattern.permute.xlu0 3
  %550 = vperm.xlu0 %549, %v69
  %v551 = vpop.permute.xlu0 %550
  %553 = vset.pattern.permute.xlu0 3
  %554 = vperm.xlu0 %553, %v70
  %v555 = vpop.permute.xlu0 %554
  %557 = vset.pattern.permute.xlu0 3
  %558 = vperm.xlu0 %557, %v71
  %v559 = vpop.permute.xlu0 %558
  %561 = vset.pattern.permute.xlu0 3
  %562 = vperm.xlu0 %561, %v72
  %v563 = vpop.permute.xlu0 %562
  %565 = vset.pattern.permute.xlu0 3
  %566 = vperm.xlu0 %565, %v73
  %v567 = vpop.permute.xlu0 %566
  %569 = vset.pattern.permute.xlu0 3
  %570 = vperm.xlu0 %569, %v74
  %v571 = vpop.permute.xlu0 %570
  %v573 = vmul.f32 %v543, %v119
  %v574 = vmul.f32 %v543, %v123
  %v575 = vmul.f32 %v543, %v127
  %v576 = vmul.f32 %v547, %v119
  %v577 = vmul.f32 %v547, %v123
  %v578 = vmul.f32 %v547, %v127
  %v579 = vmul.f32 %v551, %v119
  %v580 = vmul.f32 %v551, %v123
  %v581 = vmul.f32 %v551, %v127
  %v582 = vmul.f32 %v555, %v119
  %v583 = vmul.f32 %v555, %v123
  %v584 = vmul.f32 %v555, %v127
  %v585 = vmul.f32 %v559, %v119
  %v586 = vmul.f32 %v559, %v123
  %v587 = vmul.f32 %v559, %v127
  %v588 = vmul.f32 %v563, %v119
  %v589 = vmul.f32 %v563, %v123
  %v590 = vmul.f32 %v563, %v127
  %v591 = vmul.f32 %v567, %v119
  %v592 = vmul.f32 %v567, %v123
  %v593 = vmul.f32 %v567, %v127
  %v594 = vmul.f32 %v571, %v119
  %v595 = vmul.f32 %v571, %v123
  %v596 = vmul.f32 %v571, %v127
  %621 = vrot.lane.b32.xlu0 %v573, 110
  %v622 = vpop.permute.xlu0 %621
  %623 = vrot.lane.b32.xlu0 %v574, 110
  %v624 = vpop.permute.xlu0 %623
  %625 = vrot.lane.b32.xlu0 %v575, 110
  %v626 = vpop.permute.xlu0 %625
  %627 = vrot.lane.b32.xlu0 %v576, 110
  %v628 = vpop.permute.xlu0 %627
  %629 = vrot.lane.b32.xlu0 %v577, 110
  %v630 = vpop.permute.xlu0 %629
  %631 = vrot.lane.b32.xlu0 %v578, 110
  %v632 = vpop.permute.xlu0 %631
  %633 = vrot.lane.b32.xlu0 %v579, 110
  %v634 = vpop.permute.xlu0 %633
  %635 = vrot.lane.b32.xlu0 %v580, 110
  %v636 = vpop.permute.xlu0 %635
  %637 = vrot.lane.b32.xlu0 %v581, 110
  %v638 = vpop.permute.xlu0 %637
  %639 = vrot.lane.b32.xlu0 %v582, 110
  %v640 = vpop.permute.xlu0 %639
  %641 = vrot.lane.b32.xlu0 %v583, 110
  %v642 = vpop.permute.xlu0 %641
  %643 = vrot.lane.b32.xlu0 %v584, 110
  %v644 = vpop.permute.xlu0 %643
  %645 = vrot.lane.b32.xlu0 %v585, 110
  %v646 = vpop.permute.xlu0 %645
  %647 = vrot.lane.b32.xlu0 %v586, 110
  %v648 = vpop.permute.xlu0 %647
  %649 = vrot.lane.b32.xlu0 %v587, 110
  %v650 = vpop.permute.xlu0 %649
  %651 = vrot.lane.b32.xlu0 %v588, 110
  %v652 = vpop.permute.xlu0 %651
  %653 = vrot.lane.b32.xlu0 %v589, 110
  %v654 = vpop.permute.xlu0 %653
  %655 = vrot.lane.b32.xlu0 %v590, 110
  %v656 = vpop.permute.xlu0 %655
  %657 = vrot.lane.b32.xlu0 %v591, 110
  %v658 = vpop.permute.xlu0 %657
  %659 = vrot.lane.b32.xlu0 %v592, 110
  %v660 = vpop.permute.xlu0 %659
  %661 = vrot.lane.b32.xlu0 %v593, 110
  %v662 = vpop.permute.xlu0 %661
  %663 = vrot.lane.b32.xlu0 %v594, 110
  %v664 = vpop.permute.xlu0 %663
  %665 = vrot.lane.b32.xlu0 %v595, 110
  %v666 = vpop.permute.xlu0 %665
  %667 = vrot.lane.b32.xlu0 %v596, 110
  %v668 = vpop.permute.xlu0 %667
  %vm669 = vcmask 900096
  %v670 = vsel %vm669, %v622, %v624
  %v671 = vsel %vm669, %v624, %v626
  %v672 = vsel %vm669, %v628, %v630
  %v673 = vsel %vm669, %v630, %v632
  %v674 = vsel %vm669, %v634, %v636
  %v675 = vsel %vm669, %v636, %v638
  %v676 = vsel %vm669, %v640, %v642
  %v677 = vsel %vm669, %v642, %v644
  %v678 = vsel %vm669, %v646, %v648
  %v679 = vsel %vm669, %v648, %v650
  %v680 = vsel %vm669, %v652, %v654
  %v681 = vsel %vm669, %v654, %v656
  %v682 = vsel %vm669, %v658, %v660
  %v683 = vsel %vm669, %v660, %v662
  %v684 = vsel %vm669, %v664, %v666
  %v685 = vsel %vm669, %v666, %v668
  %v710 = vadd.f32 %v517, %v670
  %v711 = vadd.f32 %v518, %v671
  %v712 = vadd.f32 %v519, %v626
  %v713 = vadd.f32 %v520, %v672
  %v714 = vadd.f32 %v521, %v673
  %v715 = vadd.f32 %v522, %v632
  %v716 = vadd.f32 %v523, %v674
  %v717 = vadd.f32 %v524, %v675
  %v718 = vadd.f32 %v525, %v638
  %v719 = vadd.f32 %v526, %v676
  %v720 = vadd.f32 %v527, %v677
  %v721 = vadd.f32 %v528, %v644
  %v722 = vadd.f32 %v529, %v678
  %v723 = vadd.f32 %v530, %v679
  %v724 = vadd.f32 %v531, %v650
  %v725 = vadd.f32 %v532, %v680
  %v726 = vadd.f32 %v533, %v681
  %v727 = vadd.f32 %v534, %v656
  %v728 = vadd.f32 %v535, %v682
  %v729 = vadd.f32 %v536, %v683
  %v730 = vadd.f32 %v537, %v662
  %v731 = vadd.f32 %v538, %v684
  %v732 = vadd.f32 %v539, %v685
  %v733 = vadd.f32 %v540, %v668
  %734 = vset.pattern.permute.xlu0 4
  %735 = vperm.xlu0 %734, %v67
  %v736 = vpop.permute.xlu0 %735
  %738 = vset.pattern.permute.xlu0 4
  %739 = vperm.xlu0 %738, %v68
  %v740 = vpop.permute.xlu0 %739
  %742 = vset.pattern.permute.xlu0 4
  %743 = vperm.xlu0 %742, %v69
  %v744 = vpop.permute.xlu0 %743
  %746 = vset.pattern.permute.xlu0 4
  %747 = vperm.xlu0 %746, %v70
  %v748 = vpop.permute.xlu0 %747
  %750 = vset.pattern.permute.xlu0 4
  %751 = vperm.xlu0 %750, %v71
  %v752 = vpop.permute.xlu0 %751
  %754 = vset.pattern.permute.xlu0 4
  %755 = vperm.xlu0 %754, %v72
  %v756 = vpop.permute.xlu0 %755
  %758 = vset.pattern.permute.xlu0 4
  %759 = vperm.xlu0 %758, %v73
  %v760 = vpop.permute.xlu0 %759
  %762 = vset.pattern.permute.xlu0 4
  %763 = vperm.xlu0 %762, %v74
  %v764 = vpop.permute.xlu0 %763
  %v766 = vmul.f32 %v736, %v119
  %v767 = vmul.f32 %v736, %v123
  %v768 = vmul.f32 %v736, %v127
  %v769 = vmul.f32 %v740, %v119
  %v770 = vmul.f32 %v740, %v123
  %v771 = vmul.f32 %v740, %v127
  %v772 = vmul.f32 %v744, %v119
  %v773 = vmul.f32 %v744, %v123
  %v774 = vmul.f32 %v744, %v127
  %v775 = vmul.f32 %v748, %v119
  %v776 = vmul.f32 %v748, %v123
  %v777 = vmul.f32 %v748, %v127
  %v778 = vmul.f32 %v752, %v119
  %v779 = vmul.f32 %v752, %v123
  %v780 = vmul.f32 %v752, %v127
  %v781 = vmul.f32 %v756, %v119
  %v782 = vmul.f32 %v756, %v123
  %v783 = vmul.f32 %v756, %v127
  %v784 = vmul.f32 %v760, %v119
  %v785 = vmul.f32 %v760, %v123
  %v786 = vmul.f32 %v760, %v127
  %v787 = vmul.f32 %v764, %v119
  %v788 = vmul.f32 %v764, %v123
  %v789 = vmul.f32 %v764, %v127
  %814 = vrot.lane.b32.xlu0 %v766, 109
  %v815 = vpop.permute.xlu0 %814
  %816 = vrot.lane.b32.xlu0 %v767, 109
  %v817 = vpop.permute.xlu0 %816
  %818 = vrot.lane.b32.xlu0 %v768, 109
  %v819 = vpop.permute.xlu0 %818
  %820 = vrot.lane.b32.xlu0 %v769, 109
  %v821 = vpop.permute.xlu0 %820
  %822 = vrot.lane.b32.xlu0 %v770, 109
  %v823 = vpop.permute.xlu0 %822
  %824 = vrot.lane.b32.xlu0 %v771, 109
  %v825 = vpop.permute.xlu0 %824
  %826 = vrot.lane.b32.xlu0 %v772, 109
  %v827 = vpop.permute.xlu0 %826
  %828 = vrot.lane.b32.xlu0 %v773, 109
  %v829 = vpop.permute.xlu0 %828
  %830 = vrot.lane.b32.xlu0 %v774, 109
  %v831 = vpop.permute.xlu0 %830
  %832 = vrot.lane.b32.xlu0 %v775, 109
  %v833 = vpop.permute.xlu0 %832
  %834 = vrot.lane.b32.xlu0 %v776, 109
  %v835 = vpop.permute.xlu0 %834
  %836 = vrot.lane.b32.xlu0 %v777, 109
  %v837 = vpop.permute.xlu0 %836
  %838 = vrot.lane.b32.xlu0 %v778, 109
  %v839 = vpop.permute.xlu0 %838
  %840 = vrot.lane.b32.xlu0 %v779, 109
  %v841 = vpop.permute.xlu0 %840
  %842 = vrot.lane.b32.xlu0 %v780, 109
  %v843 = vpop.permute.xlu0 %842
  %844 = vrot.lane.b32.xlu0 %v781, 109
  %v845 = vpop.permute.xlu0 %844
  %846 = vrot.lane.b32.xlu0 %v782, 109
  %v847 = vpop.permute.xlu0 %846
  %848 = vrot.lane.b32.xlu0 %v783, 109
  %v849 = vpop.permute.xlu0 %848
  %850 = vrot.lane.b32.xlu0 %v784, 109
  %v851 = vpop.permute.xlu0 %850
  %852 = vrot.lane.b32.xlu0 %v785, 109
  %v853 = vpop.permute.xlu0 %852
  %854 = vrot.lane.b32.xlu0 %v786, 109
  %v855 = vpop.permute.xlu0 %854
  %856 = vrot.lane.b32.xlu0 %v787, 109
  %v857 = vpop.permute.xlu0 %856
  %858 = vrot.lane.b32.xlu0 %v788, 109
  %v859 = vpop.permute.xlu0 %858
  %860 = vrot.lane.b32.xlu0 %v789, 109
  %v861 = vpop.permute.xlu0 %860
  %vm862 = vcmask 891904
  %v863 = vsel %vm862, %v815, %v817
  %v864 = vsel %vm862, %v817, %v819
  %v865 = vsel %vm862, %v821, %v823
  %v866 = vsel %vm862, %v823, %v825
  %v867 = vsel %vm862, %v827, %v829
  %v868 = vsel %vm862, %v829, %v831
  %v869 = vsel %vm862, %v833, %v835
  %v870 = vsel %vm862, %v835, %v837
  %v871 = vsel %vm862, %v839, %v841
  %v872 = vsel %vm862, %v841, %v843
  %v873 = vsel %vm862, %v845, %v847
  %v874 = vsel %vm862, %v847, %v849
  %v875 = vsel %vm862, %v851, %v853
  %v876 = vsel %vm862, %v853, %v855
  %v877 = vsel %vm862, %v857, %v859
  %v878 = vsel %vm862, %v859, %v861
  %v903 = vadd.f32 %v710, %v863
  %v904 = vadd.f32 %v711, %v864
  %v905 = vadd.f32 %v712, %v819
  %v906 = vadd.f32 %v713, %v865
  %v907 = vadd.f32 %v714, %v866
  %v908 = vadd.f32 %v715, %v825
  %v909 = vadd.f32 %v716, %v867
  %v910 = vadd.f32 %v717, %v868
  %v911 = vadd.f32 %v718, %v831
  %v912 = vadd.f32 %v719, %v869
  %v913 = vadd.f32 %v720, %v870
  %v914 = vadd.f32 %v721, %v837
  %v915 = vadd.f32 %v722, %v871
  %v916 = vadd.f32 %v723, %v872
  %v917 = vadd.f32 %v724, %v843
  %v918 = vadd.f32 %v725, %v873
  %v919 = vadd.f32 %v726, %v874
  %v920 = vadd.f32 %v727, %v849
  %v921 = vadd.f32 %v728, %v875
  %v922 = vadd.f32 %v729, %v876
  %v923 = vadd.f32 %v730, %v855
  %v924 = vadd.f32 %v731, %v877
  %v925 = vadd.f32 %v732, %v878
  %v926 = vadd.f32 %v733, %v861
  %927 = vset.pattern.permute.xlu0 5
  %928 = vperm.xlu0 %927, %v67
  %v929 = vpop.permute.xlu0 %928
  %931 = vset.pattern.permute.xlu0 5
  %932 = vperm.xlu0 %931, %v68
  %v933 = vpop.permute.xlu0 %932
  %935 = vset.pattern.permute.xlu0 5
  %936 = vperm.xlu0 %935, %v69
  %v937 = vpop.permute.xlu0 %936
  %939 = vset.pattern.permute.xlu0 5
  %940 = vperm.xlu0 %939, %v70
  %v941 = vpop.permute.xlu0 %940
  %943 = vset.pattern.permute.xlu0 5
  %944 = vperm.xlu0 %943, %v71
  %v945 = vpop.permute.xlu0 %944
  %947 = vset.pattern.permute.xlu0 5
  %948 = vperm.xlu0 %947, %v72
  %v949 = vpop.permute.xlu0 %948
  %951 = vset.pattern.permute.xlu0 5
  %952 = vperm.xlu0 %951, %v73
  %v953 = vpop.permute.xlu0 %952
  %955 = vset.pattern.permute.xlu0 5
  %956 = vperm.xlu0 %955, %v74
  %v957 = vpop.permute.xlu0 %956
  %v959 = vmul.f32 %v929, %v119
  %v960 = vmul.f32 %v929, %v123
  %v961 = vmul.f32 %v929, %v127
  %v962 = vmul.f32 %v933, %v119
  %v963 = vmul.f32 %v933, %v123
  %v964 = vmul.f32 %v933, %v127
  %v965 = vmul.f32 %v937, %v119
  %v966 = vmul.f32 %v937, %v123
  %v967 = vmul.f32 %v937, %v127
  %v968 = vmul.f32 %v941, %v119
  %v969 = vmul.f32 %v941, %v123
  %v970 = vmul.f32 %v941, %v127
  %v971 = vmul.f32 %v945, %v119
  %v972 = vmul.f32 %v945, %v123
  %v973 = vmul.f32 %v945, %v127
  %v974 = vmul.f32 %v949, %v119
  %v975 = vmul.f32 %v949, %v123
  %v976 = vmul.f32 %v949, %v127
  %v977 = vmul.f32 %v953, %v119
  %v978 = vmul.f32 %v953, %v123
  %v979 = vmul.f32 %v953, %v127
  %v980 = vmul.f32 %v957, %v119
  %v981 = vmul.f32 %v957, %v123
  %v982 = vmul.f32 %v957, %v127
  %1007 = vrot.lane.b32.xlu0 %v959, 108
  %v1008 = vpop.permute.xlu0 %1007
  %1009 = vrot.lane.b32.xlu0 %v960, 108
  %v1010 = vpop.permute.xlu0 %1009
  %1011 = vrot.lane.b32.xlu0 %v961, 108
  %v1012 = vpop.permute.xlu0 %1011
  %1013 = vrot.lane.b32.xlu0 %v962, 108
  %v1014 = vpop.permute.xlu0 %1013
  %1015 = vrot.lane.b32.xlu0 %v963, 108
  %v1016 = vpop.permute.xlu0 %1015
  %1017 = vrot.lane.b32.xlu0 %v964, 108
  %v1018 = vpop.permute.xlu0 %1017
  %1019 = vrot.lane.b32.xlu0 %v965, 108
  %v1020 = vpop.permute.xlu0 %1019
  %1021 = vrot.lane.b32.xlu0 %v966, 108
  %v1022 = vpop.permute.xlu0 %1021
  %1023 = vrot.lane.b32.xlu0 %v967, 108
  %v1024 = vpop.permute.xlu0 %1023
  %1025 = vrot.lane.b32.xlu0 %v968, 108
  %v1026 = vpop.permute.xlu0 %1025
  %1027 = vrot.lane.b32.xlu0 %v969, 108
  %v1028 = vpop.permute.xlu0 %1027
  %1029 = vrot.lane.b32.xlu0 %v970, 108
  %v1030 = vpop.permute.xlu0 %1029
  %1031 = vrot.lane.b32.xlu0 %v971, 108
  %v1032 = vpop.permute.xlu0 %1031
  %1033 = vrot.lane.b32.xlu0 %v972, 108
  %v1034 = vpop.permute.xlu0 %1033
  %1035 = vrot.lane.b32.xlu0 %v973, 108
  %v1036 = vpop.permute.xlu0 %1035
  %1037 = vrot.lane.b32.xlu0 %v974, 108
  %v1038 = vpop.permute.xlu0 %1037
  %1039 = vrot.lane.b32.xlu0 %v975, 108
  %v1040 = vpop.permute.xlu0 %1039
  %1041 = vrot.lane.b32.xlu0 %v976, 108
  %v1042 = vpop.permute.xlu0 %1041
  %1043 = vrot.lane.b32.xlu0 %v977, 108
  %v1044 = vpop.permute.xlu0 %1043
  %1045 = vrot.lane.b32.xlu0 %v978, 108
  %v1046 = vpop.permute.xlu0 %1045
  %1047 = vrot.lane.b32.xlu0 %v979, 108
  %v1048 = vpop.permute.xlu0 %1047
  %1049 = vrot.lane.b32.xlu0 %v980, 108
  %v1050 = vpop.permute.xlu0 %1049
  %1051 = vrot.lane.b32.xlu0 %v981, 108
  %v1052 = vpop.permute.xlu0 %1051
  %1053 = vrot.lane.b32.xlu0 %v982, 108
  %v1054 = vpop.permute.xlu0 %1053
  %vm1055 = vcmask 883712
  %v1056 = vsel %vm1055, %v1008, %v1010
  %v1057 = vsel %vm1055, %v1010, %v1012
  %v1058 = vsel %vm1055, %v1014, %v1016
  %v1059 = vsel %vm1055, %v1016, %v1018
  %v1060 = vsel %vm1055, %v1020, %v1022
  %v1061 = vsel %vm1055, %v1022, %v1024
  %v1062 = vsel %vm1055, %v1026, %v1028
  %v1063 = vsel %vm1055, %v1028, %v1030
  %v1064 = vsel %vm1055, %v1032, %v1034
  %v1065 = vsel %vm1055, %v1034, %v1036
  %v1066 = vsel %vm1055, %v1038, %v1040
  %v1067 = vsel %vm1055, %v1040, %v1042
  %v1068 = vsel %vm1055, %v1044, %v1046
  %v1069 = vsel %vm1055, %v1046, %v1048
  %v1070 = vsel %vm1055, %v1050, %v1052
  %v1071 = vsel %vm1055, %v1052, %v1054
  %v1096 = vadd.f32 %v903, %v1056
  %v1097 = vadd.f32 %v904, %v1057
  %v1098 = vadd.f32 %v905, %v1012
  %v1099 = vadd.f32 %v906, %v1058
  %v1100 = vadd.f32 %v907, %v1059
  %v1101 = vadd.f32 %v908, %v1018
  %v1102 = vadd.f32 %v909, %v1060
  %v1103 = vadd.f32 %v910, %v1061
  %v1104 = vadd.f32 %v911, %v1024
  %v1105 = vadd.f32 %v912, %v1062
  %v1106 = vadd.f32 %v913, %v1063
  %v1107 = vadd.f32 %v914, %v1030
  %v1108 = vadd.f32 %v915, %v1064
  %v1109 = vadd.f32 %v916, %v1065
  %v1110 = vadd.f32 %v917, %v1036
  %v1111 = vadd.f32 %v918, %v1066
  %v1112 = vadd.f32 %v919, %v1067
  %v1113 = vadd.f32 %v920, %v1042
  %v1114 = vadd.f32 %v921, %v1068
  %v1115 = vadd.f32 %v922, %v1069
  %v1116 = vadd.f32 %v923, %v1048
  %v1117 = vadd.f32 %v924, %v1070
  %v1118 = vadd.f32 %v925, %v1071
  %v1119 = vadd.f32 %v926, %v1054
  %1120 = vset.pattern.permute.xlu0 6
  %1121 = vperm.xlu0 %1120, %v67
  %v1122 = vpop.permute.xlu0 %1121
  %1124 = vset.pattern.permute.xlu0 6
  %1125 = vperm.xlu0 %1124, %v68
  %v1126 = vpop.permute.xlu0 %1125
  %1128 = vset.pattern.permute.xlu0 6
  %1129 = vperm.xlu0 %1128, %v69
  %v1130 = vpop.permute.xlu0 %1129
  %1132 = vset.pattern.permute.xlu0 6
  %1133 = vperm.xlu0 %1132, %v70
  %v1134 = vpop.permute.xlu0 %1133
  %1136 = vset.pattern.permute.xlu0 6
  %1137 = vperm.xlu0 %1136, %v71
  %v1138 = vpop.permute.xlu0 %1137
  %1140 = vset.pattern.permute.xlu0 6
  %1141 = vperm.xlu0 %1140, %v72
  %v1142 = vpop.permute.xlu0 %1141
  %1144 = vset.pattern.permute.xlu0 6
  %1145 = vperm.xlu0 %1144, %v73
  %v1146 = vpop.permute.xlu0 %1145
  %1148 = vset.pattern.permute.xlu0 6
  %1149 = vperm.xlu0 %1148, %v74
  %v1150 = vpop.permute.xlu0 %1149
  %v1152 = vmul.f32 %v1122, %v119
  %v1153 = vmul.f32 %v1122, %v123
  %v1154 = vmul.f32 %v1122, %v127
  %v1155 = vmul.f32 %v1126, %v119
  %v1156 = vmul.f32 %v1126, %v123
  %v1157 = vmul.f32 %v1126, %v127
  %v1158 = vmul.f32 %v1130, %v119
  %v1159 = vmul.f32 %v1130, %v123
  %v1160 = vmul.f32 %v1130, %v127
  %v1161 = vmul.f32 %v1134, %v119
  %v1162 = vmul.f32 %v1134, %v123
  %v1163 = vmul.f32 %v1134, %v127
  %v1164 = vmul.f32 %v1138, %v119
  %v1165 = vmul.f32 %v1138, %v123
  %v1166 = vmul.f32 %v1138, %v127
  %v1167 = vmul.f32 %v1142, %v119
  %v1168 = vmul.f32 %v1142, %v123
  %v1169 = vmul.f32 %v1142, %v127
  %v1170 = vmul.f32 %v1146, %v119
  %v1171 = vmul.f32 %v1146, %v123
  %v1172 = vmul.f32 %v1146, %v127
  %v1173 = vmul.f32 %v1150, %v119
  %v1174 = vmul.f32 %v1150, %v123
  %v1175 = vmul.f32 %v1150, %v127
  %1200 = vrot.lane.b32.xlu0 %v1152, 92
  %v1201 = vpop.permute.xlu0 %1200
  %1202 = vrot.lane.b32.xlu0 %v1153, 92
  %v1203 = vpop.permute.xlu0 %1202
  %1204 = vrot.lane.b32.xlu0 %v1154, 92
  %v1205 = vpop.permute.xlu0 %1204
  %1206 = vrot.lane.b32.xlu0 %v1155, 92
  %v1207 = vpop.permute.xlu0 %1206
  %1208 = vrot.lane.b32.xlu0 %v1156, 92
  %v1209 = vpop.permute.xlu0 %1208
  %1210 = vrot.lane.b32.xlu0 %v1157, 92
  %v1211 = vpop.permute.xlu0 %1210
  %1212 = vrot.lane.b32.xlu0 %v1158, 92
  %v1213 = vpop.permute.xlu0 %1212
  %1214 = vrot.lane.b32.xlu0 %v1159, 92
  %v1215 = vpop.permute.xlu0 %1214
  %1216 = vrot.lane.b32.xlu0 %v1160, 92
  %v1217 = vpop.permute.xlu0 %1216
  %1218 = vrot.lane.b32.xlu0 %v1161, 92
  %v1219 = vpop.permute.xlu0 %1218
  %1220 = vrot.lane.b32.xlu0 %v1162, 92
  %v1221 = vpop.permute.xlu0 %1220
  %1222 = vrot.lane.b32.xlu0 %v1163, 92
  %v1223 = vpop.permute.xlu0 %1222
  %1224 = vrot.lane.b32.xlu0 %v1164, 92
  %v1225 = vpop.permute.xlu0 %1224
  %1226 = vrot.lane.b32.xlu0 %v1165, 92
  %v1227 = vpop.permute.xlu0 %1226
  %1228 = vrot.lane.b32.xlu0 %v1166, 92
  %v1229 = vpop.permute.xlu0 %1228
  %1230 = vrot.lane.b32.xlu0 %v1167, 92
  %v1231 = vpop.permute.xlu0 %1230
  %1232 = vrot.lane.b32.xlu0 %v1168, 92
  %v1233 = vpop.permute.xlu0 %1232
  %1234 = vrot.lane.b32.xlu0 %v1169, 92
  %v1235 = vpop.permute.xlu0 %1234
  %1236 = vrot.lane.b32.xlu0 %v1170, 92
  %v1237 = vpop.permute.xlu0 %1236
  %1238 = vrot.lane.b32.xlu0 %v1171, 92
  %v1239 = vpop.permute.xlu0 %1238
  %1240 = vrot.lane.b32.xlu0 %v1172, 92
  %v1241 = vpop.permute.xlu0 %1240
  %1242 = vrot.lane.b32.xlu0 %v1173, 92
  %v1243 = vpop.permute.xlu0 %1242
  %1244 = vrot.lane.b32.xlu0 %v1174, 92
  %v1245 = vpop.permute.xlu0 %1244
  %1246 = vrot.lane.b32.xlu0 %v1175, 92
  %v1247 = vpop.permute.xlu0 %1246
  %vm1248 = vcmask 752640
  %v1249 = vsel %vm1248, %v1201, %v1203
  %v1250 = vsel %vm1248, %v1203, %v1205
  %v1251 = vsel %vm1248, %v1207, %v1209
  %v1252 = vsel %vm1248, %v1209, %v1211
  %v1253 = vsel %vm1248, %v1213, %v1215
  %v1254 = vsel %vm1248, %v1215, %v1217
  %v1255 = vsel %vm1248, %v1219, %v1221
  %v1256 = vsel %vm1248, %v1221, %v1223
  %v1257 = vsel %vm1248, %v1225, %v1227
  %v1258 = vsel %vm1248, %v1227, %v1229
  %v1259 = vsel %vm1248, %v1231, %v1233
  %v1260 = vsel %vm1248, %v1233, %v1235
  %v1261 = vsel %vm1248, %v1237, %v1239
  %v1262 = vsel %vm1248, %v1239, %v1241
  %v1263 = vsel %vm1248, %v1243, %v1245
  %v1264 = vsel %vm1248, %v1245, %v1247
  %v1289 = vadd.f32 %v1096, %v1249
  %v1290 = vadd.f32 %v1097, %v1250
  %v1291 = vadd.f32 %v1098, %v1205
  %v1292 = vadd.f32 %v1099, %v1251
  %v1293 = vadd.f32 %v1100, %v1252
  %v1294 = vadd.f32 %v1101, %v1211
  %v1295 = vadd.f32 %v1102, %v1253
  %v1296 = vadd.f32 %v1103, %v1254
  %v1297 = vadd.f32 %v1104, %v1217
  %v1298 = vadd.f32 %v1105, %v1255
  %v1299 = vadd.f32 %v1106, %v1256
  %v1300 = vadd.f32 %v1107, %v1223
  %v1301 = vadd.f32 %v1108, %v1257
  %v1302 = vadd.f32 %v1109, %v1258
  %v1303 = vadd.f32 %v1110, %v1229
  %v1304 = vadd.f32 %v1111, %v1259
  %v1305 = vadd.f32 %v1112, %v1260
  %v1306 = vadd.f32 %v1113, %v1235
  %v1307 = vadd.f32 %v1114, %v1261
  %v1308 = vadd.f32 %v1115, %v1262
  %v1309 = vadd.f32 %v1116, %v1241
  %v1310 = vadd.f32 %v1117, %v1263
  %v1311 = vadd.f32 %v1118, %v1264
  %v1312 = vadd.f32 %v1119, %v1247
  %1313 = vset.pattern.permute.xlu0 7
  %1314 = vperm.xlu0 %1313, %v67
  %v1315 = vpop.permute.xlu0 %1314
  %1317 = vset.pattern.permute.xlu0 7
  %1318 = vperm.xlu0 %1317, %v68
  %v1319 = vpop.permute.xlu0 %1318
  %1321 = vset.pattern.permute.xlu0 7
  %1322 = vperm.xlu0 %1321, %v69
  %v1323 = vpop.permute.xlu0 %1322
  %1325 = vset.pattern.permute.xlu0 7
  %1326 = vperm.xlu0 %1325, %v70
  %v1327 = vpop.permute.xlu0 %1326
  %1329 = vset.pattern.permute.xlu0 7
  %1330 = vperm.xlu0 %1329, %v71
  %v1331 = vpop.permute.xlu0 %1330
  %1333 = vset.pattern.permute.xlu0 7
  %1334 = vperm.xlu0 %1333, %v72
  %v1335 = vpop.permute.xlu0 %1334
  %1337 = vset.pattern.permute.xlu0 7
  %1338 = vperm.xlu0 %1337, %v73
  %v1339 = vpop.permute.xlu0 %1338
  %1341 = vset.pattern.permute.xlu0 7
  %1342 = vperm.xlu0 %1341, %v74
  %v1343 = vpop.permute.xlu0 %1342
  %v1345 = vmul.f32 %v1315, %v119
  %v1346 = vmul.f32 %v1315, %v123
  %v1347 = vmul.f32 %v1315, %v127
  %v1348 = vmul.f32 %v1319, %v119
  %v1349 = vmul.f32 %v1319, %v123
  %v1350 = vmul.f32 %v1319, %v127
  %v1351 = vmul.f32 %v1323, %v119
  %v1352 = vmul.f32 %v1323, %v123
  %v1353 = vmul.f32 %v1323, %v127
  %v1354 = vmul.f32 %v1327, %v119
  %v1355 = vmul.f32 %v1327, %v123
  %v1356 = vmul.f32 %v1327, %v127
  %v1357 = vmul.f32 %v1331, %v119
  %v1358 = vmul.f32 %v1331, %v123
  %v1359 = vmul.f32 %v1331, %v127
  %v1360 = vmul.f32 %v1335, %v119
  %v1361 = vmul.f32 %v1335, %v123
  %v1362 = vmul.f32 %v1335, %v127
  %v1363 = vmul.f32 %v1339, %v119
  %v1364 = vmul.f32 %v1339, %v123
  %v1365 = vmul.f32 %v1339, %v127
  %v1366 = vmul.f32 %v1343, %v119
  %v1367 = vmul.f32 %v1343, %v123
  %v1368 = vmul.f32 %v1343, %v127
  %1393 = vrot.lane.b32.xlu0 %v1345, 91
  %v1394 = vpop.permute.xlu0 %1393
  %1395 = vrot.lane.b32.xlu0 %v1346, 91
  %v1396 = vpop.permute.xlu0 %1395
  %1397 = vrot.lane.b32.xlu0 %v1347, 91
  %v1398 = vpop.permute.xlu0 %1397
  %1399 = vrot.lane.b32.xlu0 %v1348, 91
  %v1400 = vpop.permute.xlu0 %1399
  %1401 = vrot.lane.b32.xlu0 %v1349, 91
  %v1402 = vpop.permute.xlu0 %1401
  %1403 = vrot.lane.b32.xlu0 %v1350, 91
  %v1404 = vpop.permute.xlu0 %1403
  %1405 = vrot.lane.b32.xlu0 %v1351, 91
  %v1406 = vpop.permute.xlu0 %1405
  %1407 = vrot.lane.b32.xlu0 %v1352, 91
  %v1408 = vpop.permute.xlu0 %1407
  %1409 = vrot.lane.b32.xlu0 %v1353, 91
  %v1410 = vpop.permute.xlu0 %1409
  %1411 = vrot.lane.b32.xlu0 %v1354, 91
  %v1412 = vpop.permute.xlu0 %1411
  %1413 = vrot.lane.b32.xlu0 %v1355, 91
  %v1414 = vpop.permute.xlu0 %1413
  %1415 = vrot.lane.b32.xlu0 %v1356, 91
  %v1416 = vpop.permute.xlu0 %1415
  %1417 = vrot.lane.b32.xlu0 %v1357, 91
  %v1418 = vpop.permute.xlu0 %1417
  %1419 = vrot.lane.b32.xlu0 %v1358, 91
  %v1420 = vpop.permute.xlu0 %1419
  %1421 = vrot.lane.b32.xlu0 %v1359, 91
  %v1422 = vpop.permute.xlu0 %1421
  %1423 = vrot.lane.b32.xlu0 %v1360, 91
  %v1424 = vpop.permute.xlu0 %1423
  %1425 = vrot.lane.b32.xlu0 %v1361, 91
  %v1426 = vpop.permute.xlu0 %1425
  %1427 = vrot.lane.b32.xlu0 %v1362, 91
  %v1428 = vpop.permute.xlu0 %1427
  %1429 = vrot.lane.b32.xlu0 %v1363, 91
  %v1430 = vpop.permute.xlu0 %1429
  %1431 = vrot.lane.b32.xlu0 %v1364, 91
  %v1432 = vpop.permute.xlu0 %1431
  %1433 = vrot.lane.b32.xlu0 %v1365, 91
  %v1434 = vpop.permute.xlu0 %1433
  %1435 = vrot.lane.b32.xlu0 %v1366, 91
  %v1436 = vpop.permute.xlu0 %1435
  %1437 = vrot.lane.b32.xlu0 %v1367, 91
  %v1438 = vpop.permute.xlu0 %1437
  %1439 = vrot.lane.b32.xlu0 %v1368, 91
  %v1440 = vpop.permute.xlu0 %1439
  %vm1441 = vcmask 744448
  %v1442 = vsel %vm1441, %v1394, %v1396
  %v1443 = vsel %vm1441, %v1396, %v1398
  %v1444 = vsel %vm1441, %v1400, %v1402
  %v1445 = vsel %vm1441, %v1402, %v1404
  %v1446 = vsel %vm1441, %v1406, %v1408
  %v1447 = vsel %vm1441, %v1408, %v1410
  %v1448 = vsel %vm1441, %v1412, %v1414
  %v1449 = vsel %vm1441, %v1414, %v1416
  %v1450 = vsel %vm1441, %v1418, %v1420
  %v1451 = vsel %vm1441, %v1420, %v1422
  %v1452 = vsel %vm1441, %v1424, %v1426
  %v1453 = vsel %vm1441, %v1426, %v1428
  %v1454 = vsel %vm1441, %v1430, %v1432
  %v1455 = vsel %vm1441, %v1432, %v1434
  %v1456 = vsel %vm1441, %v1436, %v1438
  %v1457 = vsel %vm1441, %v1438, %v1440
  %v1482 = vadd.f32 %v1289, %v1442
  %v1483 = vadd.f32 %v1290, %v1443
  %v1484 = vadd.f32 %v1291, %v1398
  %v1485 = vadd.f32 %v1292, %v1444
  %v1486 = vadd.f32 %v1293, %v1445
  %v1487 = vadd.f32 %v1294, %v1404
  %v1488 = vadd.f32 %v1295, %v1446
  %v1489 = vadd.f32 %v1296, %v1447
  %v1490 = vadd.f32 %v1297, %v1410
  %v1491 = vadd.f32 %v1298, %v1448
  %v1492 = vadd.f32 %v1299, %v1449
  %v1493 = vadd.f32 %v1300, %v1416
  %v1494 = vadd.f32 %v1301, %v1450
  %v1495 = vadd.f32 %v1302, %v1451
  %v1496 = vadd.f32 %v1303, %v1422
  %v1497 = vadd.f32 %v1304, %v1452
  %v1498 = vadd.f32 %v1305, %v1453
  %v1499 = vadd.f32 %v1306, %v1428
  %v1500 = vadd.f32 %v1307, %v1454
  %v1501 = vadd.f32 %v1308, %v1455
  %v1502 = vadd.f32 %v1309, %v1434
  %v1503 = vadd.f32 %v1310, %v1456
  %v1504 = vadd.f32 %v1311, %v1457
  %v1505 = vadd.f32 %v1312, %v1440
  %1506 = vset.pattern.permute.xlu0 8
  %1507 = vperm.xlu0 %1506, %v67
  %v1508 = vpop.permute.xlu0 %1507
  %1510 = vset.pattern.permute.xlu0 8
  %1511 = vperm.xlu0 %1510, %v68
  %v1512 = vpop.permute.xlu0 %1511
  %1514 = vset.pattern.permute.xlu0 8
  %1515 = vperm.xlu0 %1514, %v69
  %v1516 = vpop.permute.xlu0 %1515
  %1518 = vset.pattern.permute.xlu0 8
  %1519 = vperm.xlu0 %1518, %v70
  %v1520 = vpop.permute.xlu0 %1519
  %1522 = vset.pattern.permute.xlu0 8
  %1523 = vperm.xlu0 %1522, %v71
  %v1524 = vpop.permute.xlu0 %1523
  %1526 = vset.pattern.permute.xlu0 8
  %1527 = vperm.xlu0 %1526, %v72
  %v1528 = vpop.permute.xlu0 %1527
  %1530 = vset.pattern.permute.xlu0 8
  %1531 = vperm.xlu0 %1530, %v73
  %v1532 = vpop.permute.xlu0 %1531
  %1534 = vset.pattern.permute.xlu0 8
  %1535 = vperm.xlu0 %1534, %v74
  %v1536 = vpop.permute.xlu0 %1535
  %v1538 = vmul.f32 %v1508, %v119
  %v1539 = vmul.f32 %v1508, %v123
  %v1540 = vmul.f32 %v1508, %v127
  %v1541 = vmul.f32 %v1512, %v119
  %v1542 = vmul.f32 %v1512, %v123
  %v1543 = vmul.f32 %v1512, %v127
  %v1544 = vmul.f32 %v1516, %v119
  %v1545 = vmul.f32 %v1516, %v123
  %v1546 = vmul.f32 %v1516, %v127
  %v1547 = vmul.f32 %v1520, %v119
  %v1548 = vmul.f32 %v1520, %v123
  %v1549 = vmul.f32 %v1520, %v127
  %v1550 = vmul.f32 %v1524, %v119
  %v1551 = vmul.f32 %v1524, %v123
  %v1552 = vmul.f32 %v1524, %v127
  %v1553 = vmul.f32 %v1528, %v119
  %v1554 = vmul.f32 %v1528, %v123
  %v1555 = vmul.f32 %v1528, %v127
  %v1556 = vmul.f32 %v1532, %v119
  %v1557 = vmul.f32 %v1532, %v123
  %v1558 = vmul.f32 %v1532, %v127
  %v1559 = vmul.f32 %v1536, %v119
  %v1560 = vmul.f32 %v1536, %v123
  %v1561 = vmul.f32 %v1536, %v127
  %1586 = vrot.lane.b32.xlu0 %v1538, 90
  %v1587 = vpop.permute.xlu0 %1586
  %1588 = vrot.lane.b32.xlu0 %v1539, 90
  %v1589 = vpop.permute.xlu0 %1588
  %1590 = vrot.lane.b32.xlu0 %v1540, 90
  %v1591 = vpop.permute.xlu0 %1590
  %1592 = vrot.lane.b32.xlu0 %v1541, 90
  %v1593 = vpop.permute.xlu0 %1592
  %1594 = vrot.lane.b32.xlu0 %v1542, 90
  %v1595 = vpop.permute.xlu0 %1594
  %1596 = vrot.lane.b32.xlu0 %v1543, 90
  %v1597 = vpop.permute.xlu0 %1596
  %1598 = vrot.lane.b32.xlu0 %v1544, 90
  %v1599 = vpop.permute.xlu0 %1598
  %1600 = vrot.lane.b32.xlu0 %v1545, 90
  %v1601 = vpop.permute.xlu0 %1600
  %1602 = vrot.lane.b32.xlu0 %v1546, 90
  %v1603 = vpop.permute.xlu0 %1602
  %1604 = vrot.lane.b32.xlu0 %v1547, 90
  %v1605 = vpop.permute.xlu0 %1604
  %1606 = vrot.lane.b32.xlu0 %v1548, 90
  %v1607 = vpop.permute.xlu0 %1606
  %1608 = vrot.lane.b32.xlu0 %v1549, 90
  %v1609 = vpop.permute.xlu0 %1608
  %1610 = vrot.lane.b32.xlu0 %v1550, 90
  %v1611 = vpop.permute.xlu0 %1610
  %1612 = vrot.lane.b32.xlu0 %v1551, 90
  %v1613 = vpop.permute.xlu0 %1612
  %1614 = vrot.lane.b32.xlu0 %v1552, 90
  %v1615 = vpop.permute.xlu0 %1614
  %1616 = vrot.lane.b32.xlu0 %v1553, 90
  %v1617 = vpop.permute.xlu0 %1616
  %1618 = vrot.lane.b32.xlu0 %v1554, 90
  %v1619 = vpop.permute.xlu0 %1618
  %1620 = vrot.lane.b32.xlu0 %v1555, 90
  %v1621 = vpop.permute.xlu0 %1620
  %1622 = vrot.lane.b32.xlu0 %v1556, 90
  %v1623 = vpop.permute.xlu0 %1622
  %1624 = vrot.lane.b32.xlu0 %v1557, 90
  %v1625 = vpop.permute.xlu0 %1624
  %1626 = vrot.lane.b32.xlu0 %v1558, 90
  %v1627 = vpop.permute.xlu0 %1626
  %1628 = vrot.lane.b32.xlu0 %v1559, 90
  %v1629 = vpop.permute.xlu0 %1628
  %1630 = vrot.lane.b32.xlu0 %v1560, 90
  %v1631 = vpop.permute.xlu0 %1630
  %1632 = vrot.lane.b32.xlu0 %v1561, 90
  %v1633 = vpop.permute.xlu0 %1632
  %vm1634 = vcmask 736256
  %v1635 = vsel %vm1634, %v1587, %v1589
  %v1636 = vsel %vm1634, %v1589, %v1591
  %v1637 = vsel %vm1634, %v1593, %v1595
  %v1638 = vsel %vm1634, %v1595, %v1597
  %v1639 = vsel %vm1634, %v1599, %v1601
  %v1640 = vsel %vm1634, %v1601, %v1603
  %v1641 = vsel %vm1634, %v1605, %v1607
  %v1642 = vsel %vm1634, %v1607, %v1609
  %v1643 = vsel %vm1634, %v1611, %v1613
  %v1644 = vsel %vm1634, %v1613, %v1615
  %v1645 = vsel %vm1634, %v1617, %v1619
  %v1646 = vsel %vm1634, %v1619, %v1621
  %v1647 = vsel %vm1634, %v1623, %v1625
  %v1648 = vsel %vm1634, %v1625, %v1627
  %v1649 = vsel %vm1634, %v1629, %v1631
  %v1650 = vsel %vm1634, %v1631, %v1633
  %v1675 = vadd.f32 %v1482, %v1635
  %v1676 = vadd.f32 %v1483, %v1636
  %v1677 = vadd.f32 %v1484, %v1591
  %v1678 = vadd.f32 %v1485, %v1637
  %v1679 = vadd.f32 %v1486, %v1638
  %v1680 = vadd.f32 %v1487, %v1597
  %v1681 = vadd.f32 %v1488, %v1639
  %v1682 = vadd.f32 %v1489, %v1640
  %v1683 = vadd.f32 %v1490, %v1603
  %v1684 = vadd.f32 %v1491, %v1641
  %v1685 = vadd.f32 %v1492, %v1642
  %v1686 = vadd.f32 %v1493, %v1609
  %v1687 = vadd.f32 %v1494, %v1643
  %v1688 = vadd.f32 %v1495, %v1644
  %v1689 = vadd.f32 %v1496, %v1615
  %v1690 = vadd.f32 %v1497, %v1645
  %v1691 = vadd.f32 %v1498, %v1646
  %v1692 = vadd.f32 %v1499, %v1621
  %v1693 = vadd.f32 %v1500, %v1647
  %v1694 = vadd.f32 %v1501, %v1648
  %v1695 = vadd.f32 %v1502, %v1627
  %v1696 = vadd.f32 %v1503, %v1649
  %v1697 = vadd.f32 %v1504, %v1650
  %v1698 = vadd.f32 %v1505, %v1633
  %v1699 = vld [vmem:[%s3] sm:$0xff]
  %v1700 = vld [vmem:[%s3 + $0x8] sm:$0xff]
  %v1701 = vld [vmem:[%s3 + $0x10] sm:$0xff]
  %v1702 = vld [vmem:[%s3 + $0x18] sm:$0xff]
  %v1703 = vld [vmem:[%s3 + $0x20] sm:$0xff]
  %v1704 = vld [vmem:[%s3 + $0x28] sm:$0xff]
  %v1705 = vld [vmem:[%s3 + $0x30] sm:$0xff]
  %v1706 = vld [vmem:[%s3 + $0x38] sm:$0xff]
  %1708 = vset.pattern.permute.xlu0 0
  %1709 = vperm.xlu0 %1708, %v1699
  %v1710 = vpop.permute.xlu0 %1709
  %1713 = vset.pattern.permute.xlu0 0
  %1714 = vperm.xlu0 %1713, %v1700
  %v1715 = vpop.permute.xlu0 %1714
  %1718 = vset.pattern.permute.xlu0 0
  %1719 = vperm.xlu0 %1718, %v1701
  %v1720 = vpop.permute.xlu0 %1719
  %1723 = vset.pattern.permute.xlu0 0
  %1724 = vperm.xlu0 %1723, %v1702
  %v1725 = vpop.permute.xlu0 %1724
  %1728 = vset.pattern.permute.xlu0 0
  %1729 = vperm.xlu0 %1728, %v1703
  %v1730 = vpop.permute.xlu0 %1729
  %1733 = vset.pattern.permute.xlu0 0
  %1734 = vperm.xlu0 %1733, %v1704
  %v1735 = vpop.permute.xlu0 %1734
  %1738 = vset.pattern.permute.xlu0 0
  %1739 = vperm.xlu0 %1738, %v1705
  %v1740 = vpop.permute.xlu0 %1739
  %1743 = vset.pattern.permute.xlu0 0
  %1744 = vperm.xlu0 %1743, %v1706
  %v1745 = vpop.permute.xlu0 %1744
  %v1747 = vadd.f32 %v1675, %v1710
  %v1748 = vadd.f32 %v1676, %v1710
  %v1749 = vadd.f32 %v1677, %v1710
  %v1750 = vadd.f32 %v1678, %v1715
  %v1751 = vadd.f32 %v1679, %v1715
  %v1752 = vadd.f32 %v1680, %v1715
  %v1753 = vadd.f32 %v1681, %v1720
  %v1754 = vadd.f32 %v1682, %v1720
  %v1755 = vadd.f32 %v1683, %v1720
  %v1756 = vadd.f32 %v1684, %v1725
  %v1757 = vadd.f32 %v1685, %v1725
  %v1758 = vadd.f32 %v1686, %v1725
  %v1759 = vadd.f32 %v1687, %v1730
  %v1760 = vadd.f32 %v1688, %v1730
  %v1761 = vadd.f32 %v1689, %v1730
  %v1762 = vadd.f32 %v1690, %v1735
  %v1763 = vadd.f32 %v1691, %v1735
  %v1764 = vadd.f32 %v1692, %v1735
  %v1765 = vadd.f32 %v1693, %v1740
  %v1766 = vadd.f32 %v1694, %v1740
  %v1767 = vadd.f32 %v1695, %v1740
  %v1768 = vadd.f32 %v1696, %v1745
  %v1769 = vadd.f32 %v1697, %v1745
  %v1770 = vadd.f32 %v1698, %v1745
  %v1771 = vmax.f32 %v1747, 0.0
  %v1772 = vmax.f32 %v1748, 0.0
  %v1773 = vmax.f32 %v1749, 0.0
  %v1774 = vmax.f32 %v1750, 0.0
  %v1775 = vmax.f32 %v1751, 0.0
  %v1776 = vmax.f32 %v1752, 0.0
  %v1777 = vmax.f32 %v1753, 0.0
  %v1778 = vmax.f32 %v1754, 0.0
  %v1779 = vmax.f32 %v1755, 0.0
  %v1780 = vmax.f32 %v1756, 0.0
  %v1781 = vmax.f32 %v1757, 0.0
  %v1782 = vmax.f32 %v1758, 0.0
  %v1783 = vmax.f32 %v1759, 0.0
  %v1784 = vmax.f32 %v1760, 0.0
  %v1785 = vmax.f32 %v1761, 0.0
  %v1786 = vmax.f32 %v1762, 0.0
  %v1787 = vmax.f32 %v1763, 0.0
  %v1788 = vmax.f32 %v1764, 0.0
  %v1789 = vmax.f32 %v1765, 0.0
  %v1790 = vmax.f32 %v1766, 0.0
  %v1791 = vmax.f32 %v1767, 0.0
  %v1792 = vmax.f32 %v1768, 0.0
  %v1793 = vmax.f32 %v1769, 0.0
  %v1794 = vmax.f32 %v1770, 0.0
  %v1796 = vlaneseq
  %v1797 = vshrl.u32 %v1796, 7
  %v1798 = vsub.s32 0, %v1797
  %v1799 = vrot.slane %v63, %v1798
  %v1800 = vlaneseq
  %v1801 = vshrl.u32 %v1800, 7
  %v1802 = vsub.s32 1, %v1801
  %v1803 = vrot.slane %v63, %v1802
  %v1804 = vlaneseq
  %v1805 = vshrl.u32 %v1804, 7
  %v1806 = vsub.s32 2, %v1805
  %v1807 = vrot.slane %v63, %v1806
  %v1811 = vmul.f32 %v1771, %v1799
  %v1812 = vmul.f32 %v1772, %v1803
  %v1813 = vmul.f32 %v1773, %v1807
  %v1814 = vmul.f32 %v1774, %v1799
  %v1815 = vmul.f32 %v1775, %v1803
  %v1816 = vmul.f32 %v1776, %v1807
  %v1817 = vmul.f32 %v1777, %v1799
  %v1818 = vmul.f32 %v1778, %v1803
  %v1819 = vmul.f32 %v1779, %v1807
  %v1820 = vmul.f32 %v1780, %v1799
  %v1821 = vmul.f32 %v1781, %v1803
  %v1822 = vmul.f32 %v1782, %v1807
  %v1823 = vmul.f32 %v1783, %v1799
  %v1824 = vmul.f32 %v1784, %v1803
  %v1825 = vmul.f32 %v1785, %v1807
  %v1826 = vmul.f32 %v1786, %v1799
  %v1827 = vmul.f32 %v1787, %v1803
  %v1828 = vmul.f32 %v1788, %v1807
  %v1829 = vmul.f32 %v1789, %v1799
  %v1830 = vmul.f32 %v1790, %v1803
  %v1831 = vmul.f32 %v1791, %v1807
  %v1832 = vmul.f32 %v1792, %v1799
  %v1833 = vmul.f32 %v1793, %v1803
  %v1834 = vmul.f32 %v1794, %v1807
  %v1835 = vpack.c.bf16 %v1814, %v1811
  %v1836 = vpack.c.bf16 %v1815, %v1812
  %v1837 = vpack.c.bf16 %v1816, %v1813
  %v1838 = vpack.c.bf16 %v1820, %v1817
  %v1839 = vpack.c.bf16 %v1821, %v1818
  %v1840 = vpack.c.bf16 %v1822, %v1819
  %v1841 = vpack.c.bf16 %v1826, %v1823
  %v1842 = vpack.c.bf16 %v1827, %v1824
  %v1843 = vpack.c.bf16 %v1828, %v1825
  %v1844 = vpack.c.bf16 %v1832, %v1829
  %v1845 = vpack.c.bf16 %v1833, %v1830
  %v1846 = vpack.c.bf16 %v1834, %v1831
  %1859 = vrot.lane.b32.xlu0 %v1835, 19
  %v1860 = vpop.permute.xlu0 %1859
  %1861 = vrot.lane.b32.xlu0 %v1836, 19
  %v1862 = vpop.permute.xlu0 %1861
  %1863 = vrot.lane.b32.xlu0 %v1837, 19
  %v1864 = vpop.permute.xlu0 %1863
  %1865 = vrot.lane.b32.xlu0 %v1838, 19
  %v1866 = vpop.permute.xlu0 %1865
  %1867 = vrot.lane.b32.xlu0 %v1839, 19
  %v1868 = vpop.permute.xlu0 %1867
  %1869 = vrot.lane.b32.xlu0 %v1840, 19
  %v1870 = vpop.permute.xlu0 %1869
  %1871 = vrot.lane.b32.xlu0 %v1841, 19
  %v1872 = vpop.permute.xlu0 %1871
  %1873 = vrot.lane.b32.xlu0 %v1842, 19
  %v1874 = vpop.permute.xlu0 %1873
  %1875 = vrot.lane.b32.xlu0 %v1843, 19
  %v1876 = vpop.permute.xlu0 %1875
  %1877 = vrot.lane.b32.xlu0 %v1844, 19
  %v1878 = vpop.permute.xlu0 %1877
  %1879 = vrot.lane.b32.xlu0 %v1845, 19
  %v1880 = vpop.permute.xlu0 %1879
  %1881 = vrot.lane.b32.xlu0 %v1846, 19
  %v1882 = vpop.permute.xlu0 %1881
  %vm1883 = vcmask 154624
  %v1884 = vsel %vm1883, %v1860, %v1862
  %v1885 = vsel %vm1883, %v1862, %v1864
  %v1886 = vsel %vm1883, %v1866, %v1868
  %v1887 = vsel %vm1883, %v1868, %v1870
  %v1888 = vsel %vm1883, %v1872, %v1874
  %v1889 = vsel %vm1883, %v1874, %v1876
  %v1890 = vsel %vm1883, %v1878, %v1880
  %v1891 = vsel %vm1883, %v1880, %v1882
  %vm1904 = vcmask 1047704
  %1905 = vst.msk [vmem:[#allocation2] sm:$0xff] %vm1904, %v1860
  %1906 = vst [vmem:[#allocation2 + $0x8] sm:$0xff] %v1884
  %vm1907 = vcmask 416768
  %1908 = vst.msk [vmem:[#allocation2 + $0x10] sm:$0xff] %vm1907, %v1885
  %1909 = vst.msk [vmem:[#allocation2 + $0x30] sm:$0xff] %vm1904, %v1866
  %1910 = vst [vmem:[#allocation2 + $0x38] sm:$0xff] %v1886
  %1911 = vst.msk [vmem:[#allocation2 + $0x40] sm:$0xff] %vm1907, %v1887
  %1912 = vst.msk [vmem:[#allocation2 + $0x60] sm:$0xff] %vm1904, %v1872
  %1913 = vst [vmem:[#allocation2 + $0x68] sm:$0xff] %v1888
  %1914 = vst.msk [vmem:[#allocation2 + $0x70] sm:$0xff] %vm1907, %v1889
  %1915 = vst.msk [vmem:[#allocation2 + $0x90] sm:$0xff] %vm1904, %v1878
  %1916 = vst [vmem:[#allocation2 + $0x98] sm:$0xff] %v1890
  %1917 = vst.msk [vmem:[#allocation2 + $0xa0] sm:$0xff] %vm1907, %v1891
  %v1918 = vld [vmem:[%s2] sm:$0xff]
  %v1919 = vld [vmem:[%s2 + $0x8] sm:$0xff]
  %v1920 = vld [vmem:[%s2 + $0x10] sm:$0xff]
  %v1921 = vld [vmem:[%s2 + $0x18] sm:$0xff]
  %v1922 = vld [vmem:[%s2 + $0x20] sm:$0xff]
  %v1923 = vld [vmem:[%s2 + $0x28] sm:$0xff]
  %v1924 = vld [vmem:[%s2 + $0x30] sm:$0xff]
  %v1925 = vld [vmem:[%s2 + $0x38] sm:$0xff]
  %1927 = vset.pattern.permute.xlu0 0
  %1928 = vperm.xlu0 %1927, %v1918
  %v1929 = vpop.permute.xlu0 %1928
  %1932 = vset.pattern.permute.xlu0 0
  %1933 = vperm.xlu0 %1932, %v1919
  %v1934 = vpop.permute.xlu0 %1933
  %1937 = vset.pattern.permute.xlu0 0
  %1938 = vperm.xlu0 %1937, %v1920
  %v1939 = vpop.permute.xlu0 %1938
  %1942 = vset.pattern.permute.xlu0 0
  %1943 = vperm.xlu0 %1942, %v1921
  %v1944 = vpop.permute.xlu0 %1943
  %1947 = vset.pattern.permute.xlu0 0
  %1948 = vperm.xlu0 %1947, %v1922
  %v1949 = vpop.permute.xlu0 %1948
  %1952 = vset.pattern.permute.xlu0 0
  %1953 = vperm.xlu0 %1952, %v1923
  %v1954 = vpop.permute.xlu0 %1953
  %1957 = vset.pattern.permute.xlu0 0
  %1958 = vperm.xlu0 %1957, %v1924
  %v1959 = vpop.permute.xlu0 %1958
  %1962 = vset.pattern.permute.xlu0 0
  %1963 = vperm.xlu0 %1962, %v1925
  %v1964 = vpop.permute.xlu0 %1963
  %v1967 = vlaneseq
  %v1968 = vshrl.u32 %v1967, 7
  %v1969 = vsub.s32 0, %v1968
  %v1970 = vrot.slane %v66, %v1969
  %v1971 = vlaneseq
  %v1972 = vshrl.u32 %v1971, 7
  %v1973 = vsub.s32 1, %v1972
  %v1974 = vrot.slane %v66, %v1973
  %v1975 = vlaneseq
  %v1976 = vshrl.u32 %v1975, 7
  %v1977 = vsub.s32 2, %v1976
  %v1978 = vrot.slane %v66, %v1977
  %v1982 = vmul.f32 %v1929, %v1970
  %v1983 = vmul.f32 %v1929, %v1974
  %v1984 = vmul.f32 %v1929, %v1978
  %v1985 = vmul.f32 %v1934, %v1970
  %v1986 = vmul.f32 %v1934, %v1974
  %v1987 = vmul.f32 %v1934, %v1978
  %v1988 = vmul.f32 %v1939, %v1970
  %v1989 = vmul.f32 %v1939, %v1974
  %v1990 = vmul.f32 %v1939, %v1978
  %v1991 = vmul.f32 %v1944, %v1970
  %v1992 = vmul.f32 %v1944, %v1974
  %v1993 = vmul.f32 %v1944, %v1978
  %v1994 = vmul.f32 %v1949, %v1970
  %v1995 = vmul.f32 %v1949, %v1974
  %v1996 = vmul.f32 %v1949, %v1978
  %v1997 = vmul.f32 %v1954, %v1970
  %v1998 = vmul.f32 %v1954, %v1974
  %v1999 = vmul.f32 %v1954, %v1978
  %v2000 = vmul.f32 %v1959, %v1970
  %v2001 = vmul.f32 %v1959, %v1974
  %v2002 = vmul.f32 %v1959, %v1978
  %v2003 = vmul.f32 %v1964, %v1970
  %v2004 = vmul.f32 %v1964, %v1974
  %v2005 = vmul.f32 %v1964, %v1978
  %2006 = vset.pattern.permute.xlu0 1
  %2007 = vperm.xlu0 %2006, %v1918
  %v2008 = vpop.permute.xlu0 %2007
  %2010 = vset.pattern.permute.xlu0 1
  %2011 = vperm.xlu0 %2010, %v1919
  %v2012 = vpop.permute.xlu0 %2011
  %2014 = vset.pattern.permute.xlu0 1
  %2015 = vperm.xlu0 %2014, %v1920
  %v2016 = vpop.permute.xlu0 %2015
  %2018 = vset.pattern.permute.xlu0 1
  %2019 = vperm.xlu0 %2018, %v1921
  %v2020 = vpop.permute.xlu0 %2019
  %2022 = vset.pattern.permute.xlu0 1
  %2023 = vperm.xlu0 %2022, %v1922
  %v2024 = vpop.permute.xlu0 %2023
  %2026 = vset.pattern.permute.xlu0 1
  %2027 = vperm.xlu0 %2026, %v1923
  %v2028 = vpop.permute.xlu0 %2027
  %2030 = vset.pattern.permute.xlu0 1
  %2031 = vperm.xlu0 %2030, %v1924
  %v2032 = vpop.permute.xlu0 %2031
  %2034 = vset.pattern.permute.xlu0 1
  %2035 = vperm.xlu0 %2034, %v1925
  %v2036 = vpop.permute.xlu0 %2035
  %v2038 = vmul.f32 %v2008, %v1970
  %v2039 = vmul.f32 %v2008, %v1974
  %v2040 = vmul.f32 %v2008, %v1978
  %v2041 = vmul.f32 %v2012, %v1970
  %v2042 = vmul.f32 %v2012, %v1974
  %v2043 = vmul.f32 %v2012, %v1978
  %v2044 = vmul.f32 %v2016, %v1970
  %v2045 = vmul.f32 %v2016, %v1974
  %v2046 = vmul.f32 %v2016, %v1978
  %v2047 = vmul.f32 %v2020, %v1970
  %v2048 = vmul.f32 %v2020, %v1974
  %v2049 = vmul.f32 %v2020, %v1978
  %v2050 = vmul.f32 %v2024, %v1970
  %v2051 = vmul.f32 %v2024, %v1974
  %v2052 = vmul.f32 %v2024, %v1978
  %v2053 = vmul.f32 %v2028, %v1970
  %v2054 = vmul.f32 %v2028, %v1974
  %v2055 = vmul.f32 %v2028, %v1978
  %v2056 = vmul.f32 %v2032, %v1970
  %v2057 = vmul.f32 %v2032, %v1974
  %v2058 = vmul.f32 %v2032, %v1978
  %v2059 = vmul.f32 %v2036, %v1970
  %v2060 = vmul.f32 %v2036, %v1974
  %v2061 = vmul.f32 %v2036, %v1978
  %2086 = vrot.lane.b32.xlu0 %v2038, 127
  %v2087 = vpop.permute.xlu0 %2086
  %2088 = vrot.lane.b32.xlu0 %v2039, 127
  %v2089 = vpop.permute.xlu0 %2088
  %2090 = vrot.lane.b32.xlu0 %v2040, 127
  %v2091 = vpop.permute.xlu0 %2090
  %2092 = vrot.lane.b32.xlu0 %v2041, 127
  %v2093 = vpop.permute.xlu0 %2092
  %2094 = vrot.lane.b32.xlu0 %v2042, 127
  %v2095 = vpop.permute.xlu0 %2094
  %2096 = vrot.lane.b32.xlu0 %v2043, 127
  %v2097 = vpop.permute.xlu0 %2096
  %2098 = vrot.lane.b32.xlu0 %v2044, 127
  %v2099 = vpop.permute.xlu0 %2098
  %2100 = vrot.lane.b32.xlu0 %v2045, 127
  %v2101 = vpop.permute.xlu0 %2100
  %2102 = vrot.lane.b32.xlu0 %v2046, 127
  %v2103 = vpop.permute.xlu0 %2102
  %2104 = vrot.lane.b32.xlu0 %v2047, 127
  %v2105 = vpop.permute.xlu0 %2104
  %2106 = vrot.lane.b32.xlu0 %v2048, 127
  %v2107 = vpop.permute.xlu0 %2106
  %2108 = vrot.lane.b32.xlu0 %v2049, 127
  %v2109 = vpop.permute.xlu0 %2108
  %2110 = vrot.lane.b32.xlu0 %v2050, 127
  %v2111 = vpop.permute.xlu0 %2110
  %2112 = vrot.lane.b32.xlu0 %v2051, 127
  %v2113 = vpop.permute.xlu0 %2112
  %2114 = vrot.lane.b32.xlu0 %v2052, 127
  %v2115 = vpop.permute.xlu0 %2114
  %2116 = vrot.lane.b32.xlu0 %v2053, 127
  %v2117 = vpop.permute.xlu0 %2116
  %2118 = vrot.lane.b32.xlu0 %v2054, 127
  %v2119 = vpop.permute.xlu0 %2118
  %2120 = vrot.lane.b32.xlu0 %v2055, 127
  %v2121 = vpop.permute.xlu0 %2120
  %2122 = vrot.lane.b32.xlu0 %v2056, 127
  %v2123 = vpop.permute.xlu0 %2122
  %2124 = vrot.lane.b32.xlu0 %v2057, 127
  %v2125 = vpop.permute.xlu0 %2124
  %2126 = vrot.lane.b32.xlu0 %v2058, 127
  %v2127 = vpop.permute.xlu0 %2126
  %2128 = vrot.lane.b32.xlu0 %v2059, 127
  %v2129 = vpop.permute.xlu0 %2128
  %2130 = vrot.lane.b32.xlu0 %v2060, 127
  %v2131 = vpop.permute.xlu0 %2130
  %2132 = vrot.lane.b32.xlu0 %v2061, 127
  %v2133 = vpop.permute.xlu0 %2132
  %v2134 = vsel %vm283, %v2087, %v2089
  %v2135 = vsel %vm283, %v2089, %v2091
  %v2136 = vsel %vm283, %v2093, %v2095
  %v2137 = vsel %vm283, %v2095, %v2097
  %v2138 = vsel %vm283, %v2099, %v2101
  %v2139 = vsel %vm283, %v2101, %v2103
  %v2140 = vsel %vm283, %v2105, %v2107
  %v2141 = vsel %vm283, %v2107, %v2109
  %v2142 = vsel %vm283, %v2111, %v2113
  %v2143 = vsel %vm283, %v2113, %v2115
  %v2144 = vsel %vm283, %v2117, %v2119
  %v2145 = vsel %vm283, %v2119, %v2121
  %v2146 = vsel %vm283, %v2123, %v2125
  %v2147 = vsel %vm283, %v2125, %v2127
  %v2148 = vsel %vm283, %v2129, %v2131
  %v2149 = vsel %vm283, %v2131, %v2133
  %v2174 = vadd.f32 %v1982, %v2134
  %v2175 = vadd.f32 %v1983, %v2135
  %v2176 = vadd.f32 %v1984, %v2091
  %v2177 = vadd.f32 %v1985, %v2136
  %v2178 = vadd.f32 %v1986, %v2137
  %v2179 = vadd.f32 %v1987, %v2097
  %v2180 = vadd.f32 %v1988, %v2138
  %v2181 = vadd.f32 %v1989, %v2139
  %v2182 = vadd.f32 %v1990, %v2103
  %v2183 = vadd.f32 %v1991, %v2140
  %v2184 = vadd.f32 %v1992, %v2141
  %v2185 = vadd.f32 %v1993, %v2109
  %v2186 = vadd.f32 %v1994, %v2142
  %v2187 = vadd.f32 %v1995, %v2143
  %v2188 = vadd.f32 %v1996, %v2115
  %v2189 = vadd.f32 %v1997, %v2144
  %v2190 = vadd.f32 %v1998, %v2145
  %v2191 = vadd.f32 %v1999, %v2121
  %v2192 = vadd.f32 %v2000, %v2146
  %v2193 = vadd.f32 %v2001, %v2147
  %v2194 = vadd.f32 %v2002, %v2127
  %v2195 = vadd.f32 %v2003, %v2148
  %v2196 = vadd.f32 %v2004, %v2149
  %v2197 = vadd.f32 %v2005, %v2133
  %2198 = vset.pattern.permute.xlu0 2
  %2199 = vperm.xlu0 %2198, %v1918
  %v2200 = vpop.permute.xlu0 %2199
  %2202 = vset.pattern.permute.xlu0 2
  %2203 = vperm.xlu0 %2202, %v1919
  %v2204 = vpop.permute.xlu0 %2203
  %2206 = vset.pattern.permute.xlu0 2
  %2207 = vperm.xlu0 %2206, %v1920
  %v2208 = vpop.permute.xlu0 %2207
  %2210 = vset.pattern.permute.xlu0 2
  %2211 = vperm.xlu0 %2210, %v1921
  %v2212 = vpop.permute.xlu0 %2211
  %2214 = vset.pattern.permute.xlu0 2
  %2215 = vperm.xlu0 %2214, %v1922
  %v2216 = vpop.permute.xlu0 %2215
  %2218 = vset.pattern.permute.xlu0 2
  %2219 = vperm.xlu0 %2218, %v1923
  %v2220 = vpop.permute.xlu0 %2219
  %2222 = vset.pattern.permute.xlu0 2
  %2223 = vperm.xlu0 %2222, %v1924
  %v2224 = vpop.permute.xlu0 %2223
  %2226 = vset.pattern.permute.xlu0 2
  %2227 = vperm.xlu0 %2226, %v1925
  %v2228 = vpop.permute.xlu0 %2227
  %v2230 = vmul.f32 %v2200, %v1970
  %v2231 = vmul.f32 %v2200, %v1974
  %v2232 = vmul.f32 %v2200, %v1978
  %v2233 = vmul.f32 %v2204, %v1970
  %v2234 = vmul.f32 %v2204, %v1974
  %v2235 = vmul.f32 %v2204, %v1978
  %v2236 = vmul.f32 %v2208, %v1970
  %v2237 = vmul.f32 %v2208, %v1974
  %v2238 = vmul.f32 %v2208, %v1978
  %v2239 = vmul.f32 %v2212, %v1970
  %v2240 = vmul.f32 %v2212, %v1974
  %v2241 = vmul.f32 %v2212, %v1978
  %v2242 = vmul.f32 %v2216, %v1970
  %v2243 = vmul.f32 %v2216, %v1974
  %v2244 = vmul.f32 %v2216, %v1978
  %v2245 = vmul.f32 %v2220, %v1970
  %v2246 = vmul.f32 %v2220, %v1974
  %v2247 = vmul.f32 %v2220, %v1978
  %v2248 = vmul.f32 %v2224, %v1970
  %v2249 = vmul.f32 %v2224, %v1974
  %v2250 = vmul.f32 %v2224, %v1978
  %v2251 = vmul.f32 %v2228, %v1970
  %v2252 = vmul.f32 %v2228, %v1974
  %v2253 = vmul.f32 %v2228, %v1978
  %2278 = vrot.lane.b32.xlu0 %v2230, 126
  %v2279 = vpop.permute.xlu0 %2278
  %2280 = vrot.lane.b32.xlu0 %v2231, 126
  %v2281 = vpop.permute.xlu0 %2280
  %2282 = vrot.lane.b32.xlu0 %v2232, 126
  %v2283 = vpop.permute.xlu0 %2282
  %2284 = vrot.lane.b32.xlu0 %v2233, 126
  %v2285 = vpop.permute.xlu0 %2284
  %2286 = vrot.lane.b32.xlu0 %v2234, 126
  %v2287 = vpop.permute.xlu0 %2286
  %2288 = vrot.lane.b32.xlu0 %v2235, 126
  %v2289 = vpop.permute.xlu0 %2288
  %2290 = vrot.lane.b32.xlu0 %v2236, 126
  %v2291 = vpop.permute.xlu0 %2290
  %2292 = vrot.lane.b32.xlu0 %v2237, 126
  %v2293 = vpop.permute.xlu0 %2292
  %2294 = vrot.lane.b32.xlu0 %v2238, 126
  %v2295 = vpop.permute.xlu0 %2294
  %2296 = vrot.lane.b32.xlu0 %v2239, 126
  %v2297 = vpop.permute.xlu0 %2296
  %2298 = vrot.lane.b32.xlu0 %v2240, 126
  %v2299 = vpop.permute.xlu0 %2298
  %2300 = vrot.lane.b32.xlu0 %v2241, 126
  %v2301 = vpop.permute.xlu0 %2300
  %2302 = vrot.lane.b32.xlu0 %v2242, 126
  %v2303 = vpop.permute.xlu0 %2302
  %2304 = vrot.lane.b32.xlu0 %v2243, 126
  %v2305 = vpop.permute.xlu0 %2304
  %2306 = vrot.lane.b32.xlu0 %v2244, 126
  %v2307 = vpop.permute.xlu0 %2306
  %2308 = vrot.lane.b32.xlu0 %v2245, 126
  %v2309 = vpop.permute.xlu0 %2308
  %2310 = vrot.lane.b32.xlu0 %v2246, 126
  %v2311 = vpop.permute.xlu0 %2310
  %2312 = vrot.lane.b32.xlu0 %v2247, 126
  %v2313 = vpop.permute.xlu0 %2312
  %2314 = vrot.lane.b32.xlu0 %v2248, 126
  %v2315 = vpop.permute.xlu0 %2314
  %2316 = vrot.lane.b32.xlu0 %v2249, 126
  %v2317 = vpop.permute.xlu0 %2316
  %2318 = vrot.lane.b32.xlu0 %v2250, 126
  %v2319 = vpop.permute.xlu0 %2318
  %2320 = vrot.lane.b32.xlu0 %v2251, 126
  %v2321 = vpop.permute.xlu0 %2320
  %2322 = vrot.lane.b32.xlu0 %v2252, 126
  %v2323 = vpop.permute.xlu0 %2322
  %2324 = vrot.lane.b32.xlu0 %v2253, 126
  %v2325 = vpop.permute.xlu0 %2324
  %v2326 = vsel %vm476, %v2279, %v2281
  %v2327 = vsel %vm476, %v2281, %v2283
  %v2328 = vsel %vm476, %v2285, %v2287
  %v2329 = vsel %vm476, %v2287, %v2289
  %v2330 = vsel %vm476, %v2291, %v2293
  %v2331 = vsel %vm476, %v2293, %v2295
  %v2332 = vsel %vm476, %v2297, %v2299
  %v2333 = vsel %vm476, %v2299, %v2301
  %v2334 = vsel %vm476, %v2303, %v2305
  %v2335 = vsel %vm476, %v2305, %v2307
  %v2336 = vsel %vm476, %v2309, %v2311
  %v2337 = vsel %vm476, %v2311, %v2313
  %v2338 = vsel %vm476, %v2315, %v2317
  %v2339 = vsel %vm476, %v2317, %v2319
  %v2340 = vsel %vm476, %v2321, %v2323
  %v2341 = vsel %vm476, %v2323, %v2325
  %v2366 = vadd.f32 %v2174, %v2326
  %v2367 = vadd.f32 %v2175, %v2327
  %v2368 = vadd.f32 %v2176, %v2283
  %v2369 = vadd.f32 %v2177, %v2328
  %v2370 = vadd.f32 %v2178, %v2329
  %v2371 = vadd.f32 %v2179, %v2289
  %v2372 = vadd.f32 %v2180, %v2330
  %v2373 = vadd.f32 %v2181, %v2331
  %v2374 = vadd.f32 %v2182, %v2295
  %v2375 = vadd.f32 %v2183, %v2332
  %v2376 = vadd.f32 %v2184, %v2333
  %v2377 = vadd.f32 %v2185, %v2301
  %v2378 = vadd.f32 %v2186, %v2334
  %v2379 = vadd.f32 %v2187, %v2335
  %v2380 = vadd.f32 %v2188, %v2307
  %v2381 = vadd.f32 %v2189, %v2336
  %v2382 = vadd.f32 %v2190, %v2337
  %v2383 = vadd.f32 %v2191, %v2313
  %v2384 = vadd.f32 %v2192, %v2338
  %v2385 = vadd.f32 %v2193, %v2339
  %v2386 = vadd.f32 %v2194, %v2319
  %v2387 = vadd.f32 %v2195, %v2340
  %v2388 = vadd.f32 %v2196, %v2341
  %v2389 = vadd.f32 %v2197, %v2325
  %2390 = vset.pattern.permute.xlu0 3
  %2391 = vperm.xlu0 %2390, %v1918
  %v2392 = vpop.permute.xlu0 %2391
  %2394 = vset.pattern.permute.xlu0 3
  %2395 = vperm.xlu0 %2394, %v1919
  %v2396 = vpop.permute.xlu0 %2395
  %2398 = vset.pattern.permute.xlu0 3
  %2399 = vperm.xlu0 %2398, %v1920
  %v2400 = vpop.permute.xlu0 %2399
  %2402 = vset.pattern.permute.xlu0 3
  %2403 = vperm.xlu0 %2402, %v1921
  %v2404 = vpop.permute.xlu0 %2403
  %2406 = vset.pattern.permute.xlu0 3
  %2407 = vperm.xlu0 %2406, %v1922
  %v2408 = vpop.permute.xlu0 %2407
  %2410 = vset.pattern.permute.xlu0 3
  %2411 = vperm.xlu0 %2410, %v1923
  %v2412 = vpop.permute.xlu0 %2411
  %2414 = vset.pattern.permute.xlu0 3
  %2415 = vperm.xlu0 %2414, %v1924
  %v2416 = vpop.permute.xlu0 %2415
  %2418 = vset.pattern.permute.xlu0 3
  %2419 = vperm.xlu0 %2418, %v1925
  %v2420 = vpop.permute.xlu0 %2419
  %v2422 = vmul.f32 %v2392, %v1970
  %v2423 = vmul.f32 %v2392, %v1974
  %v2424 = vmul.f32 %v2392, %v1978
  %v2425 = vmul.f32 %v2396, %v1970
  %v2426 = vmul.f32 %v2396, %v1974
  %v2427 = vmul.f32 %v2396, %v1978
  %v2428 = vmul.f32 %v2400, %v1970
  %v2429 = vmul.f32 %v2400, %v1974
  %v2430 = vmul.f32 %v2400, %v1978
  %v2431 = vmul.f32 %v2404, %v1970
  %v2432 = vmul.f32 %v2404, %v1974
  %v2433 = vmul.f32 %v2404, %v1978
  %v2434 = vmul.f32 %v2408, %v1970
  %v2435 = vmul.f32 %v2408, %v1974
  %v2436 = vmul.f32 %v2408, %v1978
  %v2437 = vmul.f32 %v2412, %v1970
  %v2438 = vmul.f32 %v2412, %v1974
  %v2439 = vmul.f32 %v2412, %v1978
  %v2440 = vmul.f32 %v2416, %v1970
  %v2441 = vmul.f32 %v2416, %v1974
  %v2442 = vmul.f32 %v2416, %v1978
  %v2443 = vmul.f32 %v2420, %v1970
  %v2444 = vmul.f32 %v2420, %v1974
  %v2445 = vmul.f32 %v2420, %v1978
  %2470 = vrot.lane.b32.xlu0 %v2422, 110
  %v2471 = vpop.permute.xlu0 %2470
  %2472 = vrot.lane.b32.xlu0 %v2423, 110
  %v2473 = vpop.permute.xlu0 %2472
  %2474 = vrot.lane.b32.xlu0 %v2424, 110
  %v2475 = vpop.permute.xlu0 %2474
  %2476 = vrot.lane.b32.xlu0 %v2425, 110
  %v2477 = vpop.permute.xlu0 %2476
  %2478 = vrot.lane.b32.xlu0 %v2426, 110
  %v2479 = vpop.permute.xlu0 %2478
  %2480 = vrot.lane.b32.xlu0 %v2427, 110
  %v2481 = vpop.permute.xlu0 %2480
  %2482 = vrot.lane.b32.xlu0 %v2428, 110
  %v2483 = vpop.permute.xlu0 %2482
  %2484 = vrot.lane.b32.xlu0 %v2429, 110
  %v2485 = vpop.permute.xlu0 %2484
  %2486 = vrot.lane.b32.xlu0 %v2430, 110
  %v2487 = vpop.permute.xlu0 %2486
  %2488 = vrot.lane.b32.xlu0 %v2431, 110
  %v2489 = vpop.permute.xlu0 %2488
  %2490 = vrot.lane.b32.xlu0 %v2432, 110
  %v2491 = vpop.permute.xlu0 %2490
  %2492 = vrot.lane.b32.xlu0 %v2433, 110
  %v2493 = vpop.permute.xlu0 %2492
  %2494 = vrot.lane.b32.xlu0 %v2434, 110
  %v2495 = vpop.permute.xlu0 %2494
  %2496 = vrot.lane.b32.xlu0 %v2435, 110
  %v2497 = vpop.permute.xlu0 %2496
  %2498 = vrot.lane.b32.xlu0 %v2436, 110
  %v2499 = vpop.permute.xlu0 %2498
  %2500 = vrot.lane.b32.xlu0 %v2437, 110
  %v2501 = vpop.permute.xlu0 %2500
  %2502 = vrot.lane.b32.xlu0 %v2438, 110
  %v2503 = vpop.permute.xlu0 %2502
  %2504 = vrot.lane.b32.xlu0 %v2439, 110
  %v2505 = vpop.permute.xlu0 %2504
  %2506 = vrot.lane.b32.xlu0 %v2440, 110
  %v2507 = vpop.permute.xlu0 %2506
  %2508 = vrot.lane.b32.xlu0 %v2441, 110
  %v2509 = vpop.permute.xlu0 %2508
  %2510 = vrot.lane.b32.xlu0 %v2442, 110
  %v2511 = vpop.permute.xlu0 %2510
  %2512 = vrot.lane.b32.xlu0 %v2443, 110
  %v2513 = vpop.permute.xlu0 %2512
  %2514 = vrot.lane.b32.xlu0 %v2444, 110
  %v2515 = vpop.permute.xlu0 %2514
  %2516 = vrot.lane.b32.xlu0 %v2445, 110
  %v2517 = vpop.permute.xlu0 %2516
  %v2518 = vsel %vm669, %v2471, %v2473
  %v2519 = vsel %vm669, %v2473, %v2475
  %v2520 = vsel %vm669, %v2477, %v2479
  %v2521 = vsel %vm669, %v2479, %v2481
  %v2522 = vsel %vm669, %v2483, %v2485
  %v2523 = vsel %vm669, %v2485, %v2487
  %v2524 = vsel %vm669, %v2489, %v2491
  %v2525 = vsel %vm669, %v2491, %v2493
  %v2526 = vsel %vm669, %v2495, %v2497
  %v2527 = vsel %vm669, %v2497, %v2499
  %v2528 = vsel %vm669, %v2501, %v2503
  %v2529 = vsel %vm669, %v2503, %v2505
  %v2530 = vsel %vm669, %v2507, %v2509
  %v2531 = vsel %vm669, %v2509, %v2511
  %v2532 = vsel %vm669, %v2513, %v2515
  %v2533 = vsel %vm669, %v2515, %v2517
  %v2558 = vadd.f32 %v2366, %v2518
  %v2559 = vadd.f32 %v2367, %v2519
  %v2560 = vadd.f32 %v2368, %v2475
  %v2561 = vadd.f32 %v2369, %v2520
  %v2562 = vadd.f32 %v2370, %v2521
  %v2563 = vadd.f32 %v2371, %v2481
  %v2564 = vadd.f32 %v2372, %v2522
  %v2565 = vadd.f32 %v2373, %v2523
  %v2566 = vadd.f32 %v2374, %v2487
  %v2567 = vadd.f32 %v2375, %v2524
  %v2568 = vadd.f32 %v2376, %v2525
  %v2569 = vadd.f32 %v2377, %v2493
  %v2570 = vadd.f32 %v2378, %v2526
  %v2571 = vadd.f32 %v2379, %v2527
  %v2572 = vadd.f32 %v2380, %v2499
  %v2573 = vadd.f32 %v2381, %v2528
  %v2574 = vadd.f32 %v2382, %v2529
  %v2575 = vadd.f32 %v2383, %v2505
  %v2576 = vadd.f32 %v2384, %v2530
  %v2577 = vadd.f32 %v2385, %v2531
  %v2578 = vadd.f32 %v2386, %v2511
  %v2579 = vadd.f32 %v2387, %v2532
  %v2580 = vadd.f32 %v2388, %v2533
  %v2581 = vadd.f32 %v2389, %v2517
  %2582 = vset.pattern.permute.xlu0 4
  %2583 = vperm.xlu0 %2582, %v1918
  %v2584 = vpop.permute.xlu0 %2583
  %2586 = vset.pattern.permute.xlu0 4
  %2587 = vperm.xlu0 %2586, %v1919
  %v2588 = vpop.permute.xlu0 %2587
  %2590 = vset.pattern.permute.xlu0 4
  %2591 = vperm.xlu0 %2590, %v1920
  %v2592 = vpop.permute.xlu0 %2591
  %2594 = vset.pattern.permute.xlu0 4
  %2595 = vperm.xlu0 %2594, %v1921
  %v2596 = vpop.permute.xlu0 %2595
  %2598 = vset.pattern.permute.xlu0 4
  %2599 = vperm.xlu0 %2598, %v1922
  %v2600 = vpop.permute.xlu0 %2599
  %2602 = vset.pattern.permute.xlu0 4
  %2603 = vperm.xlu0 %2602, %v1923
  %v2604 = vpop.permute.xlu0 %2603
  %2606 = vset.pattern.permute.xlu0 4
  %2607 = vperm.xlu0 %2606, %v1924
  %v2608 = vpop.permute.xlu0 %2607
  %2610 = vset.pattern.permute.xlu0 4
  %2611 = vperm.xlu0 %2610, %v1925
  %v2612 = vpop.permute.xlu0 %2611
  %v2614 = vmul.f32 %v2584, %v1970
  %v2615 = vmul.f32 %v2584, %v1974
  %v2616 = vmul.f32 %v2584, %v1978
  %v2617 = vmul.f32 %v2588, %v1970
  %v2618 = vmul.f32 %v2588, %v1974
  %v2619 = vmul.f32 %v2588, %v1978
  %v2620 = vmul.f32 %v2592, %v1970
  %v2621 = vmul.f32 %v2592, %v1974
  %v2622 = vmul.f32 %v2592, %v1978
  %v2623 = vmul.f32 %v2596, %v1970
  %v2624 = vmul.f32 %v2596, %v1974
  %v2625 = vmul.f32 %v2596, %v1978
  %v2626 = vmul.f32 %v2600, %v1970
  %v2627 = vmul.f32 %v2600, %v1974
  %v2628 = vmul.f32 %v2600, %v1978
  %v2629 = vmul.f32 %v2604, %v1970
  %v2630 = vmul.f32 %v2604, %v1974
  %v2631 = vmul.f32 %v2604, %v1978
  %v2632 = vmul.f32 %v2608, %v1970
  %v2633 = vmul.f32 %v2608, %v1974
  %v2634 = vmul.f32 %v2608, %v1978
  %v2635 = vmul.f32 %v2612, %v1970
  %v2636 = vmul.f32 %v2612, %v1974
  %v2637 = vmul.f32 %v2612, %v1978
  %2662 = vrot.lane.b32.xlu0 %v2614, 109
  %v2663 = vpop.permute.xlu0 %2662
  %2664 = vrot.lane.b32.xlu0 %v2615, 109
  %v2665 = vpop.permute.xlu0 %2664
  %2666 = vrot.lane.b32.xlu0 %v2616, 109
  %v2667 = vpop.permute.xlu0 %2666
  %2668 = vrot.lane.b32.xlu0 %v2617, 109
  %v2669 = vpop.permute.xlu0 %2668
  %2670 = vrot.lane.b32.xlu0 %v2618, 109
  %v2671 = vpop.permute.xlu0 %2670
  %2672 = vrot.lane.b32.xlu0 %v2619, 109
  %v2673 = vpop.permute.xlu0 %2672
  %2674 = vrot.lane.b32.xlu0 %v2620, 109
  %v2675 = vpop.permute.xlu0 %2674
  %2676 = vrot.lane.b32.xlu0 %v2621, 109
  %v2677 = vpop.permute.xlu0 %2676
  %2678 = vrot.lane.b32.xlu0 %v2622, 109
  %v2679 = vpop.permute.xlu0 %2678
  %2680 = vrot.lane.b32.xlu0 %v2623, 109
  %v2681 = vpop.permute.xlu0 %2680
  %2682 = vrot.lane.b32.xlu0 %v2624, 109
  %v2683 = vpop.permute.xlu0 %2682
  %2684 = vrot.lane.b32.xlu0 %v2625, 109
  %v2685 = vpop.permute.xlu0 %2684
  %2686 = vrot.lane.b32.xlu0 %v2626, 109
  %v2687 = vpop.permute.xlu0 %2686
  %2688 = vrot.lane.b32.xlu0 %v2627, 109
  %v2689 = vpop.permute.xlu0 %2688
  %2690 = vrot.lane.b32.xlu0 %v2628, 109
  %v2691 = vpop.permute.xlu0 %2690
  %2692 = vrot.lane.b32.xlu0 %v2629, 109
  %v2693 = vpop.permute.xlu0 %2692
  %2694 = vrot.lane.b32.xlu0 %v2630, 109
  %v2695 = vpop.permute.xlu0 %2694
  %2696 = vrot.lane.b32.xlu0 %v2631, 109
  %v2697 = vpop.permute.xlu0 %2696
  %2698 = vrot.lane.b32.xlu0 %v2632, 109
  %v2699 = vpop.permute.xlu0 %2698
  %2700 = vrot.lane.b32.xlu0 %v2633, 109
  %v2701 = vpop.permute.xlu0 %2700
  %2702 = vrot.lane.b32.xlu0 %v2634, 109
  %v2703 = vpop.permute.xlu0 %2702
  %2704 = vrot.lane.b32.xlu0 %v2635, 109
  %v2705 = vpop.permute.xlu0 %2704
  %2706 = vrot.lane.b32.xlu0 %v2636, 109
  %v2707 = vpop.permute.xlu0 %2706
  %2708 = vrot.lane.b32.xlu0 %v2637, 109
  %v2709 = vpop.permute.xlu0 %2708
  %v2710 = vsel %vm862, %v2663, %v2665
  %v2711 = vsel %vm862, %v2665, %v2667
  %v2712 = vsel %vm862, %v2669, %v2671
  %v2713 = vsel %vm862, %v2671, %v2673
  %v2714 = vsel %vm862, %v2675, %v2677
  %v2715 = vsel %vm862, %v2677, %v2679
  %v2716 = vsel %vm862, %v2681, %v2683
  %v2717 = vsel %vm862, %v2683, %v2685
  %v2718 = vsel %vm862, %v2687, %v2689
  %v2719 = vsel %vm862, %v2689, %v2691
  %v2720 = vsel %vm862, %v2693, %v2695
  %v2721 = vsel %vm862, %v2695, %v2697
  %v2722 = vsel %vm862, %v2699, %v2701
  %v2723 = vsel %vm862, %v2701, %v2703
  %v2724 = vsel %vm862, %v2705, %v2707
  %v2725 = vsel %vm862, %v2707, %v2709
  %v2750 = vadd.f32 %v2558, %v2710
  %v2751 = vadd.f32 %v2559, %v2711
  %v2752 = vadd.f32 %v2560, %v2667
  %v2753 = vadd.f32 %v2561, %v2712
  %v2754 = vadd.f32 %v2562, %v2713
  %v2755 = vadd.f32 %v2563, %v2673
  %v2756 = vadd.f32 %v2564, %v2714
  %v2757 = vadd.f32 %v2565, %v2715
  %v2758 = vadd.f32 %v2566, %v2679
  %v2759 = vadd.f32 %v2567, %v2716
  %v2760 = vadd.f32 %v2568, %v2717
  %v2761 = vadd.f32 %v2569, %v2685
  %v2762 = vadd.f32 %v2570, %v2718
  %v2763 = vadd.f32 %v2571, %v2719
  %v2764 = vadd.f32 %v2572, %v2691
  %v2765 = vadd.f32 %v2573, %v2720
  %v2766 = vadd.f32 %v2574, %v2721
  %v2767 = vadd.f32 %v2575, %v2697
  %v2768 = vadd.f32 %v2576, %v2722
  %v2769 = vadd.f32 %v2577, %v2723
  %v2770 = vadd.f32 %v2578, %v2703
  %v2771 = vadd.f32 %v2579, %v2724
  %v2772 = vadd.f32 %v2580, %v2725
  %v2773 = vadd.f32 %v2581, %v2709
  %2774 = vset.pattern.permute.xlu0 5
  %2775 = vperm.xlu0 %2774, %v1918
  %v2776 = vpop.permute.xlu0 %2775
  %2778 = vset.pattern.permute.xlu0 5
  %2779 = vperm.xlu0 %2778, %v1919
  %v2780 = vpop.permute.xlu0 %2779
  %2782 = vset.pattern.permute.xlu0 5
  %2783 = vperm.xlu0 %2782, %v1920
  %v2784 = vpop.permute.xlu0 %2783
  %2786 = vset.pattern.permute.xlu0 5
  %2787 = vperm.xlu0 %2786, %v1921
  %v2788 = vpop.permute.xlu0 %2787
  %2790 = vset.pattern.permute.xlu0 5
  %2791 = vperm.xlu0 %2790, %v1922
  %v2792 = vpop.permute.xlu0 %2791
  %2794 = vset.pattern.permute.xlu0 5
  %2795 = vperm.xlu0 %2794, %v1923
  %v2796 = vpop.permute.xlu0 %2795
  %2798 = vset.pattern.permute.xlu0 5
  %2799 = vperm.xlu0 %2798, %v1924
  %v2800 = vpop.permute.xlu0 %2799
  %2802 = vset.pattern.permute.xlu0 5
  %2803 = vperm.xlu0 %2802, %v1925
  %v2804 = vpop.permute.xlu0 %2803
  %v2806 = vmul.f32 %v2776, %v1970
  %v2807 = vmul.f32 %v2776, %v1974
  %v2808 = vmul.f32 %v2776, %v1978
  %v2809 = vmul.f32 %v2780, %v1970
  %v2810 = vmul.f32 %v2780, %v1974
  %v2811 = vmul.f32 %v2780, %v1978
  %v2812 = vmul.f32 %v2784, %v1970
  %v2813 = vmul.f32 %v2784, %v1974
  %v2814 = vmul.f32 %v2784, %v1978
  %v2815 = vmul.f32 %v2788, %v1970
  %v2816 = vmul.f32 %v2788, %v1974
  %v2817 = vmul.f32 %v2788, %v1978
  %v2818 = vmul.f32 %v2792, %v1970
  %v2819 = vmul.f32 %v2792, %v1974
  %v2820 = vmul.f32 %v2792, %v1978
  %v2821 = vmul.f32 %v2796, %v1970
  %v2822 = vmul.f32 %v2796, %v1974
  %v2823 = vmul.f32 %v2796, %v1978
  %v2824 = vmul.f32 %v2800, %v1970
  %v2825 = vmul.f32 %v2800, %v1974
  %v2826 = vmul.f32 %v2800, %v1978
  %v2827 = vmul.f32 %v2804, %v1970
  %v2828 = vmul.f32 %v2804, %v1974
  %v2829 = vmul.f32 %v2804, %v1978
  %2854 = vrot.lane.b32.xlu0 %v2806, 108
  %v2855 = vpop.permute.xlu0 %2854
  %2856 = vrot.lane.b32.xlu0 %v2807, 108
  %v2857 = vpop.permute.xlu0 %2856
  %2858 = vrot.lane.b32.xlu0 %v2808, 108
  %v2859 = vpop.permute.xlu0 %2858
  %2860 = vrot.lane.b32.xlu0 %v2809, 108
  %v2861 = vpop.permute.xlu0 %2860
  %2862 = vrot.lane.b32.xlu0 %v2810, 108
  %v2863 = vpop.permute.xlu0 %2862
  %2864 = vrot.lane.b32.xlu0 %v2811, 108
  %v2865 = vpop.permute.xlu0 %2864
  %2866 = vrot.lane.b32.xlu0 %v2812, 108
  %v2867 = vpop.permute.xlu0 %2866
  %2868 = vrot.lane.b32.xlu0 %v2813, 108
  %v2869 = vpop.permute.xlu0 %2868
  %2870 = vrot.lane.b32.xlu0 %v2814, 108
  %v2871 = vpop.permute.xlu0 %2870
  %2872 = vrot.lane.b32.xlu0 %v2815, 108
  %v2873 = vpop.permute.xlu0 %2872
  %2874 = vrot.lane.b32.xlu0 %v2816, 108
  %v2875 = vpop.permute.xlu0 %2874
  %2876 = vrot.lane.b32.xlu0 %v2817, 108
  %v2877 = vpop.permute.xlu0 %2876
  %2878 = vrot.lane.b32.xlu0 %v2818, 108
  %v2879 = vpop.permute.xlu0 %2878
  %2880 = vrot.lane.b32.xlu0 %v2819, 108
  %v2881 = vpop.permute.xlu0 %2880
  %2882 = vrot.lane.b32.xlu0 %v2820, 108
  %v2883 = vpop.permute.xlu0 %2882
  %2884 = vrot.lane.b32.xlu0 %v2821, 108
  %v2885 = vpop.permute.xlu0 %2884
  %2886 = vrot.lane.b32.xlu0 %v2822, 108
  %v2887 = vpop.permute.xlu0 %2886
  %2888 = vrot.lane.b32.xlu0 %v2823, 108
  %v2889 = vpop.permute.xlu0 %2888
  %2890 = vrot.lane.b32.xlu0 %v2824, 108
  %v2891 = vpop.permute.xlu0 %2890
  %2892 = vrot.lane.b32.xlu0 %v2825, 108
  %v2893 = vpop.permute.xlu0 %2892
  %2894 = vrot.lane.b32.xlu0 %v2826, 108
  %v2895 = vpop.permute.xlu0 %2894
  %2896 = vrot.lane.b32.xlu0 %v2827, 108
  %v2897 = vpop.permute.xlu0 %2896
  %2898 = vrot.lane.b32.xlu0 %v2828, 108
  %v2899 = vpop.permute.xlu0 %2898
  %2900 = vrot.lane.b32.xlu0 %v2829, 108
  %v2901 = vpop.permute.xlu0 %2900
  %v2902 = vsel %vm1055, %v2855, %v2857
  %v2903 = vsel %vm1055, %v2857, %v2859
  %v2904 = vsel %vm1055, %v2861, %v2863
  %v2905 = vsel %vm1055, %v2863, %v2865
  %v2906 = vsel %vm1055, %v2867, %v2869
  %v2907 = vsel %vm1055, %v2869, %v2871
  %v2908 = vsel %vm1055, %v2873, %v2875
  %v2909 = vsel %vm1055, %v2875, %v2877
  %v2910 = vsel %vm1055, %v2879, %v2881
  %v2911 = vsel %vm1055, %v2881, %v2883
  %v2912 = vsel %vm1055, %v2885, %v2887
  %v2913 = vsel %vm1055, %v2887, %v2889
  %v2914 = vsel %vm1055, %v2891, %v2893
  %v2915 = vsel %vm1055, %v2893, %v2895
  %v2916 = vsel %vm1055, %v2897, %v2899
  %v2917 = vsel %vm1055, %v2899, %v2901
  %v2942 = vadd.f32 %v2750, %v2902
  %v2943 = vadd.f32 %v2751, %v2903
  %v2944 = vadd.f32 %v2752, %v2859
  %v2945 = vadd.f32 %v2753, %v2904
  %v2946 = vadd.f32 %v2754, %v2905
  %v2947 = vadd.f32 %v2755, %v2865
  %v2948 = vadd.f32 %v2756, %v2906
  %v2949 = vadd.f32 %v2757, %v2907
  %v2950 = vadd.f32 %v2758, %v2871
  %v2951 = vadd.f32 %v2759, %v2908
  %v2952 = vadd.f32 %v2760, %v2909
  %v2953 = vadd.f32 %v2761, %v2877
  %v2954 = vadd.f32 %v2762, %v2910
  %v2955 = vadd.f32 %v2763, %v2911
  %v2956 = vadd.f32 %v2764, %v2883
  %v2957 = vadd.f32 %v2765, %v2912
  %v2958 = vadd.f32 %v2766, %v2913
  %v2959 = vadd.f32 %v2767, %v2889
  %v2960 = vadd.f32 %v2768, %v2914
  %v2961 = vadd.f32 %v2769, %v2915
  %v2962 = vadd.f32 %v2770, %v2895
  %v2963 = vadd.f32 %v2771, %v2916
  %v2964 = vadd.f32 %v2772, %v2917
  %v2965 = vadd.f32 %v2773, %v2901
  %2966 = vset.pattern.permute.xlu0 6
  %2967 = vperm.xlu0 %2966, %v1918
  %v2968 = vpop.permute.xlu0 %2967
  %2970 = vset.pattern.permute.xlu0 6
  %2971 = vperm.xlu0 %2970, %v1919
  %v2972 = vpop.permute.xlu0 %2971
  %2974 = vset.pattern.permute.xlu0 6
  %2975 = vperm.xlu0 %2974, %v1920
  %v2976 = vpop.permute.xlu0 %2975
  %2978 = vset.pattern.permute.xlu0 6
  %2979 = vperm.xlu0 %2978, %v1921
  %v2980 = vpop.permute.xlu0 %2979
  %2982 = vset.pattern.permute.xlu0 6
  %2983 = vperm.xlu0 %2982, %v1922
  %v2984 = vpop.permute.xlu0 %2983
  %2986 = vset.pattern.permute.xlu0 6
  %2987 = vperm.xlu0 %2986, %v1923
  %v2988 = vpop.permute.xlu0 %2987
  %2990 = vset.pattern.permute.xlu0 6
  %2991 = vperm.xlu0 %2990, %v1924
  %v2992 = vpop.permute.xlu0 %2991
  %2994 = vset.pattern.permute.xlu0 6
  %2995 = vperm.xlu0 %2994, %v1925
  %v2996 = vpop.permute.xlu0 %2995
  %v2998 = vmul.f32 %v2968, %v1970
  %v2999 = vmul.f32 %v2968, %v1974
  %v3000 = vmul.f32 %v2968, %v1978
  %v3001 = vmul.f32 %v2972, %v1970
  %v3002 = vmul.f32 %v2972, %v1974
  %v3003 = vmul.f32 %v2972, %v1978
  %v3004 = vmul.f32 %v2976, %v1970
  %v3005 = vmul.f32 %v2976, %v1974
  %v3006 = vmul.f32 %v2976, %v1978
  %v3007 = vmul.f32 %v2980, %v1970
  %v3008 = vmul.f32 %v2980, %v1974
  %v3009 = vmul.f32 %v2980, %v1978
  %v3010 = vmul.f32 %v2984, %v1970
  %v3011 = vmul.f32 %v2984, %v1974
  %v3012 = vmul.f32 %v2984, %v1978
  %v3013 = vmul.f32 %v2988, %v1970
  %v3014 = vmul.f32 %v2988, %v1974
  %v3015 = vmul.f32 %v2988, %v1978
  %v3016 = vmul.f32 %v2992, %v1970
  %v3017 = vmul.f32 %v2992, %v1974
  %v3018 = vmul.f32 %v2992, %v1978
  %v3019 = vmul.f32 %v2996, %v1970
  %v3020 = vmul.f32 %v2996, %v1974
  %v3021 = vmul.f32 %v2996, %v1978
  %3046 = vrot.lane.b32.xlu0 %v2998, 92
  %v3047 = vpop.permute.xlu0 %3046
  %3048 = vrot.lane.b32.xlu0 %v2999, 92
  %v3049 = vpop.permute.xlu0 %3048
  %3050 = vrot.lane.b32.xlu0 %v3000, 92
  %v3051 = vpop.permute.xlu0 %3050
  %3052 = vrot.lane.b32.xlu0 %v3001, 92
  %v3053 = vpop.permute.xlu0 %3052
  %3054 = vrot.lane.b32.xlu0 %v3002, 92
  %v3055 = vpop.permute.xlu0 %3054
  %3056 = vrot.lane.b32.xlu0 %v3003, 92
  %v3057 = vpop.permute.xlu0 %3056
  %3058 = vrot.lane.b32.xlu0 %v3004, 92
  %v3059 = vpop.permute.xlu0 %3058
  %3060 = vrot.lane.b32.xlu0 %v3005, 92
  %v3061 = vpop.permute.xlu0 %3060
  %3062 = vrot.lane.b32.xlu0 %v3006, 92
  %v3063 = vpop.permute.xlu0 %3062
  %3064 = vrot.lane.b32.xlu0 %v3007, 92
  %v3065 = vpop.permute.xlu0 %3064
  %3066 = vrot.lane.b32.xlu0 %v3008, 92
  %v3067 = vpop.permute.xlu0 %3066
  %3068 = vrot.lane.b32.xlu0 %v3009, 92
  %v3069 = vpop.permute.xlu0 %3068
  %3070 = vrot.lane.b32.xlu0 %v3010, 92
  %v3071 = vpop.permute.xlu0 %3070
  %3072 = vrot.lane.b32.xlu0 %v3011, 92
  %v3073 = vpop.permute.xlu0 %3072
  %3074 = vrot.lane.b32.xlu0 %v3012, 92
  %v3075 = vpop.permute.xlu0 %3074
  %3076 = vrot.lane.b32.xlu0 %v3013, 92
  %v3077 = vpop.permute.xlu0 %3076
  %3078 = vrot.lane.b32.xlu0 %v3014, 92
  %v3079 = vpop.permute.xlu0 %3078
  %3080 = vrot.lane.b32.xlu0 %v3015, 92
  %v3081 = vpop.permute.xlu0 %3080
  %3082 = vrot.lane.b32.xlu0 %v3016, 92
  %v3083 = vpop.permute.xlu0 %3082
  %3084 = vrot.lane.b32.xlu0 %v3017, 92
  %v3085 = vpop.permute.xlu0 %3084
  %3086 = vrot.lane.b32.xlu0 %v3018, 92
  %v3087 = vpop.permute.xlu0 %3086
  %3088 = vrot.lane.b32.xlu0 %v3019, 92
  %v3089 = vpop.permute.xlu0 %3088
  %3090 = vrot.lane.b32.xlu0 %v3020, 92
  %v3091 = vpop.permute.xlu0 %3090
  %3092 = vrot.lane.b32.xlu0 %v3021, 92
  %v3093 = vpop.permute.xlu0 %3092
  %v3094 = vsel %vm1248, %v3047, %v3049
  %v3095 = vsel %vm1248, %v3049, %v3051
  %v3096 = vsel %vm1248, %v3053, %v3055
  %v3097 = vsel %vm1248, %v3055, %v3057
  %v3098 = vsel %vm1248, %v3059, %v3061
  %v3099 = vsel %vm1248, %v3061, %v3063
  %v3100 = vsel %vm1248, %v3065, %v3067
  %v3101 = vsel %vm1248, %v3067, %v3069
  %v3102 = vsel %vm1248, %v3071, %v3073
  %v3103 = vsel %vm1248, %v3073, %v3075
  %v3104 = vsel %vm1248, %v3077, %v3079
  %v3105 = vsel %vm1248, %v3079, %v3081
  %v3106 = vsel %vm1248, %v3083, %v3085
  %v3107 = vsel %vm1248, %v3085, %v3087
  %v3108 = vsel %vm1248, %v3089, %v3091
  %v3109 = vsel %vm1248, %v3091, %v3093
  %v3134 = vadd.f32 %v2942, %v3094
  %v3135 = vadd.f32 %v2943, %v3095
  %v3136 = vadd.f32 %v2944, %v3051
  %v3137 = vadd.f32 %v2945, %v3096
  %v3138 = vadd.f32 %v2946, %v3097
  %v3139 = vadd.f32 %v2947, %v3057
  %v3140 = vadd.f32 %v2948, %v3098
  %v3141 = vadd.f32 %v2949, %v3099
  %v3142 = vadd.f32 %v2950, %v3063
  %v3143 = vadd.f32 %v2951, %v3100
  %v3144 = vadd.f32 %v2952, %v3101
  %v3145 = vadd.f32 %v2953, %v3069
  %v3146 = vadd.f32 %v2954, %v3102
  %v3147 = vadd.f32 %v2955, %v3103
  %v3148 = vadd.f32 %v2956, %v3075
  %v3149 = vadd.f32 %v2957, %v3104
  %v3150 = vadd.f32 %v2958, %v3105
  %v3151 = vadd.f32 %v2959, %v3081
  %v3152 = vadd.f32 %v2960, %v3106
  %v3153 = vadd.f32 %v2961, %v3107
  %v3154 = vadd.f32 %v2962, %v3087
  %v3155 = vadd.f32 %v2963, %v3108
  %v3156 = vadd.f32 %v2964, %v3109
  %v3157 = vadd.f32 %v2965, %v3093
  %3158 = vset.pattern.permute.xlu0 7
  %3159 = vperm.xlu0 %3158, %v1918
  %v3160 = vpop.permute.xlu0 %3159
  %3162 = vset.pattern.permute.xlu0 7
  %3163 = vperm.xlu0 %3162, %v1919
  %v3164 = vpop.permute.xlu0 %3163
  %3166 = vset.pattern.permute.xlu0 7
  %3167 = vperm.xlu0 %3166, %v1920
  %v3168 = vpop.permute.xlu0 %3167
  %3170 = vset.pattern.permute.xlu0 7
  %3171 = vperm.xlu0 %3170, %v1921
  %v3172 = vpop.permute.xlu0 %3171
  %3174 = vset.pattern.permute.xlu0 7
  %3175 = vperm.xlu0 %3174, %v1922
  %v3176 = vpop.permute.xlu0 %3175
  %3178 = vset.pattern.permute.xlu0 7
  %3179 = vperm.xlu0 %3178, %v1923
  %v3180 = vpop.permute.xlu0 %3179
  %3182 = vset.pattern.permute.xlu0 7
  %3183 = vperm.xlu0 %3182, %v1924
  %v3184 = vpop.permute.xlu0 %3183
  %3186 = vset.pattern.permute.xlu0 7
  %3187 = vperm.xlu0 %3186, %v1925
  %v3188 = vpop.permute.xlu0 %3187
  %v3190 = vmul.f32 %v3160, %v1970
  %v3191 = vmul.f32 %v3160, %v1974
  %v3192 = vmul.f32 %v3160, %v1978
  %v3193 = vmul.f32 %v3164, %v1970
  %v3194 = vmul.f32 %v3164, %v1974
  %v3195 = vmul.f32 %v3164, %v1978
  %v3196 = vmul.f32 %v3168, %v1970
  %v3197 = vmul.f32 %v3168, %v1974
  %v3198 = vmul.f32 %v3168, %v1978
  %v3199 = vmul.f32 %v3172, %v1970
  %v3200 = vmul.f32 %v3172, %v1974
  %v3201 = vmul.f32 %v3172, %v1978
  %v3202 = vmul.f32 %v3176, %v1970
  %v3203 = vmul.f32 %v3176, %v1974
  %v3204 = vmul.f32 %v3176, %v1978
  %v3205 = vmul.f32 %v3180, %v1970
  %v3206 = vmul.f32 %v3180, %v1974
  %v3207 = vmul.f32 %v3180, %v1978
  %v3208 = vmul.f32 %v3184, %v1970
  %v3209 = vmul.f32 %v3184, %v1974
  %v3210 = vmul.f32 %v3184, %v1978
  %v3211 = vmul.f32 %v3188, %v1970
  %v3212 = vmul.f32 %v3188, %v1974
  %v3213 = vmul.f32 %v3188, %v1978
  %3238 = vrot.lane.b32.xlu0 %v3190, 91
  %v3239 = vpop.permute.xlu0 %3238
  %3240 = vrot.lane.b32.xlu0 %v3191, 91
  %v3241 = vpop.permute.xlu0 %3240
  %3242 = vrot.lane.b32.xlu0 %v3192, 91
  %v3243 = vpop.permute.xlu0 %3242
  %3244 = vrot.lane.b32.xlu0 %v3193, 91
  %v3245 = vpop.permute.xlu0 %3244
  %3246 = vrot.lane.b32.xlu0 %v3194, 91
  %v3247 = vpop.permute.xlu0 %3246
  %3248 = vrot.lane.b32.xlu0 %v3195, 91
  %v3249 = vpop.permute.xlu0 %3248
  %3250 = vrot.lane.b32.xlu0 %v3196, 91
  %v3251 = vpop.permute.xlu0 %3250
  %3252 = vrot.lane.b32.xlu0 %v3197, 91
  %v3253 = vpop.permute.xlu0 %3252
  %3254 = vrot.lane.b32.xlu0 %v3198, 91
  %v3255 = vpop.permute.xlu0 %3254
  %3256 = vrot.lane.b32.xlu0 %v3199, 91
  %v3257 = vpop.permute.xlu0 %3256
  %3258 = vrot.lane.b32.xlu0 %v3200, 91
  %v3259 = vpop.permute.xlu0 %3258
  %3260 = vrot.lane.b32.xlu0 %v3201, 91
  %v3261 = vpop.permute.xlu0 %3260
  %3262 = vrot.lane.b32.xlu0 %v3202, 91
  %v3263 = vpop.permute.xlu0 %3262
  %3264 = vrot.lane.b32.xlu0 %v3203, 91
  %v3265 = vpop.permute.xlu0 %3264
  %3266 = vrot.lane.b32.xlu0 %v3204, 91
  %v3267 = vpop.permute.xlu0 %3266
  %3268 = vrot.lane.b32.xlu0 %v3205, 91
  %v3269 = vpop.permute.xlu0 %3268
  %3270 = vrot.lane.b32.xlu0 %v3206, 91
  %v3271 = vpop.permute.xlu0 %3270
  %3272 = vrot.lane.b32.xlu0 %v3207, 91
  %v3273 = vpop.permute.xlu0 %3272
  %3274 = vrot.lane.b32.xlu0 %v3208, 91
  %v3275 = vpop.permute.xlu0 %3274
  %3276 = vrot.lane.b32.xlu0 %v3209, 91
  %v3277 = vpop.permute.xlu0 %3276
  %3278 = vrot.lane.b32.xlu0 %v3210, 91
  %v3279 = vpop.permute.xlu0 %3278
  %3280 = vrot.lane.b32.xlu0 %v3211, 91
  %v3281 = vpop.permute.xlu0 %3280
  %3282 = vrot.lane.b32.xlu0 %v3212, 91
  %v3283 = vpop.permute.xlu0 %3282
  %3284 = vrot.lane.b32.xlu0 %v3213, 91
  %v3285 = vpop.permute.xlu0 %3284
  %v3286 = vsel %vm1441, %v3239, %v3241
  %v3287 = vsel %vm1441, %v3241, %v3243
  %v3288 = vsel %vm1441, %v3245, %v3247
  %v3289 = vsel %vm1441, %v3247, %v3249
  %v3290 = vsel %vm1441, %v3251, %v3253
  %v3291 = vsel %vm1441, %v3253, %v3255
  %v3292 = vsel %vm1441, %v3257, %v3259
  %v3293 = vsel %vm1441, %v3259, %v3261
  %v3294 = vsel %vm1441, %v3263, %v3265
  %v3295 = vsel %vm1441, %v3265, %v3267
  %v3296 = vsel %vm1441, %v3269, %v3271
  %v3297 = vsel %vm1441, %v3271, %v3273
  %v3298 = vsel %vm1441, %v3275, %v3277
  %v3299 = vsel %vm1441, %v3277, %v3279
  %v3300 = vsel %vm1441, %v3281, %v3283
  %v3301 = vsel %vm1441, %v3283, %v3285
  %v3326 = vadd.f32 %v3134, %v3286
  %v3327 = vadd.f32 %v3135, %v3287
  %v3328 = vadd.f32 %v3136, %v3243
  %v3329 = vadd.f32 %v3137, %v3288
  %v3330 = vadd.f32 %v3138, %v3289
  %v3331 = vadd.f32 %v3139, %v3249
  %v3332 = vadd.f32 %v3140, %v3290
  %v3333 = vadd.f32 %v3141, %v3291
  %v3334 = vadd.f32 %v3142, %v3255
  %v3335 = vadd.f32 %v3143, %v3292
  %v3336 = vadd.f32 %v3144, %v3293
  %v3337 = vadd.f32 %v3145, %v3261
  %v3338 = vadd.f32 %v3146, %v3294
  %v3339 = vadd.f32 %v3147, %v3295
  %v3340 = vadd.f32 %v3148, %v3267
  %v3341 = vadd.f32 %v3149, %v3296
  %v3342 = vadd.f32 %v3150, %v3297
  %v3343 = vadd.f32 %v3151, %v3273
  %v3344 = vadd.f32 %v3152, %v3298
  %v3345 = vadd.f32 %v3153, %v3299
  %v3346 = vadd.f32 %v3154, %v3279
  %v3347 = vadd.f32 %v3155, %v3300
  %v3348 = vadd.f32 %v3156, %v3301
  %v3349 = vadd.f32 %v3157, %v3285
  %3350 = vset.pattern.permute.xlu0 8
  %3351 = vperm.xlu0 %3350, %v1918
  %v3352 = vpop.permute.xlu0 %3351
  %3354 = vset.pattern.permute.xlu0 8
  %3355 = vperm.xlu0 %3354, %v1919
  %v3356 = vpop.permute.xlu0 %3355
  %3358 = vset.pattern.permute.xlu0 8
  %3359 = vperm.xlu0 %3358, %v1920
  %v3360 = vpop.permute.xlu0 %3359
  %3362 = vset.pattern.permute.xlu0 8
  %3363 = vperm.xlu0 %3362, %v1921
  %v3364 = vpop.permute.xlu0 %3363
  %3366 = vset.pattern.permute.xlu0 8
  %3367 = vperm.xlu0 %3366, %v1922
  %v3368 = vpop.permute.xlu0 %3367
  %3370 = vset.pattern.permute.xlu0 8
  %3371 = vperm.xlu0 %3370, %v1923
  %v3372 = vpop.permute.xlu0 %3371
  %3374 = vset.pattern.permute.xlu0 8
  %3375 = vperm.xlu0 %3374, %v1924
  %v3376 = vpop.permute.xlu0 %3375
  %3378 = vset.pattern.permute.xlu0 8
  %3379 = vperm.xlu0 %3378, %v1925
  %v3380 = vpop.permute.xlu0 %3379
  %v3382 = vmul.f32 %v3352, %v1970
  %v3383 = vmul.f32 %v3352, %v1974
  %v3384 = vmul.f32 %v3352, %v1978
  %v3385 = vmul.f32 %v3356, %v1970
  %v3386 = vmul.f32 %v3356, %v1974
  %v3387 = vmul.f32 %v3356, %v1978
  %v3388 = vmul.f32 %v3360, %v1970
  %v3389 = vmul.f32 %v3360, %v1974
  %v3390 = vmul.f32 %v3360, %v1978
  %v3391 = vmul.f32 %v3364, %v1970
  %v3392 = vmul.f32 %v3364, %v1974
  %v3393 = vmul.f32 %v3364, %v1978
  %v3394 = vmul.f32 %v3368, %v1970
  %v3395 = vmul.f32 %v3368, %v1974
  %v3396 = vmul.f32 %v3368, %v1978
  %v3397 = vmul.f32 %v3372, %v1970
  %v3398 = vmul.f32 %v3372, %v1974
  %v3399 = vmul.f32 %v3372, %v1978
  %v3400 = vmul.f32 %v3376, %v1970
  %v3401 = vmul.f32 %v3376, %v1974
  %v3402 = vmul.f32 %v3376, %v1978
  %v3403 = vmul.f32 %v3380, %v1970
  %v3404 = vmul.f32 %v3380, %v1974
  %v3405 = vmul.f32 %v3380, %v1978
  %3430 = vrot.lane.b32.xlu0 %v3382, 90
  %v3431 = vpop.permute.xlu0 %3430
  %3432 = vrot.lane.b32.xlu0 %v3383, 90
  %v3433 = vpop.permute.xlu0 %3432
  %3434 = vrot.lane.b32.xlu0 %v3384, 90
  %v3435 = vpop.permute.xlu0 %3434
  %3436 = vrot.lane.b32.xlu0 %v3385, 90
  %v3437 = vpop.permute.xlu0 %3436
  %3438 = vrot.lane.b32.xlu0 %v3386, 90
  %v3439 = vpop.permute.xlu0 %3438
  %3440 = vrot.lane.b32.xlu0 %v3387, 90
  %v3441 = vpop.permute.xlu0 %3440
  %3442 = vrot.lane.b32.xlu0 %v3388, 90
  %v3443 = vpop.permute.xlu0 %3442
  %3444 = vrot.lane.b32.xlu0 %v3389, 90
  %v3445 = vpop.permute.xlu0 %3444
  %3446 = vrot.lane.b32.xlu0 %v3390, 90
  %v3447 = vpop.permute.xlu0 %3446
  %3448 = vrot.lane.b32.xlu0 %v3391, 90
  %v3449 = vpop.permute.xlu0 %3448
  %3450 = vrot.lane.b32.xlu0 %v3392, 90
  %v3451 = vpop.permute.xlu0 %3450
  %3452 = vrot.lane.b32.xlu0 %v3393, 90
  %v3453 = vpop.permute.xlu0 %3452
  %3454 = vrot.lane.b32.xlu0 %v3394, 90
  %v3455 = vpop.permute.xlu0 %3454
  %3456 = vrot.lane.b32.xlu0 %v3395, 90
  %v3457 = vpop.permute.xlu0 %3456
  %3458 = vrot.lane.b32.xlu0 %v3396, 90
  %v3459 = vpop.permute.xlu0 %3458
  %3460 = vrot.lane.b32.xlu0 %v3397, 90
  %v3461 = vpop.permute.xlu0 %3460
  %3462 = vrot.lane.b32.xlu0 %v3398, 90
  %v3463 = vpop.permute.xlu0 %3462
  %3464 = vrot.lane.b32.xlu0 %v3399, 90
  %v3465 = vpop.permute.xlu0 %3464
  %3466 = vrot.lane.b32.xlu0 %v3400, 90
  %v3467 = vpop.permute.xlu0 %3466
  %3468 = vrot.lane.b32.xlu0 %v3401, 90
  %v3469 = vpop.permute.xlu0 %3468
  %3470 = vrot.lane.b32.xlu0 %v3402, 90
  %v3471 = vpop.permute.xlu0 %3470
  %3472 = vrot.lane.b32.xlu0 %v3403, 90
  %v3473 = vpop.permute.xlu0 %3472
  %3474 = vrot.lane.b32.xlu0 %v3404, 90
  %v3475 = vpop.permute.xlu0 %3474
  %3476 = vrot.lane.b32.xlu0 %v3405, 90
  %v3477 = vpop.permute.xlu0 %3476
  %v3478 = vsel %vm1634, %v3431, %v3433
  %v3479 = vsel %vm1634, %v3433, %v3435
  %v3480 = vsel %vm1634, %v3437, %v3439
  %v3481 = vsel %vm1634, %v3439, %v3441
  %v3482 = vsel %vm1634, %v3443, %v3445
  %v3483 = vsel %vm1634, %v3445, %v3447
  %v3484 = vsel %vm1634, %v3449, %v3451
  %v3485 = vsel %vm1634, %v3451, %v3453
  %v3486 = vsel %vm1634, %v3455, %v3457
  %v3487 = vsel %vm1634, %v3457, %v3459
  %v3488 = vsel %vm1634, %v3461, %v3463
  %v3489 = vsel %vm1634, %v3463, %v3465
  %v3490 = vsel %vm1634, %v3467, %v3469
  %v3491 = vsel %vm1634, %v3469, %v3471
  %v3492 = vsel %vm1634, %v3473, %v3475
  %v3493 = vsel %vm1634, %v3475, %v3477
  %v3518 = vadd.f32 %v3326, %v3478
  %v3519 = vadd.f32 %v3327, %v3479
  %v3520 = vadd.f32 %v3328, %v3435
  %v3521 = vadd.f32 %v3329, %v3480
  %v3522 = vadd.f32 %v3330, %v3481
  %v3523 = vadd.f32 %v3331, %v3441
  %v3524 = vadd.f32 %v3332, %v3482
  %v3525 = vadd.f32 %v3333, %v3483
  %v3526 = vadd.f32 %v3334, %v3447
  %v3527 = vadd.f32 %v3335, %v3484
  %v3528 = vadd.f32 %v3336, %v3485
  %v3529 = vadd.f32 %v3337, %v3453
  %v3530 = vadd.f32 %v3338, %v3486
  %v3531 = vadd.f32 %v3339, %v3487
  %v3532 = vadd.f32 %v3340, %v3459
  %v3533 = vadd.f32 %v3341, %v3488
  %v3534 = vadd.f32 %v3342, %v3489
  %v3535 = vadd.f32 %v3343, %v3465
  %v3536 = vadd.f32 %v3344, %v3490
  %v3537 = vadd.f32 %v3345, %v3491
  %v3538 = vadd.f32 %v3346, %v3471
  %v3539 = vadd.f32 %v3347, %v3492
  %v3540 = vadd.f32 %v3348, %v3493
  %v3541 = vadd.f32 %v3349, %v3477
  %v3542 = vld [vmem:[%s3] sm:$0xff]
  %v3543 = vld [vmem:[%s3 + $0x8] sm:$0xff]
  %v3544 = vld [vmem:[%s3 + $0x10] sm:$0xff]
  %v3545 = vld [vmem:[%s3 + $0x18] sm:$0xff]
  %v3546 = vld [vmem:[%s3 + $0x20] sm:$0xff]
  %v3547 = vld [vmem:[%s3 + $0x28] sm:$0xff]
  %v3548 = vld [vmem:[%s3 + $0x30] sm:$0xff]
  %v3549 = vld [vmem:[%s3 + $0x38] sm:$0xff]
  %3551 = vset.pattern.permute.xlu0 0
  %3552 = vperm.xlu0 %3551, %v3542
  %v3553 = vpop.permute.xlu0 %3552
  %3556 = vset.pattern.permute.xlu0 0
  %3557 = vperm.xlu0 %3556, %v3543
  %v3558 = vpop.permute.xlu0 %3557
  %3561 = vset.pattern.permute.xlu0 0
  %3562 = vperm.xlu0 %3561, %v3544
  %v3563 = vpop.permute.xlu0 %3562
  %3566 = vset.pattern.permute.xlu0 0
  %3567 = vperm.xlu0 %3566, %v3545
  %v3568 = vpop.permute.xlu0 %3567
  %3571 = vset.pattern.permute.xlu0 0
  %3572 = vperm.xlu0 %3571, %v3546
  %v3573 = vpop.permute.xlu0 %3572
  %3576 = vset.pattern.permute.xlu0 0
  %3577 = vperm.xlu0 %3576, %v3547
  %v3578 = vpop.permute.xlu0 %3577
  %3581 = vset.pattern.permute.xlu0 0
  %3582 = vperm.xlu0 %3581, %v3548
  %v3583 = vpop.permute.xlu0 %3582
  %3586 = vset.pattern.permute.xlu0 0
  %3587 = vperm.xlu0 %3586, %v3549
  %v3588 = vpop.permute.xlu0 %3587
  %v3590 = vadd.f32 %v3518, %v3553
  %v3591 = vadd.f32 %v3519, %v3553
  %v3592 = vadd.f32 %v3520, %v3553
  %v3593 = vadd.f32 %v3521, %v3558
  %v3594 = vadd.f32 %v3522, %v3558
  %v3595 = vadd.f32 %v3523, %v3558
  %v3596 = vadd.f32 %v3524, %v3563
  %v3597 = vadd.f32 %v3525, %v3563
  %v3598 = vadd.f32 %v3526, %v3563
  %v3599 = vadd.f32 %v3527, %v3568
  %v3600 = vadd.f32 %v3528, %v3568
  %v3601 = vadd.f32 %v3529, %v3568
  %v3602 = vadd.f32 %v3530, %v3573
  %v3603 = vadd.f32 %v3531, %v3573
  %v3604 = vadd.f32 %v3532, %v3573
  %v3605 = vadd.f32 %v3533, %v3578
  %v3606 = vadd.f32 %v3534, %v3578
  %v3607 = vadd.f32 %v3535, %v3578
  %v3608 = vadd.f32 %v3536, %v3583
  %v3609 = vadd.f32 %v3537, %v3583
  %v3610 = vadd.f32 %v3538, %v3583
  %v3611 = vadd.f32 %v3539, %v3588
  %v3612 = vadd.f32 %v3540, %v3588
  %v3613 = vadd.f32 %v3541, %v3588
  %v3614 = vmax.f32 %v3590, 0.0
  %v3615 = vmax.f32 %v3591, 0.0
  %v3616 = vmax.f32 %v3592, 0.0
  %v3617 = vmax.f32 %v3593, 0.0
  %v3618 = vmax.f32 %v3594, 0.0
  %v3619 = vmax.f32 %v3595, 0.0
  %v3620 = vmax.f32 %v3596, 0.0
  %v3621 = vmax.f32 %v3597, 0.0
  %v3622 = vmax.f32 %v3598, 0.0
  %v3623 = vmax.f32 %v3599, 0.0
  %v3624 = vmax.f32 %v3600, 0.0
  %v3625 = vmax.f32 %v3601, 0.0
  %v3626 = vmax.f32 %v3602, 0.0
  %v3627 = vmax.f32 %v3603, 0.0
  %v3628 = vmax.f32 %v3604, 0.0
  %v3629 = vmax.f32 %v3605, 0.0
  %v3630 = vmax.f32 %v3606, 0.0
  %v3631 = vmax.f32 %v3607, 0.0
  %v3632 = vmax.f32 %v3608, 0.0
  %v3633 = vmax.f32 %v3609, 0.0
  %v3634 = vmax.f32 %v3610, 0.0
  %v3635 = vmax.f32 %v3611, 0.0
  %v3636 = vmax.f32 %v3612, 0.0
  %v3637 = vmax.f32 %v3613, 0.0
  %v3638 = vmul.f32 %v3614, %v1799
  %v3639 = vmul.f32 %v3615, %v1803
  %v3640 = vmul.f32 %v3616, %v1807
  %v3641 = vmul.f32 %v3617, %v1799
  %v3642 = vmul.f32 %v3618, %v1803
  %v3643 = vmul.f32 %v3619, %v1807
  %v3644 = vmul.f32 %v3620, %v1799
  %v3645 = vmul.f32 %v3621, %v1803
  %v3646 = vmul.f32 %v3622, %v1807
  %v3647 = vmul.f32 %v3623, %v1799
  %v3648 = vmul.f32 %v3624, %v1803
  %v3649 = vmul.f32 %v3625, %v1807
  %v3650 = vmul.f32 %v3626, %v1799
  %v3651 = vmul.f32 %v3627, %v1803
  %v3652 = vmul.f32 %v3628, %v1807
  %v3653 = vmul.f32 %v3629, %v1799
  %v3654 = vmul.f32 %v3630, %v1803
  %v3655 = vmul.f32 %v3631, %v1807
  %v3656 = vmul.f32 %v3632, %v1799
  %v3657 = vmul.f32 %v3633, %v1803
  %v3658 = vmul.f32 %v3634, %v1807
  %v3659 = vmul.f32 %v3635, %v1799
  %v3660 = vmul.f32 %v3636, %v1803
  %v3661 = vmul.f32 %v3637, %v1807
  %v3662 = vpack.c.bf16 %v3641, %v3638
  %v3663 = vpack.c.bf16 %v3642, %v3639
  %v3664 = vpack.c.bf16 %v3643, %v3640
  %v3665 = vpack.c.bf16 %v3647, %v3644
  %v3666 = vpack.c.bf16 %v3648, %v3645
  %v3667 = vpack.c.bf16 %v3649, %v3646
  %v3668 = vpack.c.bf16 %v3653, %v3650
  %v3669 = vpack.c.bf16 %v3654, %v3651
  %v3670 = vpack.c.bf16 %v3655, %v3652
  %v3671 = vpack.c.bf16 %v3659, %v3656
  %v3672 = vpack.c.bf16 %v3660, %v3657
  %v3673 = vpack.c.bf16 %v3661, %v3658
  %3686 = vrot.lane.b32.xlu0 %v3662, 89
  %v3687 = vpop.permute.xlu0 %3686
  %3688 = vrot.lane.b32.xlu0 %v3663, 89
  %v3689 = vpop.permute.xlu0 %3688
  %3690 = vrot.lane.b32.xlu0 %v3664, 89
  %v3691 = vpop.permute.xlu0 %3690
  %3692 = vrot.lane.b32.xlu0 %v3665, 89
  %v3693 = vpop.permute.xlu0 %3692
  %3694 = vrot.lane.b32.xlu0 %v3666, 89
  %v3695 = vpop.permute.xlu0 %3694
  %3696 = vrot.lane.b32.xlu0 %v3667, 89
  %v3697 = vpop.permute.xlu0 %3696
  %3698 = vrot.lane.b32.xlu0 %v3668, 89
  %v3699 = vpop.permute.xlu0 %3698
  %3700 = vrot.lane.b32.xlu0 %v3669, 89
  %v3701 = vpop.permute.xlu0 %3700
  %3702 = vrot.lane.b32.xlu0 %v3670, 89
  %v3703 = vpop.permute.xlu0 %3702
  %3704 = vrot.lane.b32.xlu0 %v3671, 89
  %v3705 = vpop.permute.xlu0 %3704
  %3706 = vrot.lane.b32.xlu0 %v3672, 89
  %v3707 = vpop.permute.xlu0 %3706
  %3708 = vrot.lane.b32.xlu0 %v3673, 89
  %v3709 = vpop.permute.xlu0 %3708
  %vm3710 = vcmask 728064
  %v3711 = vsel %vm3710, %v3687, %v3689
  %v3712 = vsel %vm3710, %v3689, %v3691
  %v3713 = vsel %vm3710, %v3693, %v3695
  %v3714 = vsel %vm3710, %v3695, %v3697
  %v3715 = vsel %vm3710, %v3699, %v3701
  %v3716 = vsel %vm3710, %v3701, %v3703
  %v3717 = vsel %vm3710, %v3705, %v3707
  %v3718 = vsel %vm3710, %v3707, %v3709
  %vm3731 = vcmask 1048264
  %3732 = vst.msk [vmem:[#allocation2 + $0x10] sm:$0xff] %vm3731, %v3687
  %3733 = vst [vmem:[#allocation2 + $0x18] sm:$0xff] %v3711
  %vm3734 = vcmask 990208
  %3735 = vst.msk [vmem:[#allocation2 + $0x20] sm:$0xff] %vm3734, %v3712
  %3736 = vst.msk [vmem:[#allocation2 + $0x40] sm:$0xff] %vm3731, %v3693
  %3737 = vst [vmem:[#allocation2 + $0x48] sm:$0xff] %v3713
  %3738 = vst.msk [vmem:[#allocation2 + $0x50] sm:$0xff] %vm3734, %v3714
  %3739 = vst.msk [vmem:[#allocation2 + $0x70] sm:$0xff] %vm3731, %v3699
  %3740 = vst [vmem:[#allocation2 + $0x78] sm:$0xff] %v3715
  %3741 = vst.msk [vmem:[#allocation2 + $0x80] sm:$0xff] %vm3734, %v3716
  %3742 = vst.msk [vmem:[#allocation2 + $0xa0] sm:$0xff] %vm3731, %v3705
  %3743 = vst [vmem:[#allocation2 + $0xa8] sm:$0xff] %v3717
  %3744 = vst.msk [vmem:[#allocation2 + $0xb0] sm:$0xff] %vm3734, %v3718
  %v3745 = vld [vmem:[#allocation2] sm:$0xff]
  %v3746 = vld [vmem:[#allocation2 + $0x8] sm:$0xff]
  %v3747 = vld [vmem:[#allocation2 + $0x10] sm:$0xff]
  %v3748 = vld [vmem:[#allocation2 + $0x30] sm:$0xff]
  %v3749 = vld [vmem:[#allocation2 + $0x38] sm:$0xff]
  %v3750 = vld [vmem:[#allocation2 + $0x40] sm:$0xff]
  %v3751 = vld [vmem:[#allocation2 + $0x60] sm:$0xff]
  %v3752 = vld [vmem:[#allocation2 + $0x68] sm:$0xff]
  %v3753 = vld [vmem:[#allocation2 + $0x70] sm:$0xff]
  %v3754 = vld [vmem:[#allocation2 + $0x90] sm:$0xff]
  %v3755 = vld [vmem:[#allocation2 + $0x98] sm:$0xff]
  %v3756 = vld [vmem:[#allocation2 + $0xa0] sm:$0xff]
  %3757 = vst [vmem:[#allocation3] sm:$0xff] %v3745
  %3758 = vst [vmem:[#allocation3 + $0x8] sm:$0xff] %v3746
  %vm3759 = vcmask 261120
  %3760 = vst.msk [vmem:[#allocation3 + $0x10] sm:$0xff] %vm3759, %v3747
  %3761 = vst [vmem:[#allocation3 + $0x28] sm:$0xff] %v3748
  %3762 = vst [vmem:[#allocation3 + $0x30] sm:$0xff] %v3749
  %3763 = vst.msk [vmem:[#allocation3 + $0x38] sm:$0xff] %vm3759, %v3750
  %3764 = vst [vmem:[#allocation3 + $0x50] sm:$0xff] %v3751
  %3765 = vst [vmem:[#allocation3 + $0x58] sm:$0xff] %v3752
  %3766 = vst.msk [vmem:[#allocation3 + $0x60] sm:$0xff] %vm3759, %v3753
  %3767 = vst [vmem:[#allocation3 + $0x78] sm:$0xff] %v3754
  %3768 = vst [vmem:[#allocation3 + $0x80] sm:$0xff] %v3755
  %3769 = vst.msk [vmem:[#allocation3 + $0x88] sm:$0xff] %vm3759, %v3756
  %v3770 = vld [vmem:[#allocation2] sm:$0xff]
  %v3771 = vld [vmem:[#allocation2 + $0x8] sm:$0xff]
  %v3772 = vld [vmem:[#allocation2 + $0x10] sm:$0xff]
  %v3773 = vld [vmem:[#allocation2 + $0x30] sm:$0xff]
  %v3774 = vld [vmem:[#allocation2 + $0x38] sm:$0xff]
  %v3775 = vld [vmem:[#allocation2 + $0x40] sm:$0xff]
  %v3776 = vld [vmem:[#allocation2 + $0x60] sm:$0xff]
  %v3777 = vld [vmem:[#allocation2 + $0x68] sm:$0xff]
  %v3778 = vld [vmem:[#allocation2 + $0x70] sm:$0xff]
  %v3779 = vld [vmem:[#allocation2 + $0x90] sm:$0xff]
  %v3780 = vld [vmem:[#allocation2 + $0x98] sm:$0xff]
  %v3781 = vld [vmem:[#allocation2 + $0xa0] sm:$0xff]
  %3794 = vrot.lane.b32.xlu0 %v3770, 127
  %v3795 = vpop.permute.xlu0 %3794
  %3796 = vrot.lane.b32.xlu0 %v3771, 127
  %v3797 = vpop.permute.xlu0 %3796
  %3798 = vrot.lane.b32.xlu0 %v3772, 127
  %v3799 = vpop.permute.xlu0 %3798
  %3800 = vrot.lane.b32.xlu0 %v3773, 127
  %v3801 = vpop.permute.xlu0 %3800
  %3802 = vrot.lane.b32.xlu0 %v3774, 127
  %v3803 = vpop.permute.xlu0 %3802
  %3804 = vrot.lane.b32.xlu0 %v3775, 127
  %v3805 = vpop.permute.xlu0 %3804
  %3806 = vrot.lane.b32.xlu0 %v3776, 127
  %v3807 = vpop.permute.xlu0 %3806
  %3808 = vrot.lane.b32.xlu0 %v3777, 127
  %v3809 = vpop.permute.xlu0 %3808
  %3810 = vrot.lane.b32.xlu0 %v3778, 127
  %v3811 = vpop.permute.xlu0 %3810
  %3812 = vrot.lane.b32.xlu0 %v3779, 127
  %v3813 = vpop.permute.xlu0 %3812
  %3814 = vrot.lane.b32.xlu0 %v3780, 127
  %v3815 = vpop.permute.xlu0 %3814
  %3816 = vrot.lane.b32.xlu0 %v3781, 127
  %v3817 = vpop.permute.xlu0 %3816
  %vm3818 = vcmask 1039360
  %v3819 = vsel %vm3818, %v3795, %v3797
  %v3820 = vsel %vm3818, %v3797, %v3799
  %v3821 = vsel %vm3818, %v3801, %v3803
  %v3822 = vsel %vm3818, %v3803, %v3805
  %v3823 = vsel %vm3818, %v3807, %v3809
  %v3824 = vsel %vm3818, %v3809, %v3811
  %v3825 = vsel %vm3818, %v3813, %v3815
  %v3826 = vsel %vm3818, %v3815, %v3817
  %3839 = vst [vmem:[#allocation3 + $0xa0] sm:$0xff] %v3819
  %3840 = vst [vmem:[#allocation3 + $0xa8] sm:$0xff] %v3820
  %3841 = vst.msk [vmem:[#allocation3 + $0xb0] sm:$0xff] %vm3759, %v3799
  %3842 = vst [vmem:[#allocation3 + $0xc8] sm:$0xff] %v3821
  %3843 = vst [vmem:[#allocation3 + $0xd0] sm:$0xff] %v3822
  %3844 = vst.msk [vmem:[#allocation3 + $0xd8] sm:$0xff] %vm3759, %v3805
  %3845 = vst [vmem:[#allocation3 + $0xf0] sm:$0xff] %v3823
  %3846 = vst [vmem:[#allocation3 + $0xf8] sm:$0xff] %v3824
  %3847 = vst.msk [vmem:[#allocation3 + $0x100] sm:$0xff] %vm3759, %v3811
  %3848 = vst [vmem:[#allocation3 + $0x118] sm:$0xff] %v3825
  %3849 = vst [vmem:[#allocation3 + $0x120] sm:$0xff] %v3826
  %3850 = vst.msk [vmem:[#allocation3 + $0x128] sm:$0xff] %vm3759, %v3817
  %v3851 = vld [vmem:[#allocation2] sm:$0xff]
  %v3852 = vld [vmem:[#allocation2 + $0x8] sm:$0xff]
  %v3853 = vld [vmem:[#allocation2 + $0x10] sm:$0xff]
  %v3854 = vld [vmem:[#allocation2 + $0x30] sm:$0xff]
  %v3855 = vld [vmem:[#allocation2 + $0x38] sm:$0xff]
  %v3856 = vld [vmem:[#allocation2 + $0x40] sm:$0xff]
  %v3857 = vld [vmem:[#allocation2 + $0x60] sm:$0xff]
  %v3858 = vld [vmem:[#allocation2 + $0x68] sm:$0xff]
  %v3859 = vld [vmem:[#allocation2 + $0x70] sm:$0xff]
  %v3860 = vld [vmem:[#allocation2 + $0x90] sm:$0xff]
  %v3861 = vld [vmem:[#allocation2 + $0x98] sm:$0xff]
  %v3862 = vld [vmem:[#allocation2 + $0xa0] sm:$0xff]
  %3875 = vrot.lane.b32.xlu0 %v3851, 126
  %v3876 = vpop.permute.xlu0 %3875
  %3877 = vrot.lane.b32.xlu0 %v3852, 126
  %v3878 = vpop.permute.xlu0 %3877
  %3879 = vrot.lane.b32.xlu0 %v3853, 126
  %v3880 = vpop.permute.xlu0 %3879
  %3881 = vrot.lane.b32.xlu0 %v3854, 126
  %v3882 = vpop.permute.xlu0 %3881
  %3883 = vrot.lane.b32.xlu0 %v3855, 126
  %v3884 = vpop.permute.xlu0 %3883
  %3885 = vrot.lane.b32.xlu0 %v3856, 126
  %v3886 = vpop.permute.xlu0 %3885
  %3887 = vrot.lane.b32.xlu0 %v3857, 126
  %v3888 = vpop.permute.xlu0 %3887
  %3889 = vrot.lane.b32.xlu0 %v3858, 126
  %v3890 = vpop.permute.xlu0 %3889
  %3891 = vrot.lane.b32.xlu0 %v3859, 126
  %v3892 = vpop.permute.xlu0 %3891
  %3893 = vrot.lane.b32.xlu0 %v3860, 126
  %v3894 = vpop.permute.xlu0 %3893
  %3895 = vrot.lane.b32.xlu0 %v3861, 126
  %v3896 = vpop.permute.xlu0 %3895
  %3897 = vrot.lane.b32.xlu0 %v3862, 126
  %v3898 = vpop.permute.xlu0 %3897
  %vm3899 = vcmask 1031168
  %v3900 = vsel %vm3899, %v3876, %v3878
  %v3901 = vsel %vm3899, %v3878, %v3880
  %v3902 = vsel %vm3899, %v3882, %v3884
  %v3903 = vsel %vm3899, %v3884, %v3886
  %v3904 = vsel %vm3899, %v3888, %v3890
  %v3905 = vsel %vm3899, %v3890, %v3892
  %v3906 = vsel %vm3899, %v3894, %v3896
  %v3907 = vsel %vm3899, %v3896, %v3898
  %3920 = vst [vmem:[#allocation3 + $0x140] sm:$0xff] %v3900
  %3921 = vst [vmem:[#allocation3 + $0x148] sm:$0xff] %v3901
  %3922 = vst.msk [vmem:[#allocation3 + $0x150] sm:$0xff] %vm3759, %v3880
  %3923 = vst [vmem:[#allocation3 + $0x168] sm:$0xff] %v3902
  %3924 = vst [vmem:[#allocation3 + $0x170] sm:$0xff] %v3903
  %3925 = vst.msk [vmem:[#allocation3 + $0x178] sm:$0xff] %vm3759, %v3886
  %3926 = vst [vmem:[#allocation3 + $0x190] sm:$0xff] %v3904
  %3927 = vst [vmem:[#allocation3 + $0x198] sm:$0xff] %v3905
  %3928 = vst.msk [vmem:[#allocation3 + $0x1a0] sm:$0xff] %vm3759, %v3892
  %3929 = vst [vmem:[#allocation3 + $0x1b8] sm:$0xff] %v3906
  %3930 = vst [vmem:[#allocation3 + $0x1c0] sm:$0xff] %v3907
  %3931 = vst.msk [vmem:[#allocation3 + $0x1c8] sm:$0xff] %vm3759, %v3898
  %v3932 = vld [vmem:[#allocation2] sm:$0xff]
  %v3933 = vld [vmem:[#allocation2 + $0x8] sm:$0xff]
  %v3934 = vld [vmem:[#allocation2 + $0x10] sm:$0xff]
  %v3935 = vld [vmem:[#allocation2 + $0x30] sm:$0xff]
  %v3936 = vld [vmem:[#allocation2 + $0x38] sm:$0xff]
  %v3937 = vld [vmem:[#allocation2 + $0x40] sm:$0xff]
  %v3938 = vld [vmem:[#allocation2 + $0x60] sm:$0xff]
  %v3939 = vld [vmem:[#allocation2 + $0x68] sm:$0xff]
  %v3940 = vld [vmem:[#allocation2 + $0x70] sm:$0xff]
  %v3941 = vld [vmem:[#allocation2 + $0x90] sm:$0xff]
  %v3942 = vld [vmem:[#allocation2 + $0x98] sm:$0xff]
  %v3943 = vld [vmem:[#allocation2 + $0xa0] sm:$0xff]
  %3956 = vrot.lane.b32.xlu0 %v3932, 110
  %v3957 = vpop.permute.xlu0 %3956
  %3958 = vrot.lane.b32.xlu0 %v3933, 110
  %v3959 = vpop.permute.xlu0 %3958
  %3960 = vrot.lane.b32.xlu0 %v3934, 110
  %v3961 = vpop.permute.xlu0 %3960
  %3962 = vrot.lane.b32.xlu0 %v3935, 110
  %v3963 = vpop.permute.xlu0 %3962
  %3964 = vrot.lane.b32.xlu0 %v3936, 110
  %v3965 = vpop.permute.xlu0 %3964
  %3966 = vrot.lane.b32.xlu0 %v3937, 110
  %v3967 = vpop.permute.xlu0 %3966
  %3968 = vrot.lane.b32.xlu0 %v3938, 110
  %v3969 = vpop.permute.xlu0 %3968
  %3970 = vrot.lane.b32.xlu0 %v3939, 110
  %v3971 = vpop.permute.xlu0 %3970
  %3972 = vrot.lane.b32.xlu0 %v3940, 110
  %v3973 = vpop.permute.xlu0 %3972
  %3974 = vrot.lane.b32.xlu0 %v3941, 110
  %v3975 = vpop.permute.xlu0 %3974
  %3976 = vrot.lane.b32.xlu0 %v3942, 110
  %v3977 = vpop.permute.xlu0 %3976
  %3978 = vrot.lane.b32.xlu0 %v3943, 110
  %v3979 = vpop.permute.xlu0 %3978
  %vm3980 = vcmask 900096
  %v3981 = vsel %vm3980, %v3957, %v3959
  %v3982 = vsel %vm3980, %v3959, %v3961
  %v3983 = vsel %vm3980, %v3963, %v3965
  %v3984 = vsel %vm3980, %v3965, %v3967
  %v3985 = vsel %vm3980, %v3969, %v3971
  %v3986 = vsel %vm3980, %v3971, %v3973
  %v3987 = vsel %vm3980, %v3975, %v3977
  %v3988 = vsel %vm3980, %v3977, %v3979
  %4001 = vst [vmem:[#allocation3 + $0x1e0] sm:$0xff] %v3981
  %4002 = vst [vmem:[#allocation3 + $0x1e8] sm:$0xff] %v3982
  %4003 = vst.msk [vmem:[#allocation3 + $0x1f0] sm:$0xff] %vm3759, %v3961
  %4004 = vst [vmem:[#allocation3 + $0x208] sm:$0xff] %v3983
  %4005 = vst [vmem:[#allocation3 + $0x210] sm:$0xff] %v3984
  %4006 = vst.msk [vmem:[#allocation3 + $0x218] sm:$0xff] %vm3759, %v3967
  %4007 = vst [vmem:[#allocation3 + $0x230] sm:$0xff] %v3985
  %4008 = vst [vmem:[#allocation3 + $0x238] sm:$0xff] %v3986
  %4009 = vst.msk [vmem:[#allocation3 + $0x240] sm:$0xff] %vm3759, %v3973
  %4010 = vst [vmem:[#allocation3 + $0x258] sm:$0xff] %v3987
  %4011 = vst [vmem:[#allocation3 + $0x260] sm:$0xff] %v3988
  %4012 = vst.msk [vmem:[#allocation3 + $0x268] sm:$0xff] %vm3759, %v3979
  %v4013 = vld [vmem:[#allocation2] sm:$0xff]
  %v4014 = vld [vmem:[#allocation2 + $0x8] sm:$0xff]
  %v4015 = vld [vmem:[#allocation2 + $0x10] sm:$0xff]
  %v4016 = vld [vmem:[#allocation2 + $0x30] sm:$0xff]
  %v4017 = vld [vmem:[#allocation2 + $0x38] sm:$0xff]
  %v4018 = vld [vmem:[#allocation2 + $0x40] sm:$0xff]
  %v4019 = vld [vmem:[#allocation2 + $0x60] sm:$0xff]
  %v4020 = vld [vmem:[#allocation2 + $0x68] sm:$0xff]
  %v4021 = vld [vmem:[#allocation2 + $0x70] sm:$0xff]
  %v4022 = vld [vmem:[#allocation2 + $0x90] sm:$0xff]
  %v4023 = vld [vmem:[#allocation2 + $0x98] sm:$0xff]
  %v4024 = vld [vmem:[#allocation2 + $0xa0] sm:$0xff]
  %4037 = vrot.lane.b32.xlu0 %v4013, 109
  %v4038 = vpop.permute.xlu0 %4037
  %4039 = vrot.lane.b32.xlu0 %v4014, 109
  %v4040 = vpop.permute.xlu0 %4039
  %4041 = vrot.lane.b32.xlu0 %v4015, 109
  %v4042 = vpop.permute.xlu0 %4041
  %4043 = vrot.lane.b32.xlu0 %v4016, 109
  %v4044 = vpop.permute.xlu0 %4043
  %4045 = vrot.lane.b32.xlu0 %v4017, 109
  %v4046 = vpop.permute.xlu0 %4045
  %4047 = vrot.lane.b32.xlu0 %v4018, 109
  %v4048 = vpop.permute.xlu0 %4047
  %4049 = vrot.lane.b32.xlu0 %v4019, 109
  %v4050 = vpop.permute.xlu0 %4049
  %4051 = vrot.lane.b32.xlu0 %v4020, 109
  %v4052 = vpop.permute.xlu0 %4051
  %4053 = vrot.lane.b32.xlu0 %v4021, 109
  %v4054 = vpop.permute.xlu0 %4053
  %4055 = vrot.lane.b32.xlu0 %v4022, 109
  %v4056 = vpop.permute.xlu0 %4055
  %4057 = vrot.lane.b32.xlu0 %v4023, 109
  %v4058 = vpop.permute.xlu0 %4057
  %4059 = vrot.lane.b32.xlu0 %v4024, 109
  %v4060 = vpop.permute.xlu0 %4059
  %vm4061 = vcmask 891904
  %v4062 = vsel %vm4061, %v4038, %v4040
  %v4063 = vsel %vm4061, %v4040, %v4042
  %v4064 = vsel %vm4061, %v4044, %v4046
  %v4065 = vsel %vm4061, %v4046, %v4048
  %v4066 = vsel %vm4061, %v4050, %v4052
  %v4067 = vsel %vm4061, %v4052, %v4054
  %v4068 = vsel %vm4061, %v4056, %v4058
  %v4069 = vsel %vm4061, %v4058, %v4060
  %4082 = vst [vmem:[#allocation3 + $0x280] sm:$0xff] %v4062
  %4083 = vst [vmem:[#allocation3 + $0x288] sm:$0xff] %v4063
  %4084 = vst.msk [vmem:[#allocation3 + $0x290] sm:$0xff] %vm3759, %v4042
  %4085 = vst [vmem:[#allocation3 + $0x2a8] sm:$0xff] %v4064
  %4086 = vst [vmem:[#allocation3 + $0x2b0] sm:$0xff] %v4065
  %4087 = vst.msk [vmem:[#allocation3 + $0x2b8] sm:$0xff] %vm3759, %v4048
  %4088 = vst [vmem:[#allocation3 + $0x2d0] sm:$0xff] %v4066
  %4089 = vst [vmem:[#allocation3 + $0x2d8] sm:$0xff] %v4067
  %4090 = vst.msk [vmem:[#allocation3 + $0x2e0] sm:$0xff] %vm3759, %v4054
  %4091 = vst [vmem:[#allocation3 + $0x2f8] sm:$0xff] %v4068
  %4092 = vst [vmem:[#allocation3 + $0x300] sm:$0xff] %v4069
  %4093 = vst.msk [vmem:[#allocation3 + $0x308] sm:$0xff] %vm3759, %v4060
  %v4094 = vld [vmem:[#allocation2] sm:$0xff]
  %v4095 = vld [vmem:[#allocation2 + $0x8] sm:$0xff]
  %v4096 = vld [vmem:[#allocation2 + $0x10] sm:$0xff]
  %v4097 = vld [vmem:[#allocation2 + $0x30] sm:$0xff]
  %v4098 = vld [vmem:[#allocation2 + $0x38] sm:$0xff]
  %v4099 = vld [vmem:[#allocation2 + $0x40] sm:$0xff]
  %v4100 = vld [vmem:[#allocation2 + $0x60] sm:$0xff]
  %v4101 = vld [vmem:[#allocation2 + $0x68] sm:$0xff]
  %v4102 = vld [vmem:[#allocation2 + $0x70] sm:$0xff]
  %v4103 = vld [vmem:[#allocation2 + $0x90] sm:$0xff]
  %v4104 = vld [vmem:[#allocation2 + $0x98] sm:$0xff]
  %v4105 = vld [vmem:[#allocation2 + $0xa0] sm:$0xff]
  %4118 = vrot.lane.b32.xlu0 %v4094, 108
  %v4119 = vpop.permute.xlu0 %4118
  %4120 = vrot.lane.b32.xlu0 %v4095, 108
  %v4121 = vpop.permute.xlu0 %4120
  %4122 = vrot.lane.b32.xlu0 %v4096, 108
  %v4123 = vpop.permute.xlu0 %4122
  %4124 = vrot.lane.b32.xlu0 %v4097, 108
  %v4125 = vpop.permute.xlu0 %4124
  %4126 = vrot.lane.b32.xlu0 %v4098, 108
  %v4127 = vpop.permute.xlu0 %4126
  %4128 = vrot.lane.b32.xlu0 %v4099, 108
  %v4129 = vpop.permute.xlu0 %4128
  %4130 = vrot.lane.b32.xlu0 %v4100, 108
  %v4131 = vpop.permute.xlu0 %4130
  %4132 = vrot.lane.b32.xlu0 %v4101, 108
  %v4133 = vpop.permute.xlu0 %4132
  %4134 = vrot.lane.b32.xlu0 %v4102, 108
  %v4135 = vpop.permute.xlu0 %4134
  %4136 = vrot.lane.b32.xlu0 %v4103, 108
  %v4137 = vpop.permute.xlu0 %4136
  %4138 = vrot.lane.b32.xlu0 %v4104, 108
  %v4139 = vpop.permute.xlu0 %4138
  %4140 = vrot.lane.b32.xlu0 %v4105, 108
  %v4141 = vpop.permute.xlu0 %4140
  %vm4142 = vcmask 883712
  %v4143 = vsel %vm4142, %v4119, %v4121
  %v4144 = vsel %vm4142, %v4121, %v4123
  %v4145 = vsel %vm4142, %v4125, %v4127
  %v4146 = vsel %vm4142, %v4127, %v4129
  %v4147 = vsel %vm4142, %v4131, %v4133
  %v4148 = vsel %vm4142, %v4133, %v4135
  %v4149 = vsel %vm4142, %v4137, %v4139
  %v4150 = vsel %vm4142, %v4139, %v4141
  %4163 = vst [vmem:[#allocation3 + $0x320] sm:$0xff] %v4143
  %4164 = vst [vmem:[#allocation3 + $0x328] sm:$0xff] %v4144
  %4165 = vst.msk [vmem:[#allocation3 + $0x330] sm:$0xff] %vm3759, %v4123
  %4166 = vst [vmem:[#allocation3 + $0x348] sm:$0xff] %v4145
  %4167 = vst [vmem:[#allocation3 + $0x350] sm:$0xff] %v4146
  %4168 = vst.msk [vmem:[#allocation3 + $0x358] sm:$0xff] %vm3759, %v4129
  %4169 = vst [vmem:[#allocation3 + $0x370] sm:$0xff] %v4147
  %4170 = vst [vmem:[#allocation3 + $0x378] sm:$0xff] %v4148
  %4171 = vst.msk [vmem:[#allocation3 + $0x380] sm:$0xff] %vm3759, %v4135
  %4172 = vst [vmem:[#allocation3 + $0x398] sm:$0xff] %v4149
  %4173 = vst [vmem:[#allocation3 + $0x3a0] sm:$0xff] %v4150
  %4174 = vst.msk [vmem:[#allocation3 + $0x3a8] sm:$0xff] %vm3759, %v4141
  %v4175 = vld [vmem:[#allocation2] sm:$0xff]
  %v4176 = vld [vmem:[#allocation2 + $0x8] sm:$0xff]
  %v4177 = vld [vmem:[#allocation2 + $0x10] sm:$0xff]
  %v4178 = vld [vmem:[#allocation2 + $0x30] sm:$0xff]
  %v4179 = vld [vmem:[#allocation2 + $0x38] sm:$0xff]
  %v4180 = vld [vmem:[#allocation2 + $0x40] sm:$0xff]
  %v4181 = vld [vmem:[#allocation2 + $0x60] sm:$0xff]
  %v4182 = vld [vmem:[#allocation2 + $0x68] sm:$0xff]
  %v4183 = vld [vmem:[#allocation2 + $0x70] sm:$0xff]
  %v4184 = vld [vmem:[#allocation2 + $0x90] sm:$0xff]
  %v4185 = vld [vmem:[#allocation2 + $0x98] sm:$0xff]
  %v4186 = vld [vmem:[#allocation2 + $0xa0] sm:$0xff]
  %4199 = vrot.lane.b32.xlu0 %v4175, 92
  %v4200 = vpop.permute.xlu0 %4199
  %4201 = vrot.lane.b32.xlu0 %v4176, 92
  %v4202 = vpop.permute.xlu0 %4201
  %4203 = vrot.lane.b32.xlu0 %v4177, 92
  %v4204 = vpop.permute.xlu0 %4203
  %4205 = vrot.lane.b32.xlu0 %v4178, 92
  %v4206 = vpop.permute.xlu0 %4205
  %4207 = vrot.lane.b32.xlu0 %v4179, 92
  %v4208 = vpop.permute.xlu0 %4207
  %4209 = vrot.lane.b32.xlu0 %v4180, 92
  %v4210 = vpop.permute.xlu0 %4209
  %4211 = vrot.lane.b32.xlu0 %v4181, 92
  %v4212 = vpop.permute.xlu0 %4211
  %4213 = vrot.lane.b32.xlu0 %v4182, 92
  %v4214 = vpop.permute.xlu0 %4213
  %4215 = vrot.lane.b32.xlu0 %v4183, 92
  %v4216 = vpop.permute.xlu0 %4215
  %4217 = vrot.lane.b32.xlu0 %v4184, 92
  %v4218 = vpop.permute.xlu0 %4217
  %4219 = vrot.lane.b32.xlu0 %v4185, 92
  %v4220 = vpop.permute.xlu0 %4219
  %4221 = vrot.lane.b32.xlu0 %v4186, 92
  %v4222 = vpop.permute.xlu0 %4221
  %vm4223 = vcmask 752640
  %v4224 = vsel %vm4223, %v4200, %v4202
  %v4225 = vsel %vm4223, %v4202, %v4204
  %v4226 = vsel %vm4223, %v4206, %v4208
  %v4227 = vsel %vm4223, %v4208, %v4210
  %v4228 = vsel %vm4223, %v4212, %v4214
  %v4229 = vsel %vm4223, %v4214, %v4216
  %v4230 = vsel %vm4223, %v4218, %v4220
  %v4231 = vsel %vm4223, %v4220, %v4222
  %4244 = vst [vmem:[#allocation3 + $0x3c0] sm:$0xff] %v4224
  %4245 = vst [vmem:[#allocation3 + $0x3c8] sm:$0xff] %v4225
  %4246 = vst.msk [vmem:[#allocation3 + $0x3d0] sm:$0xff] %vm3759, %v4204
  %4247 = vst [vmem:[#allocation3 + $0x3e8] sm:$0xff] %v4226
  %4248 = vst [vmem:[#allocation3 + $0x3f0] sm:$0xff] %v4227
  %4249 = vst.msk [vmem:[#allocation3 + $0x3f8] sm:$0xff] %vm3759, %v4210
  %4250 = vst [vmem:[#allocation3 + $0x410] sm:$0xff] %v4228
  %4251 = vst [vmem:[#allocation3 + $0x418] sm:$0xff] %v4229
  %4252 = vst.msk [vmem:[#allocation3 + $0x420] sm:$0xff] %vm3759, %v4216
  %4253 = vst [vmem:[#allocation3 + $0x438] sm:$0xff] %v4230
  %4254 = vst [vmem:[#allocation3 + $0x440] sm:$0xff] %v4231
  %4255 = vst.msk [vmem:[#allocation3 + $0x448] sm:$0xff] %vm3759, %v4222
  %v4256 = vld [vmem:[#allocation2] sm:$0xff]
  %v4257 = vld [vmem:[#allocation2 + $0x8] sm:$0xff]
  %v4258 = vld [vmem:[#allocation2 + $0x10] sm:$0xff]
  %v4259 = vld [vmem:[#allocation2 + $0x30] sm:$0xff]
  %v4260 = vld [vmem:[#allocation2 + $0x38] sm:$0xff]
  %v4261 = vld [vmem:[#allocation2 + $0x40] sm:$0xff]
  %v4262 = vld [vmem:[#allocation2 + $0x60] sm:$0xff]
  %v4263 = vld [vmem:[#allocation2 + $0x68] sm:$0xff]
  %v4264 = vld [vmem:[#allocation2 + $0x70] sm:$0xff]
  %v4265 = vld [vmem:[#allocation2 + $0x90] sm:$0xff]
  %v4266 = vld [vmem:[#allocation2 + $0x98] sm:$0xff]
  %v4267 = vld [vmem:[#allocation2 + $0xa0] sm:$0xff]
  %4280 = vrot.lane.b32.xlu0 %v4256, 91
  %v4281 = vpop.permute.xlu0 %4280
  %4282 = vrot.lane.b32.xlu0 %v4257, 91
  %v4283 = vpop.permute.xlu0 %4282
  %4284 = vrot.lane.b32.xlu0 %v4258, 91
  %v4285 = vpop.permute.xlu0 %4284
  %4286 = vrot.lane.b32.xlu0 %v4259, 91
  %v4287 = vpop.permute.xlu0 %4286
  %4288 = vrot.lane.b32.xlu0 %v4260, 91
  %v4289 = vpop.permute.xlu0 %4288
  %4290 = vrot.lane.b32.xlu0 %v4261, 91
  %v4291 = vpop.permute.xlu0 %4290
  %4292 = vrot.lane.b32.xlu0 %v4262, 91
  %v4293 = vpop.permute.xlu0 %4292
  %4294 = vrot.lane.b32.xlu0 %v4263, 91
  %v4295 = vpop.permute.xlu0 %4294
  %4296 = vrot.lane.b32.xlu0 %v4264, 91
  %v4297 = vpop.permute.xlu0 %4296
  %4298 = vrot.lane.b32.xlu0 %v4265, 91
  %v4299 = vpop.permute.xlu0 %4298
  %4300 = vrot.lane.b32.xlu0 %v4266, 91
  %v4301 = vpop.permute.xlu0 %4300
  %4302 = vrot.lane.b32.xlu0 %v4267, 91
  %v4303 = vpop.permute.xlu0 %4302
  %vm4304 = vcmask 744448
  %v4305 = vsel %vm4304, %v4281, %v4283
  %v4306 = vsel %vm4304, %v4283, %v4285
  %v4307 = vsel %vm4304, %v4287, %v4289
  %v4308 = vsel %vm4304, %v4289, %v4291
  %v4309 = vsel %vm4304, %v4293, %v4295
  %v4310 = vsel %vm4304, %v4295, %v4297
  %v4311 = vsel %vm4304, %v4299, %v4301
  %v4312 = vsel %vm4304, %v4301, %v4303
  %4325 = vst [vmem:[#allocation3 + $0x460] sm:$0xff] %v4305
  %4326 = vst [vmem:[#allocation3 + $0x468] sm:$0xff] %v4306
  %4327 = vst.msk [vmem:[#allocation3 + $0x470] sm:$0xff] %vm3759, %v4285
  %4328 = vst [vmem:[#allocation3 + $0x488] sm:$0xff] %v4307
  %4329 = vst [vmem:[#allocation3 + $0x490] sm:$0xff] %v4308
  %4330 = vst.msk [vmem:[#allocation3 + $0x498] sm:$0xff] %vm3759, %v4291
  %4331 = vst [vmem:[#allocation3 + $0x4b0] sm:$0xff] %v4309
  %4332 = vst [vmem:[#allocation3 + $0x4b8] sm:$0xff] %v4310
  %4333 = vst.msk [vmem:[#allocation3 + $0x4c0] sm:$0xff] %vm3759, %v4297
  %4334 = vst [vmem:[#allocation3 + $0x4d8] sm:$0xff] %v4311
  %4335 = vst [vmem:[#allocation3 + $0x4e0] sm:$0xff] %v4312
  %4336 = vst.msk [vmem:[#allocation3 + $0x4e8] sm:$0xff] %vm3759, %v4303
  %v4337 = vld [vmem:[#allocation2] sm:$0xff]
  %v4338 = vld [vmem:[#allocation2 + $0x8] sm:$0xff]
  %v4339 = vld [vmem:[#allocation2 + $0x10] sm:$0xff]
  %v4340 = vld [vmem:[#allocation2 + $0x30] sm:$0xff]
  %v4341 = vld [vmem:[#allocation2 + $0x38] sm:$0xff]
  %v4342 = vld [vmem:[#allocation2 + $0x40] sm:$0xff]
  %v4343 = vld [vmem:[#allocation2 + $0x60] sm:$0xff]
  %v4344 = vld [vmem:[#allocation2 + $0x68] sm:$0xff]
  %v4345 = vld [vmem:[#allocation2 + $0x70] sm:$0xff]
  %v4346 = vld [vmem:[#allocation2 + $0x90] sm:$0xff]
  %v4347 = vld [vmem:[#allocation2 + $0x98] sm:$0xff]
  %v4348 = vld [vmem:[#allocation2 + $0xa0] sm:$0xff]
  %4361 = vrot.lane.b32.xlu0 %v4337, 90
  %v4362 = vpop.permute.xlu0 %4361
  %4363 = vrot.lane.b32.xlu0 %v4338, 90
  %v4364 = vpop.permute.xlu0 %4363
  %4365 = vrot.lane.b32.xlu0 %v4339, 90
  %v4366 = vpop.permute.xlu0 %4365
  %4367 = vrot.lane.b32.xlu0 %v4340, 90
  %v4368 = vpop.permute.xlu0 %4367
  %4369 = vrot.lane.b32.xlu0 %v4341, 90
  %v4370 = vpop.permute.xlu0 %4369
  %4371 = vrot.lane.b32.xlu0 %v4342, 90
  %v4372 = vpop.permute.xlu0 %4371
  %4373 = vrot.lane.b32.xlu0 %v4343, 90
  %v4374 = vpop.permute.xlu0 %4373
  %4375 = vrot.lane.b32.xlu0 %v4344, 90
  %v4376 = vpop.permute.xlu0 %4375
  %4377 = vrot.lane.b32.xlu0 %v4345, 90
  %v4378 = vpop.permute.xlu0 %4377
  %4379 = vrot.lane.b32.xlu0 %v4346, 90
  %v4380 = vpop.permute.xlu0 %4379
  %4381 = vrot.lane.b32.xlu0 %v4347, 90
  %v4382 = vpop.permute.xlu0 %4381
  %4383 = vrot.lane.b32.xlu0 %v4348, 90
  %v4384 = vpop.permute.xlu0 %4383
  %vm4385 = vcmask 736256
  %v4386 = vsel %vm4385, %v4362, %v4364
  %v4387 = vsel %vm4385, %v4364, %v4366
  %v4388 = vsel %vm4385, %v4368, %v4370
  %v4389 = vsel %vm4385, %v4370, %v4372
  %v4390 = vsel %vm4385, %v4374, %v4376
  %v4391 = vsel %vm4385, %v4376, %v4378
  %v4392 = vsel %vm4385, %v4380, %v4382
  %v4393 = vsel %vm4385, %v4382, %v4384
  %4406 = vst [vmem:[#allocation3 + $0x500] sm:$0xff] %v4386
  %4407 = vst [vmem:[#allocation3 + $0x508] sm:$0xff] %v4387
  %4408 = vst.msk [vmem:[#allocation3 + $0x510] sm:$0xff] %vm3759, %v4366
  %4409 = vst [vmem:[#allocation3 + $0x528] sm:$0xff] %v4388
  %4410 = vst [vmem:[#allocation3 + $0x530] sm:$0xff] %v4389
  %4411 = vst.msk [vmem:[#allocation3 + $0x538] sm:$0xff] %vm3759, %v4372
  %4412 = vst [vmem:[#allocation3 + $0x550] sm:$0xff] %v4390
  %4413 = vst [vmem:[#allocation3 + $0x558] sm:$0xff] %v4391
  %4414 = vst.msk [vmem:[#allocation3 + $0x560] sm:$0xff] %vm3759, %v4378
  %4415 = vst [vmem:[#allocation3 + $0x578] sm:$0xff] %v4392
  %4416 = vst [vmem:[#allocation3 + $0x580] sm:$0xff] %v4393
  %4417 = vst.msk [vmem:[#allocation3 + $0x588] sm:$0xff] %vm3759, %v4384
  %v4418 = vld [vmem:[#allocation2 + $0x10] sm:$0xff]
  %v4419 = vld [vmem:[#allocation2 + $0x18] sm:$0xff]
  %v4420 = vld [vmem:[#allocation2 + $0x20] sm:$0xff]
  %v4421 = vld [vmem:[#allocation2 + $0x40] sm:$0xff]
  %v4422 = vld [vmem:[#allocation2 + $0x48] sm:$0xff]
  %v4423 = vld [vmem:[#allocation2 + $0x50] sm:$0xff]
  %v4424 = vld [vmem:[#allocation2 + $0x70] sm:$0xff]
  %v4425 = vld [vmem:[#allocation2 + $0x78] sm:$0xff]
  %v4426 = vld [vmem:[#allocation2 + $0x80] sm:$0xff]
  %v4427 = vld [vmem:[#allocation2 + $0xa0] sm:$0xff]
  %v4428 = vld [vmem:[#allocation2 + $0xa8] sm:$0xff]
  %v4429 = vld [vmem:[#allocation2 + $0xb0] sm:$0xff]
  %4442 = vrot.lane.b32.xlu0 %v4418, 90
  %v4443 = vpop.permute.xlu0 %4442
  %4444 = vrot.lane.b32.xlu0 %v4419, 90
  %v4445 = vpop.permute.xlu0 %4444
  %4446 = vrot.lane.b32.xlu0 %v4420, 90
  %v4447 = vpop.permute.xlu0 %4446
  %4448 = vrot.lane.b32.xlu0 %v4421, 90
  %v4449 = vpop.permute.xlu0 %4448
  %4450 = vrot.lane.b32.xlu0 %v4422, 90
  %v4451 = vpop.permute.xlu0 %4450
  %4452 = vrot.lane.b32.xlu0 %v4423, 90
  %v4453 = vpop.permute.xlu0 %4452
  %4454 = vrot.lane.b32.xlu0 %v4424, 90
  %v4455 = vpop.permute.xlu0 %4454
  %4456 = vrot.lane.b32.xlu0 %v4425, 90
  %v4457 = vpop.permute.xlu0 %4456
  %4458 = vrot.lane.b32.xlu0 %v4426, 90
  %v4459 = vpop.permute.xlu0 %4458
  %4460 = vrot.lane.b32.xlu0 %v4427, 90
  %v4461 = vpop.permute.xlu0 %4460
  %4462 = vrot.lane.b32.xlu0 %v4428, 90
  %v4463 = vpop.permute.xlu0 %4462
  %4464 = vrot.lane.b32.xlu0 %v4429, 90
  %v4465 = vpop.permute.xlu0 %4464
  %v4466 = vsel %vm4385, %v4443, %v4445
  %v4467 = vsel %vm4385, %v4445, %v4447
  %v4468 = vsel %vm4385, %v4449, %v4451
  %v4469 = vsel %vm4385, %v4451, %v4453
  %v4470 = vsel %vm4385, %v4455, %v4457
  %v4471 = vsel %vm4385, %v4457, %v4459
  %v4472 = vsel %vm4385, %v4461, %v4463
  %v4473 = vsel %vm4385, %v4463, %v4465
  %vm4486 = vcmask 1047808
  %4487 = vst.msk [vmem:[#allocation3 + $0x10] sm:$0xff] %vm4486, %v4466
  %4488 = vst [vmem:[#allocation3 + $0x18] sm:$0xff] %v4467
  %vm4489 = vcmask 523264
  %4490 = vst.msk [vmem:[#allocation3 + $0x20] sm:$0xff] %vm4489, %v4447
  %4491 = vst.msk [vmem:[#allocation3 + $0x38] sm:$0xff] %vm4486, %v4468
  %4492 = vst [vmem:[#allocation3 + $0x40] sm:$0xff] %v4469
  %4493 = vst.msk [vmem:[#allocation3 + $0x48] sm:$0xff] %vm4489, %v4453
  %4494 = vst.msk [vmem:[#allocation3 + $0x60] sm:$0xff] %vm4486, %v4470
  %4495 = vst [vmem:[#allocation3 + $0x68] sm:$0xff] %v4471
  %4496 = vst.msk [vmem:[#allocation3 + $0x70] sm:$0xff] %vm4489, %v4459
  %4497 = vst.msk [vmem:[#allocation3 + $0x88] sm:$0xff] %vm4486, %v4472
  %4498 = vst [vmem:[#allocation3 + $0x90] sm:$0xff] %v4473
  %4499 = vst.msk [vmem:[#allocation3 + $0x98] sm:$0xff] %vm4489, %v4465
  %v4500 = vld [vmem:[#allocation2 + $0x10] sm:$0xff]
  %v4501 = vld [vmem:[#allocation2 + $0x18] sm:$0xff]
  %v4502 = vld [vmem:[#allocation2 + $0x20] sm:$0xff]
  %v4503 = vld [vmem:[#allocation2 + $0x40] sm:$0xff]
  %v4504 = vld [vmem:[#allocation2 + $0x48] sm:$0xff]
  %v4505 = vld [vmem:[#allocation2 + $0x50] sm:$0xff]
  %v4506 = vld [vmem:[#allocation2 + $0x70] sm:$0xff]
  %v4507 = vld [vmem:[#allocation2 + $0x78] sm:$0xff]
  %v4508 = vld [vmem:[#allocation2 + $0x80] sm:$0xff]
  %v4509 = vld [vmem:[#allocation2 + $0xa0] sm:$0xff]
  %v4510 = vld [vmem:[#allocation2 + $0xa8] sm:$0xff]
  %v4511 = vld [vmem:[#allocation2 + $0xb0] sm:$0xff]
  %4524 = vrot.lane.b32.xlu0 %v4500, 89
  %v4525 = vpop.permute.xlu0 %4524
  %4526 = vrot.lane.b32.xlu0 %v4501, 89
  %v4527 = vpop.permute.xlu0 %4526
  %4528 = vrot.lane.b32.xlu0 %v4502, 89
  %v4529 = vpop.permute.xlu0 %4528
  %4530 = vrot.lane.b32.xlu0 %v4503, 89
  %v4531 = vpop.permute.xlu0 %4530
  %4532 = vrot.lane.b32.xlu0 %v4504, 89
  %v4533 = vpop.permute.xlu0 %4532
  %4534 = vrot.lane.b32.xlu0 %v4505, 89
  %v4535 = vpop.permute.xlu0 %4534
  %4536 = vrot.lane.b32.xlu0 %v4506, 89
  %v4537 = vpop.permute.xlu0 %4536
  %4538 = vrot.lane.b32.xlu0 %v4507, 89
  %v4539 = vpop.permute.xlu0 %4538
  %4540 = vrot.lane.b32.xlu0 %v4508, 89
  %v4541 = vpop.permute.xlu0 %4540
  %4542 = vrot.lane.b32.xlu0 %v4509, 89
  %v4543 = vpop.permute.xlu0 %4542
  %4544 = vrot.lane.b32.xlu0 %v4510, 89
  %v4545 = vpop.permute.xlu0 %4544
  %4546 = vrot.lane.b32.xlu0 %v4511, 89
  %v4547 = vpop.permute.xlu0 %4546
  %v4548 = vsel %vm3710, %v4525, %v4527
  %v4549 = vsel %vm3710, %v4527, %v4529
  %v4550 = vsel %vm3710, %v4531, %v4533
  %v4551 = vsel %vm3710, %v4533, %v4535
  %v4552 = vsel %vm3710, %v4537, %v4539
  %v4553 = vsel %vm3710, %v4539, %v4541
  %v4554 = vsel %vm3710, %v4543, %v4545
  %v4555 = vsel %vm3710, %v4545, %v4547
  %4568 = vst.msk [vmem:[#allocation3 + $0xb0] sm:$0xff] %vm4486, %v4548
  %4569 = vst [vmem:[#allocation3 + $0xb8] sm:$0xff] %v4549
  %4570 = vst.msk [vmem:[#allocation3 + $0xc0] sm:$0xff] %vm4489, %v4529
  %4571 = vst.msk [vmem:[#allocation3 + $0xd8] sm:$0xff] %vm4486, %v4550
  %4572 = vst [vmem:[#allocation3 + $0xe0] sm:$0xff] %v4551
  %4573 = vst.msk [vmem:[#allocation3 + $0xe8] sm:$0xff] %vm4489, %v4535
  %4574 = vst.msk [vmem:[#allocation3 + $0x100] sm:$0xff] %vm4486, %v4552
  %4575 = vst [vmem:[#allocation3 + $0x108] sm:$0xff] %v4553
  %4576 = vst.msk [vmem:[#allocation3 + $0x110] sm:$0xff] %vm4489, %v4541
  %4577 = vst.msk [vmem:[#allocation3 + $0x128] sm:$0xff] %vm4486, %v4554
  %4578 = vst [vmem:[#allocation3 + $0x130] sm:$0xff] %v4555
  %4579 = vst.msk [vmem:[#allocation3 + $0x138] sm:$0xff] %vm4489, %v4547
  %v4580 = vld [vmem:[#allocation2 + $0x10] sm:$0xff]
  %v4581 = vld [vmem:[#allocation2 + $0x18] sm:$0xff]
  %v4582 = vld [vmem:[#allocation2 + $0x20] sm:$0xff]
  %v4583 = vld [vmem:[#allocation2 + $0x40] sm:$0xff]
  %v4584 = vld [vmem:[#allocation2 + $0x48] sm:$0xff]
  %v4585 = vld [vmem:[#allocation2 + $0x50] sm:$0xff]
  %v4586 = vld [vmem:[#allocation2 + $0x70] sm:$0xff]
  %v4587 = vld [vmem:[#allocation2 + $0x78] sm:$0xff]
  %v4588 = vld [vmem:[#allocation2 + $0x80] sm:$0xff]
  %v4589 = vld [vmem:[#allocation2 + $0xa0] sm:$0xff]
  %v4590 = vld [vmem:[#allocation2 + $0xa8] sm:$0xff]
  %v4591 = vld [vmem:[#allocation2 + $0xb0] sm:$0xff]
  %4604 = vrot.lane.b32.xlu0 %v4580, 88
  %v4605 = vpop.permute.xlu0 %4604
  %4606 = vrot.lane.b32.xlu0 %v4581, 88
  %v4607 = vpop.permute.xlu0 %4606
  %4608 = vrot.lane.b32.xlu0 %v4582, 88
  %v4609 = vpop.permute.xlu0 %4608
  %4610 = vrot.lane.b32.xlu0 %v4583, 88
  %v4611 = vpop.permute.xlu0 %4610
  %4612 = vrot.lane.b32.xlu0 %v4584, 88
  %v4613 = vpop.permute.xlu0 %4612
  %4614 = vrot.lane.b32.xlu0 %v4585, 88
  %v4615 = vpop.permute.xlu0 %4614
  %4616 = vrot.lane.b32.xlu0 %v4586, 88
  %v4617 = vpop.permute.xlu0 %4616
  %4618 = vrot.lane.b32.xlu0 %v4587, 88
  %v4619 = vpop.permute.xlu0 %4618
  %4620 = vrot.lane.b32.xlu0 %v4588, 88
  %v4621 = vpop.permute.xlu0 %4620
  %4622 = vrot.lane.b32.xlu0 %v4589, 88
  %v4623 = vpop.permute.xlu0 %4622
  %4624 = vrot.lane.b32.xlu0 %v4590, 88
  %v4625 = vpop.permute.xlu0 %4624
  %4626 = vrot.lane.b32.xlu0 %v4591, 88
  %v4627 = vpop.permute.xlu0 %4626
  %vm4628 = vcmask 719872
  %v4629 = vsel %vm4628, %v4605, %v4607
  %v4630 = vsel %vm4628, %v4607, %v4609
  %v4631 = vsel %vm4628, %v4611, %v4613
  %v4632 = vsel %vm4628, %v4613, %v4615
  %v4633 = vsel %vm4628, %v4617, %v4619
  %v4634 = vsel %vm4628, %v4619, %v4621
  %v4635 = vsel %vm4628, %v4623, %v4625
  %v4636 = vsel %vm4628, %v4625, %v4627
  %4649 = vst.msk [vmem:[#allocation3 + $0x150] sm:$0xff] %vm4486, %v4629
  %4650 = vst [vmem:[#allocation3 + $0x158] sm:$0xff] %v4630
  %4651 = vst.msk [vmem:[#allocation3 + $0x160] sm:$0xff] %vm4489, %v4609
  %4652 = vst.msk [vmem:[#allocation3 + $0x178] sm:$0xff] %vm4486, %v4631
  %4653 = vst [vmem:[#allocation3 + $0x180] sm:$0xff] %v4632
  %4654 = vst.msk [vmem:[#allocation3 + $0x188] sm:$0xff] %vm4489, %v4615
  %4655 = vst.msk [vmem:[#allocation3 + $0x1a0] sm:$0xff] %vm4486, %v4633
  %4656 = vst [vmem:[#allocation3 + $0x1a8] sm:$0xff] %v4634
  %4657 = vst.msk [vmem:[#allocation3 + $0x1b0] sm:$0xff] %vm4489, %v4621
  %4658 = vst.msk [vmem:[#allocation3 + $0x1c8] sm:$0xff] %vm4486, %v4635
  %4659 = vst [vmem:[#allocation3 + $0x1d0] sm:$0xff] %v4636
  %4660 = vst.msk [vmem:[#allocation3 + $0x1d8] sm:$0xff] %vm4489, %v4627
  %v4661 = vld [vmem:[#allocation2 + $0x10] sm:$0xff]
  %v4662 = vld [vmem:[#allocation2 + $0x18] sm:$0xff]
  %v4663 = vld [vmem:[#allocation2 + $0x20] sm:$0xff]
  %v4664 = vld [vmem:[#allocation2 + $0x40] sm:$0xff]
  %v4665 = vld [vmem:[#allocation2 + $0x48] sm:$0xff]
  %v4666 = vld [vmem:[#allocation2 + $0x50] sm:$0xff]
  %v4667 = vld [vmem:[#allocation2 + $0x70] sm:$0xff]
  %v4668 = vld [vmem:[#allocation2 + $0x78] sm:$0xff]
  %v4669 = vld [vmem:[#allocation2 + $0x80] sm:$0xff]
  %v4670 = vld [vmem:[#allocation2 + $0xa0] sm:$0xff]
  %v4671 = vld [vmem:[#allocation2 + $0xa8] sm:$0xff]
  %v4672 = vld [vmem:[#allocation2 + $0xb0] sm:$0xff]
  %4685 = vrot.lane.b32.xlu0 %v4661, 72
  %v4686 = vpop.permute.xlu0 %4685
  %4687 = vrot.lane.b32.xlu0 %v4662, 72
  %v4688 = vpop.permute.xlu0 %4687
  %4689 = vrot.lane.b32.xlu0 %v4663, 72
  %v4690 = vpop.permute.xlu0 %4689
  %4691 = vrot.lane.b32.xlu0 %v4664, 72
  %v4692 = vpop.permute.xlu0 %4691
  %4693 = vrot.lane.b32.xlu0 %v4665, 72
  %v4694 = vpop.permute.xlu0 %4693
  %4695 = vrot.lane.b32.xlu0 %v4666, 72
  %v4696 = vpop.permute.xlu0 %4695
  %4697 = vrot.lane.b32.xlu0 %v4667, 72
  %v4698 = vpop.permute.xlu0 %4697
  %4699 = vrot.lane.b32.xlu0 %v4668, 72
  %v4700 = vpop.permute.xlu0 %4699
  %4701 = vrot.lane.b32.xlu0 %v4669, 72
  %v4702 = vpop.permute.xlu0 %4701
  %4703 = vrot.lane.b32.xlu0 %v4670, 72
  %v4704 = vpop.permute.xlu0 %4703
  %4705 = vrot.lane.b32.xlu0 %v4671, 72
  %v4706 = vpop.permute.xlu0 %4705
  %4707 = vrot.lane.b32.xlu0 %v4672, 72
  %v4708 = vpop.permute.xlu0 %4707
  %vm4709 = vcmask 588800
  %v4710 = vsel %vm4709, %v4686, %v4688
  %v4711 = vsel %vm4709, %v4688, %v4690
  %v4712 = vsel %vm4709, %v4692, %v4694
  %v4713 = vsel %vm4709, %v4694, %v4696
  %v4714 = vsel %vm4709, %v4698, %v4700
  %v4715 = vsel %vm4709, %v4700, %v4702
  %v4716 = vsel %vm4709, %v4704, %v4706
  %v4717 = vsel %vm4709, %v4706, %v4708
  %4730 = vst.msk [vmem:[#allocation3 + $0x1f0] sm:$0xff] %vm4486, %v4710
  %4731 = vst [vmem:[#allocation3 + $0x1f8] sm:$0xff] %v4711
  %4732 = vst.msk [vmem:[#allocation3 + $0x200] sm:$0xff] %vm4489, %v4690
  %4733 = vst.msk [vmem:[#allocation3 + $0x218] sm:$0xff] %vm4486, %v4712
  %4734 = vst [vmem:[#allocation3 + $0x220] sm:$0xff] %v4713
  %4735 = vst.msk [vmem:[#allocation3 + $0x228] sm:$0xff] %vm4489, %v4696
  %4736 = vst.msk [vmem:[#allocation3 + $0x240] sm:$0xff] %vm4486, %v4714
  %4737 = vst [vmem:[#allocation3 + $0x248] sm:$0xff] %v4715
  %4738 = vst.msk [vmem:[#allocation3 + $0x250] sm:$0xff] %vm4489, %v4702
  %4739 = vst.msk [vmem:[#allocation3 + $0x268] sm:$0xff] %vm4486, %v4716
  %4740 = vst [vmem:[#allocation3 + $0x270] sm:$0xff] %v4717
  %4741 = vst.msk [vmem:[#allocation3 + $0x278] sm:$0xff] %vm4489, %v4708
  %v4742 = vld [vmem:[#allocation2 + $0x10] sm:$0xff]
  %v4743 = vld [vmem:[#allocation2 + $0x18] sm:$0xff]
  %v4744 = vld [vmem:[#allocation2 + $0x20] sm:$0xff]
  %v4745 = vld [vmem:[#allocation2 + $0x40] sm:$0xff]
  %v4746 = vld [vmem:[#allocation2 + $0x48] sm:$0xff]
  %v4747 = vld [vmem:[#allocation2 + $0x50] sm:$0xff]
  %v4748 = vld [vmem:[#allocation2 + $0x70] sm:$0xff]
  %v4749 = vld [vmem:[#allocation2 + $0x78] sm:$0xff]
  %v4750 = vld [vmem:[#allocation2 + $0x80] sm:$0xff]
  %v4751 = vld [vmem:[#allocation2 + $0xa0] sm:$0xff]
  %v4752 = vld [vmem:[#allocation2 + $0xa8] sm:$0xff]
  %v4753 = vld [vmem:[#allocation2 + $0xb0] sm:$0xff]
  %4766 = vrot.lane.b32.xlu0 %v4742, 71
  %v4767 = vpop.permute.xlu0 %4766
  %4768 = vrot.lane.b32.xlu0 %v4743, 71
  %v4769 = vpop.permute.xlu0 %4768
  %4770 = vrot.lane.b32.xlu0 %v4744, 71
  %v4771 = vpop.permute.xlu0 %4770
  %4772 = vrot.lane.b32.xlu0 %v4745, 71
  %v4773 = vpop.permute.xlu0 %4772
  %4774 = vrot.lane.b32.xlu0 %v4746, 71
  %v4775 = vpop.permute.xlu0 %4774
  %4776 = vrot.lane.b32.xlu0 %v4747, 71
  %v4777 = vpop.permute.xlu0 %4776
  %4778 = vrot.lane.b32.xlu0 %v4748, 71
  %v4779 = vpop.permute.xlu0 %4778
  %4780 = vrot.lane.b32.xlu0 %v4749, 71
  %v4781 = vpop.permute.xlu0 %4780
  %4782 = vrot.lane.b32.xlu0 %v4750, 71
  %v4783 = vpop.permute.xlu0 %4782
  %4784 = vrot.lane.b32.xlu0 %v4751, 71
  %v4785 = vpop.permute.xlu0 %4784
  %4786 = vrot.lane.b32.xlu0 %v4752, 71
  %v4787 = vpop.permute.xlu0 %4786
  %4788 = vrot.lane.b32.xlu0 %v4753, 71
  %v4789 = vpop.permute.xlu0 %4788
  %vm4790 = vcmask 580608
  %v4791 = vsel %vm4790, %v4767, %v4769
  %v4792 = vsel %vm4790, %v4769, %v4771
  %v4793 = vsel %vm4790, %v4773, %v4775
  %v4794 = vsel %vm4790, %v4775, %v4777
  %v4795 = vsel %vm4790, %v4779, %v4781
  %v4796 = vsel %vm4790, %v4781, %v4783
  %v4797 = vsel %vm4790, %v4785, %v4787
  %v4798 = vsel %vm4790, %v4787, %v4789
  %4811 = vst.msk [vmem:[#allocation3 + $0x290] sm:$0xff] %vm4486, %v4791
  %4812 = vst [vmem:[#allocation3 + $0x298] sm:$0xff] %v4792
  %4813 = vst.msk [vmem:[#allocation3 + $0x2a0] sm:$0xff] %vm4489, %v4771
  %4814 = vst.msk [vmem:[#allocation3 + $0x2b8] sm:$0xff] %vm4486, %v4793
  %4815 = vst [vmem:[#allocation3 + $0x2c0] sm:$0xff] %v4794
  %4816 = vst.msk [vmem:[#allocation3 + $0x2c8] sm:$0xff] %vm4489, %v4777
  %4817 = vst.msk [vmem:[#allocation3 + $0x2e0] sm:$0xff] %vm4486, %v4795
  %4818 = vst [vmem:[#allocation3 + $0x2e8] sm:$0xff] %v4796
  %4819 = vst.msk [vmem:[#allocation3 + $0x2f0] sm:$0xff] %vm4489, %v4783
  %4820 = vst.msk [vmem:[#allocation3 + $0x308] sm:$0xff] %vm4486, %v4797
  %4821 = vst [vmem:[#allocation3 + $0x310] sm:$0xff] %v4798
  %4822 = vst.msk [vmem:[#allocation3 + $0x318] sm:$0xff] %vm4489, %v4789
  %v4823 = vld [vmem:[#allocation2 + $0x10] sm:$0xff]
  %v4824 = vld [vmem:[#allocation2 + $0x18] sm:$0xff]
  %v4825 = vld [vmem:[#allocation2 + $0x20] sm:$0xff]
  %v4826 = vld [vmem:[#allocation2 + $0x40] sm:$0xff]
  %v4827 = vld [vmem:[#allocation2 + $0x48] sm:$0xff]
  %v4828 = vld [vmem:[#allocation2 + $0x50] sm:$0xff]
  %v4829 = vld [vmem:[#allocation2 + $0x70] sm:$0xff]
  %v4830 = vld [vmem:[#allocation2 + $0x78] sm:$0xff]
  %v4831 = vld [vmem:[#allocation2 + $0x80] sm:$0xff]
  %v4832 = vld [vmem:[#allocation2 + $0xa0] sm:$0xff]
  %v4833 = vld [vmem:[#allocation2 + $0xa8] sm:$0xff]
  %v4834 = vld [vmem:[#allocation2 + $0xb0] sm:$0xff]
  %4847 = vrot.lane.b32.xlu0 %v4823, 70
  %v4848 = vpop.permute.xlu0 %4847
  %4849 = vrot.lane.b32.xlu0 %v4824, 70
  %v4850 = vpop.permute.xlu0 %4849
  %4851 = vrot.lane.b32.xlu0 %v4825, 70
  %v4852 = vpop.permute.xlu0 %4851
  %4853 = vrot.lane.b32.xlu0 %v4826, 70
  %v4854 = vpop.permute.xlu0 %4853
  %4855 = vrot.lane.b32.xlu0 %v4827, 70
  %v4856 = vpop.permute.xlu0 %4855
  %4857 = vrot.lane.b32.xlu0 %v4828, 70
  %v4858 = vpop.permute.xlu0 %4857
  %4859 = vrot.lane.b32.xlu0 %v4829, 70
  %v4860 = vpop.permute.xlu0 %4859
  %4861 = vrot.lane.b32.xlu0 %v4830, 70
  %v4862 = vpop.permute.xlu0 %4861
  %4863 = vrot.lane.b32.xlu0 %v4831, 70
  %v4864 = vpop.permute.xlu0 %4863
  %4865 = vrot.lane.b32.xlu0 %v4832, 70
  %v4866 = vpop.permute.xlu0 %4865
  %4867 = vrot.lane.b32.xlu0 %v4833, 70
  %v4868 = vpop.permute.xlu0 %4867
  %4869 = vrot.lane.b32.xlu0 %v4834, 70
  %v4870 = vpop.permute.xlu0 %4869
  %vm4871 = vcmask 572416
  %v4872 = vsel %vm4871, %v4848, %v4850
  %v4873 = vsel %vm4871, %v4850, %v4852
  %v4874 = vsel %vm4871, %v4854, %v4856
  %v4875 = vsel %vm4871, %v4856, %v4858
  %v4876 = vsel %vm4871, %v4860, %v4862
  %v4877 = vsel %vm4871, %v4862, %v4864
  %v4878 = vsel %vm4871, %v4866, %v4868
  %v4879 = vsel %vm4871, %v4868, %v4870
  %4892 = vst.msk [vmem:[#allocation3 + $0x330] sm:$0xff] %vm4486, %v4872
  %4893 = vst [vmem:[#allocation3 + $0x338] sm:$0xff] %v4873
  %4894 = vst.msk [vmem:[#allocation3 + $0x340] sm:$0xff] %vm4489, %v4852
  %4895 = vst.msk [vmem:[#allocation3 + $0x358] sm:$0xff] %vm4486, %v4874
  %4896 = vst [vmem:[#allocation3 + $0x360] sm:$0xff] %v4875
  %4897 = vst.msk [vmem:[#allocation3 + $0x368] sm:$0xff] %vm4489, %v4858
  %4898 = vst.msk [vmem:[#allocation3 + $0x380] sm:$0xff] %vm4486, %v4876
  %4899 = vst [vmem:[#allocation3 + $0x388] sm:$0xff] %v4877
  %4900 = vst.msk [vmem:[#allocation3 + $0x390] sm:$0xff] %vm4489, %v4864
  %4901 = vst.msk [vmem:[#allocation3 + $0x3a8] sm:$0xff] %vm4486, %v4878
  %4902 = vst [vmem:[#allocation3 + $0x3b0] sm:$0xff] %v4879
  %4903 = vst.msk [vmem:[#allocation3 + $0x3b8] sm:$0xff] %vm4489, %v4870
  %v4904 = vld [vmem:[#allocation2 + $0x10] sm:$0xff]
  %v4905 = vld [vmem:[#allocation2 + $0x18] sm:$0xff]
  %v4906 = vld [vmem:[#allocation2 + $0x20] sm:$0xff]
  %v4907 = vld [vmem:[#allocation2 + $0x28] sm:$0xff]
  %v4908 = vld [vmem:[#allocation2 + $0x40] sm:$0xff]
  %v4909 = vld [vmem:[#allocation2 + $0x48] sm:$0xff]
  %v4910 = vld [vmem:[#allocation2 + $0x50] sm:$0xff]
  %v4911 = vld [vmem:[#allocation2 + $0x58] sm:$0xff]
  %v4912 = vld [vmem:[#allocation2 + $0x70] sm:$0xff]
  %v4913 = vld [vmem:[#allocation2 + $0x78] sm:$0xff]
  %v4914 = vld [vmem:[#allocation2 + $0x80] sm:$0xff]
  %v4915 = vld [vmem:[#allocation2 + $0x88] sm:$0xff]
  %v4916 = vld [vmem:[#allocation2 + $0xa0] sm:$0xff]
  %v4917 = vld [vmem:[#allocation2 + $0xa8] sm:$0xff]
  %v4918 = vld [vmem:[#allocation2 + $0xb0] sm:$0xff]
  %v4919 = vld [vmem:[#allocation2 + $0xb8] sm:$0xff]
  %4936 = vrot.lane.b32.xlu0 %v4904, 54
  %v4937 = vpop.permute.xlu0 %4936
  %4938 = vrot.lane.b32.xlu0 %v4905, 54
  %v4939 = vpop.permute.xlu0 %4938
  %4940 = vrot.lane.b32.xlu0 %v4906, 54
  %v4941 = vpop.permute.xlu0 %4940
  %4942 = vrot.lane.b32.xlu0 %v4907, 54
  %v4943 = vpop.permute.xlu0 %4942
  %4944 = vrot.lane.b32.xlu0 %v4908, 54
  %v4945 = vpop.permute.xlu0 %4944
  %4946 = vrot.lane.b32.xlu0 %v4909, 54
  %v4947 = vpop.permute.xlu0 %4946
  %4948 = vrot.lane.b32.xlu0 %v4910, 54
  %v4949 = vpop.permute.xlu0 %4948
  %4950 = vrot.lane.b32.xlu0 %v4911, 54
  %v4951 = vpop.permute.xlu0 %4950
  %4952 = vrot.lane.b32.xlu0 %v4912, 54
  %v4953 = vpop.permute.xlu0 %4952
  %4954 = vrot.lane.b32.xlu0 %v4913, 54
  %v4955 = vpop.permute.xlu0 %4954
  %4956 = vrot.lane.b32.xlu0 %v4914, 54
  %v4957 = vpop.permute.xlu0 %4956
  %4958 = vrot.lane.b32.xlu0 %v4915, 54
  %v4959 = vpop.permute.xlu0 %4958
  %4960 = vrot.lane.b32.xlu0 %v4916, 54
  %v4961 = vpop.permute.xlu0 %4960
  %4962 = vrot.lane.b32.xlu0 %v4917, 54
  %v4963 = vpop.permute.xlu0 %4962
  %4964 = vrot.lane.b32.xlu0 %v4918, 54
  %v4965 = vpop.permute.xlu0 %4964
  %4966 = vrot.lane.b32.xlu0 %v4919, 54
  %v4967 = vpop.permute.xlu0 %4966
  %vm4968 = vcmask 441344
  %v4969 = vsel %vm4968, %v4937, %v4939
  %v4970 = vsel %vm4968, %v4939, %v4941
  %v4971 = vsel %vm4968, %v4941, %v4943
  %v4972 = vsel %vm4968, %v4945, %v4947
  %v4973 = vsel %vm4968, %v4947, %v4949
  %v4974 = vsel %vm4968, %v4949, %v4951
  %v4975 = vsel %vm4968, %v4953, %v4955
  %v4976 = vsel %vm4968, %v4955, %v4957
  %v4977 = vsel %vm4968, %v4957, %v4959
  %v4978 = vsel %vm4968, %v4961, %v4963
  %v4979 = vsel %vm4968, %v4963, %v4965
  %v4980 = vsel %vm4968, %v4965, %v4967
  %4993 = vst.msk [vmem:[#allocation3 + $0x3d0] sm:$0xff] %vm4486, %v4969
  %4994 = vst [vmem:[#allocation3 + $0x3d8] sm:$0xff] %v4970
  %4995 = vst.msk [vmem:[#allocation3 + $0x3e0] sm:$0xff] %vm4489, %v4971
  %4996 = vst.msk [vmem:[#allocation3 + $0x3f8] sm:$0xff] %vm4486, %v4972
  %4997 = vst [vmem:[#allocation3 + $0x400] sm:$0xff] %v4973
  %4998 = vst.msk [vmem:[#allocation3 + $0x408] sm:$0xff] %vm4489, %v4974
  %4999 = vst.msk [vmem:[#allocation3 + $0x420] sm:$0xff] %vm4486, %v4975
  %5000 = vst [vmem:[#allocation3 + $0x428] sm:$0xff] %v4976
  %5001 = vst.msk [vmem:[#allocation3 + $0x430] sm:$0xff] %vm4489, %v4977
  %5002 = vst.msk [vmem:[#allocation3 + $0x448] sm:$0xff] %vm4486, %v4978
  %5003 = vst [vmem:[#allocation3 + $0x450] sm:$0xff] %v4979
  %5004 = vst.msk [vmem:[#allocation3 + $0x458] sm:$0xff] %vm4489, %v4980
  %v5005 = vld [vmem:[#allocation2 + $0x10] sm:$0xff]
  %v5006 = vld [vmem:[#allocation2 + $0x18] sm:$0xff]
  %v5007 = vld [vmem:[#allocation2 + $0x20] sm:$0xff]
  %v5008 = vld [vmem:[#allocation2 + $0x28] sm:$0xff]
  %v5009 = vld [vmem:[#allocation2 + $0x40] sm:$0xff]
  %v5010 = vld [vmem:[#allocation2 + $0x48] sm:$0xff]
  %v5011 = vld [vmem:[#allocation2 + $0x50] sm:$0xff]
  %v5012 = vld [vmem:[#allocation2 + $0x58] sm:$0xff]
  %v5013 = vld [vmem:[#allocation2 + $0x70] sm:$0xff]
  %v5014 = vld [vmem:[#allocation2 + $0x78] sm:$0xff]
  %v5015 = vld [vmem:[#allocation2 + $0x80] sm:$0xff]
  %v5016 = vld [vmem:[#allocation2 + $0x88] sm:$0xff]
  %v5017 = vld [vmem:[#allocation2 + $0xa0] sm:$0xff]
  %v5018 = vld [vmem:[#allocation2 + $0xa8] sm:$0xff]
  %v5019 = vld [vmem:[#allocation2 + $0xb0] sm:$0xff]
  %v5020 = vld [vmem:[#allocation2 + $0xb8] sm:$0xff]
  %5037 = vrot.lane.b32.xlu0 %v5005, 53
  %v5038 = vpop.permute.xlu0 %5037
  %5039 = vrot.lane.b32.xlu0 %v5006, 53
  %v5040 = vpop.permute.xlu0 %5039
  %5041 = vrot.lane.b32.xlu0 %v5007, 53
  %v5042 = vpop.permute.xlu0 %5041
  %5043 = vrot.lane.b32.xlu0 %v5008, 53
  %v5044 = vpop.permute.xlu0 %5043
  %5045 = vrot.lane.b32.xlu0 %v5009, 53
  %v5046 = vpop.permute.xlu0 %5045
  %5047 = vrot.lane.b32.xlu0 %v5010, 53
  %v5048 = vpop.permute.xlu0 %5047
  %5049 = vrot.lane.b32.xlu0 %v5011, 53
  %v5050 = vpop.permute.xlu0 %5049
  %5051 = vrot.lane.b32.xlu0 %v5012, 53
  %v5052 = vpop.permute.xlu0 %5051
  %5053 = vrot.lane.b32.xlu0 %v5013, 53
  %v5054 = vpop.permute.xlu0 %5053
  %5055 = vrot.lane.b32.xlu0 %v5014, 53
  %v5056 = vpop.permute.xlu0 %5055
  %5057 = vrot.lane.b32.xlu0 %v5015, 53
  %v5058 = vpop.permute.xlu0 %5057
  %5059 = vrot.lane.b32.xlu0 %v5016, 53
  %v5060 = vpop.permute.xlu0 %5059
  %5061 = vrot.lane.b32.xlu0 %v5017, 53
  %v5062 = vpop.permute.xlu0 %5061
  %5063 = vrot.lane.b32.xlu0 %v5018, 53
  %v5064 = vpop.permute.xlu0 %5063
  %5065 = vrot.lane.b32.xlu0 %v5019, 53
  %v5066 = vpop.permute.xlu0 %5065
  %5067 = vrot.lane.b32.xlu0 %v5020, 53
  %v5068 = vpop.permute.xlu0 %5067
  %vm5069 = vcmask 433152
  %v5070 = vsel %vm5069, %v5038, %v5040
  %v5071 = vsel %vm5069, %v5040, %v5042
  %v5072 = vsel %vm5069, %v5042, %v5044
  %v5073 = vsel %vm5069, %v5046, %v5048
  %v5074 = vsel %vm5069, %v5048, %v5050
  %v5075 = vsel %vm5069, %v5050, %v5052
  %v5076 = vsel %vm5069, %v5054, %v5056
  %v5077 = vsel %vm5069, %v5056, %v5058
  %v5078 = vsel %vm5069, %v5058, %v5060
  %v5079 = vsel %vm5069, %v5062, %v5064
  %v5080 = vsel %vm5069, %v5064, %v5066
  %v5081 = vsel %vm5069, %v5066, %v5068
  %5094 = vst.msk [vmem:[#allocation3 + $0x470] sm:$0xff] %vm4486, %v5070
  %5095 = vst [vmem:[#allocation3 + $0x478] sm:$0xff] %v5071
  %5096 = vst.msk [vmem:[#allocation3 + $0x480] sm:$0xff] %vm4489, %v5072
  %5097 = vst.msk [vmem:[#allocation3 + $0x498] sm:$0xff] %vm4486, %v5073
  %5098 = vst [vmem:[#allocation3 + $0x4a0] sm:$0xff] %v5074
  %5099 = vst.msk [vmem:[#allocation3 + $0x4a8] sm:$0xff] %vm4489, %v5075
  %5100 = vst.msk [vmem:[#allocation3 + $0x4c0] sm:$0xff] %vm4486, %v5076
  %5101 = vst [vmem:[#allocation3 + $0x4c8] sm:$0xff] %v5077
  %5102 = vst.msk [vmem:[#allocation3 + $0x4d0] sm:$0xff] %vm4489, %v5078
  %5103 = vst.msk [vmem:[#allocation3 + $0x4e8] sm:$0xff] %vm4486, %v5079
  %5104 = vst [vmem:[#allocation3 + $0x4f0] sm:$0xff] %v5080
  %5105 = vst.msk [vmem:[#allocation3 + $0x4f8] sm:$0xff] %vm4489, %v5081
  %v5106 = vld [vmem:[#allocation2 + $0x10] sm:$0xff]
  %v5107 = vld [vmem:[#allocation2 + $0x18] sm:$0xff]
  %v5108 = vld [vmem:[#allocation2 + $0x20] sm:$0xff]
  %v5109 = vld [vmem:[#allocation2 + $0x28] sm:$0xff]
  %v5110 = vld [vmem:[#allocation2 + $0x40] sm:$0xff]
  %v5111 = vld [vmem:[#allocation2 + $0x48] sm:$0xff]
  %v5112 = vld [vmem:[#allocation2 + $0x50] sm:$0xff]
  %v5113 = vld [vmem:[#allocation2 + $0x58] sm:$0xff]
  %v5114 = vld [vmem:[#allocation2 + $0x70] sm:$0xff]
  %v5115 = vld [vmem:[#allocation2 + $0x78] sm:$0xff]
  %v5116 = vld [vmem:[#allocation2 + $0x80] sm:$0xff]
  %v5117 = vld [vmem:[#allocation2 + $0x88] sm:$0xff]
  %v5118 = vld [vmem:[#allocation2 + $0xa0] sm:$0xff]
  %v5119 = vld [vmem:[#allocation2 + $0xa8] sm:$0xff]
  %v5120 = vld [vmem:[#allocation2 + $0xb0] sm:$0xff]
  %v5121 = vld [vmem:[#allocation2 + $0xb8] sm:$0xff]
  %5138 = vrot.lane.b32.xlu0 %v5106, 52
  %v5139 = vpop.permute.xlu0 %5138
  %5140 = vrot.lane.b32.xlu0 %v5107, 52
  %v5141 = vpop.permute.xlu0 %5140
  %5142 = vrot.lane.b32.xlu0 %v5108, 52
  %v5143 = vpop.permute.xlu0 %5142
  %5144 = vrot.lane.b32.xlu0 %v5109, 52
  %v5145 = vpop.permute.xlu0 %5144
  %5146 = vrot.lane.b32.xlu0 %v5110, 52
  %v5147 = vpop.permute.xlu0 %5146
  %5148 = vrot.lane.b32.xlu0 %v5111, 52
  %v5149 = vpop.permute.xlu0 %5148
  %5150 = vrot.lane.b32.xlu0 %v5112, 52
  %v5151 = vpop.permute.xlu0 %5150
  %5152 = vrot.lane.b32.xlu0 %v5113, 52
  %v5153 = vpop.permute.xlu0 %5152
  %5154 = vrot.lane.b32.xlu0 %v5114, 52
  %v5155 = vpop.permute.xlu0 %5154
  %5156 = vrot.lane.b32.xlu0 %v5115, 52
  %v5157 = vpop.permute.xlu0 %5156
  %5158 = vrot.lane.b32.xlu0 %v5116, 52
  %v5159 = vpop.permute.xlu0 %5158
  %5160 = vrot.lane.b32.xlu0 %v5117, 52
  %v5161 = vpop.permute.xlu0 %5160
  %5162 = vrot.lane.b32.xlu0 %v5118, 52
  %v5163 = vpop.permute.xlu0 %5162
  %5164 = vrot.lane.b32.xlu0 %v5119, 52
  %v5165 = vpop.permute.xlu0 %5164
  %5166 = vrot.lane.b32.xlu0 %v5120, 52
  %v5167 = vpop.permute.xlu0 %5166
  %5168 = vrot.lane.b32.xlu0 %v5121, 52
  %v5169 = vpop.permute.xlu0 %5168
  %vm5170 = vcmask 424960
  %v5171 = vsel %vm5170, %v5139, %v5141
  %v5172 = vsel %vm5170, %v5141, %v5143
  %v5173 = vsel %vm5170, %v5143, %v5145
  %v5174 = vsel %vm5170, %v5147, %v5149
  %v5175 = vsel %vm5170, %v5149, %v5151
  %v5176 = vsel %vm5170, %v5151, %v5153
  %v5177 = vsel %vm5170, %v5155, %v5157
  %v5178 = vsel %vm5170, %v5157, %v5159
  %v5179 = vsel %vm5170, %v5159, %v5161
  %v5180 = vsel %vm5170, %v5163, %v5165
  %v5181 = vsel %vm5170, %v5165, %v5167
  %v5182 = vsel %vm5170, %v5167, %v5169
  %5195 = vst.msk [vmem:[#allocation3 + $0x510] sm:$0xff] %vm4486, %v5171
  %5196 = vst [vmem:[#allocation3 + $0x518] sm:$0xff] %v5172
  %5197 = vst.msk [vmem:[#allocation3 + $0x520] sm:$0xff] %vm4489, %v5173
  %5198 = vst.msk [vmem:[#allocation3 + $0x538] sm:$0xff] %vm4486, %v5174
  %5199 = vst [vmem:[#allocation3 + $0x540] sm:$0xff] %v5175
  %5200 = vst.msk [vmem:[#allocation3 + $0x548] sm:$0xff] %vm4489, %v5176
  %5201 = vst.msk [vmem:[#allocation3 + $0x560] sm:$0xff] %vm4486, %v5177
  %5202 = vst [vmem:[#allocation3 + $0x568] sm:$0xff] %v5178
  %5203 = vst.msk [vmem:[#allocation3 + $0x570] sm:$0xff] %vm4489, %v5179
  %5204 = vst.msk [vmem:[#allocation3 + $0x588] sm:$0xff] %vm4486, %v5180
  %5205 = vst [vmem:[#allocation3 + $0x590] sm:$0xff] %v5181
  %5206 = vst.msk [vmem:[#allocation3 + $0x598] sm:$0xff] %vm4489, %v5182
  %v5207 = vld [vmem:[%s4] sm:$0xff]
  %v5208 = vld [vmem:[%s4 + $0x8] sm:$0xff]
  %v5209 = vld [vmem:[%s4 + $0x10] sm:$0xf]
  %v5210 = vld [vmem:[%s4 + $0x14] sm:$0xff]
  %v5211 = vld [vmem:[%s4 + $0x1c] sm:$0xff]
  %v5212 = vld [vmem:[%s4 + $0x24] sm:$0xf]
  %v5213 = vld [vmem:[%s4 + $0x28] sm:$0xff]
  %v5214 = vld [vmem:[%s4 + $0x30] sm:$0xff]
  %v5215 = vld [vmem:[%s4 + $0x38] sm:$0xf]
  %v5216 = vld [vmem:[%s4 + $0x3c] sm:$0xff]
  %v5217 = vld [vmem:[%s4 + $0x44] sm:$0xff]
  %v5218 = vld [vmem:[%s4 + $0x4c] sm:$0xf]
  %v5219 = vld [vmem:[%s4 + $0x50] sm:$0xff]
  %v5220 = vld [vmem:[%s4 + $0x58] sm:$0xff]
  %v5221 = vld [vmem:[%s4 + $0x60] sm:$0xf]
  %v5222 = vld [vmem:[%s4 + $0x64] sm:$0xff]
  %v5223 = vld [vmem:[%s4 + $0x6c] sm:$0xff]
  %v5224 = vld [vmem:[%s4 + $0x74] sm:$0xf]
  %v5225 = vld [vmem:[%s4 + $0x78] sm:$0xff]
  %v5226 = vld [vmem:[%s4 + $0x80] sm:$0xff]
  %v5227 = vld [vmem:[%s4 + $0x88] sm:$0xf]
  %v5228 = vld [vmem:[%s4 + $0x8c] sm:$0xff]
  %v5229 = vld [vmem:[%s4 + $0x94] sm:$0xff]
  %v5230 = vld [vmem:[%s4 + $0x9c] sm:$0xf]
  %v5231 = vld [vmem:[#allocation3] sm:$0xff]
  %v5232 = vld [vmem:[#allocation3 + $0x8] sm:$0xff]
  %v5233 = vld [vmem:[#allocation3 + $0x10] sm:$0xff]
  %v5234 = vld [vmem:[#allocation3 + $0x18] sm:$0xff]
  %v5235 = vld [vmem:[#allocation3 + $0x20] sm:$0xff]
  %v5236 = vld [vmem:[#allocation3 + $0x28] sm:$0xff]
  %v5237 = vld [vmem:[#allocation3 + $0x30] sm:$0xff]
  %v5238 = vld [vmem:[#allocation3 + $0x38] sm:$0xff]
  %v5239 = vld [vmem:[#allocation3 + $0x40] sm:$0xff]
  %v5240 = vld [vmem:[#allocation3 + $0x48] sm:$0xff]
  %v5241 = vld [vmem:[#allocation3 + $0x50] sm:$0xff]
  %v5242 = vld [vmem:[#allocation3 + $0x58] sm:$0xff]
  %v5243 = vld [vmem:[#allocation3 + $0x60] sm:$0xff]
  %v5244 = vld [vmem:[#allocation3 + $0x68] sm:$0xff]
  %v5245 = vld [vmem:[#allocation3 + $0x70] sm:$0xff]
  %v5246 = vld [vmem:[#allocation3 + $0x78] sm:$0xff]
  %v5247 = vld [vmem:[#allocation3 + $0x80] sm:$0xff]
  %v5248 = vld [vmem:[#allocation3 + $0x88] sm:$0xff]
  %v5249 = vld [vmem:[#allocation3 + $0x90] sm:$0xff]
  %v5250 = vld [vmem:[#allocation3 + $0x98] sm:$0xff]
  %v5251 = vld [vmem:[#allocation3 + $0xa0] sm:$0xff]
  %v5252 = vld [vmem:[#allocation3 + $0xa8] sm:$0xff]
  %v5253 = vld [vmem:[#allocation3 + $0xb0] sm:$0xff]
  %v5254 = vld [vmem:[#allocation3 + $0xb8] sm:$0xff]
  %v5255 = vld [vmem:[#allocation3 + $0xc0] sm:$0xff]
  %v5256 = vld [vmem:[#allocation3 + $0xc8] sm:$0xff]
  %v5257 = vld [vmem:[#allocation3 + $0xd0] sm:$0xff]
  %v5258 = vld [vmem:[#allocation3 + $0xd8] sm:$0xff]
  %v5259 = vld [vmem:[#allocation3 + $0xe0] sm:$0xff]
  %v5260 = vld [vmem:[#allocation3 + $0xe8] sm:$0xff]
  %v5261 = vld [vmem:[#allocation3 + $0xf0] sm:$0xff]
  %v5262 = vld [vmem:[#allocation3 + $0xf8] sm:$0xff]
  %v5263 = vld [vmem:[#allocation3 + $0x100] sm:$0xff]
  %v5264 = vld [vmem:[#allocation3 + $0x108] sm:$0xff]
  %v5265 = vld [vmem:[#allocation3 + $0x110] sm:$0xff]
  %v5266 = vld [vmem:[#allocation3 + $0x118] sm:$0xff]
  %v5267 = vld [vmem:[#allocation3 + $0x120] sm:$0xff]
  %v5268 = vld [vmem:[#allocation3 + $0x128] sm:$0xff]
  %v5269 = vld [vmem:[#allocation3 + $0x130] sm:$0xff]
  %v5270 = vld [vmem:[#allocation3 + $0x138] sm:$0xff]
  %v5271 = vld [vmem:[#allocation3 + $0x140] sm:$0xff]
  %v5272 = vld [vmem:[#allocation3 + $0x148] sm:$0xff]
  %v5273 = vld [vmem:[#allocation3 + $0x150] sm:$0xff]
  %v5274 = vld [vmem:[#allocation3 + $0x158] sm:$0xff]
  %v5275 = vld [vmem:[#allocation3 + $0x160] sm:$0xff]
  %v5276 = vld [vmem:[#allocation3 + $0x168] sm:$0xff]
  %v5277 = vld [vmem:[#allocation3 + $0x170] sm:$0xff]
  %v5278 = vld [vmem:[#allocation3 + $0x178] sm:$0xff]
  %v5279 = vld [vmem:[#allocation3 + $0x180] sm:$0xff]
  %v5280 = vld [vmem:[#allocation3 + $0x188] sm:$0xff]
  %v5281 = vld [vmem:[#allocation3 + $0x190] sm:$0xff]
  %v5282 = vld [vmem:[#allocation3 + $0x198] sm:$0xff]
  %v5283 = vld [vmem:[#allocation3 + $0x1a0] sm:$0xff]
  %v5284 = vld [vmem:[#allocation3 + $0x1a8] sm:$0xff]
  %v5285 = vld [vmem:[#allocation3 + $0x1b0] sm:$0xff]
  %v5286 = vld [vmem:[#allocation3 + $0x1b8] sm:$0xff]
  %v5287 = vld [vmem:[#allocation3 + $0x1c0] sm:$0xff]
  %v5288 = vld [vmem:[#allocation3 + $0x1c8] sm:$0xff]
  %v5289 = vld [vmem:[#allocation3 + $0x1d0] sm:$0xff]
  %v5290 = vld [vmem:[#allocation3 + $0x1d8] sm:$0xff]
  %v5291 = vld [vmem:[#allocation3 + $0x1e0] sm:$0xff]
  %v5292 = vld [vmem:[#allocation3 + $0x1e8] sm:$0xff]
  %v5293 = vld [vmem:[#allocation3 + $0x1f0] sm:$0xff]
  %v5294 = vld [vmem:[#allocation3 + $0x1f8] sm:$0xff]
  %v5295 = vld [vmem:[#allocation3 + $0x200] sm:$0xff]
  %v5296 = vld [vmem:[#allocation3 + $0x208] sm:$0xff]
  %v5297 = vld [vmem:[#allocation3 + $0x210] sm:$0xff]
  %v5298 = vld [vmem:[#allocation3 + $0x218] sm:$0xff]
  %v5299 = vld [vmem:[#allocation3 + $0x220] sm:$0xff]
  %v5300 = vld [vmem:[#allocation3 + $0x228] sm:$0xff]
  %v5301 = vld [vmem:[#allocation3 + $0x230] sm:$0xff]
  %v5302 = vld [vmem:[#allocation3 + $0x238] sm:$0xff]
  %v5303 = vld [vmem:[#allocation3 + $0x240] sm:$0xff]
  %v5304 = vld [vmem:[#allocation3 + $0x248] sm:$0xff]
  %v5305 = vld [vmem:[#allocation3 + $0x250] sm:$0xff]
  %v5306 = vld [vmem:[#allocation3 + $0x258] sm:$0xff]
  %v5307 = vld [vmem:[#allocation3 + $0x260] sm:$0xff]
  %v5308 = vld [vmem:[#allocation3 + $0x268] sm:$0xff]
  %v5309 = vld [vmem:[#allocation3 + $0x270] sm:$0xff]
  %v5310 = vld [vmem:[#allocation3 + $0x278] sm:$0xff]
  %v5311 = vld [vmem:[#allocation3 + $0x280] sm:$0xff]
  %v5312 = vld [vmem:[#allocation3 + $0x288] sm:$0xff]
  %v5313 = vld [vmem:[#allocation3 + $0x290] sm:$0xff]
  %v5314 = vld [vmem:[#allocation3 + $0x298] sm:$0xff]
  %v5315 = vld [vmem:[#allocation3 + $0x2a0] sm:$0xff]
  %v5316 = vld [vmem:[#allocation3 + $0x2a8] sm:$0xff]
  %v5317 = vld [vmem:[#allocation3 + $0x2b0] sm:$0xff]
  %v5318 = vld [vmem:[#allocation3 + $0x2b8] sm:$0xff]
  %v5319 = vld [vmem:[#allocation3 + $0x2c0] sm:$0xff]
  %v5320 = vld [vmem:[#allocation3 + $0x2c8] sm:$0xff]
  %v5321 = vld [vmem:[#allocation3 + $0x2d0] sm:$0xff]
  %v5322 = vld [vmem:[#allocation3 + $0x2d8] sm:$0xff]
  %v5323 = vld [vmem:[#allocation3 + $0x2e0] sm:$0xff]
  %v5324 = vld [vmem:[#allocation3 + $0x2e8] sm:$0xff]
  %v5325 = vld [vmem:[#allocation3 + $0x2f0] sm:$0xff]
  %v5326 = vld [vmem:[#allocation3 + $0x2f8] sm:$0xff]
  %v5327 = vld [vmem:[#allocation3 + $0x300] sm:$0xff]
  %v5328 = vld [vmem:[#allocation3 + $0x308] sm:$0xff]
  %v5329 = vld [vmem:[#allocation3 + $0x310] sm:$0xff]
  %v5330 = vld [vmem:[#allocation3 + $0x318] sm:$0xff]
  %v5331 = vld [vmem:[#allocation3 + $0x320] sm:$0xff]
  %v5332 = vld [vmem:[#allocation3 + $0x328] sm:$0xff]
  %v5333 = vld [vmem:[#allocation3 + $0x330] sm:$0xff]
  %v5334 = vld [vmem:[#allocation3 + $0x338] sm:$0xff]
  %v5335 = vld [vmem:[#allocation3 + $0x340] sm:$0xff]
  %v5336 = vld [vmem:[#allocation3 + $0x348] sm:$0xff]
  %v5337 = vld [vmem:[#allocation3 + $0x350] sm:$0xff]
  %v5338 = vld [vmem:[#allocation3 + $0x358] sm:$0xff]
  %v5339 = vld [vmem:[#allocation3 + $0x360] sm:$0xff]
  %v5340 = vld [vmem:[#allocation3 + $0x368] sm:$0xff]
  %v5341 = vld [vmem:[#allocation3 + $0x370] sm:$0xff]
  %v5342 = vld [vmem:[#allocation3 + $0x378] sm:$0xff]
  %v5343 = vld [vmem:[#allocation3 + $0x380] sm:$0xff]
  %v5344 = vld [vmem:[#allocation3 + $0x388] sm:$0xff]
  %v5345 = vld [vmem:[#allocation3 + $0x390] sm:$0xff]
  %v5346 = vld [vmem:[#allocation3 + $0x398] sm:$0xff]
  %v5347 = vld [vmem:[#allocation3 + $0x3a0] sm:$0xff]
  %v5348 = vld [vmem:[#allocation3 + $0x3a8] sm:$0xff]
  %v5349 = vld [vmem:[#allocation3 + $0x3b0] sm:$0xff]
  %v5350 = vld [vmem:[#allocation3 + $0x3b8] sm:$0xff]
  %v5351 = vld [vmem:[#allocation3 + $0x3c0] sm:$0xff]
  %v5352 = vld [vmem:[#allocation3 + $0x3c8] sm:$0xff]
  %v5353 = vld [vmem:[#allocation3 + $0x3d0] sm:$0xff]
  %v5354 = vld [vmem:[#allocation3 + $0x3d8] sm:$0xff]
  %v5355 = vld [vmem:[#allocation3 + $0x3e0] sm:$0xff]
  %v5356 = vld [vmem:[#allocation3 + $0x3e8] sm:$0xff]
  %v5357 = vld [vmem:[#allocation3 + $0x3f0] sm:$0xff]
  %v5358 = vld [vmem:[#allocation3 + $0x3f8] sm:$0xff]
  %v5359 = vld [vmem:[#allocation3 + $0x400] sm:$0xff]
  %v5360 = vld [vmem:[#allocation3 + $0x408] sm:$0xff]
  %v5361 = vld [vmem:[#allocation3 + $0x410] sm:$0xff]
  %v5362 = vld [vmem:[#allocation3 + $0x418] sm:$0xff]
  %v5363 = vld [vmem:[#allocation3 + $0x420] sm:$0xff]
  %v5364 = vld [vmem:[#allocation3 + $0x428] sm:$0xff]
  %v5365 = vld [vmem:[#allocation3 + $0x430] sm:$0xff]
  %v5366 = vld [vmem:[#allocation3 + $0x438] sm:$0xff]
  %v5367 = vld [vmem:[#allocation3 + $0x440] sm:$0xff]
  %v5368 = vld [vmem:[#allocation3 + $0x448] sm:$0xff]
  %v5369 = vld [vmem:[#allocation3 + $0x450] sm:$0xff]
  %v5370 = vld [vmem:[#allocation3 + $0x458] sm:$0xff]
  %v5371 = vld [vmem:[#allocation3 + $0x460] sm:$0xff]
  %v5372 = vld [vmem:[#allocation3 + $0x468] sm:$0xff]
  %v5373 = vld [vmem:[#allocation3 + $0x470] sm:$0xff]
  %v5374 = vld [vmem:[#allocation3 + $0x478] sm:$0xff]
  %v5375 = vld [vmem:[#allocation3 + $0x480] sm:$0xff]
  %v5376 = vld [vmem:[#allocation3 + $0x488] sm:$0xff]
  %v5377 = vld [vmem:[#allocation3 + $0x490] sm:$0xff]
  %v5378 = vld [vmem:[#allocation3 + $0x498] sm:$0xff]
  %v5379 = vld [vmem:[#allocation3 + $0x4a0] sm:$0xff]
  %v5380 = vld [vmem:[#allocation3 + $0x4a8] sm:$0xff]
  %v5381 = vld [vmem:[#allocation3 + $0x4b0] sm:$0xff]
  %v5382 = vld [vmem:[#allocation3 + $0x4b8] sm:$0xff]
  %v5383 = vld [vmem:[#allocation3 + $0x4c0] sm:$0xff]
  %v5384 = vld [vmem:[#allocation3 + $0x4c8] sm:$0xff]
  %v5385 = vld [vmem:[#allocation3 + $0x4d0] sm:$0xff]
  %v5386 = vld [vmem:[#allocation3 + $0x4d8] sm:$0xff]
  %v5387 = vld [vmem:[#allocation3 + $0x4e0] sm:$0xff]
  %v5388 = vld [vmem:[#allocation3 + $0x4e8] sm:$0xff]
  %v5389 = vld [vmem:[#allocation3 + $0x4f0] sm:$0xff]
  %v5390 = vld [vmem:[#allocation3 + $0x4f8] sm:$0xff]
  %v5391 = vld [vmem:[#allocation3 + $0x500] sm:$0xff]
  %v5392 = vld [vmem:[#allocation3 + $0x508] sm:$0xff]
  %v5393 = vld [vmem:[#allocation3 + $0x510] sm:$0xff]
  %v5394 = vld [vmem:[#allocation3 + $0x518] sm:$0xff]
  %v5395 = vld [vmem:[#allocation3 + $0x520] sm:$0xff]
  %v5396 = vld [vmem:[#allocation3 + $0x528] sm:$0xff]
  %v5397 = vld [vmem:[#allocation3 + $0x530] sm:$0xff]
  %v5398 = vld [vmem:[#allocation3 + $0x538] sm:$0xff]
  %v5399 = vld [vmem:[#allocation3 + $0x540] sm:$0xff]
  %v5400 = vld [vmem:[#allocation3 + $0x548] sm:$0xff]
  %v5401 = vld [vmem:[#allocation3 + $0x550] sm:$0xff]
  %v5402 = vld [vmem:[#allocation3 + $0x558] sm:$0xff]
  %v5403 = vld [vmem:[#allocation3 + $0x560] sm:$0xff]
  %v5404 = vld [vmem:[#allocation3 + $0x568] sm:$0xff]
  %v5405 = vld [vmem:[#allocation3 + $0x570] sm:$0xff]
  %v5406 = vld [vmem:[#allocation3 + $0x578] sm:$0xff]
  %v5407 = vld [vmem:[#allocation3 + $0x580] sm:$0xff]
  %v5408 = vld [vmem:[#allocation3 + $0x588] sm:$0xff]
  %v5409 = vld [vmem:[#allocation3 + $0x590] sm:$0xff]
  %v5410 = vld [vmem:[#allocation3 + $0x598] sm:$0xff]
  %v5411 = vld [vmem:[%s5] sm:$0xff]
  %v5412 = vld [vmem:[%s5 + $0x8] sm:$0xff]
  %v5413 = vld [vmem:[%s5 + $0x10] sm:$0xff]
  %v5414 = vld [vmem:[%s5 + $0x18] sm:$0xff]
  %v5415 = vld [vmem:[%s5 + $0x20] sm:$0xff]
  %v5416 = vld [vmem:[%s5 + $0x28] sm:$0xff]
  %v5417 = vld [vmem:[%s5 + $0x30] sm:$0xff]
  %v5418 = vld [vmem:[%s5 + $0x38] sm:$0xff]
  %5420 = vset.pattern.permute.xlu0 0
  %5421 = vperm.xlu0 %5420, %v5411
  %v5422 = vpop.permute.xlu0 %5421
  %5425 = vset.pattern.permute.xlu0 0
  %5426 = vperm.xlu0 %5425, %v5412
  %v5427 = vpop.permute.xlu0 %5426
  %5430 = vset.pattern.permute.xlu0 0
  %5431 = vperm.xlu0 %5430, %v5413
  %v5432 = vpop.permute.xlu0 %5431
  %5435 = vset.pattern.permute.xlu0 0
  %5436 = vperm.xlu0 %5435, %v5414
  %v5437 = vpop.permute.xlu0 %5436
  %5440 = vset.pattern.permute.xlu0 0
  %5441 = vperm.xlu0 %5440, %v5415
  %v5442 = vpop.permute.xlu0 %5441
  %5445 = vset.pattern.permute.xlu0 0
  %5446 = vperm.xlu0 %5445, %v5416
  %v5447 = vpop.permute.xlu0 %5446
  %5450 = vset.pattern.permute.xlu0 0
  %5451 = vperm.xlu0 %5450, %v5417
  %v5452 = vpop.permute.xlu0 %5451
  %5455 = vset.pattern.permute.xlu0 0
  %5456 = vperm.xlu0 %5455, %v5418
  %v5457 = vpop.permute.xlu0 %5456
  %v5483 = vunpack.c.l.b16 %v5207
  %v5484 = vunpack.c.h.b16 %v5207
  %v5485 = vunpack.c.l.b16 %v5208
  %v5486 = vunpack.c.h.b16 %v5208
  %v5487 = vunpack.c.l.b16 %v5209
  %v5488 = vunpack.c.l.b16 %v5210
  %v5489 = vunpack.c.h.b16 %v5210
  %v5490 = vunpack.c.l.b16 %v5211
  %v5491 = vunpack.c.h.b16 %v5211
  %v5492 = vunpack.c.l.b16 %v5212
  %v5493 = vunpack.c.l.b16 %v5213
  %v5494 = vunpack.c.h.b16 %v5213
  %v5495 = vunpack.c.l.b16 %v5214
  %v5496 = vunpack.c.h.b16 %v5214
  %v5497 = vunpack.c.l.b16 %v5215
  %v5498 = vunpack.c.l.b16 %v5216
  %v5499 = vunpack.c.h.b16 %v5216
  %v5500 = vunpack.c.l.b16 %v5217
  %v5501 = vunpack.c.h.b16 %v5217
  %v5502 = vunpack.c.l.b16 %v5218
  %v5503 = vunpack.c.l.b16 %v5219
  %v5504 = vunpack.c.h.b16 %v5219
  %v5505 = vunpack.c.l.b16 %v5220
  %v5506 = vunpack.c.h.b16 %v5220
  %v5507 = vunpack.c.l.b16 %v5221
  %v5508 = vunpack.c.l.b16 %v5222
  %v5509 = vunpack.c.h.b16 %v5222
  %v5510 = vunpack.c.l.b16 %v5223
  %v5511 = vunpack.c.h.b16 %v5223
  %v5512 = vunpack.c.l.b16 %v5224
  %v5513 = vunpack.c.l.b16 %v5225
  %v5514 = vunpack.c.h.b16 %v5225
  %v5515 = vunpack.c.l.b16 %v5226
  %v5516 = vunpack.c.h.b16 %v5226
  %v5517 = vunpack.c.l.b16 %v5227
  %v5518 = vunpack.c.l.b16 %v5228
  %v5519 = vunpack.c.h.b16 %v5228
  %v5520 = vunpack.c.l.b16 %v5229
  %v5521 = vunpack.c.h.b16 %v5229
  %v5522 = vunpack.c.l.b16 %v5230
  %v5523 = vpack.c.b16 %v5488, %v5483
  %v5524 = vpack.c.b16 %v5489, %v5484
  %v5525 = vpack.c.b16 %v5490, %v5485
  %v5526 = vpack.c.b16 %v5491, %v5486
  %v5527 = vpack.c.b16 %v5492, %v5487
  %v5528 = vpack.c.b16 %v5498, %v5493
  %v5529 = vpack.c.b16 %v5499, %v5494
  %v5530 = vpack.c.b16 %v5500, %v5495
  %v5531 = vpack.c.b16 %v5501, %v5496
  %v5532 = vpack.c.b16 %v5502, %v5497
  %v5533 = vpack.c.b16 %v5508, %v5503
  %v5534 = vpack.c.b16 %v5509, %v5504
  %v5535 = vpack.c.b16 %v5510, %v5505
  %v5536 = vpack.c.b16 %v5511, %v5506
  %v5537 = vpack.c.b16 %v5512, %v5507
  %v5538 = vpack.c.b16 %v5518, %v5513
  %v5539 = vpack.c.b16 %v5519, %v5514
  %v5540 = vpack.c.b16 %v5520, %v5515
  %v5541 = vpack.c.b16 %v5521, %v5516
  %v5542 = vpack.c.b16 %v5522, %v5517
  %v5560 = vsel %vm4489, %v5527, 0
  %v5563 = vsel %vm4489, %v5532, 0
  %v5566 = vsel %vm4489, %v5537, 0
  %v5569 = vsel %vm4489, %v5542, 0
  %5571 = vmatprep.subr.bf16.mxu0 %v5232
  %5572 = vmatpush1.bf16.msra.mxu0 %v5231
  %5573 = vmatprep.subr.bf16.mxu0 %v5237
  %5574 = vmatpush1.bf16.msra.mxu0 %v5236
  %5575 = vmatprep.subr.bf16.mxu0 %v5242
  %5576 = vmatpush1.bf16.msra.mxu0 %v5241
  %5577 = vmatprep.subr.bf16.mxu0 %v5247
  %5578 = vmatpush1.bf16.msra.mxu0 %v5246
  %5579 = vmatprep.subr.bf16.mxu0 %v5252
  %5580 = vmatpush1.bf16.msra.mxu0 %v5251
  %5581 = vmatprep.subr.bf16.mxu0 %v5257
  %5582 = vmatpush1.bf16.msra.mxu0 %v5256
  %5583 = vmatprep.subr.bf16.mxu0 %v5262
  %5584 = vmatpush1.bf16.msra.mxu0 %v5261
  %5585 = vmatprep.subr.bf16.mxu0 %v5267
  %5586 = vmatpush1.bf16.msra.mxu0 %v5266
  %5587 = vmatprep.subr.bf16.mxu0 %v5272
  %5588 = vmatpush1.bf16.msra.mxu0 %v5271
  %5589 = vmatprep.subr.bf16.mxu0 %v5277
  %5590 = vmatpush1.bf16.msra.mxu0 %v5276
  %5591 = vmatprep.subr.bf16.mxu0 %v5282
  %5592 = vmatpush1.bf16.msra.mxu0 %v5281
  %5593 = vmatprep.subr.bf16.mxu0 %v5287
  %5594 = vmatpush1.bf16.msra.mxu0 %v5286
  %5595 = vmatprep.subr.bf16.mxu0 %v5292
  %5596 = vmatpush1.bf16.msra.mxu0 %v5291
  %5597 = vmatprep.subr.bf16.mxu0 %v5297
  %5598 = vmatpush1.bf16.msra.mxu0 %v5296
  %5599 = vmatprep.subr.bf16.mxu0 %v5302
  %5600 = vmatpush1.bf16.msra.mxu0 %v5301
  %5601 = vmatprep.subr.bf16.mxu0 %v5307
  %5602 = vmatpush1.bf16.msra.mxu0 %v5306
  %5603 = vmatprep.mubr.bf16.mxu0 %v5524
  %5604 = vmatmul.mubr.bf16.gmra.mrb[0].mxu0 %v5523
  %v5605 = vpop.f32.mrb[0].mxu0
  %v5606 = vadd.f32 %v5422, %v5605
  %v5607 = vpop.f32.mrb[0].mxu0
  %v5608 = vadd.f32 %v5422, %v5607
  %v5609 = vpop.f32.mrb[0].mxu0
  %v5610 = vadd.f32 %v5427, %v5609
  %v5611 = vpop.f32.mrb[0].mxu0
  %v5612 = vadd.f32 %v5427, %v5611
  %5613 = vmatprep.mubr.bf16.mxu0 %v5529
  %5614 = vmatmul.mubr.bf16.gmra.mrb[0].mxu0 %v5528
  %v5615 = vpop.f32.mrb[0].mxu0
  %v5616 = vadd.f32 %v5432, %v5615
  %v5617 = vpop.f32.mrb[0].mxu0
  %v5618 = vadd.f32 %v5432, %v5617
  %v5619 = vpop.f32.mrb[0].mxu0
  %v5620 = vadd.f32 %v5437, %v5619
  %v5621 = vpop.f32.mrb[0].mxu0
  %v5622 = vadd.f32 %v5437, %v5621
  %5623 = vmatprep.mubr.bf16.mxu0 %v5534
  %5624 = vmatmul.mubr.bf16.gmra.mrb[0].mxu0 %v5533
  %v5625 = vpop.f32.mrb[0].mxu0
  %v5626 = vadd.f32 %v5442, %v5625
  %v5627 = vpop.f32.mrb[0].mxu0
  %v5628 = vadd.f32 %v5442, %v5627
  %v5629 = vpop.f32.mrb[0].mxu0
  %v5630 = vadd.f32 %v5447, %v5629
  %v5631 = vpop.f32.mrb[0].mxu0
  %v5632 = vadd.f32 %v5447, %v5631
  %5633 = vmatprep.mubr.bf16.mxu0 %v5539
  %5634 = vmatmul.mubr.bf16.gmra.mrb[0].mxu0 %v5538
  %v5635 = vpop.f32.mrb[0].mxu0
  %v5636 = vadd.f32 %v5452, %v5635
  %v5637 = vpop.f32.mrb[0].mxu0
  %v5638 = vadd.f32 %v5452, %v5637
  %v5639 = vpop.f32.mrb[0].mxu0
  %v5640 = vadd.f32 %v5457, %v5639
  %v5641 = vpop.f32.mrb[0].mxu0
  %v5642 = vadd.f32 %v5457, %v5641
  %5643 = vdwg.mxu0
  %5644 = vmatprep.subr.bf16.mxu0 %v5312
  %5645 = vmatpush1.bf16.msra.mxu0 %v5311
  %5646 = vmatprep.subr.bf16.mxu0 %v5317
  %5647 = vmatpush1.bf16.msra.mxu0 %v5316
  %5648 = vmatprep.subr.bf16.mxu0 %v5322
  %5649 = vmatpush1.bf16.msra.mxu0 %v5321
  %5650 = vmatprep.subr.bf16.mxu0 %v5327
  %5651 = vmatpush1.bf16.msra.mxu0 %v5326
  %5652 = vmatprep.subr.bf16.mxu0 %v5332
  %5653 = vmatpush1.bf16.msra.mxu0 %v5331
  %5654 = vmatprep.subr.bf16.mxu0 %v5337
  %5655 = vmatpush1.bf16.msra.mxu0 %v5336
  %5656 = vmatprep.subr.bf16.mxu0 %v5342
  %5657 = vmatpush1.bf16.msra.mxu0 %v5341
  %5658 = vmatprep.subr.bf16.mxu0 %v5347
  %5659 = vmatpush1.bf16.msra.mxu0 %v5346
  %5660 = vmatprep.subr.bf16.mxu0 %v5352
  %5661 = vmatpush1.bf16.msra.mxu0 %v5351
  %5662 = vmatprep.subr.bf16.mxu0 %v5357
  %5663 = vmatpush1.bf16.msra.mxu0 %v5356
  %5664 = vmatprep.subr.bf16.mxu0 %v5362
  %5665 = vmatpush1.bf16.msra.mxu0 %v5361
  %5666 = vmatprep.subr.bf16.mxu0 %v5367
  %5667 = vmatpush1.bf16.msra.mxu0 %v5366
  %5668 = vmatprep.subr.bf16.mxu0 %v5372
  %5669 = vmatpush1.bf16.msra.mxu0 %v5371
  %5670 = vmatprep.subr.bf16.mxu0 %v5377
  %5671 = vmatpush1.bf16.msra.mxu0 %v5376
  %5672 = vmatprep.subr.bf16.mxu0 %v5382
  %5673 = vmatpush1.bf16.msra.mxu0 %v5381
  %5674 = vmatprep.subr.bf16.mxu0 %v5387
  %5675 = vmatpush1.bf16.msra.mxu0 %v5386
  %5676 = vmatprep.mubr.bf16.mxu0 %v5526
  %5677 = vmatmul.mubr.bf16.gmra.mrb[0].mxu0 %v5525
  %v5678 = vpop.f32.mrb[0].mxu0
  %v5679 = vadd.f32 %v5606, %v5678
  %v5680 = vpop.f32.mrb[0].mxu0
  %v5681 = vadd.f32 %v5608, %v5680
  %v5682 = vpop.f32.mrb[0].mxu0
  %v5683 = vadd.f32 %v5610, %v5682
  %v5684 = vpop.f32.mrb[0].mxu0
  %v5685 = vadd.f32 %v5612, %v5684
  %5686 = vmatprep.mubr.bf16.mxu0 %v5531
  %5687 = vmatmul.mubr.bf16.gmra.mrb[0].mxu0 %v5530
  %v5688 = vpop.f32.mrb[0].mxu0
  %v5689 = vadd.f32 %v5616, %v5688
  %v5690 = vpop.f32.mrb[0].mxu0
  %v5691 = vadd.f32 %v5618, %v5690
  %v5692 = vpop.f32.mrb[0].mxu0
  %v5693 = vadd.f32 %v5620, %v5692
  %v5694 = vpop.f32.mrb[0].mxu0
  %v5695 = vadd.f32 %v5622, %v5694
  %5696 = vmatprep.mubr.bf16.mxu0 %v5536
  %5697 = vmatmul.mubr.bf16.gmra.mrb[0].mxu0 %v5535
  %v5698 = vpop.f32.mrb[0].mxu0
  %v5699 = vadd.f32 %v5626, %v5698
  %v5700 = vpop.f32.mrb[0].mxu0
  %v5701 = vadd.f32 %v5628, %v5700
  %v5702 = vpop.f32.mrb[0].mxu0
  %v5703 = vadd.f32 %v5630, %v5702
  %v5704 = vpop.f32.mrb[0].mxu0
  %v5705 = vadd.f32 %v5632, %v5704
  %5706 = vmatprep.mubr.bf16.mxu0 %v5541
  %5707 = vmatmul.mubr.bf16.gmra.mrb[0].mxu0 %v5540
  %v5708 = vpop.f32.mrb[0].mxu0
  %v5709 = vadd.f32 %v5636, %v5708
  %v5710 = vpop.f32.mrb[0].mxu0
  %v5711 = vadd.f32 %v5638, %v5710
  %v5712 = vpop.f32.mrb[0].mxu0
  %v5713 = vadd.f32 %v5640, %v5712
  %v5714 = vpop.f32.mrb[0].mxu0
  %v5715 = vadd.f32 %v5642, %v5714
  %5716 = vdwg.mxu0
  %5717 = vmatprep.subr.bf16.mxu0 %v5392
  %5718 = vmatpush1.bf16.msra.mxu0 %v5391
  %5719 = vmatprep.subr.bf16.mxu0 %v5397
  %5720 = vmatpush1.bf16.msra.mxu0 %v5396
  %5721 = vmatprep.subr.bf16.mxu0 %v5402
  %5722 = vmatpush1.bf16.msra.mxu0 %v5401
  %5723 = vmatprep.subr.bf16.mxu0 %v5407
  %5724 = vmatpush1.bf16.msra.mxu0 %v5406
  %5725 = vmatprep.subr.bf16.mxu0 0
  %5726 = vmatpush1.bf16.msra.mxu0 0
  %5727 = vmatprep.subr.bf16.mxu0 0
  %5728 = vmatpush1.bf16.msra.mxu0 0
  %5729 = vmatprep.subr.bf16.mxu0 0
  %5730 = vmatpush1.bf16.msra.mxu0 0
  %5731 = vmatprep.subr.bf16.mxu0 0
  %5732 = vmatpush1.bf16.msra.mxu0 0
  %5733 = vmatprep.subr.bf16.mxu0 0
  %5734 = vmatpush1.bf16.msra.mxu0 0
  %5735 = vmatprep.subr.bf16.mxu0 0
  %5736 = vmatpush1.bf16.msra.mxu0 0
  %5737 = vmatprep.subr.bf16.mxu0 0
  %5738 = vmatpush1.bf16.msra.mxu0 0
  %5739 = vmatprep.subr.bf16.mxu0 0
  %5740 = vmatpush1.bf16.msra.mxu0 0
  %5741 = vmatprep.subr.bf16.mxu0 0
  %5742 = vmatpush1.bf16.msra.mxu0 0
  %5743 = vmatprep.subr.bf16.mxu0 0
  %5744 = vmatpush1.bf16.msra.mxu0 0
  %5745 = vmatprep.subr.bf16.mxu0 0
  %5746 = vmatpush1.bf16.msra.mxu0 0
  %5747 = vmatprep.subr.bf16.mxu0 0
  %5748 = vmatpush1.bf16.msra.mxu0 0
  %5749 = vmatprep.mubr.bf16.mxu0 0
  %5750 = vmatmul.mubr.bf16.gmra.mrb[0].mxu0 %v5560
  %v5751 = vpop.f32.mrb[0].mxu0
  %v5752 = vadd.f32 %v5679, %v5751
  %v5753 = vpop.f32.mrb[0].mxu0
  %v5754 = vadd.f32 %v5681, %v5753
  %v5755 = vpop.f32.mrb[0].mxu0
  %v5756 = vadd.f32 %v5683, %v5755
  %v5757 = vpop.f32.mrb[0].mxu0
  %v5758 = vadd.f32 %v5685, %v5757
  %5759 = vmatprep.mubr.bf16.mxu0 0
  %5760 = vmatmul.mubr.bf16.gmra.mrb[0].mxu0 %v5563
  %v5761 = vpop.f32.mrb[0].mxu0
  %v5762 = vadd.f32 %v5689, %v5761
  %v5763 = vpop.f32.mrb[0].mxu0
  %v5764 = vadd.f32 %v5691, %v5763
  %v5765 = vpop.f32.mrb[0].mxu0
  %v5766 = vadd.f32 %v5693, %v5765
  %v5767 = vpop.f32.mrb[0].mxu0
  %v5768 = vadd.f32 %v5695, %v5767
  %5769 = vmatprep.mubr.bf16.mxu0 0
  %5770 = vmatmul.mubr.bf16.gmra.mrb[0].mxu0 %v5566
  %v5771 = vpop.f32.mrb[0].mxu0
  %v5772 = vadd.f32 %v5699, %v5771
  %v5773 = vpop.f32.mrb[0].mxu0
  %v5774 = vadd.f32 %v5701, %v5773
  %v5775 = vpop.f32.mrb[0].mxu0
  %v5776 = vadd.f32 %v5703, %v5775
  %v5777 = vpop.f32.mrb[0].mxu0
  %v5778 = vadd.f32 %v5705, %v5777
  %5779 = vmatprep.mubr.bf16.mxu0 0
  %5780 = vmatmul.mubr.bf16.gmra.mrb[0].mxu0 %v5569
  %v5781 = vpop.f32.mrb[0].mxu0
  %v5782 = vadd.f32 %v5709, %v5781
  %v5783 = vpop.f32.mrb[0].mxu0
  %v5784 = vadd.f32 %v5711, %v5783
  %v5785 = vpop.f32.mrb[0].mxu0
  %v5786 = vadd.f32 %v5713, %v5785
  %v5787 = vpop.f32.mrb[0].mxu0
  %v5788 = vadd.f32 %v5715, %v5787
  %5789 = vdwg.mxu0
  %5790 = vmatprep.subr.bf16.mxu0 %v5234
  %5791 = vmatpush1.bf16.msra.mxu0 %v5233
  %5792 = vmatprep.subr.bf16.mxu0 %v5239
  %5793 = vmatpush1.bf16.msra.mxu0 %v5238
  %5794 = vmatprep.subr.bf16.mxu0 %v5244
  %5795 = vmatpush1.bf16.msra.mxu0 %v5243
  %5796 = vmatprep.subr.bf16.mxu0 %v5249
  %5797 = vmatpush1.bf16.msra.mxu0 %v5248
  %5798 = vmatprep.subr.bf16.mxu0 %v5254
  %5799 = vmatpush1.bf16.msra.mxu0 %v5253
  %5800 = vmatprep.subr.bf16.mxu0 %v5259
  %5801 = vmatpush1.bf16.msra.mxu0 %v5258
  %5802 = vmatprep.subr.bf16.mxu0 %v5264
  %5803 = vmatpush1.bf16.msra.mxu0 %v5263
  %5804 = vmatprep.subr.bf16.mxu0 %v5269
  %5805 = vmatpush1.bf16.msra.mxu0 %v5268
  %5806 = vmatprep.subr.bf16.mxu0 %v5274
  %5807 = vmatpush1.bf16.msra.mxu0 %v5273
  %5808 = vmatprep.subr.bf16.mxu0 %v5279
  %5809 = vmatpush1.bf16.msra.mxu0 %v5278
  %5810 = vmatprep.subr.bf16.mxu0 %v5284
  %5811 = vmatpush1.bf16.msra.mxu0 %v5283
  %5812 = vmatprep.subr.bf16.mxu0 %v5289
  %5813 = vmatpush1.bf16.msra.mxu0 %v5288
  %5814 = vmatprep.subr.bf16.mxu0 %v5294
  %5815 = vmatpush1.bf16.msra.mxu0 %v5293
  %5816 = vmatprep.subr.bf16.mxu0 %v5299
  %5817 = vmatpush1.bf16.msra.mxu0 %v5298
  %5818 = vmatprep.subr.bf16.mxu0 %v5304
  %5819 = vmatpush1.bf16.msra.mxu0 %v5303
  %5820 = vmatprep.subr.bf16.mxu0 %v5309
  %5821 = vmatpush1.bf16.msra.mxu0 %v5308
  %5822 = vmatprep.mubr.bf16.mxu0 %v5524
  %5823 = vmatmul.mubr.bf16.gmra.mrb[0].mxu0 %v5523
  %v5824 = vpop.f32.mrb[0].mxu0
  %v5825 = vadd.f32 %v5422, %v5824
  %v5826 = vpop.f32.mrb[0].mxu0
  %v5827 = vadd.f32 %v5422, %v5826
  %v5828 = vpop.f32.mrb[0].mxu0
  %v5829 = vadd.f32 %v5427, %v5828
  %v5830 = vpop.f32.mrb[0].mxu0
  %v5831 = vadd.f32 %v5427, %v5830
  %5832 = vmatprep.mubr.bf16.mxu0 %v5529
  %5833 = vmatmul.mubr.bf16.gmra.mrb[0].mxu0 %v5528
  %v5834 = vpop.f32.mrb[0].mxu0
  %v5835 = vadd.f32 %v5432, %v5834
  %v5836 = vpop.f32.mrb[0].mxu0
  %v5837 = vadd.f32 %v5432, %v5836
  %v5838 = vpop.f32.mrb[0].mxu0
  %v5839 = vadd.f32 %v5437, %v5838
  %v5840 = vpop.f32.mrb[0].mxu0
  %v5841 = vadd.f32 %v5437, %v5840
  %5842 = vmatprep.mubr.bf16.mxu0 %v5534
  %5843 = vmatmul.mubr.bf16.gmra.mrb[0].mxu0 %v5533
  %v5844 = vpop.f32.mrb[0].mxu0
  %v5845 = vadd.f32 %v5442, %v5844
  %v5846 = vpop.f32.mrb[0].mxu0
  %v5847 = vadd.f32 %v5442, %v5846
  %v5848 = vpop.f32.mrb[0].mxu0
  %v5849 = vadd.f32 %v5447, %v5848
  %v5850 = vpop.f32.mrb[0].mxu0
  %v5851 = vadd.f32 %v5447, %v5850
  %5852 = vmatprep.mubr.bf16.mxu0 %v5539
  %5853 = vmatmul.mubr.bf16.gmra.mrb[0].mxu0 %v5538
  %v5854 = vpop.f32.mrb[0].mxu0
  %v5855 = vadd.f32 %v5452, %v5854
  %v5856 = vpop.f32.mrb[0].mxu0
  %v5857 = vadd.f32 %v5452, %v5856
  %v5858 = vpop.f32.mrb[0].mxu0
  %v5859 = vadd.f32 %v5457, %v5858
  %v5860 = vpop.f32.mrb[0].mxu0
  %v5861 = vadd.f32 %v5457, %v5860
  %5862 = vdwg.mxu0
  %5863 = vmatprep.subr.bf16.mxu0 %v5314
  %5864 = vmatpush1.bf16.msra.mxu0 %v5313
  %5865 = vmatprep.subr.bf16.mxu0 %v5319
  %5866 = vmatpush1.bf16.msra.mxu0 %v5318
  %5867 = vmatprep.subr.bf16.mxu0 %v5324
  %5868 = vmatpush1.bf16.msra.mxu0 %v5323
  %5869 = vmatprep.subr.bf16.mxu0 %v5329
  %5870 = vmatpush1.bf16.msra.mxu0 %v5328
  %5871 = vmatprep.subr.bf16.mxu0 %v5334
  %5872 = vmatpush1.bf16.msra.mxu0 %v5333
  %5873 = vmatprep.subr.bf16.mxu0 %v5339
  %5874 = vmatpush1.bf16.msra.mxu0 %v5338
  %5875 = vmatprep.subr.bf16.mxu0 %v5344
  %5876 = vmatpush1.bf16.msra.mxu0 %v5343
  %5877 = vmatprep.subr.bf16.mxu0 %v5349
  %5878 = vmatpush1.bf16.msra.mxu0 %v5348
  %5879 = vmatprep.subr.bf16.mxu0 %v5354
  %5880 = vmatpush1.bf16.msra.mxu0 %v5353
  %5881 = vmatprep.subr.bf16.mxu0 %v5359
  %5882 = vmatpush1.bf16.msra.mxu0 %v5358
  %5883 = vmatprep.subr.bf16.mxu0 %v5364
  %5884 = vmatpush1.bf16.msra.mxu0 %v5363
  %5885 = vmatprep.subr.bf16.mxu0 %v5369
  %5886 = vmatpush1.bf16.msra.mxu0 %v5368
  %5887 = vmatprep.subr.bf16.mxu0 %v5374
  %5888 = vmatpush1.bf16.msra.mxu0 %v5373
  %5889 = vmatprep.subr.bf16.mxu0 %v5379
  %5890 = vmatpush1.bf16.msra.mxu0 %v5378
  %5891 = vmatprep.subr.bf16.mxu0 %v5384
  %5892 = vmatpush1.bf16.msra.mxu0 %v5383
  %5893 = vmatprep.subr.bf16.mxu0 %v5389
  %5894 = vmatpush1.bf16.msra.mxu0 %v5388
  %5895 = vmatprep.mubr.bf16.mxu0 %v5526
  %5896 = vmatmul.mubr.bf16.gmra.mrb[0].mxu0 %v5525
  %v5897 = vpop.f32.mrb[0].mxu0
  %v5898 = vadd.f32 %v5825, %v5897
  %v5899 = vpop.f32.mrb[0].mxu0
  %v5900 = vadd.f32 %v5827, %v5899
  %v5901 = vpop.f32.mrb[0].mxu0
  %v5902 = vadd.f32 %v5829, %v5901
  %v5903 = vpop.f32.mrb[0].mxu0
  %v5904 = vadd.f32 %v5831, %v5903
  %5905 = vmatprep.mubr.bf16.mxu0 %v5531
  %5906 = vmatmul.mubr.bf16.gmra.mrb[0].mxu0 %v5530
  %v5907 = vpop.f32.mrb[0].mxu0
  %v5908 = vadd.f32 %v5835, %v5907
  %v5909 = vpop.f32.mrb[0].mxu0
  %v5910 = vadd.f32 %v5837, %v5909
  %v5911 = vpop.f32.mrb[0].mxu0
  %v5912 = vadd.f32 %v5839, %v5911
  %v5913 = vpop.f32.mrb[0].mxu0
  %v5914 = vadd.f32 %v5841, %v5913
  %5915 = vmatprep.mubr.bf16.mxu0 %v5536
  %5916 = vmatmul.mubr.bf16.gmra.mrb[0].mxu0 %v5535
  %v5917 = vpop.f32.mrb[0].mxu0
  %v5918 = vadd.f32 %v5845, %v5917
  %v5919 = vpop.f32.mrb[0].mxu0
  %v5920 = vadd.f32 %v5847, %v5919
  %v5921 = vpop.f32.mrb[0].mxu0
  %v5922 = vadd.f32 %v5849, %v5921
  %v5923 = vpop.f32.mrb[0].mxu0
  %v5924 = vadd.f32 %v5851, %v5923
  %5925 = vmatprep.mubr.bf16.mxu0 %v5541
  %5926 = vmatmul.mubr.bf16.gmra.mrb[0].mxu0 %v5540
  %v5927 = vpop.f32.mrb[0].mxu0
  %v5928 = vadd.f32 %v5855, %v5927
  %v5929 = vpop.f32.mrb[0].mxu0
  %v5930 = vadd.f32 %v5857, %v5929
  %v5931 = vpop.f32.mrb[0].mxu0
  %v5932 = vadd.f32 %v5859, %v5931
  %v5933 = vpop.f32.mrb[0].mxu0
  %v5934 = vadd.f32 %v5861, %v5933
  %5935 = vdwg.mxu0
  %5936 = vmatprep.subr.bf16.mxu0 %v5394
  %5937 = vmatpush1.bf16.msra.mxu0 %v5393
  %5938 = vmatprep.subr.bf16.mxu0 %v5399
  %5939 = vmatpush1.bf16.msra.mxu0 %v5398
  %5940 = vmatprep.subr.bf16.mxu0 %v5404
  %5941 = vmatpush1.bf16.msra.mxu0 %v5403
  %5942 = vmatprep.subr.bf16.mxu0 %v5409
  %5943 = vmatpush1.bf16.msra.mxu0 %v5408
  %5944 = vmatprep.subr.bf16.mxu0 0
  %5945 = vmatpush1.bf16.msra.mxu0 0
  %5946 = vmatprep.subr.bf16.mxu0 0
  %5947 = vmatpush1.bf16.msra.mxu0 0
  %5948 = vmatprep.subr.bf16.mxu0 0
  %5949 = vmatpush1.bf16.msra.mxu0 0
  %5950 = vmatprep.subr.bf16.mxu0 0
  %5951 = vmatpush1.bf16.msra.mxu0 0
  %5952 = vmatprep.subr.bf16.mxu0 0
  %5953 = vmatpush1.bf16.msra.mxu0 0
  %5954 = vmatprep.subr.bf16.mxu0 0
  %5955 = vmatpush1.bf16.msra.mxu0 0
  %5956 = vmatprep.subr.bf16.mxu0 0
  %5957 = vmatpush1.bf16.msra.mxu0 0
  %5958 = vmatprep.subr.bf16.mxu0 0
  %5959 = vmatpush1.bf16.msra.mxu0 0
  %5960 = vmatprep.subr.bf16.mxu0 0
  %5961 = vmatpush1.bf16.msra.mxu0 0
  %5962 = vmatprep.subr.bf16.mxu0 0
  %5963 = vmatpush1.bf16.msra.mxu0 0
  %5964 = vmatprep.subr.bf16.mxu0 0
  %5965 = vmatpush1.bf16.msra.mxu0 0
  %5966 = vmatprep.subr.bf16.mxu0 0
  %5967 = vmatpush1.bf16.msra.mxu0 0
  %5968 = vmatprep.mubr.bf16.mxu0 0
  %5969 = vmatmul.mubr.bf16.gmra.mrb[0].mxu0 %v5560
  %v5970 = vpop.f32.mrb[0].mxu0
  %v5971 = vadd.f32 %v5898, %v5970
  %v5972 = vpop.f32.mrb[0].mxu0
  %v5973 = vadd.f32 %v5900, %v5972
  %v5974 = vpop.f32.mrb[0].mxu0
  %v5975 = vadd.f32 %v5902, %v5974
  %v5976 = vpop.f32.mrb[0].mxu0
  %v5977 = vadd.f32 %v5904, %v5976
  %5978 = vmatprep.mubr.bf16.mxu0 0
  %5979 = vmatmul.mubr.bf16.gmra.mrb[0].mxu0 %v5563
  %v5980 = vpop.f32.mrb[0].mxu0
  %v5981 = vadd.f32 %v5908, %v5980
  %v5982 = vpop.f32.mrb[0].mxu0
  %v5983 = vadd.f32 %v5910, %v5982
  %v5984 = vpop.f32.mrb[0].mxu0
  %v5985 = vadd.f32 %v5912, %v5984
  %v5986 = vpop.f32.mrb[0].mxu0
  %v5987 = vadd.f32 %v5914, %v5986
  %5988 = vmatprep.mubr.bf16.mxu0 0
  %5989 = vmatmul.mubr.bf16.gmra.mrb[0].mxu0 %v5566
  %v5990 = vpop.f32.mrb[0].mxu0
  %v5991 = vadd.f32 %v5918, %v5990
  %v5992 = vpop.f32.mrb[0].mxu0
  %v5993 = vadd.f32 %v5920, %v5992
  %v5994 = vpop.f32.mrb[0].mxu0
  %v5995 = vadd.f32 %v5922, %v5994
  %v5996 = vpop.f32.mrb[0].mxu0
  %v5997 = vadd.f32 %v5924, %v5996
  %5998 = vmatprep.mubr.bf16.mxu0 0
  %5999 = vmatmul.mubr.bf16.gmra.mrb[0].mxu0 %v5569
  %v6000 = vpop.f32.mrb[0].mxu0
  %v6001 = vadd.f32 %v5928, %v6000
  %v6002 = vpop.f32.mrb[0].mxu0
  %v6003 = vadd.f32 %v5930, %v6002
  %v6004 = vpop.f32.mrb[0].mxu0
  %v6005 = vadd.f32 %v5932, %v6004
  %v6006 = vpop.f32.mrb[0].mxu0
  %v6007 = vadd.f32 %v5934, %v6006
  %6008 = vdwg.mxu0
  %6009 = vmatprep.subr.bf16.mxu0 0
  %6010 = vmatpush1.bf16.msra.mxu0 %v5235
  %6011 = vmatprep.subr.bf16.mxu0 0
  %6012 = vmatpush1.bf16.msra.mxu0 %v5240
  %6013 = vmatprep.subr.bf16.mxu0 0
  %6014 = vmatpush1.bf16.msra.mxu0 %v5245
  %6015 = vmatprep.subr.bf16.mxu0 0
  %6016 = vmatpush1.bf16.msra.mxu0 %v5250
  %6017 = vmatprep.subr.bf16.mxu0 0
  %6018 = vmatpush1.bf16.msra.mxu0 %v5255
  %6019 = vmatprep.subr.bf16.mxu0 0
  %6020 = vmatpush1.bf16.msra.mxu0 %v5260
  %6021 = vmatprep.subr.bf16.mxu0 0
  %6022 = vmatpush1.bf16.msra.mxu0 %v5265
  %6023 = vmatprep.subr.bf16.mxu0 0
  %6024 = vmatpush1.bf16.msra.mxu0 %v5270
  %6025 = vmatprep.subr.bf16.mxu0 0
  %6026 = vmatpush1.bf16.msra.mxu0 %v5275
  %6027 = vmatprep.subr.bf16.mxu0 0
  %6028 = vmatpush1.bf16.msra.mxu0 %v5280
  %6029 = vmatprep.subr.bf16.mxu0 0
  %6030 = vmatpush1.bf16.msra.mxu0 %v5285
  %6031 = vmatprep.subr.bf16.mxu0 0
  %6032 = vmatpush1.bf16.msra.mxu0 %v5290
  %6033 = vmatprep.subr.bf16.mxu0 0
  %6034 = vmatpush1.bf16.msra.mxu0 %v5295
  %6035 = vmatprep.subr.bf16.mxu0 0
  %6036 = vmatpush1.bf16.msra.mxu0 %v5300
  %6037 = vmatprep.subr.bf16.mxu0 0
  %6038 = vmatpush1.bf16.msra.mxu0 %v5305
  %6039 = vmatprep.subr.bf16.mxu0 0
  %6040 = vmatpush1.bf16.msra.mxu0 %v5310
  %6041 = vmatprep.mubr.bf16.mxu0 %v5524
  %6042 = vmatmul.mubr.bf16.gmra.mrb[0].mxu0 %v5523
  %v6043 = vpop.f32.mrb[0].mxu0
  %v6044 = vadd.f32 %v5422, %v6043
  %v6045 = vpop.f32.mrb[0].mxu0
  %v6046 = vpop.f32.mrb[0].mxu0
  %v6047 = vadd.f32 %v5427, %v6046
  %v6048 = vpop.f32.mrb[0].mxu0
  %6049 = vmatprep.mubr.bf16.mxu0 %v5529
  %6050 = vmatmul.mubr.bf16.gmra.mrb[0].mxu0 %v5528
  %v6051 = vpop.f32.mrb[0].mxu0
  %v6052 = vadd.f32 %v5432, %v6051
  %v6053 = vpop.f32.mrb[0].mxu0
  %v6054 = vpop.f32.mrb[0].mxu0
  %v6055 = vadd.f32 %v5437, %v6054
  %v6056 = vpop.f32.mrb[0].mxu0
  %6057 = vmatprep.mubr.bf16.mxu0 %v5534
  %6058 = vmatmul.mubr.bf16.gmra.mrb[0].mxu0 %v5533
  %v6059 = vpop.f32.mrb[0].mxu0
  %v6060 = vadd.f32 %v5442, %v6059
  %v6061 = vpop.f32.mrb[0].mxu0
  %v6062 = vpop.f32.mrb[0].mxu0
  %v6063 = vadd.f32 %v5447, %v6062
  %v6064 = vpop.f32.mrb[0].mxu0
  %6065 = vmatprep.mubr.bf16.mxu0 %v5539
  %6066 = vmatmul.mubr.bf16.gmra.mrb[0].mxu0 %v5538
  %v6067 = vpop.f32.mrb[0].mxu0
  %v6068 = vadd.f32 %v5452, %v6067
  %v6069 = vpop.f32.mrb[0].mxu0
  %v6070 = vpop.f32.mrb[0].mxu0
  %v6071 = vadd.f32 %v5457, %v6070
  %v6072 = vpop.f32.mrb[0].mxu0
  %6073 = vdwg.mxu0
  %6074 = vmatprep.subr.bf16.mxu0 0
  %6075 = vmatpush1.bf16.msra.mxu0 %v5315
  %6076 = vmatprep.subr.bf16.mxu0 0
  %6077 = vmatpush1.bf16.msra.mxu0 %v5320
  %6078 = vmatprep.subr.bf16.mxu0 0
  %6079 = vmatpush1.bf16.msra.mxu0 %v5325
  %6080 = vmatprep.subr.bf16.mxu0 0
  %6081 = vmatpush1.bf16.msra.mxu0 %v5330
  %6082 = vmatprep.subr.bf16.mxu0 0
  %6083 = vmatpush1.bf16.msra.mxu0 %v5335
  %6084 = vmatprep.subr.bf16.mxu0 0
  %6085 = vmatpush1.bf16.msra.mxu0 %v5340
  %6086 = vmatprep.subr.bf16.mxu0 0
  %6087 = vmatpush1.bf16.msra.mxu0 %v5345
  %6088 = vmatprep.subr.bf16.mxu0 0
  %6089 = vmatpush1.bf16.msra.mxu0 %v5350
  %6090 = vmatprep.subr.bf16.mxu0 0
  %6091 = vmatpush1.bf16.msra.mxu0 %v5355
  %6092 = vmatprep.subr.bf16.mxu0 0
  %6093 = vmatpush1.bf16.msra.mxu0 %v5360
  %6094 = vmatprep.subr.bf16.mxu0 0
  %6095 = vmatpush1.bf16.msra.mxu0 %v5365
  %6096 = vmatprep.subr.bf16.mxu0 0
  %6097 = vmatpush1.bf16.msra.mxu0 %v5370
  %6098 = vmatprep.subr.bf16.mxu0 0
  %6099 = vmatpush1.bf16.msra.mxu0 %v5375
  %6100 = vmatprep.subr.bf16.mxu0 0
  %6101 = vmatpush1.bf16.msra.mxu0 %v5380
  %6102 = vmatprep.subr.bf16.mxu0 0
  %6103 = vmatpush1.bf16.msra.mxu0 %v5385
  %6104 = vmatprep.subr.bf16.mxu0 0
  %6105 = vmatpush1.bf16.msra.mxu0 %v5390
  %6106 = vmatprep.mubr.bf16.mxu0 %v5526
  %6107 = vmatmul.mubr.bf16.gmra.mrb[0].mxu0 %v5525
  %v6108 = vpop.f32.mrb[0].mxu0
  %v6109 = vadd.f32 %v6044, %v6108
  %v6110 = vpop.f32.mrb[0].mxu0
  %v6111 = vpop.f32.mrb[0].mxu0
  %v6112 = vadd.f32 %v6047, %v6111
  %v6113 = vpop.f32.mrb[0].mxu0
  %6114 = vmatprep.mubr.bf16.mxu0 %v5531
  %6115 = vmatmul.mubr.bf16.gmra.mrb[0].mxu0 %v5530
  %v6116 = vpop.f32.mrb[0].mxu0
  %v6117 = vadd.f32 %v6052, %v6116
  %v6118 = vpop.f32.mrb[0].mxu0
  %v6119 = vpop.f32.mrb[0].mxu0
  %v6120 = vadd.f32 %v6055, %v6119
  %v6121 = vpop.f32.mrb[0].mxu0
  %6122 = vmatprep.mubr.bf16.mxu0 %v5536
  %6123 = vmatmul.mubr.bf16.gmra.mrb[0].mxu0 %v5535
  %v6124 = vpop.f32.mrb[0].mxu0
  %v6125 = vadd.f32 %v6060, %v6124
  %v6126 = vpop.f32.mrb[0].mxu0
  %v6127 = vpop.f32.mrb[0].mxu0
  %v6128 = vadd.f32 %v6063, %v6127
  %v6129 = vpop.f32.mrb[0].mxu0
  %6130 = vmatprep.mubr.bf16.mxu0 %v5541
  %6131 = vmatmul.mubr.bf16.gmra.mrb[0].mxu0 %v5540
  %v6132 = vpop.f32.mrb[0].mxu0
  %v6133 = vadd.f32 %v6068, %v6132
  %v6134 = vpop.f32.mrb[0].mxu0
  %v6135 = vpop.f32.mrb[0].mxu0
  %v6136 = vadd.f32 %v6071, %v6135
  %v6137 = vpop.f32.mrb[0].mxu0
  %6138 = vdwg.mxu0
  %6139 = vmatprep.subr.bf16.mxu0 0
  %6140 = vmatpush1.bf16.msra.mxu0 %v5395
  %6141 = vmatprep.subr.bf16.mxu0 0
  %6142 = vmatpush1.bf16.msra.mxu0 %v5400
  %6143 = vmatprep.subr.bf16.mxu0 0
  %6144 = vmatpush1.bf16.msra.mxu0 %v5405
  %6145 = vmatprep.subr.bf16.mxu0 0
  %6146 = vmatpush1.bf16.msra.mxu0 %v5410
  %6147 = vmatprep.subr.bf16.mxu0 0
  %6148 = vmatpush1.bf16.msra.mxu0 0
  %6149 = vmatprep.subr.bf16.mxu0 0
  %6150 = vmatpush1.bf16.msra.mxu0 0
  %6151 = vmatprep.subr.bf16.mxu0 0
  %6152 = vmatpush1.bf16.msra.mxu0 0
  %6153 = vmatprep.subr.bf16.mxu0 0
  %6154 = vmatpush1.bf16.msra.mxu0 0
  %6155 = vmatprep.subr.bf16.mxu0 0
  %6156 = vmatpush1.bf16.msra.mxu0 0
  %6157 = vmatprep.subr.bf16.mxu0 0
  %6158 = vmatpush1.bf16.msra.mxu0 0
  %6159 = vmatprep.subr.bf16.mxu0 0
  %6160 = vmatpush1.bf16.msra.mxu0 0
  %6161 = vmatprep.subr.bf16.mxu0 0
  %6162 = vmatpush1.bf16.msra.mxu0 0
  %6163 = vmatprep.subr.bf16.mxu0 0
  %6164 = vmatpush1.bf16.msra.mxu0 0
  %6165 = vmatprep.subr.bf16.mxu0 0
  %6166 = vmatpush1.bf16.msra.mxu0 0
  %6167 = vmatprep.subr.bf16.mxu0 0
  %6168 = vmatpush1.bf16.msra.mxu0 0
  %6169 = vmatprep.subr.bf16.mxu0 0
  %6170 = vmatpush1.bf16.msra.mxu0 0
  %6171 = vmatprep.mubr.bf16.mxu0 0
  %6172 = vmatmul.mubr.bf16.gmra.mrb[0].mxu0 %v5560
  %v6173 = vpop.f32.mrb[0].mxu0
  %v6174 = vadd.f32 %v6109, %v6173
  %v6175 = vpop.f32.mrb[0].mxu0
  %v6176 = vpop.f32.mrb[0].mxu0
  %v6177 = vadd.f32 %v6112, %v6176
  %v6178 = vpop.f32.mrb[0].mxu0
  %6179 = vmatprep.mubr.bf16.mxu0 0
  %6180 = vmatmul.mubr.bf16.gmra.mrb[0].mxu0 %v5563
  %v6181 = vpop.f32.mrb[0].mxu0
  %v6182 = vadd.f32 %v6117, %v6181
  %v6183 = vpop.f32.mrb[0].mxu0
  %v6184 = vpop.f32.mrb[0].mxu0
  %v6185 = vadd.f32 %v6120, %v6184
  %v6186 = vpop.f32.mrb[0].mxu0
  %6187 = vmatprep.mubr.bf16.mxu0 0
  %6188 = vmatmul.mubr.bf16.gmra.mrb[0].mxu0 %v5566
  %v6189 = vpop.f32.mrb[0].mxu0
  %v6190 = vadd.f32 %v6125, %v6189
  %v6191 = vpop.f32.mrb[0].mxu0
  %v6192 = vpop.f32.mrb[0].mxu0
  %v6193 = vadd.f32 %v6128, %v6192
  %v6194 = vpop.f32.mrb[0].mxu0
  %6195 = vmatprep.mubr.bf16.mxu0 0
  %6196 = vmatmul.mubr.bf16.gmra.mrb[0].mxu0 %v5569
  %v6197 = vpop.f32.mrb[0].mxu0
  %v6198 = vadd.f32 %v6133, %v6197
  %v6199 = vpop.f32.mrb[0].mxu0
  %v6200 = vpop.f32.mrb[0].mxu0
  %v6201 = vadd.f32 %v6136, %v6200
  %v6202 = vpop.f32.mrb[0].mxu0
  %6203 = vdwg.mxu0
  %v6204 = vmax.f32 %v5752, 0.0
  %v6205 = vmax.f32 %v5754, 0.0
  %v6206 = vmax.f32 %v5971, 0.0
  %v6207 = vmax.f32 %v5973, 0.0
  %v6208 = vmax.f32 %v6174, 0.0
  %v6209 = vmax.f32 %v5756, 0.0
  %v6210 = vmax.f32 %v5758, 0.0
  %v6211 = vmax.f32 %v5975, 0.0
  %v6212 = vmax.f32 %v5977, 0.0
  %v6213 = vmax.f32 %v6177, 0.0
  %v6214 = vmax.f32 %v5762, 0.0
  %v6215 = vmax.f32 %v5764, 0.0
  %v6216 = vmax.f32 %v5981, 0.0
  %v6217 = vmax.f32 %v5983, 0.0
  %v6218 = vmax.f32 %v6182, 0.0
  %v6219 = vmax.f32 %v5766, 0.0
  %v6220 = vmax.f32 %v5768, 0.0
  %v6221 = vmax.f32 %v5985, 0.0
  %v6222 = vmax.f32 %v5987, 0.0
  %v6223 = vmax.f32 %v6185, 0.0
  %v6224 = vmax.f32 %v5772, 0.0
  %v6225 = vmax.f32 %v5774, 0.0
  %v6226 = vmax.f32 %v5991, 0.0
  %v6227 = vmax.f32 %v5993, 0.0
  %v6228 = vmax.f32 %v6190, 0.0
  %v6229 = vmax.f32 %v5776, 0.0
  %v6230 = vmax.f32 %v5778, 0.0
  %v6231 = vmax.f32 %v5995, 0.0
  %v6232 = vmax.f32 %v5997, 0.0
  %v6233 = vmax.f32 %v6193, 0.0
  %v6234 = vmax.f32 %v5782, 0.0
  %v6235 = vmax.f32 %v5784, 0.0
  %v6236 = vmax.f32 %v6001, 0.0
  %v6237 = vmax.f32 %v6003, 0.0
  %v6238 = vmax.f32 %v6198, 0.0
  %v6239 = vmax.f32 %v5786, 0.0
  %v6240 = vmax.f32 %v5788, 0.0
  %v6241 = vmax.f32 %v6005, 0.0
  %v6242 = vmax.f32 %v6007, 0.0
  %v6243 = vmax.f32 %v6201, 0.0
  %v6244 = vlaneseq
  %v6245 = vshrl.u32 %v6244, 7
  %v6246 = vsub.s32 3, %v6245
  %v6247 = vrot.slane %v63, %v6246
  %v6248 = vlaneseq
  %v6249 = vshrl.u32 %v6248, 7
  %v6250 = vsub.s32 4, %v6249
  %v6251 = vrot.slane %v63, %v6250
  %v6254 = vmul.f32 %v6204, %v1799
  %v6255 = vmul.f32 %v6205, %v1803
  %v6256 = vmul.f32 %v6206, %v1807
  %v6257 = vmul.f32 %v6207, %v6247
  %v6258 = vmul.f32 %v6208, %v6251
  %v6259 = vmul.f32 %v6209, %v1799
  %v6260 = vmul.f32 %v6210, %v1803
  %v6261 = vmul.f32 %v6211, %v1807
  %v6262 = vmul.f32 %v6212, %v6247
  %v6263 = vmul.f32 %v6213, %v6251
  %v6264 = vmul.f32 %v6214, %v1799
  %v6265 = vmul.f32 %v6215, %v1803
  %v6266 = vmul.f32 %v6216, %v1807
  %v6267 = vmul.f32 %v6217, %v6247
  %v6268 = vmul.f32 %v6218, %v6251
  %v6269 = vmul.f32 %v6219, %v1799
  %v6270 = vmul.f32 %v6220, %v1803
  %v6271 = vmul.f32 %v6221, %v1807
  %v6272 = vmul.f32 %v6222, %v6247
  %v6273 = vmul.f32 %v6223, %v6251
  %v6274 = vmul.f32 %v6224, %v1799
  %v6275 = vmul.f32 %v6225, %v1803
  %v6276 = vmul.f32 %v6226, %v1807
  %v6277 = vmul.f32 %v6227, %v6247
  %v6278 = vmul.f32 %v6228, %v6251
  %v6279 = vmul.f32 %v6229, %v1799
  %v6280 = vmul.f32 %v6230, %v1803
  %v6281 = vmul.f32 %v6231, %v1807
  %v6282 = vmul.f32 %v6232, %v6247
  %v6283 = vmul.f32 %v6233, %v6251
  %v6284 = vmul.f32 %v6234, %v1799
  %v6285 = vmul.f32 %v6235, %v1803
  %v6286 = vmul.f32 %v6236, %v1807
  %v6287 = vmul.f32 %v6237, %v6247
  %v6288 = vmul.f32 %v6238, %v6251
  %v6289 = vmul.f32 %v6239, %v1799
  %v6290 = vmul.f32 %v6240, %v1803
  %v6291 = vmul.f32 %v6241, %v1807
  %v6292 = vmul.f32 %v6242, %v6247
  %v6293 = vmul.f32 %v6243, %v6251
  %v6294 = vpack.c.bf16 %v6259, %v6254
  %v6295 = vpack.c.bf16 %v6260, %v6255
  %v6296 = vpack.c.bf16 %v6261, %v6256
  %v6297 = vpack.c.bf16 %v6262, %v6257
  %v6298 = vpack.c.bf16 %v6263, %v6258
  %v6299 = vpack.c.bf16 %v6269, %v6264
  %v6300 = vpack.c.bf16 %v6270, %v6265
  %v6301 = vpack.c.bf16 %v6271, %v6266
  %v6302 = vpack.c.bf16 %v6272, %v6267
  %v6303 = vpack.c.bf16 %v6273, %v6268
  %v6304 = vpack.c.bf16 %v6279, %v6274
  %v6305 = vpack.c.bf16 %v6280, %v6275
  %v6306 = vpack.c.bf16 %v6281, %v6276
  %v6307 = vpack.c.bf16 %v6282, %v6277
  %v6308 = vpack.c.bf16 %v6283, %v6278
  %v6309 = vpack.c.bf16 %v6289, %v6284
  %v6310 = vpack.c.bf16 %v6290, %v6285
  %v6311 = vpack.c.bf16 %v6291, %v6286
  %v6312 = vpack.c.bf16 %v6292, %v6287
  %v6313 = vpack.c.bf16 %v6293, %v6288
  %6326 = vrot.lane.b32.xlu0 %v6294, 19
  %v6327 = vpop.permute.xlu0 %6326
  %6328 = vrot.lane.b32.xlu0 %v6295, 19
  %v6329 = vpop.permute.xlu0 %6328
  %6330 = vrot.lane.b32.xlu0 %v6296, 19
  %v6331 = vpop.permute.xlu0 %6330
  %6332 = vrot.lane.b32.xlu0 %v6299, 19
  %v6333 = vpop.permute.xlu0 %6332
  %6334 = vrot.lane.b32.xlu0 %v6300, 19
  %v6335 = vpop.permute.xlu0 %6334
  %6336 = vrot.lane.b32.xlu0 %v6301, 19
  %v6337 = vpop.permute.xlu0 %6336
  %6338 = vrot.lane.b32.xlu0 %v6304, 19
  %v6339 = vpop.permute.xlu0 %6338
  %6340 = vrot.lane.b32.xlu0 %v6305, 19
  %v6341 = vpop.permute.xlu0 %6340
  %6342 = vrot.lane.b32.xlu0 %v6306, 19
  %v6343 = vpop.permute.xlu0 %6342
  %6344 = vrot.lane.b32.xlu0 %v6309, 19
  %v6345 = vpop.permute.xlu0 %6344
  %6346 = vrot.lane.b32.xlu0 %v6310, 19
  %v6347 = vpop.permute.xlu0 %6346
  %6348 = vrot.lane.b32.xlu0 %v6311, 19
  %v6349 = vpop.permute.xlu0 %6348
  %v6350 = vsel %vm1883, %v6327, %v6329
  %v6351 = vsel %vm1883, %v6329, %v6331
  %v6352 = vsel %vm1883, %v6333, %v6335
  %v6353 = vsel %vm1883, %v6335, %v6337
  %v6354 = vsel %vm1883, %v6339, %v6341
  %v6355 = vsel %vm1883, %v6341, %v6343
  %v6356 = vsel %vm1883, %v6345, %v6347
  %v6357 = vsel %vm1883, %v6347, %v6349
  %6370 = vst.msk [vmem:[#allocation2] sm:$0xff] %vm1904, %v6327
  %6371 = vst [vmem:[#allocation2 + $0x8] sm:$0xff] %v6350
  %6372 = vst.msk [vmem:[#allocation2 + $0x10] sm:$0xff] %vm1907, %v6351
  %6373 = vst.msk [vmem:[#allocation2 + $0x30] sm:$0xff] %vm1904, %v6333
  %6374 = vst [vmem:[#allocation2 + $0x38] sm:$0xff] %v6352
  %6375 = vst.msk [vmem:[#allocation2 + $0x40] sm:$0xff] %vm1907, %v6353
  %6376 = vst.msk [vmem:[#allocation2 + $0x60] sm:$0xff] %vm1904, %v6339
  %6377 = vst [vmem:[#allocation2 + $0x68] sm:$0xff] %v6354
  %6378 = vst.msk [vmem:[#allocation2 + $0x70] sm:$0xff] %vm1907, %v6355
  %6379 = vst.msk [vmem:[#allocation2 + $0x90] sm:$0xff] %vm1904, %v6345
  %6380 = vst [vmem:[#allocation2 + $0x98] sm:$0xff] %v6356
  %6381 = vst.msk [vmem:[#allocation2 + $0xa0] sm:$0xff] %vm1907, %v6357
  %6390 = vrot.lane.b32.xlu0 %v6296, 57
  %v6391 = vpop.permute.xlu0 %6390
  %6392 = vrot.lane.b32.xlu0 %v6297, 57
  %v6393 = vpop.permute.xlu0 %6392
  %6394 = vrot.lane.b32.xlu0 %v6298, 57
  %v6395 = vpop.permute.xlu0 %6394
  %6396 = vrot.lane.b32.xlu0 %v6301, 57
  %v6397 = vpop.permute.xlu0 %6396
  %6398 = vrot.lane.b32.xlu0 %v6302, 57
  %v6399 = vpop.permute.xlu0 %6398
  %6400 = vrot.lane.b32.xlu0 %v6303, 57
  %v6401 = vpop.permute.xlu0 %6400
  %6402 = vrot.lane.b32.xlu0 %v6306, 57
  %v6403 = vpop.permute.xlu0 %6402
  %6404 = vrot.lane.b32.xlu0 %v6307, 57
  %v6405 = vpop.permute.xlu0 %6404
  %6406 = vrot.lane.b32.xlu0 %v6308, 57
  %v6407 = vpop.permute.xlu0 %6406
  %6408 = vrot.lane.b32.xlu0 %v6311, 57
  %v6409 = vpop.permute.xlu0 %6408
  %6410 = vrot.lane.b32.xlu0 %v6312, 57
  %v6411 = vpop.permute.xlu0 %6410
  %6412 = vrot.lane.b32.xlu0 %v6313, 57
  %v6413 = vpop.permute.xlu0 %6412
  %vm6414 = vcmask 465920
  %v6415 = vsel %vm6414, %v6391, %v6393
  %v6416 = vsel %vm6414, %v6393, %v6395
  %v6417 = vsel %vm6414, %v6397, %v6399
  %v6418 = vsel %vm6414, %v6399, %v6401
  %v6419 = vsel %vm6414, %v6403, %v6405
  %v6420 = vsel %vm6414, %v6405, %v6407
  %v6421 = vsel %vm6414, %v6409, %v6411
  %v6422 = vsel %vm6414, %v6411, %v6413
  %6435 = vst.msk [vmem:[#allocation2 + $0x10] sm:$0xff] %vm3731, %v6391
  %6436 = vst [vmem:[#allocation2 + $0x18] sm:$0xff] %v6415
  %6437 = vst.msk [vmem:[#allocation2 + $0x20] sm:$0xff] %vm3734, %v6416
  %6438 = vst.msk [vmem:[#allocation2 + $0x40] sm:$0xff] %vm3731, %v6397
  %6439 = vst [vmem:[#allocation2 + $0x48] sm:$0xff] %v6417
  %6440 = vst.msk [vmem:[#allocation2 + $0x50] sm:$0xff] %vm3734, %v6418
  %6441 = vst.msk [vmem:[#allocation2 + $0x70] sm:$0xff] %vm3731, %v6403
  %6442 = vst [vmem:[#allocation2 + $0x78] sm:$0xff] %v6419
  %6443 = vst.msk [vmem:[#allocation2 + $0x80] sm:$0xff] %vm3734, %v6420
  %6444 = vst.msk [vmem:[#allocation2 + $0xa0] sm:$0xff] %vm3731, %v6409
  %6445 = vst [vmem:[#allocation2 + $0xa8] sm:$0xff] %v6421
  %6446 = vst.msk [vmem:[#allocation2 + $0xb0] sm:$0xff] %vm3734, %v6422
  %v6447 = vld [vmem:[#allocation2] sm:$0xff]
  %v6448 = vld [vmem:[#allocation2 + $0x8] sm:$0xff]
  %v6449 = vld [vmem:[#allocation2 + $0x10] sm:$0xff]
  %v6450 = vld [vmem:[#allocation2 + $0x30] sm:$0xff]
  %v6451 = vld [vmem:[#allocation2 + $0x38] sm:$0xff]
  %v6452 = vld [vmem:[#allocation2 + $0x40] sm:$0xff]
  %v6453 = vld [vmem:[#allocation2 + $0x60] sm:$0xff]
  %v6454 = vld [vmem:[#allocation2 + $0x68] sm:$0xff]
  %v6455 = vld [vmem:[#allocation2 + $0x70] sm:$0xff]
  %v6456 = vld [vmem:[#allocation2 + $0x90] sm:$0xff]
  %v6457 = vld [vmem:[#allocation2 + $0x98] sm:$0xff]
  %v6458 = vld [vmem:[#allocation2 + $0xa0] sm:$0xff]
  %6459 = vst [vmem:[#allocation3] sm:$0xff] %v6447
  %6460 = vst [vmem:[#allocation3 + $0x8] sm:$0xff] %v6448
  %6461 = vst.msk [vmem:[#allocation3 + $0x10] sm:$0xff] %vm3759, %v6449
  %6462 = vst [vmem:[#allocation3 + $0x28] sm:$0xff] %v6450
  %6463 = vst [vmem:[#allocation3 + $0x30] sm:$0xff] %v6451
  %6464 = vst.msk [vmem:[#allocation3 + $0x38] sm:$0xff] %vm3759, %v6452
  %6465 = vst [vmem:[#allocation3 + $0x50] sm:$0xff] %v6453
  %6466 = vst [vmem:[#allocation3 + $0x58] sm:$0xff] %v6454
  %6467 = vst.msk [vmem:[#allocation3 + $0x60] sm:$0xff] %vm3759, %v6455
  %6468 = vst [vmem:[#allocation3 + $0x78] sm:$0xff] %v6456
  %6469 = vst [vmem:[#allocation3 + $0x80] sm:$0xff] %v6457
  %6470 = vst.msk [vmem:[#allocation3 + $0x88] sm:$0xff] %vm3759, %v6458
  %v6471 = vld [vmem:[#allocation2] sm:$0xff]
  %v6472 = vld [vmem:[#allocation2 + $0x8] sm:$0xff]
  %v6473 = vld [vmem:[#allocation2 + $0x10] sm:$0xff]
  %v6474 = vld [vmem:[#allocation2 + $0x30] sm:$0xff]
  %v6475 = vld [vmem:[#allocation2 + $0x38] sm:$0xff]
  %v6476 = vld [vmem:[#allocation2 + $0x40] sm:$0xff]
  %v6477 = vld [vmem:[#allocation2 + $0x60] sm:$0xff]
  %v6478 = vld [vmem:[#allocation2 + $0x68] sm:$0xff]
  %v6479 = vld [vmem:[#allocation2 + $0x70] sm:$0xff]
  %v6480 = vld [vmem:[#allocation2 + $0x90] sm:$0xff]
  %v6481 = vld [vmem:[#allocation2 + $0x98] sm:$0xff]
  %v6482 = vld [vmem:[#allocation2 + $0xa0] sm:$0xff]
  %6495 = vrot.lane.b32.xlu0 %v6471, 127
  %v6496 = vpop.permute.xlu0 %6495
  %6497 = vrot.lane.b32.xlu0 %v6472, 127
  %v6498 = vpop.permute.xlu0 %6497
  %6499 = vrot.lane.b32.xlu0 %v6473, 127
  %v6500 = vpop.permute.xlu0 %6499
  %6501 = vrot.lane.b32.xlu0 %v6474, 127
  %v6502 = vpop.permute.xlu0 %6501
  %6503 = vrot.lane.b32.xlu0 %v6475, 127
  %v6504 = vpop.permute.xlu0 %6503
  %6505 = vrot.lane.b32.xlu0 %v6476, 127
  %v6506 = vpop.permute.xlu0 %6505
  %6507 = vrot.lane.b32.xlu0 %v6477, 127
  %v6508 = vpop.permute.xlu0 %6507
  %6509 = vrot.lane.b32.xlu0 %v6478, 127
  %v6510 = vpop.permute.xlu0 %6509
  %6511 = vrot.lane.b32.xlu0 %v6479, 127
  %v6512 = vpop.permute.xlu0 %6511
  %6513 = vrot.lane.b32.xlu0 %v6480, 127
  %v6514 = vpop.permute.xlu0 %6513
  %6515 = vrot.lane.b32.xlu0 %v6481, 127
  %v6516 = vpop.permute.xlu0 %6515
  %6517 = vrot.lane.b32.xlu0 %v6482, 127
  %v6518 = vpop.permute.xlu0 %6517
  %v6519 = vsel %vm3818, %v6496, %v6498
  %v6520 = vsel %vm3818, %v6498, %v6500
  %v6521 = vsel %vm3818, %v6502, %v6504
  %v6522 = vsel %vm3818, %v6504, %v6506
  %v6523 = vsel %vm3818, %v6508, %v6510
  %v6524 = vsel %vm3818, %v6510, %v6512
  %v6525 = vsel %vm3818, %v6514, %v6516
  %v6526 = vsel %vm3818, %v6516, %v6518
  %6539 = vst [vmem:[#allocation3 + $0xa0] sm:$0xff] %v6519
  %6540 = vst [vmem:[#allocation3 + $0xa8] sm:$0xff] %v6520
  %6541 = vst.msk [vmem:[#allocation3 + $0xb0] sm:$0xff] %vm3759, %v6500
  %6542 = vst [vmem:[#allocation3 + $0xc8] sm:$0xff] %v6521
  %6543 = vst [vmem:[#allocation3 + $0xd0] sm:$0xff] %v6522
  %6544 = vst.msk [vmem:[#allocation3 + $0xd8] sm:$0xff] %vm3759, %v6506
  %6545 = vst [vmem:[#allocation3 + $0xf0] sm:$0xff] %v6523
  %6546 = vst [vmem:[#allocation3 + $0xf8] sm:$0xff] %v6524
  %6547 = vst.msk [vmem:[#allocation3 + $0x100] sm:$0xff] %vm3759, %v6512
  %6548 = vst [vmem:[#allocation3 + $0x118] sm:$0xff] %v6525
  %6549 = vst [vmem:[#allocation3 + $0x120] sm:$0xff] %v6526
  %6550 = vst.msk [vmem:[#allocation3 + $0x128] sm:$0xff] %vm3759, %v6518
  %v6551 = vld [vmem:[#allocation2] sm:$0xff]
  %v6552 = vld [vmem:[#allocation2 + $0x8] sm:$0xff]
  %v6553 = vld [vmem:[#allocation2 + $0x10] sm:$0xff]
  %v6554 = vld [vmem:[#allocation2 + $0x30] sm:$0xff]
  %v6555 = vld [vmem:[#allocation2 + $0x38] sm:$0xff]
  %v6556 = vld [vmem:[#allocation2 + $0x40] sm:$0xff]
  %v6557 = vld [vmem:[#allocation2 + $0x60] sm:$0xff]
  %v6558 = vld [vmem:[#allocation2 + $0x68] sm:$0xff]
  %v6559 = vld [vmem:[#allocation2 + $0x70] sm:$0xff]
  %v6560 = vld [vmem:[#allocation2 + $0x90] sm:$0xff]
  %v6561 = vld [vmem:[#allocation2 + $0x98] sm:$0xff]
  %v6562 = vld [vmem:[#allocation2 + $0xa0] sm:$0xff]
  %6575 = vrot.lane.b32.xlu0 %v6551, 126
  %v6576 = vpop.permute.xlu0 %6575
  %6577 = vrot.lane.b32.xlu0 %v6552, 126
  %v6578 = vpop.permute.xlu0 %6577
  %6579 = vrot.lane.b32.xlu0 %v6553, 126
  %v6580 = vpop.permute.xlu0 %6579
  %6581 = vrot.lane.b32.xlu0 %v6554, 126
  %v6582 = vpop.permute.xlu0 %6581
  %6583 = vrot.lane.b32.xlu0 %v6555, 126
  %v6584 = vpop.permute.xlu0 %6583
  %6585 = vrot.lane.b32.xlu0 %v6556, 126
  %v6586 = vpop.permute.xlu0 %6585
  %6587 = vrot.lane.b32.xlu0 %v6557, 126
  %v6588 = vpop.permute.xlu0 %6587
  %6589 = vrot.lane.b32.xlu0 %v6558, 126
  %v6590 = vpop.permute.xlu0 %6589
  %6591 = vrot.lane.b32.xlu0 %v6559, 126
  %v6592 = vpop.permute.xlu0 %6591
  %6593 = vrot.lane.b32.xlu0 %v6560, 126
  %v6594 = vpop.permute.xlu0 %6593
  %6595 = vrot.lane.b32.xlu0 %v6561, 126
  %v6596 = vpop.permute.xlu0 %6595
  %6597 = vrot.lane.b32.xlu0 %v6562, 126
  %v6598 = vpop.permute.xlu0 %6597
  %v6599 = vsel %vm3899, %v6576, %v6578
  %v6600 = vsel %vm3899, %v6578, %v6580
  %v6601 = vsel %vm3899, %v6582, %v6584
  %v6602 = vsel %vm3899, %v6584, %v6586
  %v6603 = vsel %vm3899, %v6588, %v6590
  %v6604 = vsel %vm3899, %v6590, %v6592
  %v6605 = vsel %vm3899, %v6594, %v6596
  %v6606 = vsel %vm3899, %v6596, %v6598
  %6619 = vst [vmem:[#allocation3 + $0x140] sm:$0xff] %v6599
  %6620 = vst [vmem:[#allocation3 + $0x148] sm:$0xff] %v6600
  %6621 = vst.msk [vmem:[#allocation3 + $0x150] sm:$0xff] %vm3759, %v6580
  %6622 = vst [vmem:[#allocation3 + $0x168] sm:$0xff] %v6601
  %6623 = vst [vmem:[#allocation3 + $0x170] sm:$0xff] %v6602
  %6624 = vst.msk [vmem:[#allocation3 + $0x178] sm:$0xff] %vm3759, %v6586
  %6625 = vst [vmem:[#allocation3 + $0x190] sm:$0xff] %v6603
  %6626 = vst [vmem:[#allocation3 + $0x198] sm:$0xff] %v6604
  %6627 = vst.msk [vmem:[#allocation3 + $0x1a0] sm:$0xff] %vm3759, %v6592
  %6628 = vst [vmem:[#allocation3 + $0x1b8] sm:$0xff] %v6605
  %6629 = vst [vmem:[#allocation3 + $0x1c0] sm:$0xff] %v6606
  %6630 = vst.msk [vmem:[#allocation3 + $0x1c8] sm:$0xff] %vm3759, %v6598
  %v6631 = vld [vmem:[#allocation2] sm:$0xff]
  %v6632 = vld [vmem:[#allocation2 + $0x8] sm:$0xff]
  %v6633 = vld [vmem:[#allocation2 + $0x10] sm:$0xff]
  %v6634 = vld [vmem:[#allocation2 + $0x30] sm:$0xff]
  %v6635 = vld [vmem:[#allocation2 + $0x38] sm:$0xff]
  %v6636 = vld [vmem:[#allocation2 + $0x40] sm:$0xff]
  %v6637 = vld [vmem:[#allocation2 + $0x60] sm:$0xff]
  %v6638 = vld [vmem:[#allocation2 + $0x68] sm:$0xff]
  %v6639 = vld [vmem:[#allocation2 + $0x70] sm:$0xff]
  %v6640 = vld [vmem:[#allocation2 + $0x90] sm:$0xff]
  %v6641 = vld [vmem:[#allocation2 + $0x98] sm:$0xff]
  %v6642 = vld [vmem:[#allocation2 + $0xa0] sm:$0xff]
  %6655 = vrot.lane.b32.xlu0 %v6631, 110
  %v6656 = vpop.permute.xlu0 %6655
  %6657 = vrot.lane.b32.xlu0 %v6632, 110
  %v6658 = vpop.permute.xlu0 %6657
  %6659 = vrot.lane.b32.xlu0 %v6633, 110
  %v6660 = vpop.permute.xlu0 %6659
  %6661 = vrot.lane.b32.xlu0 %v6634, 110
  %v6662 = vpop.permute.xlu0 %6661
  %6663 = vrot.lane.b32.xlu0 %v6635, 110
  %v6664 = vpop.permute.xlu0 %6663
  %6665 = vrot.lane.b32.xlu0 %v6636, 110
  %v6666 = vpop.permute.xlu0 %6665
  %6667 = vrot.lane.b32.xlu0 %v6637, 110
  %v6668 = vpop.permute.xlu0 %6667
  %6669 = vrot.lane.b32.xlu0 %v6638, 110
  %v6670 = vpop.permute.xlu0 %6669
  %6671 = vrot.lane.b32.xlu0 %v6639, 110
  %v6672 = vpop.permute.xlu0 %6671
  %6673 = vrot.lane.b32.xlu0 %v6640, 110
  %v6674 = vpop.permute.xlu0 %6673
  %6675 = vrot.lane.b32.xlu0 %v6641, 110
  %v6676 = vpop.permute.xlu0 %6675
  %6677 = vrot.lane.b32.xlu0 %v6642, 110
  %v6678 = vpop.permute.xlu0 %6677
  %v6679 = vsel %vm3980, %v6656, %v6658
  %v6680 = vsel %vm3980, %v6658, %v6660
  %v6681 = vsel %vm3980, %v6662, %v6664
  %v6682 = vsel %vm3980, %v6664, %v6666
  %v6683 = vsel %vm3980, %v6668, %v6670
  %v6684 = vsel %vm3980, %v6670, %v6672
  %v6685 = vsel %vm3980, %v6674, %v6676
  %v6686 = vsel %vm3980, %v6676, %v6678
  %6699 = vst [vmem:[#allocation3 + $0x1e0] sm:$0xff] %v6679
  %6700 = vst [vmem:[#allocation3 + $0x1e8] sm:$0xff] %v6680
  %6701 = vst.msk [vmem:[#allocation3 + $0x1f0] sm:$0xff] %vm3759, %v6660
  %6702 = vst [vmem:[#allocation3 + $0x208] sm:$0xff] %v6681
  %6703 = vst [vmem:[#allocation3 + $0x210] sm:$0xff] %v6682
  %6704 = vst.msk [vmem:[#allocation3 + $0x218] sm:$0xff] %vm3759, %v6666
  %6705 = vst [vmem:[#allocation3 + $0x230] sm:$0xff] %v6683
  %6706 = vst [vmem:[#allocation3 + $0x238] sm:$0xff] %v6684
  %6707 = vst.msk [vmem:[#allocation3 + $0x240] sm:$0xff] %vm3759, %v6672
  %6708 = vst [vmem:[#allocation3 + $0x258] sm:$0xff] %v6685
  %6709 = vst [vmem:[#allocation3 + $0x260] sm:$0xff] %v6686
  %6710 = vst.msk [vmem:[#allocation3 + $0x268] sm:$0xff] %vm3759, %v6678
  %v6711 = vld [vmem:[#allocation2] sm:$0xff]
  %v6712 = vld [vmem:[#allocation2 + $0x8] sm:$0xff]
  %v6713 = vld [vmem:[#allocation2 + $0x10] sm:$0xff]
  %v6714 = vld [vmem:[#allocation2 + $0x30] sm:$0xff]
  %v6715 = vld [vmem:[#allocation2 + $0x38] sm:$0xff]
  %v6716 = vld [vmem:[#allocation2 + $0x40] sm:$0xff]
  %v6717 = vld [vmem:[#allocation2 + $0x60] sm:$0xff]
  %v6718 = vld [vmem:[#allocation2 + $0x68] sm:$0xff]
  %v6719 = vld [vmem:[#allocation2 + $0x70] sm:$0xff]
  %v6720 = vld [vmem:[#allocation2 + $0x90] sm:$0xff]
  %v6721 = vld [vmem:[#allocation2 + $0x98] sm:$0xff]
  %v6722 = vld [vmem:[#allocation2 + $0xa0] sm:$0xff]
  %6735 = vrot.lane.b32.xlu0 %v6711, 109
  %v6736 = vpop.permute.xlu0 %6735
  %6737 = vrot.lane.b32.xlu0 %v6712, 109
  %v6738 = vpop.permute.xlu0 %6737
  %6739 = vrot.lane.b32.xlu0 %v6713, 109
  %v6740 = vpop.permute.xlu0 %6739
  %6741 = vrot.lane.b32.xlu0 %v6714, 109
  %v6742 = vpop.permute.xlu0 %6741
  %6743 = vrot.lane.b32.xlu0 %v6715, 109
  %v6744 = vpop.permute.xlu0 %6743
  %6745 = vrot.lane.b32.xlu0 %v6716, 109
  %v6746 = vpop.permute.xlu0 %6745
  %6747 = vrot.lane.b32.xlu0 %v6717, 109
  %v6748 = vpop.permute.xlu0 %6747
  %6749 = vrot.lane.b32.xlu0 %v6718, 109
  %v6750 = vpop.permute.xlu0 %6749
  %6751 = vrot.lane.b32.xlu0 %v6719, 109
  %v6752 = vpop.permute.xlu0 %6751
  %6753 = vrot.lane.b32.xlu0 %v6720, 109
  %v6754 = vpop.permute.xlu0 %6753
  %6755 = vrot.lane.b32.xlu0 %v6721, 109
  %v6756 = vpop.permute.xlu0 %6755
  %6757 = vrot.lane.b32.xlu0 %v6722, 109
  %v6758 = vpop.permute.xlu0 %6757
  %v6759 = vsel %vm4061, %v6736, %v6738
  %v6760 = vsel %vm4061, %v6738, %v6740
  %v6761 = vsel %vm4061, %v6742, %v6744
  %v6762 = vsel %vm4061, %v6744, %v6746
  %v6763 = vsel %vm4061, %v6748, %v6750
  %v6764 = vsel %vm4061, %v6750, %v6752
  %v6765 = vsel %vm4061, %v6754, %v6756
  %v6766 = vsel %vm4061, %v6756, %v6758
  %6779 = vst [vmem:[#allocation3 + $0x280] sm:$0xff] %v6759
  %6780 = vst [vmem:[#allocation3 + $0x288] sm:$0xff] %v6760
  %6781 = vst.msk [vmem:[#allocation3 + $0x290] sm:$0xff] %vm3759, %v6740
  %6782 = vst [vmem:[#allocation3 + $0x2a8] sm:$0xff] %v6761
  %6783 = vst [vmem:[#allocation3 + $0x2b0] sm:$0xff] %v6762
  %6784 = vst.msk [vmem:[#allocation3 + $0x2b8] sm:$0xff] %vm3759, %v6746
  %6785 = vst [vmem:[#allocation3 + $0x2d0] sm:$0xff] %v6763
  %6786 = vst [vmem:[#allocation3 + $0x2d8] sm:$0xff] %v6764
  %6787 = vst.msk [vmem:[#allocation3 + $0x2e0] sm:$0xff] %vm3759, %v6752
  %6788 = vst [vmem:[#allocation3 + $0x2f8] sm:$0xff] %v6765
  %6789 = vst [vmem:[#allocation3 + $0x300] sm:$0xff] %v6766
  %6790 = vst.msk [vmem:[#allocation3 + $0x308] sm:$0xff] %vm3759, %v6758
  %v6791 = vld [vmem:[#allocation2] sm:$0xff]
  %v6792 = vld [vmem:[#allocation2 + $0x8] sm:$0xff]
  %v6793 = vld [vmem:[#allocation2 + $0x10] sm:$0xff]
  %v6794 = vld [vmem:[#allocation2 + $0x30] sm:$0xff]
  %v6795 = vld [vmem:[#allocation2 + $0x38] sm:$0xff]
  %v6796 = vld [vmem:[#allocation2 + $0x40] sm:$0xff]
  %v6797 = vld [vmem:[#allocation2 + $0x60] sm:$0xff]
  %v6798 = vld [vmem:[#allocation2 + $0x68] sm:$0xff]
  %v6799 = vld [vmem:[#allocation2 + $0x70] sm:$0xff]
  %v6800 = vld [vmem:[#allocation2 + $0x90] sm:$0xff]
  %v6801 = vld [vmem:[#allocation2 + $0x98] sm:$0xff]
  %v6802 = vld [vmem:[#allocation2 + $0xa0] sm:$0xff]
  %6815 = vrot.lane.b32.xlu0 %v6791, 108
  %v6816 = vpop.permute.xlu0 %6815
  %6817 = vrot.lane.b32.xlu0 %v6792, 108
  %v6818 = vpop.permute.xlu0 %6817
  %6819 = vrot.lane.b32.xlu0 %v6793, 108
  %v6820 = vpop.permute.xlu0 %6819
  %6821 = vrot.lane.b32.xlu0 %v6794, 108
  %v6822 = vpop.permute.xlu0 %6821
  %6823 = vrot.lane.b32.xlu0 %v6795, 108
  %v6824 = vpop.permute.xlu0 %6823
  %6825 = vrot.lane.b32.xlu0 %v6796, 108
  %v6826 = vpop.permute.xlu0 %6825
  %6827 = vrot.lane.b32.xlu0 %v6797, 108
  %v6828 = vpop.permute.xlu0 %6827
  %6829 = vrot.lane.b32.xlu0 %v6798, 108
  %v6830 = vpop.permute.xlu0 %6829
  %6831 = vrot.lane.b32.xlu0 %v6799, 108
  %v6832 = vpop.permute.xlu0 %6831
  %6833 = vrot.lane.b32.xlu0 %v6800, 108
  %v6834 = vpop.permute.xlu0 %6833
  %6835 = vrot.lane.b32.xlu0 %v6801, 108
  %v6836 = vpop.permute.xlu0 %6835
  %6837 = vrot.lane.b32.xlu0 %v6802, 108
  %v6838 = vpop.permute.xlu0 %6837
  %v6839 = vsel %vm4142, %v6816, %v6818
  %v6840 = vsel %vm4142, %v6818, %v6820
  %v6841 = vsel %vm4142, %v6822, %v6824
  %v6842 = vsel %vm4142, %v6824, %v6826
  %v6843 = vsel %vm4142, %v6828, %v6830
  %v6844 = vsel %vm4142, %v6830, %v6832
  %v6845 = vsel %vm4142, %v6834, %v6836
  %v6846 = vsel %vm4142, %v6836, %v6838
  %6859 = vst [vmem:[#allocation3 + $0x320] sm:$0xff] %v6839
  %6860 = vst [vmem:[#allocation3 + $0x328] sm:$0xff] %v6840
  %6861 = vst.msk [vmem:[#allocation3 + $0x330] sm:$0xff] %vm3759, %v6820
  %6862 = vst [vmem:[#allocation3 + $0x348] sm:$0xff] %v6841
  %6863 = vst [vmem:[#allocation3 + $0x350] sm:$0xff] %v6842
  %6864 = vst.msk [vmem:[#allocation3 + $0x358] sm:$0xff] %vm3759, %v6826
  %6865 = vst [vmem:[#allocation3 + $0x370] sm:$0xff] %v6843
  %6866 = vst [vmem:[#allocation3 + $0x378] sm:$0xff] %v6844
  %6867 = vst.msk [vmem:[#allocation3 + $0x380] sm:$0xff] %vm3759, %v6832
  %6868 = vst [vmem:[#allocation3 + $0x398] sm:$0xff] %v6845
  %6869 = vst [vmem:[#allocation3 + $0x3a0] sm:$0xff] %v6846
  %6870 = vst.msk [vmem:[#allocation3 + $0x3a8] sm:$0xff] %vm3759, %v6838
  %v6871 = vld [vmem:[#allocation2] sm:$0xff]
  %v6872 = vld [vmem:[#allocation2 + $0x8] sm:$0xff]
  %v6873 = vld [vmem:[#allocation2 + $0x10] sm:$0xff]
  %v6874 = vld [vmem:[#allocation2 + $0x30] sm:$0xff]
  %v6875 = vld [vmem:[#allocation2 + $0x38] sm:$0xff]
  %v6876 = vld [vmem:[#allocation2 + $0x40] sm:$0xff]
  %v6877 = vld [vmem:[#allocation2 + $0x60] sm:$0xff]
  %v6878 = vld [vmem:[#allocation2 + $0x68] sm:$0xff]
  %v6879 = vld [vmem:[#allocation2 + $0x70] sm:$0xff]
  %v6880 = vld [vmem:[#allocation2 + $0x90] sm:$0xff]
  %v6881 = vld [vmem:[#allocation2 + $0x98] sm:$0xff]
  %v6882 = vld [vmem:[#allocation2 + $0xa0] sm:$0xff]
  %6895 = vrot.lane.b32.xlu0 %v6871, 92
  %v6896 = vpop.permute.xlu0 %6895
  %6897 = vrot.lane.b32.xlu0 %v6872, 92
  %v6898 = vpop.permute.xlu0 %6897
  %6899 = vrot.lane.b32.xlu0 %v6873, 92
  %v6900 = vpop.permute.xlu0 %6899
  %6901 = vrot.lane.b32.xlu0 %v6874, 92
  %v6902 = vpop.permute.xlu0 %6901
  %6903 = vrot.lane.b32.xlu0 %v6875, 92
  %v6904 = vpop.permute.xlu0 %6903
  %6905 = vrot.lane.b32.xlu0 %v6876, 92
  %v6906 = vpop.permute.xlu0 %6905
  %6907 = vrot.lane.b32.xlu0 %v6877, 92
  %v6908 = vpop.permute.xlu0 %6907
  %6909 = vrot.lane.b32.xlu0 %v6878, 92
  %v6910 = vpop.permute.xlu0 %6909
  %6911 = vrot.lane.b32.xlu0 %v6879, 92
  %v6912 = vpop.permute.xlu0 %6911
  %6913 = vrot.lane.b32.xlu0 %v6880, 92
  %v6914 = vpop.permute.xlu0 %6913
  %6915 = vrot.lane.b32.xlu0 %v6881, 92
  %v6916 = vpop.permute.xlu0 %6915
  %6917 = vrot.lane.b32.xlu0 %v6882, 92
  %v6918 = vpop.permute.xlu0 %6917
  %v6919 = vsel %vm4223, %v6896, %v6898
  %v6920 = vsel %vm4223, %v6898, %v6900
  %v6921 = vsel %vm4223, %v6902, %v6904
  %v6922 = vsel %vm4223, %v6904, %v6906
  %v6923 = vsel %vm4223, %v6908, %v6910
  %v6924 = vsel %vm4223, %v6910, %v6912
  %v6925 = vsel %vm4223, %v6914, %v6916
  %v6926 = vsel %vm4223, %v6916, %v6918
  %6939 = vst [vmem:[#allocation3 + $0x3c0] sm:$0xff] %v6919
  %6940 = vst [vmem:[#allocation3 + $0x3c8] sm:$0xff] %v6920
  %6941 = vst.msk [vmem:[#allocation3 + $0x3d0] sm:$0xff] %vm3759, %v6900
  %6942 = vst [vmem:[#allocation3 + $0x3e8] sm:$0xff] %v6921
  %6943 = vst [vmem:[#allocation3 + $0x3f0] sm:$0xff] %v6922
  %6944 = vst.msk [vmem:[#allocation3 + $0x3f8] sm:$0xff] %vm3759, %v6906
  %6945 = vst [vmem:[#allocation3 + $0x410] sm:$0xff] %v6923
  %6946 = vst [vmem:[#allocation3 + $0x418] sm:$0xff] %v6924
  %6947 = vst.msk [vmem:[#allocation3 + $0x420] sm:$0xff] %vm3759, %v6912
  %6948 = vst [vmem:[#allocation3 + $0x438] sm:$0xff] %v6925
  %6949 = vst [vmem:[#allocation3 + $0x440] sm:$0xff] %v6926
  %6950 = vst.msk [vmem:[#allocation3 + $0x448] sm:$0xff] %vm3759, %v6918
  %v6951 = vld [vmem:[#allocation2] sm:$0xff]
  %v6952 = vld [vmem:[#allocation2 + $0x8] sm:$0xff]
  %v6953 = vld [vmem:[#allocation2 + $0x10] sm:$0xff]
  %v6954 = vld [vmem:[#allocation2 + $0x30] sm:$0xff]
  %v6955 = vld [vmem:[#allocation2 + $0x38] sm:$0xff]
  %v6956 = vld [vmem:[#allocation2 + $0x40] sm:$0xff]
  %v6957 = vld [vmem:[#allocation2 + $0x60] sm:$0xff]
  %v6958 = vld [vmem:[#allocation2 + $0x68] sm:$0xff]
  %v6959 = vld [vmem:[#allocation2 + $0x70] sm:$0xff]
  %v6960 = vld [vmem:[#allocation2 + $0x90] sm:$0xff]
  %v6961 = vld [vmem:[#allocation2 + $0x98] sm:$0xff]
  %v6962 = vld [vmem:[#allocation2 + $0xa0] sm:$0xff]
  %6975 = vrot.lane.b32.xlu0 %v6951, 91
  %v6976 = vpop.permute.xlu0 %6975
  %6977 = vrot.lane.b32.xlu0 %v6952, 91
  %v6978 = vpop.permute.xlu0 %6977
  %6979 = vrot.lane.b32.xlu0 %v6953, 91
  %v6980 = vpop.permute.xlu0 %6979
  %6981 = vrot.lane.b32.xlu0 %v6954, 91
  %v6982 = vpop.permute.xlu0 %6981
  %6983 = vrot.lane.b32.xlu0 %v6955, 91
  %v6984 = vpop.permute.xlu0 %6983
  %6985 = vrot.lane.b32.xlu0 %v6956, 91
  %v6986 = vpop.permute.xlu0 %6985
  %6987 = vrot.lane.b32.xlu0 %v6957, 91
  %v6988 = vpop.permute.xlu0 %6987
  %6989 = vrot.lane.b32.xlu0 %v6958, 91
  %v6990 = vpop.permute.xlu0 %6989
  %6991 = vrot.lane.b32.xlu0 %v6959, 91
  %v6992 = vpop.permute.xlu0 %6991
  %6993 = vrot.lane.b32.xlu0 %v6960, 91
  %v6994 = vpop.permute.xlu0 %6993
  %6995 = vrot.lane.b32.xlu0 %v6961, 91
  %v6996 = vpop.permute.xlu0 %6995
  %6997 = vrot.lane.b32.xlu0 %v6962, 91
  %v6998 = vpop.permute.xlu0 %6997
  %v6999 = vsel %vm4304, %v6976, %v6978
  %v7000 = vsel %vm4304, %v6978, %v6980
  %v7001 = vsel %vm4304, %v6982, %v6984
  %v7002 = vsel %vm4304, %v6984, %v6986
  %v7003 = vsel %vm4304, %v6988, %v6990
  %v7004 = vsel %vm4304, %v6990, %v6992
  %v7005 = vsel %vm4304, %v6994, %v6996
  %v7006 = vsel %vm4304, %v6996, %v6998
  %7019 = vst [vmem:[#allocation3 + $0x460] sm:$0xff] %v6999
  %7020 = vst [vmem:[#allocation3 + $0x468] sm:$0xff] %v7000
  %7021 = vst.msk [vmem:[#allocation3 + $0x470] sm:$0xff] %vm3759, %v6980
  %7022 = vst [vmem:[#allocation3 + $0x488] sm:$0xff] %v7001
  %7023 = vst [vmem:[#allocation3 + $0x490] sm:$0xff] %v7002
  %7024 = vst.msk [vmem:[#allocation3 + $0x498] sm:$0xff] %vm3759, %v6986
  %7025 = vst [vmem:[#allocation3 + $0x4b0] sm:$0xff] %v7003
  %7026 = vst [vmem:[#allocation3 + $0x4b8] sm:$0xff] %v7004
  %7027 = vst.msk [vmem:[#allocation3 + $0x4c0] sm:$0xff] %vm3759, %v6992
  %7028 = vst [vmem:[#allocation3 + $0x4d8] sm:$0xff] %v7005
  %7029 = vst [vmem:[#allocation3 + $0x4e0] sm:$0xff] %v7006
  %7030 = vst.msk [vmem:[#allocation3 + $0x4e8] sm:$0xff] %vm3759, %v6998
  %v7031 = vld [vmem:[#allocation2] sm:$0xff]
  %v7032 = vld [vmem:[#allocation2 + $0x8] sm:$0xff]
  %v7033 = vld [vmem:[#allocation2 + $0x10] sm:$0xff]
  %v7034 = vld [vmem:[#allocation2 + $0x30] sm:$0xff]
  %v7035 = vld [vmem:[#allocation2 + $0x38] sm:$0xff]
  %v7036 = vld [vmem:[#allocation2 + $0x40] sm:$0xff]
  %v7037 = vld [vmem:[#allocation2 + $0x60] sm:$0xff]
  %v7038 = vld [vmem:[#allocation2 + $0x68] sm:$0xff]
  %v7039 = vld [vmem:[#allocation2 + $0x70] sm:$0xff]
  %v7040 = vld [vmem:[#allocation2 + $0x90] sm:$0xff]
  %v7041 = vld [vmem:[#allocation2 + $0x98] sm:$0xff]
  %v7042 = vld [vmem:[#allocation2 + $0xa0] sm:$0xff]
  %7055 = vrot.lane.b32.xlu0 %v7031, 90
  %v7056 = vpop.permute.xlu0 %7055
  %7057 = vrot.lane.b32.xlu0 %v7032, 90
  %v7058 = vpop.permute.xlu0 %7057
  %7059 = vrot.lane.b32.xlu0 %v7033, 90
  %v7060 = vpop.permute.xlu0 %7059
  %7061 = vrot.lane.b32.xlu0 %v7034, 90
  %v7062 = vpop.permute.xlu0 %7061
  %7063 = vrot.lane.b32.xlu0 %v7035, 90
  %v7064 = vpop.permute.xlu0 %7063
  %7065 = vrot.lane.b32.xlu0 %v7036, 90
  %v7066 = vpop.permute.xlu0 %7065
  %7067 = vrot.lane.b32.xlu0 %v7037, 90
  %v7068 = vpop.permute.xlu0 %7067
  %7069 = vrot.lane.b32.xlu0 %v7038, 90
  %v7070 = vpop.permute.xlu0 %7069
  %7071 = vrot.lane.b32.xlu0 %v7039, 90
  %v7072 = vpop.permute.xlu0 %7071
  %7073 = vrot.lane.b32.xlu0 %v7040, 90
  %v7074 = vpop.permute.xlu0 %7073
  %7075 = vrot.lane.b32.xlu0 %v7041, 90
  %v7076 = vpop.permute.xlu0 %7075
  %7077 = vrot.lane.b32.xlu0 %v7042, 90
  %v7078 = vpop.permute.xlu0 %7077
  %v7079 = vsel %vm4385, %v7056, %v7058
  %v7080 = vsel %vm4385, %v7058, %v7060
  %v7081 = vsel %vm4385, %v7062, %v7064
  %v7082 = vsel %vm4385, %v7064, %v7066
  %v7083 = vsel %vm4385, %v7068, %v7070
  %v7084 = vsel %vm4385, %v7070, %v7072
  %v7085 = vsel %vm4385, %v7074, %v7076
  %v7086 = vsel %vm4385, %v7076, %v7078
  %7099 = vst [vmem:[#allocation3 + $0x500] sm:$0xff] %v7079
  %7100 = vst [vmem:[#allocation3 + $0x508] sm:$0xff] %v7080
  %7101 = vst.msk [vmem:[#allocation3 + $0x510] sm:$0xff] %vm3759, %v7060
  %7102 = vst [vmem:[#allocation3 + $0x528] sm:$0xff] %v7081
  %7103 = vst [vmem:[#allocation3 + $0x530] sm:$0xff] %v7082
  %7104 = vst.msk [vmem:[#allocation3 + $0x538] sm:$0xff] %vm3759, %v7066
  %7105 = vst [vmem:[#allocation3 + $0x550] sm:$0xff] %v7083
  %7106 = vst [vmem:[#allocation3 + $0x558] sm:$0xff] %v7084
  %7107 = vst.msk [vmem:[#allocation3 + $0x560] sm:$0xff] %vm3759, %v7072
  %7108 = vst [vmem:[#allocation3 + $0x578] sm:$0xff] %v7085
  %7109 = vst [vmem:[#allocation3 + $0x580] sm:$0xff] %v7086
  %7110 = vst.msk [vmem:[#allocation3 + $0x588] sm:$0xff] %vm3759, %v7078
  %v7111 = vld [vmem:[#allocation2 + $0x10] sm:$0xff]
  %v7112 = vld [vmem:[#allocation2 + $0x18] sm:$0xff]
  %v7113 = vld [vmem:[#allocation2 + $0x20] sm:$0xff]
  %v7114 = vld [vmem:[#allocation2 + $0x40] sm:$0xff]
  %v7115 = vld [vmem:[#allocation2 + $0x48] sm:$0xff]
  %v7116 = vld [vmem:[#allocation2 + $0x50] sm:$0xff]
  %v7117 = vld [vmem:[#allocation2 + $0x70] sm:$0xff]
  %v7118 = vld [vmem:[#allocation2 + $0x78] sm:$0xff]
  %v7119 = vld [vmem:[#allocation2 + $0x80] sm:$0xff]
  %v7120 = vld [vmem:[#allocation2 + $0xa0] sm:$0xff]
  %v7121 = vld [vmem:[#allocation2 + $0xa8] sm:$0xff]
  %v7122 = vld [vmem:[#allocation2 + $0xb0] sm:$0xff]
  %7135 = vrot.lane.b32.xlu0 %v7111, 90
  %v7136 = vpop.permute.xlu0 %7135
  %7137 = vrot.lane.b32.xlu0 %v7112, 90
  %v7138 = vpop.permute.xlu0 %7137
  %7139 = vrot.lane.b32.xlu0 %v7113, 90
  %v7140 = vpop.permute.xlu0 %7139
  %7141 = vrot.lane.b32.xlu0 %v7114, 90
  %v7142 = vpop.permute.xlu0 %7141
  %7143 = vrot.lane.b32.xlu0 %v7115, 90
  %v7144 = vpop.permute.xlu0 %7143
  %7145 = vrot.lane.b32.xlu0 %v7116, 90
  %v7146 = vpop.permute.xlu0 %7145
  %7147 = vrot.lane.b32.xlu0 %v7117, 90
  %v7148 = vpop.permute.xlu0 %7147
  %7149 = vrot.lane.b32.xlu0 %v7118, 90
  %v7150 = vpop.permute.xlu0 %7149
  %7151 = vrot.lane.b32.xlu0 %v7119, 90
  %v7152 = vpop.permute.xlu0 %7151
  %7153 = vrot.lane.b32.xlu0 %v7120, 90
  %v7154 = vpop.permute.xlu0 %7153
  %7155 = vrot.lane.b32.xlu0 %v7121, 90
  %v7156 = vpop.permute.xlu0 %7155
  %7157 = vrot.lane.b32.xlu0 %v7122, 90
  %v7158 = vpop.permute.xlu0 %7157
  %v7159 = vsel %vm4385, %v7136, %v7138
  %v7160 = vsel %vm4385, %v7138, %v7140
  %v7161 = vsel %vm4385, %v7142, %v7144
  %v7162 = vsel %vm4385, %v7144, %v7146
  %v7163 = vsel %vm4385, %v7148, %v7150
  %v7164 = vsel %vm4385, %v7150, %v7152
  %v7165 = vsel %vm4385, %v7154, %v7156
  %v7166 = vsel %vm4385, %v7156, %v7158
  %7179 = vst.msk [vmem:[#allocation3 + $0x10] sm:$0xff] %vm4486, %v7159
  %7180 = vst [vmem:[#allocation3 + $0x18] sm:$0xff] %v7160
  %7181 = vst.msk [vmem:[#allocation3 + $0x20] sm:$0xff] %vm4489, %v7140
  %7182 = vst.msk [vmem:[#allocation3 + $0x38] sm:$0xff] %vm4486, %v7161
  %7183 = vst [vmem:[#allocation3 + $0x40] sm:$0xff] %v7162
  %7184 = vst.msk [vmem:[#allocation3 + $0x48] sm:$0xff] %vm4489, %v7146
  %7185 = vst.msk [vmem:[#allocation3 + $0x60] sm:$0xff] %vm4486, %v7163
  %7186 = vst [vmem:[#allocation3 + $0x68] sm:$0xff] %v7164
  %7187 = vst.msk [vmem:[#allocation3 + $0x70] sm:$0xff] %vm4489, %v7152
  %7188 = vst.msk [vmem:[#allocation3 + $0x88] sm:$0xff] %vm4486, %v7165
  %7189 = vst [vmem:[#allocation3 + $0x90] sm:$0xff] %v7166
  %7190 = vst.msk [vmem:[#allocation3 + $0x98] sm:$0xff] %vm4489, %v7158
  %v7191 = vld [vmem:[#allocation2 + $0x10] sm:$0xff]
  %v7192 = vld [vmem:[#allocation2 + $0x18] sm:$0xff]
  %v7193 = vld [vmem:[#allocation2 + $0x20] sm:$0xff]
  %v7194 = vld [vmem:[#allocation2 + $0x40] sm:$0xff]
  %v7195 = vld [vmem:[#allocation2 + $0x48] sm:$0xff]
  %v7196 = vld [vmem:[#allocation2 + $0x50] sm:$0xff]
  %v7197 = vld [vmem:[#allocation2 + $0x70] sm:$0xff]
  %v7198 = vld [vmem:[#allocation2 + $0x78] sm:$0xff]
  %v7199 = vld [vmem:[#allocation2 + $0x80] sm:$0xff]
  %v7200 = vld [vmem:[#allocation2 + $0xa0] sm:$0xff]
  %v7201 = vld [vmem:[#allocation2 + $0xa8] sm:$0xff]
  %v7202 = vld [vmem:[#allocation2 + $0xb0] sm:$0xff]
  %7215 = vrot.lane.b32.xlu0 %v7191, 89
  %v7216 = vpop.permute.xlu0 %7215
  %7217 = vrot.lane.b32.xlu0 %v7192, 89
  %v7218 = vpop.permute.xlu0 %7217
  %7219 = vrot.lane.b32.xlu0 %v7193, 89
  %v7220 = vpop.permute.xlu0 %7219
  %7221 = vrot.lane.b32.xlu0 %v7194, 89
  %v7222 = vpop.permute.xlu0 %7221
  %7223 = vrot.lane.b32.xlu0 %v7195, 89
  %v7224 = vpop.permute.xlu0 %7223
  %7225 = vrot.lane.b32.xlu0 %v7196, 89
  %v7226 = vpop.permute.xlu0 %7225
  %7227 = vrot.lane.b32.xlu0 %v7197, 89
  %v7228 = vpop.permute.xlu0 %7227
  %7229 = vrot.lane.b32.xlu0 %v7198, 89
  %v7230 = vpop.permute.xlu0 %7229
  %7231 = vrot.lane.b32.xlu0 %v7199, 89
  %v7232 = vpop.permute.xlu0 %7231
  %7233 = vrot.lane.b32.xlu0 %v7200, 89
  %v7234 = vpop.permute.xlu0 %7233
  %7235 = vrot.lane.b32.xlu0 %v7201, 89
  %v7236 = vpop.permute.xlu0 %7235
  %7237 = vrot.lane.b32.xlu0 %v7202, 89
  %v7238 = vpop.permute.xlu0 %7237
  %v7239 = vsel %vm3710, %v7216, %v7218
  %v7240 = vsel %vm3710, %v7218, %v7220
  %v7241 = vsel %vm3710, %v7222, %v7224
  %v7242 = vsel %vm3710, %v7224, %v7226
  %v7243 = vsel %vm3710, %v7228, %v7230
  %v7244 = vsel %vm3710, %v7230, %v7232
  %v7245 = vsel %vm3710, %v7234, %v7236
  %v7246 = vsel %vm3710, %v7236, %v7238
  %7259 = vst.msk [vmem:[#allocation3 + $0xb0] sm:$0xff] %vm4486, %v7239
  %7260 = vst [vmem:[#allocation3 + $0xb8] sm:$0xff] %v7240
  %7261 = vst.msk [vmem:[#allocation3 + $0xc0] sm:$0xff] %vm4489, %v7220
  %7262 = vst.msk [vmem:[#allocation3 + $0xd8] sm:$0xff] %vm4486, %v7241
  %7263 = vst [vmem:[#allocation3 + $0xe0] sm:$0xff] %v7242
  %7264 = vst.msk [vmem:[#allocation3 + $0xe8] sm:$0xff] %vm4489, %v7226
  %7265 = vst.msk [vmem:[#allocation3 + $0x100] sm:$0xff] %vm4486, %v7243
  %7266 = vst [vmem:[#allocation3 + $0x108] sm:$0xff] %v7244
  %7267 = vst.msk [vmem:[#allocation3 + $0x110] sm:$0xff] %vm4489, %v7232
  %7268 = vst.msk [vmem:[#allocation3 + $0x128] sm:$0xff] %vm4486, %v7245
  %7269 = vst [vmem:[#allocation3 + $0x130] sm:$0xff] %v7246
  %7270 = vst.msk [vmem:[#allocation3 + $0x138] sm:$0xff] %vm4489, %v7238
  %v7271 = vld [vmem:[#allocation2 + $0x10] sm:$0xff]
  %v7272 = vld [vmem:[#allocation2 + $0x18] sm:$0xff]
  %v7273 = vld [vmem:[#allocation2 + $0x20] sm:$0xff]
  %v7274 = vld [vmem:[#allocation2 + $0x40] sm:$0xff]
  %v7275 = vld [vmem:[#allocation2 + $0x48] sm:$0xff]
  %v7276 = vld [vmem:[#allocation2 + $0x50] sm:$0xff]
  %v7277 = vld [vmem:[#allocation2 + $0x70] sm:$0xff]
  %v7278 = vld [vmem:[#allocation2 + $0x78] sm:$0xff]
  %v7279 = vld [vmem:[#allocation2 + $0x80] sm:$0xff]
  %v7280 = vld [vmem:[#allocation2 + $0xa0] sm:$0xff]
  %v7281 = vld [vmem:[#allocation2 + $0xa8] sm:$0xff]
  %v7282 = vld [vmem:[#allocation2 + $0xb0] sm:$0xff]
  %7295 = vrot.lane.b32.xlu0 %v7271, 88
  %v7296 = vpop.permute.xlu0 %7295
  %7297 = vrot.lane.b32.xlu0 %v7272, 88
  %v7298 = vpop.permute.xlu0 %7297
  %7299 = vrot.lane.b32.xlu0 %v7273, 88
  %v7300 = vpop.permute.xlu0 %7299
  %7301 = vrot.lane.b32.xlu0 %v7274, 88
  %v7302 = vpop.permute.xlu0 %7301
  %7303 = vrot.lane.b32.xlu0 %v7275, 88
  %v7304 = vpop.permute.xlu0 %7303
  %7305 = vrot.lane.b32.xlu0 %v7276, 88
  %v7306 = vpop.permute.xlu0 %7305
  %7307 = vrot.lane.b32.xlu0 %v7277, 88
  %v7308 = vpop.permute.xlu0 %7307
  %7309 = vrot.lane.b32.xlu0 %v7278, 88
  %v7310 = vpop.permute.xlu0 %7309
  %7311 = vrot.lane.b32.xlu0 %v7279, 88
  %v7312 = vpop.permute.xlu0 %7311
  %7313 = vrot.lane.b32.xlu0 %v7280, 88
  %v7314 = vpop.permute.xlu0 %7313
  %7315 = vrot.lane.b32.xlu0 %v7281, 88
  %v7316 = vpop.permute.xlu0 %7315
  %7317 = vrot.lane.b32.xlu0 %v7282, 88
  %v7318 = vpop.permute.xlu0 %7317
  %v7319 = vsel %vm4628, %v7296, %v7298
  %v7320 = vsel %vm4628, %v7298, %v7300
  %v7321 = vsel %vm4628, %v7302, %v7304
  %v7322 = vsel %vm4628, %v7304, %v7306
  %v7323 = vsel %vm4628, %v7308, %v7310
  %v7324 = vsel %vm4628, %v7310, %v7312
  %v7325 = vsel %vm4628, %v7314, %v7316
  %v7326 = vsel %vm4628, %v7316, %v7318
  %7339 = vst.msk [vmem:[#allocation3 + $0x150] sm:$0xff] %vm4486, %v7319
  %7340 = vst [vmem:[#allocation3 + $0x158] sm:$0xff] %v7320
  %7341 = vst.msk [vmem:[#allocation3 + $0x160] sm:$0xff] %vm4489, %v7300
  %7342 = vst.msk [vmem:[#allocation3 + $0x178] sm:$0xff] %vm4486, %v7321
  %7343 = vst [vmem:[#allocation3 + $0x180] sm:$0xff] %v7322
  %7344 = vst.msk [vmem:[#allocation3 + $0x188] sm:$0xff] %vm4489, %v7306
  %7345 = vst.msk [vmem:[#allocation3 + $0x1a0] sm:$0xff] %vm4486, %v7323
  %7346 = vst [vmem:[#allocation3 + $0x1a8] sm:$0xff] %v7324
  %7347 = vst.msk [vmem:[#allocation3 + $0x1b0] sm:$0xff] %vm4489, %v7312
  %7348 = vst.msk [vmem:[#allocation3 + $0x1c8] sm:$0xff] %vm4486, %v7325
  %7349 = vst [vmem:[#allocation3 + $0x1d0] sm:$0xff] %v7326
  %7350 = vst.msk [vmem:[#allocation3 + $0x1d8] sm:$0xff] %vm4489, %v7318
  %v7351 = vld [vmem:[#allocation2 + $0x10] sm:$0xff]
  %v7352 = vld [vmem:[#allocation2 + $0x18] sm:$0xff]
  %v7353 = vld [vmem:[#allocation2 + $0x20] sm:$0xff]
  %v7354 = vld [vmem:[#allocation2 + $0x40] sm:$0xff]
  %v7355 = vld [vmem:[#allocation2 + $0x48] sm:$0xff]
  %v7356 = vld [vmem:[#allocation2 + $0x50] sm:$0xff]
  %v7357 = vld [vmem:[#allocation2 + $0x70] sm:$0xff]
  %v7358 = vld [vmem:[#allocation2 + $0x78] sm:$0xff]
  %v7359 = vld [vmem:[#allocation2 + $0x80] sm:$0xff]
  %v7360 = vld [vmem:[#allocation2 + $0xa0] sm:$0xff]
  %v7361 = vld [vmem:[#allocation2 + $0xa8] sm:$0xff]
  %v7362 = vld [vmem:[#allocation2 + $0xb0] sm:$0xff]
  %7375 = vrot.lane.b32.xlu0 %v7351, 72
  %v7376 = vpop.permute.xlu0 %7375
  %7377 = vrot.lane.b32.xlu0 %v7352, 72
  %v7378 = vpop.permute.xlu0 %7377
  %7379 = vrot.lane.b32.xlu0 %v7353, 72
  %v7380 = vpop.permute.xlu0 %7379
  %7381 = vrot.lane.b32.xlu0 %v7354, 72
  %v7382 = vpop.permute.xlu0 %7381
  %7383 = vrot.lane.b32.xlu0 %v7355, 72
  %v7384 = vpop.permute.xlu0 %7383
  %7385 = vrot.lane.b32.xlu0 %v7356, 72
  %v7386 = vpop.permute.xlu0 %7385
  %7387 = vrot.lane.b32.xlu0 %v7357, 72
  %v7388 = vpop.permute.xlu0 %7387
  %7389 = vrot.lane.b32.xlu0 %v7358, 72
  %v7390 = vpop.permute.xlu0 %7389
  %7391 = vrot.lane.b32.xlu0 %v7359, 72
  %v7392 = vpop.permute.xlu0 %7391
  %7393 = vrot.lane.b32.xlu0 %v7360, 72
  %v7394 = vpop.permute.xlu0 %7393
  %7395 = vrot.lane.b32.xlu0 %v7361, 72
  %v7396 = vpop.permute.xlu0 %7395
  %7397 = vrot.lane.b32.xlu0 %v7362, 72
  %v7398 = vpop.permute.xlu0 %7397
  %v7399 = vsel %vm4709, %v7376, %v7378
  %v7400 = vsel %vm4709, %v7378, %v7380
  %v7401 = vsel %vm4709, %v7382, %v7384
  %v7402 = vsel %vm4709, %v7384, %v7386
  %v7403 = vsel %vm4709, %v7388, %v7390
  %v7404 = vsel %vm4709, %v7390, %v7392
  %v7405 = vsel %vm4709, %v7394, %v7396
  %v7406 = vsel %vm4709, %v7396, %v7398
  %7419 = vst.msk [vmem:[#allocation3 + $0x1f0] sm:$0xff] %vm4486, %v7399
  %7420 = vst [vmem:[#allocation3 + $0x1f8] sm:$0xff] %v7400
  %7421 = vst.msk [vmem:[#allocation3 + $0x200] sm:$0xff] %vm4489, %v7380
  %7422 = vst.msk [vmem:[#allocation3 + $0x218] sm:$0xff] %vm4486, %v7401
  %7423 = vst [vmem:[#allocation3 + $0x220] sm:$0xff] %v7402
  %7424 = vst.msk [vmem:[#allocation3 + $0x228] sm:$0xff] %vm4489, %v7386
  %7425 = vst.msk [vmem:[#allocation3 + $0x240] sm:$0xff] %vm4486, %v7403
  %7426 = vst [vmem:[#allocation3 + $0x248] sm:$0xff] %v7404
  %7427 = vst.msk [vmem:[#allocation3 + $0x250] sm:$0xff] %vm4489, %v7392
  %7428 = vst.msk [vmem:[#allocation3 + $0x268] sm:$0xff] %vm4486, %v7405
  %7429 = vst [vmem:[#allocation3 + $0x270] sm:$0xff] %v7406
  %7430 = vst.msk [vmem:[#allocation3 + $0x278] sm:$0xff] %vm4489, %v7398
  %v7431 = vld [vmem:[#allocation2 + $0x10] sm:$0xff]
  %v7432 = vld [vmem:[#allocation2 + $0x18] sm:$0xff]
  %v7433 = vld [vmem:[#allocation2 + $0x20] sm:$0xff]
  %v7434 = vld [vmem:[#allocation2 + $0x40] sm:$0xff]
  %v7435 = vld [vmem:[#allocation2 + $0x48] sm:$0xff]
  %v7436 = vld [vmem:[#allocation2 + $0x50] sm:$0xff]
  %v7437 = vld [vmem:[#allocation2 + $0x70] sm:$0xff]
  %v7438 = vld [vmem:[#allocation2 + $0x78] sm:$0xff]
  %v7439 = vld [vmem:[#allocation2 + $0x80] sm:$0xff]
  %v7440 = vld [vmem:[#allocation2 + $0xa0] sm:$0xff]
  %v7441 = vld [vmem:[#allocation2 + $0xa8] sm:$0xff]
  %v7442 = vld [vmem:[#allocation2 + $0xb0] sm:$0xff]
  %7455 = vrot.lane.b32.xlu0 %v7431, 71
  %v7456 = vpop.permute.xlu0 %7455
  %7457 = vrot.lane.b32.xlu0 %v7432, 71
  %v7458 = vpop.permute.xlu0 %7457
  %7459 = vrot.lane.b32.xlu0 %v7433, 71
  %v7460 = vpop.permute.xlu0 %7459
  %7461 = vrot.lane.b32.xlu0 %v7434, 71
  %v7462 = vpop.permute.xlu0 %7461
  %7463 = vrot.lane.b32.xlu0 %v7435, 71
  %v7464 = vpop.permute.xlu0 %7463
  %7465 = vrot.lane.b32.xlu0 %v7436, 71
  %v7466 = vpop.permute.xlu0 %7465
  %7467 = vrot.lane.b32.xlu0 %v7437, 71
  %v7468 = vpop.permute.xlu0 %7467
  %7469 = vrot.lane.b32.xlu0 %v7438, 71
  %v7470 = vpop.permute.xlu0 %7469
  %7471 = vrot.lane.b32.xlu0 %v7439, 71
  %v7472 = vpop.permute.xlu0 %7471
  %7473 = vrot.lane.b32.xlu0 %v7440, 71
  %v7474 = vpop.permute.xlu0 %7473
  %7475 = vrot.lane.b32.xlu0 %v7441, 71
  %v7476 = vpop.permute.xlu0 %7475
  %7477 = vrot.lane.b32.xlu0 %v7442, 71
  %v7478 = vpop.permute.xlu0 %7477
  %v7479 = vsel %vm4790, %v7456, %v7458
  %v7480 = vsel %vm4790, %v7458, %v7460
  %v7481 = vsel %vm4790, %v7462, %v7464
  %v7482 = vsel %vm4790, %v7464, %v7466
  %v7483 = vsel %vm4790, %v7468, %v7470
  %v7484 = vsel %vm4790, %v7470, %v7472
  %v7485 = vsel %vm4790, %v7474, %v7476
  %v7486 = vsel %vm4790, %v7476, %v7478
  %7499 = vst.msk [vmem:[#allocation3 + $0x290] sm:$0xff] %vm4486, %v7479
  %7500 = vst [vmem:[#allocation3 + $0x298] sm:$0xff] %v7480
  %7501 = vst.msk [vmem:[#allocation3 + $0x2a0] sm:$0xff] %vm4489, %v7460
  %7502 = vst.msk [vmem:[#allocation3 + $0x2b8] sm:$0xff] %vm4486, %v7481
  %7503 = vst [vmem:[#allocation3 + $0x2c0] sm:$0xff] %v7482
  %7504 = vst.msk [vmem:[#allocation3 + $0x2c8] sm:$0xff] %vm4489, %v7466
  %7505 = vst.msk [vmem:[#allocation3 + $0x2e0] sm:$0xff] %vm4486, %v7483
  %7506 = vst [vmem:[#allocation3 + $0x2e8] sm:$0xff] %v7484
  %7507 = vst.msk [vmem:[#allocation3 + $0x2f0] sm:$0xff] %vm4489, %v7472
  %7508 = vst.msk [vmem:[#allocation3 + $0x308] sm:$0xff] %vm4486, %v7485
  %7509 = vst [vmem:[#allocation3 + $0x310] sm:$0xff] %v7486
  %7510 = vst.msk [vmem:[#allocation3 + $0x318] sm:$0xff] %vm4489, %v7478
  %v7511 = vld [vmem:[#allocation2 + $0x10] sm:$0xff]
  %v7512 = vld [vmem:[#allocation2 + $0x18] sm:$0xff]
  %v7513 = vld [vmem:[#allocation2 + $0x20] sm:$0xff]
  %v7514 = vld [vmem:[#allocation2 + $0x40] sm:$0xff]
  %v7515 = vld [vmem:[#allocation2 + $0x48] sm:$0xff]
  %v7516 = vld [vmem:[#allocation2 + $0x50] sm:$0xff]
  %v7517 = vld [vmem:[#allocation2 + $0x70] sm:$0xff]
  %v7518 = vld [vmem:[#allocation2 + $0x78] sm:$0xff]
  %v7519 = vld [vmem:[#allocation2 + $0x80] sm:$0xff]
  %v7520 = vld [vmem:[#allocation2 + $0xa0] sm:$0xff]
  %v7521 = vld [vmem:[#allocation2 + $0xa8] sm:$0xff]
  %v7522 = vld [vmem:[#allocation2 + $0xb0] sm:$0xff]
  %7535 = vrot.lane.b32.xlu0 %v7511, 70
  %v7536 = vpop.permute.xlu0 %7535
  %7537 = vrot.lane.b32.xlu0 %v7512, 70
  %v7538 = vpop.permute.xlu0 %7537
  %7539 = vrot.lane.b32.xlu0 %v7513, 70
  %v7540 = vpop.permute.xlu0 %7539
  %7541 = vrot.lane.b32.xlu0 %v7514, 70
  %v7542 = vpop.permute.xlu0 %7541
  %7543 = vrot.lane.b32.xlu0 %v7515, 70
  %v7544 = vpop.permute.xlu0 %7543
  %7545 = vrot.lane.b32.xlu0 %v7516, 70
  %v7546 = vpop.permute.xlu0 %7545
  %7547 = vrot.lane.b32.xlu0 %v7517, 70
  %v7548 = vpop.permute.xlu0 %7547
  %7549 = vrot.lane.b32.xlu0 %v7518, 70
  %v7550 = vpop.permute.xlu0 %7549
  %7551 = vrot.lane.b32.xlu0 %v7519, 70
  %v7552 = vpop.permute.xlu0 %7551
  %7553 = vrot.lane.b32.xlu0 %v7520, 70
  %v7554 = vpop.permute.xlu0 %7553
  %7555 = vrot.lane.b32.xlu0 %v7521, 70
  %v7556 = vpop.permute.xlu0 %7555
  %7557 = vrot.lane.b32.xlu0 %v7522, 70
  %v7558 = vpop.permute.xlu0 %7557
  %v7559 = vsel %vm4871, %v7536, %v7538
  %v7560 = vsel %vm4871, %v7538, %v7540
  %v7561 = vsel %vm4871, %v7542, %v7544
  %v7562 = vsel %vm4871, %v7544, %v7546
  %v7563 = vsel %vm4871, %v7548, %v7550
  %v7564 = vsel %vm4871, %v7550, %v7552
  %v7565 = vsel %vm4871, %v7554, %v7556
  %v7566 = vsel %vm4871, %v7556, %v7558
  %7579 = vst.msk [vmem:[#allocation3 + $0x330] sm:$0xff] %vm4486, %v7559
  %7580 = vst [vmem:[#allocation3 + $0x338] sm:$0xff] %v7560
  %7581 = vst.msk [vmem:[#allocation3 + $0x340] sm:$0xff] %vm4489, %v7540
  %7582 = vst.msk [vmem:[#allocation3 + $0x358] sm:$0xff] %vm4486, %v7561
  %7583 = vst [vmem:[#allocation3 + $0x360] sm:$0xff] %v7562
  %7584 = vst.msk [vmem:[#allocation3 + $0x368] sm:$0xff] %vm4489, %v7546
  %7585 = vst.msk [vmem:[#allocation3 + $0x380] sm:$0xff] %vm4486, %v7563
  %7586 = vst [vmem:[#allocation3 + $0x388] sm:$0xff] %v7564
  %7587 = vst.msk [vmem:[#allocation3 + $0x390] sm:$0xff] %vm4489, %v7552
  %7588 = vst.msk [vmem:[#allocation3 + $0x3a8] sm:$0xff] %vm4486, %v7565
  %7589 = vst [vmem:[#allocation3 + $0x3b0] sm:$0xff] %v7566
  %7590 = vst.msk [vmem:[#allocation3 + $0x3b8] sm:$0xff] %vm4489, %v7558
  %v7591 = vld [vmem:[#allocation2 + $0x10] sm:$0xff]
  %v7592 = vld [vmem:[#allocation2 + $0x18] sm:$0xff]
  %v7593 = vld [vmem:[#allocation2 + $0x20] sm:$0xff]
  %v7594 = vld [vmem:[#allocation2 + $0x28] sm:$0xff]
  %v7595 = vld [vmem:[#allocation2 + $0x40] sm:$0xff]
  %v7596 = vld [vmem:[#allocation2 + $0x48] sm:$0xff]
  %v7597 = vld [vmem:[#allocation2 + $0x50] sm:$0xff]
  %v7598 = vld [vmem:[#allocation2 + $0x58] sm:$0xff]
  %v7599 = vld [vmem:[#allocation2 + $0x70] sm:$0xff]
  %v7600 = vld [vmem:[#allocation2 + $0x78] sm:$0xff]
  %v7601 = vld [vmem:[#allocation2 + $0x80] sm:$0xff]
  %v7602 = vld [vmem:[#allocation2 + $0x88] sm:$0xff]
  %v7603 = vld [vmem:[#allocation2 + $0xa0] sm:$0xff]
  %v7604 = vld [vmem:[#allocation2 + $0xa8] sm:$0xff]
  %v7605 = vld [vmem:[#allocation2 + $0xb0] sm:$0xff]
  %v7606 = vld [vmem:[#allocation2 + $0xb8] sm:$0xff]
  %7623 = vrot.lane.b32.xlu0 %v7591, 54
  %v7624 = vpop.permute.xlu0 %7623
  %7625 = vrot.lane.b32.xlu0 %v7592, 54
  %v7626 = vpop.permute.xlu0 %7625
  %7627 = vrot.lane.b32.xlu0 %v7593, 54
  %v7628 = vpop.permute.xlu0 %7627
  %7629 = vrot.lane.b32.xlu0 %v7594, 54
  %v7630 = vpop.permute.xlu0 %7629
  %7631 = vrot.lane.b32.xlu0 %v7595, 54
  %v7632 = vpop.permute.xlu0 %7631
  %7633 = vrot.lane.b32.xlu0 %v7596, 54
  %v7634 = vpop.permute.xlu0 %7633
  %7635 = vrot.lane.b32.xlu0 %v7597, 54
  %v7636 = vpop.permute.xlu0 %7635
  %7637 = vrot.lane.b32.xlu0 %v7598, 54
  %v7638 = vpop.permute.xlu0 %7637
  %7639 = vrot.lane.b32.xlu0 %v7599, 54
  %v7640 = vpop.permute.xlu0 %7639
  %7641 = vrot.lane.b32.xlu0 %v7600, 54
  %v7642 = vpop.permute.xlu0 %7641
  %7643 = vrot.lane.b32.xlu0 %v7601, 54
  %v7644 = vpop.permute.xlu0 %7643
  %7645 = vrot.lane.b32.xlu0 %v7602, 54
  %v7646 = vpop.permute.xlu0 %7645
  %7647 = vrot.lane.b32.xlu0 %v7603, 54
  %v7648 = vpop.permute.xlu0 %7647
  %7649 = vrot.lane.b32.xlu0 %v7604, 54
  %v7650 = vpop.permute.xlu0 %7649
  %7651 = vrot.lane.b32.xlu0 %v7605, 54
  %v7652 = vpop.permute.xlu0 %7651
  %7653 = vrot.lane.b32.xlu0 %v7606, 54
  %v7654 = vpop.permute.xlu0 %7653
  %v7655 = vsel %vm4968, %v7624, %v7626
  %v7656 = vsel %vm4968, %v7626, %v7628
  %v7657 = vsel %vm4968, %v7628, %v7630
  %v7658 = vsel %vm4968, %v7632, %v7634
  %v7659 = vsel %vm4968, %v7634, %v7636
  %v7660 = vsel %vm4968, %v7636, %v7638
  %v7661 = vsel %vm4968, %v7640, %v7642
  %v7662 = vsel %vm4968, %v7642, %v7644
  %v7663 = vsel %vm4968, %v7644, %v7646
  %v7664 = vsel %vm4968, %v7648, %v7650
  %v7665 = vsel %vm4968, %v7650, %v7652
  %v7666 = vsel %vm4968, %v7652, %v7654
  %7679 = vst.msk [vmem:[#allocation3 + $0x3d0] sm:$0xff] %vm4486, %v7655
  %7680 = vst [vmem:[#allocation3 + $0x3d8] sm:$0xff] %v7656
  %7681 = vst.msk [vmem:[#allocation3 + $0x3e0] sm:$0xff] %vm4489, %v7657
  %7682 = vst.msk [vmem:[#allocation3 + $0x3f8] sm:$0xff] %vm4486, %v7658
  %7683 = vst [vmem:[#allocation3 + $0x400] sm:$0xff] %v7659
  %7684 = vst.msk [vmem:[#allocation3 + $0x408] sm:$0xff] %vm4489, %v7660
  %7685 = vst.msk [vmem:[#allocation3 + $0x420] sm:$0xff] %vm4486, %v7661
  %7686 = vst [vmem:[#allocation3 + $0x428] sm:$0xff] %v7662
  %7687 = vst.msk [vmem:[#allocation3 + $0x430] sm:$0xff] %vm4489, %v7663
  %7688 = vst.msk [vmem:[#allocation3 + $0x448] sm:$0xff] %vm4486, %v7664
  %7689 = vst [vmem:[#allocation3 + $0x450] sm:$0xff] %v7665
  %7690 = vst.msk [vmem:[#allocation3 + $0x458] sm:$0xff] %vm4489, %v7666
  %v7691 = vld [vmem:[#allocation2 + $0x10] sm:$0xff]
  %v7692 = vld [vmem:[#allocation2 + $0x18] sm:$0xff]
  %v7693 = vld [vmem:[#allocation2 + $0x20] sm:$0xff]
  %v7694 = vld [vmem:[#allocation2 + $0x28] sm:$0xff]
  %v7695 = vld [vmem:[#allocation2 + $0x40] sm:$0xff]
  %v7696 = vld [vmem:[#allocation2 + $0x48] sm:$0xff]
  %v7697 = vld [vmem:[#allocation2 + $0x50] sm:$0xff]
  %v7698 = vld [vmem:[#allocation2 + $0x58] sm:$0xff]
  %v7699 = vld [vmem:[#allocation2 + $0x70] sm:$0xff]
  %v7700 = vld [vmem:[#allocation2 + $0x78] sm:$0xff]
  %v7701 = vld [vmem:[#allocation2 + $0x80] sm:$0xff]
  %v7702 = vld [vmem:[#allocation2 + $0x88] sm:$0xff]
  %v7703 = vld [vmem:[#allocation2 + $0xa0] sm:$0xff]
  %v7704 = vld [vmem:[#allocation2 + $0xa8] sm:$0xff]
  %v7705 = vld [vmem:[#allocation2 + $0xb0] sm:$0xff]
  %v7706 = vld [vmem:[#allocation2 + $0xb8] sm:$0xff]
  %7723 = vrot.lane.b32.xlu0 %v7691, 53
  %v7724 = vpop.permute.xlu0 %7723
  %7725 = vrot.lane.b32.xlu0 %v7692, 53
  %v7726 = vpop.permute.xlu0 %7725
  %7727 = vrot.lane.b32.xlu0 %v7693, 53
  %v7728 = vpop.permute.xlu0 %7727
  %7729 = vrot.lane.b32.xlu0 %v7694, 53
  %v7730 = vpop.permute.xlu0 %7729
  %7731 = vrot.lane.b32.xlu0 %v7695, 53
  %v7732 = vpop.permute.xlu0 %7731
  %7733 = vrot.lane.b32.xlu0 %v7696, 53
  %v7734 = vpop.permute.xlu0 %7733
  %7735 = vrot.lane.b32.xlu0 %v7697, 53
  %v7736 = vpop.permute.xlu0 %7735
  %7737 = vrot.lane.b32.xlu0 %v7698, 53
  %v7738 = vpop.permute.xlu0 %7737
  %7739 = vrot.lane.b32.xlu0 %v7699, 53
  %v7740 = vpop.permute.xlu0 %7739
  %7741 = vrot.lane.b32.xlu0 %v7700, 53
  %v7742 = vpop.permute.xlu0 %7741
  %7743 = vrot.lane.b32.xlu0 %v7701, 53
  %v7744 = vpop.permute.xlu0 %7743
  %7745 = vrot.lane.b32.xlu0 %v7702, 53
  %v7746 = vpop.permute.xlu0 %7745
  %7747 = vrot.lane.b32.xlu0 %v7703, 53
  %v7748 = vpop.permute.xlu0 %7747
  %7749 = vrot.lane.b32.xlu0 %v7704, 53
  %v7750 = vpop.permute.xlu0 %7749
  %7751 = vrot.lane.b32.xlu0 %v7705, 53
  %v7752 = vpop.permute.xlu0 %7751
  %7753 = vrot.lane.b32.xlu0 %v7706, 53
  %v7754 = vpop.permute.xlu0 %7753
  %v7755 = vsel %vm5069, %v7724, %v7726
  %v7756 = vsel %vm5069, %v7726, %v7728
  %v7757 = vsel %vm5069, %v7728, %v7730
  %v7758 = vsel %vm5069, %v7732, %v7734
  %v7759 = vsel %vm5069, %v7734, %v7736
  %v7760 = vsel %vm5069, %v7736, %v7738
  %v7761 = vsel %vm5069, %v7740, %v7742
  %v7762 = vsel %vm5069, %v7742, %v7744
  %v7763 = vsel %vm5069, %v7744, %v7746
  %v7764 = vsel %vm5069, %v7748, %v7750
  %v7765 = vsel %vm5069, %v7750, %v7752
  %v7766 = vsel %vm5069, %v7752, %v7754
  %7779 = vst.msk [vmem:[#allocation3 + $0x470] sm:$0xff] %vm4486, %v7755
  %7780 = vst [vmem:[#allocation3 + $0x478] sm:$0xff] %v7756
  %7781 = vst.msk [vmem:[#allocation3 + $0x480] sm:$0xff] %vm4489, %v7757
  %7782 = vst.msk [vmem:[#allocation3 + $0x498] sm:$0xff] %vm4486, %v7758
  %7783 = vst [vmem:[#allocation3 + $0x4a0] sm:$0xff] %v7759
  %7784 = vst.msk [vmem:[#allocation3 + $0x4a8] sm:$0xff] %vm4489, %v7760
  %7785 = vst.msk [vmem:[#allocation3 + $0x4c0] sm:$0xff] %vm4486, %v7761
  %7786 = vst [vmem:[#allocation3 + $0x4c8] sm:$0xff] %v7762
  %7787 = vst.msk [vmem:[#allocation3 + $0x4d0] sm:$0xff] %vm4489, %v7763
  %7788 = vst.msk [vmem:[#allocation3 + $0x4e8] sm:$0xff] %vm4486, %v7764
  %7789 = vst [vmem:[#allocation3 + $0x4f0] sm:$0xff] %v7765
  %7790 = vst.msk [vmem:[#allocation3 + $0x4f8] sm:$0xff] %vm4489, %v7766
  %v7791 = vld [vmem:[#allocation2 + $0x10] sm:$0xff]
  %v7792 = vld [vmem:[#allocation2 + $0x18] sm:$0xff]
  %v7793 = vld [vmem:[#allocation2 + $0x20] sm:$0xff]
  %v7794 = vld [vmem:[#allocation2 + $0x28] sm:$0xff]
  %v7795 = vld [vmem:[#allocation2 + $0x40] sm:$0xff]
  %v7796 = vld [vmem:[#allocation2 + $0x48] sm:$0xff]
  %v7797 = vld [vmem:[#allocation2 + $0x50] sm:$0xff]
  %v7798 = vld [vmem:[#allocation2 + $0x58] sm:$0xff]
  %v7799 = vld [vmem:[#allocation2 + $0x70] sm:$0xff]
  %v7800 = vld [vmem:[#allocation2 + $0x78] sm:$0xff]
  %v7801 = vld [vmem:[#allocation2 + $0x80] sm:$0xff]
  %v7802 = vld [vmem:[#allocation2 + $0x88] sm:$0xff]
  %v7803 = vld [vmem:[#allocation2 + $0xa0] sm:$0xff]
  %v7804 = vld [vmem:[#allocation2 + $0xa8] sm:$0xff]
  %v7805 = vld [vmem:[#allocation2 + $0xb0] sm:$0xff]
  %v7806 = vld [vmem:[#allocation2 + $0xb8] sm:$0xff]
  %7823 = vrot.lane.b32.xlu0 %v7791, 52
  %v7824 = vpop.permute.xlu0 %7823
  %7825 = vrot.lane.b32.xlu0 %v7792, 52
  %v7826 = vpop.permute.xlu0 %7825
  %7827 = vrot.lane.b32.xlu0 %v7793, 52
  %v7828 = vpop.permute.xlu0 %7827
  %7829 = vrot.lane.b32.xlu0 %v7794, 52
  %v7830 = vpop.permute.xlu0 %7829
  %7831 = vrot.lane.b32.xlu0 %v7795, 52
  %v7832 = vpop.permute.xlu0 %7831
  %7833 = vrot.lane.b32.xlu0 %v7796, 52
  %v7834 = vpop.permute.xlu0 %7833
  %7835 = vrot.lane.b32.xlu0 %v7797, 52
  %v7836 = vpop.permute.xlu0 %7835
  %7837 = vrot.lane.b32.xlu0 %v7798, 52
  %v7838 = vpop.permute.xlu0 %7837
  %7839 = vrot.lane.b32.xlu0 %v7799, 52
  %v7840 = vpop.permute.xlu0 %7839
  %7841 = vrot.lane.b32.xlu0 %v7800, 52
  %v7842 = vpop.permute.xlu0 %7841
  %7843 = vrot.lane.b32.xlu0 %v7801, 52
  %v7844 = vpop.permute.xlu0 %7843
  %7845 = vrot.lane.b32.xlu0 %v7802, 52
  %v7846 = vpop.permute.xlu0 %7845
  %7847 = vrot.lane.b32.xlu0 %v7803, 52
  %v7848 = vpop.permute.xlu0 %7847
  %7849 = vrot.lane.b32.xlu0 %v7804, 52
  %v7850 = vpop.permute.xlu0 %7849
  %7851 = vrot.lane.b32.xlu0 %v7805, 52
  %v7852 = vpop.permute.xlu0 %7851
  %7853 = vrot.lane.b32.xlu0 %v7806, 52
  %v7854 = vpop.permute.xlu0 %7853
  %v7855 = vsel %vm5170, %v7824, %v7826
  %v7856 = vsel %vm5170, %v7826, %v7828
  %v7857 = vsel %vm5170, %v7828, %v7830
  %v7858 = vsel %vm5170, %v7832, %v7834
  %v7859 = vsel %vm5170, %v7834, %v7836
  %v7860 = vsel %vm5170, %v7836, %v7838
  %v7861 = vsel %vm5170, %v7840, %v7842
  %v7862 = vsel %vm5170, %v7842, %v7844
  %v7863 = vsel %vm5170, %v7844, %v7846
  %v7864 = vsel %vm5170, %v7848, %v7850
  %v7865 = vsel %vm5170, %v7850, %v7852
  %v7866 = vsel %vm5170, %v7852, %v7854
  %7879 = vst.msk [vmem:[#allocation3 + $0x510] sm:$0xff] %vm4486, %v7855
  %7880 = vst [vmem:[#allocation3 + $0x518] sm:$0xff] %v7856
  %7881 = vst.msk [vmem:[#allocation3 + $0x520] sm:$0xff] %vm4489, %v7857
  %7882 = vst.msk [vmem:[#allocation3 + $0x538] sm:$0xff] %vm4486, %v7858
  %7883 = vst [vmem:[#allocation3 + $0x540] sm:$0xff] %v7859
  %7884 = vst.msk [vmem:[#allocation3 + $0x548] sm:$0xff] %vm4489, %v7860
  %7885 = vst.msk [vmem:[#allocation3 + $0x560] sm:$0xff] %vm4486, %v7861
  %7886 = vst [vmem:[#allocation3 + $0x568] sm:$0xff] %v7862
  %7887 = vst.msk [vmem:[#allocation3 + $0x570] sm:$0xff] %vm4489, %v7863
  %7888 = vst.msk [vmem:[#allocation3 + $0x588] sm:$0xff] %vm4486, %v7864
  %7889 = vst [vmem:[#allocation3 + $0x590] sm:$0xff] %v7865
  %7890 = vst.msk [vmem:[#allocation3 + $0x598] sm:$0xff] %vm4489, %v7866
  %v7891 = vld [vmem:[%s6] sm:$0xff]
  %v7892 = vld [vmem:[%s6 + $0x8] sm:$0xff]
  %v7893 = vld [vmem:[%s6 + $0x10] sm:$0xf]
  %v7894 = vld [vmem:[%s6 + $0x14] sm:$0xff]
  %v7895 = vld [vmem:[%s6 + $0x1c] sm:$0xff]
  %v7896 = vld [vmem:[%s6 + $0x24] sm:$0xf]
  %v7897 = vld [vmem:[%s6 + $0x28] sm:$0xff]
  %v7898 = vld [vmem:[%s6 + $0x30] sm:$0xff]
  %v7899 = vld [vmem:[%s6 + $0x38] sm:$0xf]
  %v7900 = vld [vmem:[%s6 + $0x3c] sm:$0xff]
  %v7901 = vld [vmem:[%s6 + $0x44] sm:$0xff]
  %v7902 = vld [vmem:[%s6 + $0x4c] sm:$0xf]
  %v7903 = vld [vmem:[%s6 + $0x50] sm:$0xff]
  %v7904 = vld [vmem:[%s6 + $0x58] sm:$0xff]
  %v7905 = vld [vmem:[%s6 + $0x60] sm:$0xf]
  %v7906 = vld [vmem:[%s6 + $0x64] sm:$0xff]
  %v7907 = vld [vmem:[%s6 + $0x6c] sm:$0xff]
  %v7908 = vld [vmem:[%s6 + $0x74] sm:$0xf]
  %v7909 = vld [vmem:[%s6 + $0x78] sm:$0xff]
  %v7910 = vld [vmem:[%s6 + $0x80] sm:$0xff]
  %v7911 = vld [vmem:[%s6 + $0x88] sm:$0xf]
  %v7912 = vld [vmem:[%s6 + $0x8c] sm:$0xff]
  %v7913 = vld [vmem:[%s6 + $0x94] sm:$0xff]
  %v7914 = vld [vmem:[%s6 + $0x9c] sm:$0xf]
  %v7915 = vld [vmem:[#allocation3] sm:$0xff]
  %v7916 = vld [vmem:[#allocation3 + $0x8] sm:$0xff]
  %v7917 = vld [vmem:[#allocation3 + $0x10] sm:$0xff]
  %v7918 = vld [vmem:[#allocation3 + $0x18] sm:$0xff]
  %v7919 = vld [vmem:[#allocation3 + $0x20] sm:$0xff]
  %v7920 = vld [vmem:[#allocation3 + $0x28] sm:$0xff]
  %v7921 = vld [vmem:[#allocation3 + $0x30] sm:$0xff]
  %v7922 = vld [vmem:[#allocation3 + $0x38] sm:$0xff]
  %v7923 = vld [vmem:[#allocation3 + $0x40] sm:$0xff]
  %v7924 = vld [vmem:[#allocation3 + $0x48] sm:$0xff]
  %v7925 = vld [vmem:[#allocation3 + $0x50] sm:$0xff]
  %v7926 = vld [vmem:[#allocation3 + $0x58] sm:$0xff]
  %v7927 = vld [vmem:[#allocation3 + $0x60] sm:$0xff]
  %v7928 = vld [vmem:[#allocation3 + $0x68] sm:$0xff]
  %v7929 = vld [vmem:[#allocation3 + $0x70] sm:$0xff]
  %v7930 = vld [vmem:[#allocation3 + $0x78] sm:$0xff]
  %v7931 = vld [vmem:[#allocation3 + $0x80] sm:$0xff]
  %v7932 = vld [vmem:[#allocation3 + $0x88] sm:$0xff]
  %v7933 = vld [vmem:[#allocation3 + $0x90] sm:$0xff]
  %v7934 = vld [vmem:[#allocation3 + $0x98] sm:$0xff]
  %v7935 = vld [vmem:[#allocation3 + $0xa0] sm:$0xff]
  %v7936 = vld [vmem:[#allocation3 + $0xa8] sm:$0xff]
  %v7937 = vld [vmem:[#allocation3 + $0xb0] sm:$0xff]
  %v7938 = vld [vmem:[#allocation3 + $0xb8] sm:$0xff]
  %v7939 = vld [vmem:[#allocation3 + $0xc0] sm:$0xff]
  %v7940 = vld [vmem:[#allocation3 + $0xc8] sm:$0xff]
  %v7941 = vld [vmem:[#allocation3 + $0xd0] sm:$0xff]
  %v7942 = vld [vmem:[#allocation3 + $0xd8] sm:$0xff]
  %v7943 = vld [vmem:[#allocation3 + $0xe0] sm:$0xff]
  %v7944 = vld [vmem:[#allocation3 + $0xe8] sm:$0xff]
  %v7945 = vld [vmem:[#allocation3 + $0xf0] sm:$0xff]
  %v7946 = vld [vmem:[#allocation3 + $0xf8] sm:$0xff]
  %v7947 = vld [vmem:[#allocation3 + $0x100] sm:$0xff]
  %v7948 = vld [vmem:[#allocation3 + $0x108] sm:$0xff]
  %v7949 = vld [vmem:[#allocation3 + $0x110] sm:$0xff]
  %v7950 = vld [vmem:[#allocation3 + $0x118] sm:$0xff]
  %v7951 = vld [vmem:[#allocation3 + $0x120] sm:$0xff]
  %v7952 = vld [vmem:[#allocation3 + $0x128] sm:$0xff]
  %v7953 = vld [vmem:[#allocation3 + $0x130] sm:$0xff]
  %v7954 = vld [vmem:[#allocation3 + $0x138] sm:$0xff]
  %v7955 = vld [vmem:[#allocation3 + $0x140] sm:$0xff]
  %v7956 = vld [vmem:[#allocation3 + $0x148] sm:$0xff]
  %v7957 = vld [vmem:[#allocation3 + $0x150] sm:$0xff]
  %v7958 = vld [vmem:[#allocation3 + $0x158] sm:$0xff]
  %v7959 = vld [vmem:[#allocation3 + $0x160] sm:$0xff]
  %v7960 = vld [vmem:[#allocation3 + $0x168] sm:$0xff]
  %v7961 = vld [vmem:[#allocation3 + $0x170] sm:$0xff]
  %v7962 = vld [vmem:[#allocation3 + $0x178] sm:$0xff]
  %v7963 = vld [vmem:[#allocation3 + $0x180] sm:$0xff]
  %v7964 = vld [vmem:[#allocation3 + $0x188] sm:$0xff]
  %v7965 = vld [vmem:[#allocation3 + $0x190] sm:$0xff]
  %v7966 = vld [vmem:[#allocation3 + $0x198] sm:$0xff]
  %v7967 = vld [vmem:[#allocation3 + $0x1a0] sm:$0xff]
  %v7968 = vld [vmem:[#allocation3 + $0x1a8] sm:$0xff]
  %v7969 = vld [vmem:[#allocation3 + $0x1b0] sm:$0xff]
  %v7970 = vld [vmem:[#allocation3 + $0x1b8] sm:$0xff]
  %v7971 = vld [vmem:[#allocation3 + $0x1c0] sm:$0xff]
  %v7972 = vld [vmem:[#allocation3 + $0x1c8] sm:$0xff]
  %v7973 = vld [vmem:[#allocation3 + $0x1d0] sm:$0xff]
  %v7974 = vld [vmem:[#allocation3 + $0x1d8] sm:$0xff]
  %v7975 = vld [vmem:[#allocation3 + $0x1e0] sm:$0xff]
  %v7976 = vld [vmem:[#allocation3 + $0x1e8] sm:$0xff]
  %v7977 = vld [vmem:[#allocation3 + $0x1f0] sm:$0xff]
  %v7978 = vld [vmem:[#allocation3 + $0x1f8] sm:$0xff]
  %v7979 = vld [vmem:[#allocation3 + $0x200] sm:$0xff]
  %v7980 = vld [vmem:[#allocation3 + $0x208] sm:$0xff]
  %v7981 = vld [vmem:[#allocation3 + $0x210] sm:$0xff]
  %v7982 = vld [vmem:[#allocation3 + $0x218] sm:$0xff]
  %v7983 = vld [vmem:[#allocation3 + $0x220] sm:$0xff]
  %v7984 = vld [vmem:[#allocation3 + $0x228] sm:$0xff]
  %v7985 = vld [vmem:[#allocation3 + $0x230] sm:$0xff]
  %v7986 = vld [vmem:[#allocation3 + $0x238] sm:$0xff]
  %v7987 = vld [vmem:[#allocation3 + $0x240] sm:$0xff]
  %v7988 = vld [vmem:[#allocation3 + $0x248] sm:$0xff]
  %v7989 = vld [vmem:[#allocation3 + $0x250] sm:$0xff]
  %v7990 = vld [vmem:[#allocation3 + $0x258] sm:$0xff]
  %v7991 = vld [vmem:[#allocation3 + $0x260] sm:$0xff]
  %v7992 = vld [vmem:[#allocation3 + $0x268] sm:$0xff]
  %v7993 = vld [vmem:[#allocation3 + $0x270] sm:$0xff]
  %v7994 = vld [vmem:[#allocation3 + $0x278] sm:$0xff]
  %v7995 = vld [vmem:[#allocation3 + $0x280] sm:$0xff]
  %v7996 = vld [vmem:[#allocation3 + $0x288] sm:$0xff]
  %v7997 = vld [vmem:[#allocation3 + $0x290] sm:$0xff]
  %v7998 = vld [vmem:[#allocation3 + $0x298] sm:$0xff]
  %v7999 = vld [vmem:[#allocation3 + $0x2a0] sm:$0xff]
  %v8000 = vld [vmem:[#allocation3 + $0x2a8] sm:$0xff]
  %v8001 = vld [vmem:[#allocation3 + $0x2b0] sm:$0xff]
  %v8002 = vld [vmem:[#allocation3 + $0x2b8] sm:$0xff]
  %v8003 = vld [vmem:[#allocation3 + $0x2c0] sm:$0xff]
  %v8004 = vld [vmem:[#allocation3 + $0x2c8] sm:$0xff]
  %v8005 = vld [vmem:[#allocation3 + $0x2d0] sm:$0xff]
  %v8006 = vld [vmem:[#allocation3 + $0x2d8] sm:$0xff]
  %v8007 = vld [vmem:[#allocation3 + $0x2e0] sm:$0xff]
  %v8008 = vld [vmem:[#allocation3 + $0x2e8] sm:$0xff]
  %v8009 = vld [vmem:[#allocation3 + $0x2f0] sm:$0xff]
  %v8010 = vld [vmem:[#allocation3 + $0x2f8] sm:$0xff]
  %v8011 = vld [vmem:[#allocation3 + $0x300] sm:$0xff]
  %v8012 = vld [vmem:[#allocation3 + $0x308] sm:$0xff]
  %v8013 = vld [vmem:[#allocation3 + $0x310] sm:$0xff]
  %v8014 = vld [vmem:[#allocation3 + $0x318] sm:$0xff]
  %v8015 = vld [vmem:[#allocation3 + $0x320] sm:$0xff]
  %v8016 = vld [vmem:[#allocation3 + $0x328] sm:$0xff]
  %v8017 = vld [vmem:[#allocation3 + $0x330] sm:$0xff]
  %v8018 = vld [vmem:[#allocation3 + $0x338] sm:$0xff]
  %v8019 = vld [vmem:[#allocation3 + $0x340] sm:$0xff]
  %v8020 = vld [vmem:[#allocation3 + $0x348] sm:$0xff]
  %v8021 = vld [vmem:[#allocation3 + $0x350] sm:$0xff]
  %v8022 = vld [vmem:[#allocation3 + $0x358] sm:$0xff]
  %v8023 = vld [vmem:[#allocation3 + $0x360] sm:$0xff]
  %v8024 = vld [vmem:[#allocation3 + $0x368] sm:$0xff]
  %v8025 = vld [vmem:[#allocation3 + $0x370] sm:$0xff]
  %v8026 = vld [vmem:[#allocation3 + $0x378] sm:$0xff]
  %v8027 = vld [vmem:[#allocation3 + $0x380] sm:$0xff]
  %v8028 = vld [vmem:[#allocation3 + $0x388] sm:$0xff]
  %v8029 = vld [vmem:[#allocation3 + $0x390] sm:$0xff]
  %v8030 = vld [vmem:[#allocation3 + $0x398] sm:$0xff]
  %v8031 = vld [vmem:[#allocation3 + $0x3a0] sm:$0xff]
  %v8032 = vld [vmem:[#allocation3 + $0x3a8] sm:$0xff]
  %v8033 = vld [vmem:[#allocation3 + $0x3b0] sm:$0xff]
  %v8034 = vld [vmem:[#allocation3 + $0x3b8] sm:$0xff]
  %v8035 = vld [vmem:[#allocation3 + $0x3c0] sm:$0xff]
  %v8036 = vld [vmem:[#allocation3 + $0x3c8] sm:$0xff]
  %v8037 = vld [vmem:[#allocation3 + $0x3d0] sm:$0xff]
  %v8038 = vld [vmem:[#allocation3 + $0x3d8] sm:$0xff]
  %v8039 = vld [vmem:[#allocation3 + $0x3e0] sm:$0xff]
  %v8040 = vld [vmem:[#allocation3 + $0x3e8] sm:$0xff]
  %v8041 = vld [vmem:[#allocation3 + $0x3f0] sm:$0xff]
  %v8042 = vld [vmem:[#allocation3 + $0x3f8] sm:$0xff]
  %v8043 = vld [vmem:[#allocation3 + $0x400] sm:$0xff]
  %v8044 = vld [vmem:[#allocation3 + $0x408] sm:$0xff]
  %v8045 = vld [vmem:[#allocation3 + $0x410] sm:$0xff]
  %v8046 = vld [vmem:[#allocation3 + $0x418] sm:$0xff]
  %v8047 = vld [vmem:[#allocation3 + $0x420] sm:$0xff]
  %v8048 = vld [vmem:[#allocation3 + $0x428] sm:$0xff]
  %v8049 = vld [vmem:[#allocation3 + $0x430] sm:$0xff]
  %v8050 = vld [vmem:[#allocation3 + $0x438] sm:$0xff]
  %v8051 = vld [vmem:[#allocation3 + $0x440] sm:$0xff]
  %v8052 = vld [vmem:[#allocation3 + $0x448] sm:$0xff]
  %v8053 = vld [vmem:[#allocation3 + $0x450] sm:$0xff]
  %v8054 = vld [vmem:[#allocation3 + $0x458] sm:$0xff]
  %v8055 = vld [vmem:[#allocation3 + $0x460] sm:$0xff]
  %v8056 = vld [vmem:[#allocation3 + $0x468] sm:$0xff]
  %v8057 = vld [vmem:[#allocation3 + $0x470] sm:$0xff]
  %v8058 = vld [vmem:[#allocation3 + $0x478] sm:$0xff]
  %v8059 = vld [vmem:[#allocation3 + $0x480] sm:$0xff]
  %v8060 = vld [vmem:[#allocation3 + $0x488] sm:$0xff]
  %v8061 = vld [vmem:[#allocation3 + $0x490] sm:$0xff]
  %v8062 = vld [vmem:[#allocation3 + $0x498] sm:$0xff]
  %v8063 = vld [vmem:[#allocation3 + $0x4a0] sm:$0xff]
  %v8064 = vld [vmem:[#allocation3 + $0x4a8] sm:$0xff]
  %v8065 = vld [vmem:[#allocation3 + $0x4b0] sm:$0xff]
  %v8066 = vld [vmem:[#allocation3 + $0x4b8] sm:$0xff]
  %v8067 = vld [vmem:[#allocation3 + $0x4c0] sm:$0xff]
  %v8068 = vld [vmem:[#allocation3 + $0x4c8] sm:$0xff]
  %v8069 = vld [vmem:[#allocation3 + $0x4d0] sm:$0xff]
  %v8070 = vld [vmem:[#allocation3 + $0x4d8] sm:$0xff]
  %v8071 = vld [vmem:[#allocation3 + $0x4e0] sm:$0xff]
  %v8072 = vld [vmem:[#allocation3 + $0x4e8] sm:$0xff]
  %v8073 = vld [vmem:[#allocation3 + $0x4f0] sm:$0xff]
  %v8074 = vld [vmem:[#allocation3 + $0x4f8] sm:$0xff]
  %v8075 = vld [vmem:[#allocation3 + $0x500] sm:$0xff]
  %v8076 = vld [vmem:[#allocation3 + $0x508] sm:$0xff]
  %v8077 = vld [vmem:[#allocation3 + $0x510] sm:$0xff]
  %v8078 = vld [vmem:[#allocation3 + $0x518] sm:$0xff]
  %v8079 = vld [vmem:[#allocation3 + $0x520] sm:$0xff]
  %v8080 = vld [vmem:[#allocation3 + $0x528] sm:$0xff]
  %v8081 = vld [vmem:[#allocation3 + $0x530] sm:$0xff]
  %v8082 = vld [vmem:[#allocation3 + $0x538] sm:$0xff]
  %v8083 = vld [vmem:[#allocation3 + $0x540] sm:$0xff]
  %v8084 = vld [vmem:[#allocation3 + $0x548] sm:$0xff]
  %v8085 = vld [vmem:[#allocation3 + $0x550] sm:$0xff]
  %v8086 = vld [vmem:[#allocation3 + $0x558] sm:$0xff]
  %v8087 = vld [vmem:[#allocation3 + $0x560] sm:$0xff]
  %v8088 = vld [vmem:[#allocation3 + $0x568] sm:$0xff]
  %v8089 = vld [vmem:[#allocation3 + $0x570] sm:$0xff]
  %v8090 = vld [vmem:[#allocation3 + $0x578] sm:$0xff]
  %v8091 = vld [vmem:[#allocation3 + $0x580] sm:$0xff]
  %v8092 = vld [vmem:[#allocation3 + $0x588] sm:$0xff]
  %v8093 = vld [vmem:[#allocation3 + $0x590] sm:$0xff]
  %v8094 = vld [vmem:[#allocation3 + $0x598] sm:$0xff]
  %v8095 = vld [vmem:[%s7] sm:$0xff]
  %v8096 = vld [vmem:[%s7 + $0x8] sm:$0xff]
  %v8097 = vld [vmem:[%s7 + $0x10] sm:$0xff]
  %v8098 = vld [vmem:[%s7 + $0x18] sm:$0xff]
  %v8099 = vld [vmem:[%s7 + $0x20] sm:$0xff]
  %v8100 = vld [vmem:[%s7 + $0x28] sm:$0xff]
  %v8101 = vld [vmem:[%s7 + $0x30] sm:$0xff]
  %v8102 = vld [vmem:[%s7 + $0x38] sm:$0xff]
  %8104 = vset.pattern.permute.xlu0 0
  %8105 = vperm.xlu0 %8104, %v8095
  %v8106 = vpop.permute.xlu0 %8105
  %8109 = vset.pattern.permute.xlu0 0
  %8110 = vperm.xlu0 %8109, %v8096
  %v8111 = vpop.permute.xlu0 %8110
  %8114 = vset.pattern.permute.xlu0 0
  %8115 = vperm.xlu0 %8114, %v8097
  %v8116 = vpop.permute.xlu0 %8115
  %8119 = vset.pattern.permute.xlu0 0
  %8120 = vperm.xlu0 %8119, %v8098
  %v8121 = vpop.permute.xlu0 %8120
  %8124 = vset.pattern.permute.xlu0 0
  %8125 = vperm.xlu0 %8124, %v8099
  %v8126 = vpop.permute.xlu0 %8125
  %8129 = vset.pattern.permute.xlu0 0
  %8130 = vperm.xlu0 %8129, %v8100
  %v8131 = vpop.permute.xlu0 %8130
  %8134 = vset.pattern.permute.xlu0 0
  %8135 = vperm.xlu0 %8134, %v8101
  %v8136 = vpop.permute.xlu0 %8135
  %8139 = vset.pattern.permute.xlu0 0
  %8140 = vperm.xlu0 %8139, %v8102
  %v8141 = vpop.permute.xlu0 %8140
  %v8167 = vunpack.c.l.b16 %v7891
  %v8168 = vunpack.c.h.b16 %v7891
  %v8169 = vunpack.c.l.b16 %v7892
  %v8170 = vunpack.c.h.b16 %v7892
  %v8171 = vunpack.c.l.b16 %v7893
  %v8172 = vunpack.c.l.b16 %v7894
  %v8173 = vunpack.c.h.b16 %v7894
  %v8174 = vunpack.c.l.b16 %v7895
  %v8175 = vunpack.c.h.b16 %v7895
  %v8176 = vunpack.c.l.b16 %v7896
  %v8177 = vunpack.c.l.b16 %v7897
  %v8178 = vunpack.c.h.b16 %v7897
  %v8179 = vunpack.c.l.b16 %v7898
  %v8180 = vunpack.c.h.b16 %v7898
  %v8181 = vunpack.c.l.b16 %v7899
  %v8182 = vunpack.c.l.b16 %v7900
  %v8183 = vunpack.c.h.b16 %v7900
  %v8184 = vunpack.c.l.b16 %v7901
  %v8185 = vunpack.c.h.b16 %v7901
  %v8186 = vunpack.c.l.b16 %v7902
  %v8187 = vunpack.c.l.b16 %v7903
  %v8188 = vunpack.c.h.b16 %v7903
  %v8189 = vunpack.c.l.b16 %v7904
  %v8190 = vunpack.c.h.b16 %v7904
  %v8191 = vunpack.c.l.b16 %v7905
  %v8192 = vunpack.c.l.b16 %v7906
  %v8193 = vunpack.c.h.b16 %v7906
  %v8194 = vunpack.c.l.b16 %v7907
  %v8195 = vunpack.c.h.b16 %v7907
  %v8196 = vunpack.c.l.b16 %v7908
  %v8197 = vunpack.c.l.b16 %v7909
  %v8198 = vunpack.c.h.b16 %v7909
  %v8199 = vunpack.c.l.b16 %v7910
  %v8200 = vunpack.c.h.b16 %v7910
  %v8201 = vunpack.c.l.b16 %v7911
  %v8202 = vunpack.c.l.b16 %v7912
  %v8203 = vunpack.c.h.b16 %v7912
  %v8204 = vunpack.c.l.b16 %v7913
  %v8205 = vunpack.c.h.b16 %v7913
  %v8206 = vunpack.c.l.b16 %v7914
  %v8207 = vpack.c.b16 %v8172, %v8167
  %v8208 = vpack.c.b16 %v8173, %v8168
  %v8209 = vpack.c.b16 %v8174, %v8169
  %v8210 = vpack.c.b16 %v8175, %v8170
  %v8211 = vpack.c.b16 %v8176, %v8171
  %v8212 = vpack.c.b16 %v8182, %v8177
  %v8213 = vpack.c.b16 %v8183, %v8178
  %v8214 = vpack.c.b16 %v8184, %v8179
  %v8215 = vpack.c.b16 %v8185, %v8180
  %v8216 = vpack.c.b16 %v8186, %v8181
  %v8217 = vpack.c.b16 %v8192, %v8187
  %v8218 = vpack.c.b16 %v8193, %v8188
  %v8219 = vpack.c.b16 %v8194, %v8189
  %v8220 = vpack.c.b16 %v8195, %v8190
  %v8221 = vpack.c.b16 %v8196, %v8191
  %v8222 = vpack.c.b16 %v8202, %v8197
  %v8223 = vpack.c.b16 %v8203, %v8198
  %v8224 = vpack.c.b16 %v8204, %v8199
  %v8225 = vpack.c.b16 %v8205, %v8200
  %v8226 = vpack.c.b16 %v8206, %v8201
  %v8244 = vsel %vm4489, %v8211, 0
  %v8247 = vsel %vm4489, %v8216, 0
  %v8250 = vsel %vm4489, %v8221, 0
  %v8253 = vsel %vm4489, %v8226, 0
  %8255 = vmatprep.subr.bf16.mxu0 %v7916
  %8256 = vmatpush1.bf16.msra.mxu0 %v7915
  %8257 = vmatprep.subr.bf16.mxu0 %v7921
  %8258 = vmatpush1.bf16.msra.mxu0 %v7920
  %8259 = vmatprep.subr.bf16.mxu0 %v7926
  %8260 = vmatpush1.bf16.msra.mxu0 %v7925
  %8261 = vmatprep.subr.bf16.mxu0 %v7931
  %8262 = vmatpush1.bf16.msra.mxu0 %v7930
  %8263 = vmatprep.subr.bf16.mxu0 %v7936
  %8264 = vmatpush1.bf16.msra.mxu0 %v7935
  %8265 = vmatprep.subr.bf16.mxu0 %v7941
  %8266 = vmatpush1.bf16.msra.mxu0 %v7940
  %8267 = vmatprep.subr.bf16.mxu0 %v7946
  %8268 = vmatpush1.bf16.msra.mxu0 %v7945
  %8269 = vmatprep.subr.bf16.mxu0 %v7951
  %8270 = vmatpush1.bf16.msra.mxu0 %v7950
  %8271 = vmatprep.subr.bf16.mxu0 %v7956
  %8272 = vmatpush1.bf16.msra.mxu0 %v7955
  %8273 = vmatprep.subr.bf16.mxu0 %v7961
  %8274 = vmatpush1.bf16.msra.mxu0 %v7960
  %8275 = vmatprep.subr.bf16.mxu0 %v7966
  %8276 = vmatpush1.bf16.msra.mxu0 %v7965
  %8277 = vmatprep.subr.bf16.mxu0 %v7971
  %8278 = vmatpush1.bf16.msra.mxu0 %v7970
  %8279 = vmatprep.subr.bf16.mxu0 %v7976
  %8280 = vmatpush1.bf16.msra.mxu0 %v7975
  %8281 = vmatprep.subr.bf16.mxu0 %v7981
  %8282 = vmatpush1.bf16.msra.mxu0 %v7980
  %8283 = vmatprep.subr.bf16.mxu0 %v7986
  %8284 = vmatpush1.bf16.msra.mxu0 %v7985
  %8285 = vmatprep.subr.bf16.mxu0 %v7991
  %8286 = vmatpush1.bf16.msra.mxu0 %v7990
  %8287 = vmatprep.mubr.bf16.mxu0 %v8208
  %8288 = vmatmul.mubr.bf16.gmra.mrb[0].mxu0 %v8207
  %v8289 = vpop.f32.mrb[0].mxu0
  %v8290 = vadd.f32 %v8106, %v8289
  %v8291 = vpop.f32.mrb[0].mxu0
  %v8292 = vadd.f32 %v8106, %v8291
  %v8293 = vpop.f32.mrb[0].mxu0
  %v8294 = vadd.f32 %v8111, %v8293
  %v8295 = vpop.f32.mrb[0].mxu0
  %v8296 = vadd.f32 %v8111, %v8295
  %8297 = vmatprep.mubr.bf16.mxu0 %v8213
  %8298 = vmatmul.mubr.bf16.gmra.mrb[0].mxu0 %v8212
  %v8299 = vpop.f32.mrb[0].mxu0
  %v8300 = vadd.f32 %v8116, %v8299
  %v8301 = vpop.f32.mrb[0].mxu0
  %v8302 = vadd.f32 %v8116, %v8301
  %v8303 = vpop.f32.mrb[0].mxu0
  %v8304 = vadd.f32 %v8121, %v8303
  %v8305 = vpop.f32.mrb[0].mxu0
  %v8306 = vadd.f32 %v8121, %v8305
  %8307 = vmatprep.mubr.bf16.mxu0 %v8218
  %8308 = vmatmul.mubr.bf16.gmra.mrb[0].mxu0 %v8217
  %v8309 = vpop.f32.mrb[0].mxu0
  %v8310 = vadd.f32 %v8126, %v8309
  %v8311 = vpop.f32.mrb[0].mxu0
  %v8312 = vadd.f32 %v8126, %v8311
  %v8313 = vpop.f32.mrb[0].mxu0
  %v8314 = vadd.f32 %v8131, %v8313
  %v8315 = vpop.f32.mrb[0].mxu0
  %v8316 = vadd.f32 %v8131, %v8315
  %8317 = vmatprep.mubr.bf16.mxu0 %v8223
  %8318 = vmatmul.mubr.bf16.gmra.mrb[0].mxu0 %v8222
  %v8319 = vpop.f32.mrb[0].mxu0
  %v8320 = vadd.f32 %v8136, %v8319
  %v8321 = vpop.f32.mrb[0].mxu0
  %v8322 = vadd.f32 %v8136, %v8321
  %v8323 = vpop.f32.mrb[0].mxu0
  %v8324 = vadd.f32 %v8141, %v8323
  %v8325 = vpop.f32.mrb[0].mxu0
  %v8326 = vadd.f32 %v8141, %v8325
  %8327 = vdwg.mxu0
  %8328 = vmatprep.subr.bf16.mxu0 %v7996
  %8329 = vmatpush1.bf16.msra.mxu0 %v7995
  %8330 = vmatprep.subr.bf16.mxu0 %v8001
  %8331 = vmatpush1.bf16.msra.mxu0 %v8000
  %8332 = vmatprep.subr.bf16.mxu0 %v8006
  %8333 = vmatpush1.bf16.msra.mxu0 %v8005
  %8334 = vmatprep.subr.bf16.mxu0 %v8011
  %8335 = vmatpush1.bf16.msra.mxu0 %v8010
  %8336 = vmatprep.subr.bf16.mxu0 %v8016
  %8337 = vmatpush1.bf16.msra.mxu0 %v8015
  %8338 = vmatprep.subr.bf16.mxu0 %v8021
  %8339 = vmatpush1.bf16.msra.mxu0 %v8020
  %8340 = vmatprep.subr.bf16.mxu0 %v8026
  %8341 = vmatpush1.bf16.msra.mxu0 %v8025
  %8342 = vmatprep.subr.bf16.mxu0 %v8031
  %8343 = vmatpush1.bf16.msra.mxu0 %v8030
  %8344 = vmatprep.subr.bf16.mxu0 %v8036
  %8345 = vmatpush1.bf16.msra.mxu0 %v8035
  %8346 = vmatprep.subr.bf16.mxu0 %v8041
  %8347 = vmatpush1.bf16.msra.mxu0 %v8040
  %8348 = vmatprep.subr.bf16.mxu0 %v8046
  %8349 = vmatpush1.bf16.msra.mxu0 %v8045
  %8350 = vmatprep.subr.bf16.mxu0 %v8051
  %8351 = vmatpush1.bf16.msra.mxu0 %v8050
  %8352 = vmatprep.subr.bf16.mxu0 %v8056
  %8353 = vmatpush1.bf16.msra.mxu0 %v8055
  %8354 = vmatprep.subr.bf16.mxu0 %v8061
  %8355 = vmatpush1.bf16.msra.mxu0 %v8060
  %8356 = vmatprep.subr.bf16.mxu0 %v8066
  %8357 = vmatpush1.bf16.msra.mxu0 %v8065
  %8358 = vmatprep.subr.bf16.mxu0 %v8071
  %8359 = vmatpush1.bf16.msra.mxu0 %v8070
  %8360 = vmatprep.mubr.bf16.mxu0 %v8210
  %8361 = vmatmul.mubr.bf16.gmra.mrb[0].mxu0 %v8209
  %v8362 = vpop.f32.mrb[0].mxu0
  %v8363 = vadd.f32 %v8290, %v8362
  %v8364 = vpop.f32.mrb[0].mxu0
  %v8365 = vadd.f32 %v8292, %v8364
  %v8366 = vpop.f32.mrb[0].mxu0
  %v8367 = vadd.f32 %v8294, %v8366
  %v8368 = vpop.f32.mrb[0].mxu0
  %v8369 = vadd.f32 %v8296, %v8368
  %8370 = vmatprep.mubr.bf16.mxu0 %v8215
  %8371 = vmatmul.mubr.bf16.gmra.mrb[0].mxu0 %v8214
  %v8372 = vpop.f32.mrb[0].mxu0
  %v8373 = vadd.f32 %v8300, %v8372
  %v8374 = vpop.f32.mrb[0].mxu0
  %v8375 = vadd.f32 %v8302, %v8374
  %v8376 = vpop.f32.mrb[0].mxu0
  %v8377 = vadd.f32 %v8304, %v8376
  %v8378 = vpop.f32.mrb[0].mxu0
  %v8379 = vadd.f32 %v8306, %v8378
  %8380 = vmatprep.mubr.bf16.mxu0 %v8220
  %8381 = vmatmul.mubr.bf16.gmra.mrb[0].mxu0 %v8219
  %v8382 = vpop.f32.mrb[0].mxu0
  %v8383 = vadd.f32 %v8310, %v8382
  %v8384 = vpop.f32.mrb[0].mxu0
  %v8385 = vadd.f32 %v8312, %v8384
  %v8386 = vpop.f32.mrb[0].mxu0
  %v8387 = vadd.f32 %v8314, %v8386
  %v8388 = vpop.f32.mrb[0].mxu0
  %v8389 = vadd.f32 %v8316, %v8388
  %8390 = vmatprep.mubr.bf16.mxu0 %v8225
  %8391 = vmatmul.mubr.bf16.gmra.mrb[0].mxu0 %v8224
  %v8392 = vpop.f32.mrb[0].mxu0
  %v8393 = vadd.f32 %v8320, %v8392
  %v8394 = vpop.f32.mrb[0].mxu0
  %v8395 = vadd.f32 %v8322, %v8394
  %v8396 = vpop.f32.mrb[0].mxu0
  %v8397 = vadd.f32 %v8324, %v8396
  %v8398 = vpop.f32.mrb[0].mxu0
  %v8399 = vadd.f32 %v8326, %v8398
  %8400 = vdwg.mxu0
  %8401 = vmatprep.subr.bf16.mxu0 %v8076
  %8402 = vmatpush1.bf16.msra.mxu0 %v8075
  %8403 = vmatprep.subr.bf16.mxu0 %v8081
  %8404 = vmatpush1.bf16.msra.mxu0 %v8080
  %8405 = vmatprep.subr.bf16.mxu0 %v8086
  %8406 = vmatpush1.bf16.msra.mxu0 %v8085
  %8407 = vmatprep.subr.bf16.mxu0 %v8091
  %8408 = vmatpush1.bf16.msra.mxu0 %v8090
  %8409 = vmatprep.subr.bf16.mxu0 0
  %8410 = vmatpush1.bf16.msra.mxu0 0
  %8411 = vmatprep.subr.bf16.mxu0 0
  %8412 = vmatpush1.bf16.msra.mxu0 0
  %8413 = vmatprep.subr.bf16.mxu0 0
  %8414 = vmatpush1.bf16.msra.mxu0 0
  %8415 = vmatprep.subr.bf16.mxu0 0
  %8416 = vmatpush1.bf16.msra.mxu0 0
  %8417 = vmatprep.subr.bf16.mxu0 0
  %8418 = vmatpush1.bf16.msra.mxu0 0
  %8419 = vmatprep.subr.bf16.mxu0 0
  %8420 = vmatpush1.bf16.msra.mxu0 0
  %8421 = vmatprep.subr.bf16.mxu0 0
  %8422 = vmatpush1.bf16.msra.mxu0 0
  %8423 = vmatprep.subr.bf16.mxu0 0
  %8424 = vmatpush1.bf16.msra.mxu0 0
  %8425 = vmatprep.subr.bf16.mxu0 0
  %8426 = vmatpush1.bf16.msra.mxu0 0
  %8427 = vmatprep.subr.bf16.mxu0 0
  %8428 = vmatpush1.bf16.msra.mxu0 0
  %8429 = vmatprep.subr.bf16.mxu0 0
  %8430 = vmatpush1.bf16.msra.mxu0 0
  %8431 = vmatprep.subr.bf16.mxu0 0
  %8432 = vmatpush1.bf16.msra.mxu0 0
  %8433 = vmatprep.mubr.bf16.mxu0 0
  %8434 = vmatmul.mubr.bf16.gmra.mrb[0].mxu0 %v8244
  %v8435 = vpop.f32.mrb[0].mxu0
  %v8436 = vadd.f32 %v8363, %v8435
  %v8437 = vpop.f32.mrb[0].mxu0
  %v8438 = vadd.f32 %v8365, %v8437
  %v8439 = vpop.f32.mrb[0].mxu0
  %v8440 = vadd.f32 %v8367, %v8439
  %v8441 = vpop.f32.mrb[0].mxu0
  %v8442 = vadd.f32 %v8369, %v8441
  %8443 = vmatprep.mubr.bf16.mxu0 0
  %8444 = vmatmul.mubr.bf16.gmra.mrb[0].mxu0 %v8247
  %v8445 = vpop.f32.mrb[0].mxu0
  %v8446 = vadd.f32 %v8373, %v8445
  %v8447 = vpop.f32.mrb[0].mxu0
  %v8448 = vadd.f32 %v8375, %v8447
  %v8449 = vpop.f32.mrb[0].mxu0
  %v8450 = vadd.f32 %v8377, %v8449
  %v8451 = vpop.f32.mrb[0].mxu0
  %v8452 = vadd.f32 %v8379, %v8451
  %8453 = vmatprep.mubr.bf16.mxu0 0
  %8454 = vmatmul.mubr.bf16.gmra.mrb[0].mxu0 %v8250
  %v8455 = vpop.f32.mrb[0].mxu0
  %v8456 = vadd.f32 %v8383, %v8455
  %v8457 = vpop.f32.mrb[0].mxu0
  %v8458 = vadd.f32 %v8385, %v8457
  %v8459 = vpop.f32.mrb[0].mxu0
  %v8460 = vadd.f32 %v8387, %v8459
  %v8461 = vpop.f32.mrb[0].mxu0
  %v8462 = vadd.f32 %v8389, %v8461
  %8463 = vmatprep.mubr.bf16.mxu0 0
  %8464 = vmatmul.mubr.bf16.gmra.mrb[0].mxu0 %v8253
  %v8465 = vpop.f32.mrb[0].mxu0
  %v8466 = vadd.f32 %v8393, %v8465
  %v8467 = vpop.f32.mrb[0].mxu0
  %v8468 = vadd.f32 %v8395, %v8467
  %v8469 = vpop.f32.mrb[0].mxu0
  %v8470 = vadd.f32 %v8397, %v8469
  %v8471 = vpop.f32.mrb[0].mxu0
  %v8472 = vadd.f32 %v8399, %v8471
  %8473 = vdwg.mxu0
  %8474 = vmatprep.subr.bf16.mxu0 %v7918
  %8475 = vmatpush1.bf16.msra.mxu0 %v7917
  %8476 = vmatprep.subr.bf16.mxu0 %v7923
  %8477 = vmatpush1.bf16.msra.mxu0 %v7922
  %8478 = vmatprep.subr.bf16.mxu0 %v7928
  %8479 = vmatpush1.bf16.msra.mxu0 %v7927
  %8480 = vmatprep.subr.bf16.mxu0 %v7933
  %8481 = vmatpush1.bf16.msra.mxu0 %v7932
  %8482 = vmatprep.subr.bf16.mxu0 %v7938
  %8483 = vmatpush1.bf16.msra.mxu0 %v7937
  %8484 = vmatprep.subr.bf16.mxu0 %v7943
  %8485 = vmatpush1.bf16.msra.mxu0 %v7942
  %8486 = vmatprep.subr.bf16.mxu0 %v7948
  %8487 = vmatpush1.bf16.msra.mxu0 %v7947
  %8488 = vmatprep.subr.bf16.mxu0 %v7953
  %8489 = vmatpush1.bf16.msra.mxu0 %v7952
  %8490 = vmatprep.subr.bf16.mxu0 %v7958
  %8491 = vmatpush1.bf16.msra.mxu0 %v7957
  %8492 = vmatprep.subr.bf16.mxu0 %v7963
  %8493 = vmatpush1.bf16.msra.mxu0 %v7962
  %8494 = vmatprep.subr.bf16.mxu0 %v7968
  %8495 = vmatpush1.bf16.msra.mxu0 %v7967
  %8496 = vmatprep.subr.bf16.mxu0 %v7973
  %8497 = vmatpush1.bf16.msra.mxu0 %v7972
  %8498 = vmatprep.subr.bf16.mxu0 %v7978
  %8499 = vmatpush1.bf16.msra.mxu0 %v7977
  %8500 = vmatprep.subr.bf16.mxu0 %v7983
  %8501 = vmatpush1.bf16.msra.mxu0 %v7982
  %8502 = vmatprep.subr.bf16.mxu0 %v7988
  %8503 = vmatpush1.bf16.msra.mxu0 %v7987
  %8504 = vmatprep.subr.bf16.mxu0 %v7993
  %8505 = vmatpush1.bf16.msra.mxu0 %v7992
  %8506 = vmatprep.mubr.bf16.mxu0 %v8208
  %8507 = vmatmul.mubr.bf16.gmra.mrb[0].mxu0 %v8207
  %v8508 = vpop.f32.mrb[0].mxu0
  %v8509 = vadd.f32 %v8106, %v8508
  %v8510 = vpop.f32.mrb[0].mxu0
  %v8511 = vadd.f32 %v8106, %v8510
  %v8512 = vpop.f32.mrb[0].mxu0
  %v8513 = vadd.f32 %v8111, %v8512
  %v8514 = vpop.f32.mrb[0].mxu0
  %v8515 = vadd.f32 %v8111, %v8514
  %8516 = vmatprep.mubr.bf16.mxu0 %v8213
  %8517 = vmatmul.mubr.bf16.gmra.mrb[0].mxu0 %v8212
  %v8518 = vpop.f32.mrb[0].mxu0
  %v8519 = vadd.f32 %v8116, %v8518
  %v8520 = vpop.f32.mrb[0].mxu0
  %v8521 = vadd.f32 %v8116, %v8520
  %v8522 = vpop.f32.mrb[0].mxu0
  %v8523 = vadd.f32 %v8121, %v8522
  %v8524 = vpop.f32.mrb[0].mxu0
  %v8525 = vadd.f32 %v8121, %v8524
  %8526 = vmatprep.mubr.bf16.mxu0 %v8218
  %8527 = vmatmul.mubr.bf16.gmra.mrb[0].mxu0 %v8217
  %v8528 = vpop.f32.mrb[0].mxu0
  %v8529 = vadd.f32 %v8126, %v8528
  %v8530 = vpop.f32.mrb[0].mxu0
  %v8531 = vadd.f32 %v8126, %v8530
  %v8532 = vpop.f32.mrb[0].mxu0
  %v8533 = vadd.f32 %v8131, %v8532
  %v8534 = vpop.f32.mrb[0].mxu0
  %v8535 = vadd.f32 %v8131, %v8534
  %8536 = vmatprep.mubr.bf16.mxu0 %v8223
  %8537 = vmatmul.mubr.bf16.gmra.mrb[0].mxu0 %v8222
  %v8538 = vpop.f32.mrb[0].mxu0
  %v8539 = vadd.f32 %v8136, %v8538
  %v8540 = vpop.f32.mrb[0].mxu0
  %v8541 = vadd.f32 %v8136, %v8540
  %v8542 = vpop.f32.mrb[0].mxu0
  %v8543 = vadd.f32 %v8141, %v8542
  %v8544 = vpop.f32.mrb[0].mxu0
  %v8545 = vadd.f32 %v8141, %v8544
  %8546 = vdwg.mxu0
  %8547 = vmatprep.subr.bf16.mxu0 %v7998
  %8548 = vmatpush1.bf16.msra.mxu0 %v7997
  %8549 = vmatprep.subr.bf16.mxu0 %v8003
  %8550 = vmatpush1.bf16.msra.mxu0 %v8002
  %8551 = vmatprep.subr.bf16.mxu0 %v8008
  %8552 = vmatpush1.bf16.msra.mxu0 %v8007
  %8553 = vmatprep.subr.bf16.mxu0 %v8013
  %8554 = vmatpush1.bf16.msra.mxu0 %v8012
  %8555 = vmatprep.subr.bf16.mxu0 %v8018
  %8556 = vmatpush1.bf16.msra.mxu0 %v8017
  %8557 = vmatprep.subr.bf16.mxu0 %v8023
  %8558 = vmatpush1.bf16.msra.mxu0 %v8022
  %8559 = vmatprep.subr.bf16.mxu0 %v8028
  %8560 = vmatpush1.bf16.msra.mxu0 %v8027
  %8561 = vmatprep.subr.bf16.mxu0 %v8033
  %8562 = vmatpush1.bf16.msra.mxu0 %v8032
  %8563 = vmatprep.subr.bf16.mxu0 %v8038
  %8564 = vmatpush1.bf16.msra.mxu0 %v8037
  %8565 = vmatprep.subr.bf16.mxu0 %v8043
  %8566 = vmatpush1.bf16.msra.mxu0 %v8042
  %8567 = vmatprep.subr.bf16.mxu0 %v8048
  %8568 = vmatpush1.bf16.msra.mxu0 %v8047
  %8569 = vmatprep.subr.bf16.mxu0 %v8053
  %8570 = vmatpush1.bf16.msra.mxu0 %v8052
  %8571 = vmatprep.subr.bf16.mxu0 %v8058
  %8572 = vmatpush1.bf16.msra.mxu0 %v8057
  %8573 = vmatprep.subr.bf16.mxu0 %v8063
  %8574 = vmatpush1.bf16.msra.mxu0 %v8062
  %8575 = vmatprep.subr.bf16.mxu0 %v8068
  %8576 = vmatpush1.bf16.msra.mxu0 %v8067
  %8577 = vmatprep.subr.bf16.mxu0 %v8073
  %8578 = vmatpush1.bf16.msra.mxu0 %v8072
  %8579 = vmatprep.mubr.bf16.mxu0 %v8210
  %8580 = vmatmul.mubr.bf16.gmra.mrb[0].mxu0 %v8209
  %v8581 = vpop.f32.mrb[0].mxu0
  %v8582 = vadd.f32 %v8509, %v8581
  %v8583 = vpop.f32.mrb[0].mxu0
  %v8584 = vadd.f32 %v8511, %v8583
  %v8585 = vpop.f32.mrb[0].mxu0
  %v8586 = vadd.f32 %v8513, %v8585
  %v8587 = vpop.f32.mrb[0].mxu0
  %v8588 = vadd.f32 %v8515, %v8587
  %8589 = vmatprep.mubr.bf16.mxu0 %v8215
  %8590 = vmatmul.mubr.bf16.gmra.mrb[0].mxu0 %v8214
  %v8591 = vpop.f32.mrb[0].mxu0
  %v8592 = vadd.f32 %v8519, %v8591
  %v8593 = vpop.f32.mrb[0].mxu0
  %v8594 = vadd.f32 %v8521, %v8593
  %v8595 = vpop.f32.mrb[0].mxu0
  %v8596 = vadd.f32 %v8523, %v8595
  %v8597 = vpop.f32.mrb[0].mxu0
  %v8598 = vadd.f32 %v8525, %v8597
  %8599 = vmatprep.mubr.bf16.mxu0 %v8220
  %8600 = vmatmul.mubr.bf16.gmra.mrb[0].mxu0 %v8219
  %v8601 = vpop.f32.mrb[0].mxu0
  %v8602 = vadd.f32 %v8529, %v8601
  %v8603 = vpop.f32.mrb[0].mxu0
  %v8604 = vadd.f32 %v8531, %v8603
  %v8605 = vpop.f32.mrb[0].mxu0
  %v8606 = vadd.f32 %v8533, %v8605
  %v8607 = vpop.f32.mrb[0].mxu0
  %v8608 = vadd.f32 %v8535, %v8607
  %8609 = vmatprep.mubr.bf16.mxu0 %v8225
  %8610 = vmatmul.mubr.bf16.gmra.mrb[0].mxu0 %v8224
  %v8611 = vpop.f32.mrb[0].mxu0
  %v8612 = vadd.f32 %v8539, %v8611
  %v8613 = vpop.f32.mrb[0].mxu0
  %v8614 = vadd.f32 %v8541, %v8613
  %v8615 = vpop.f32.mrb[0].mxu0
  %v8616 = vadd.f32 %v8543, %v8615
  %v8617 = vpop.f32.mrb[0].mxu0
  %v8618 = vadd.f32 %v8545, %v8617
  %8619 = vdwg.mxu0
  %8620 = vmatprep.subr.bf16.mxu0 %v8078
  %8621 = vmatpush1.bf16.msra.mxu0 %v8077
  %8622 = vmatprep.subr.bf16.mxu0 %v8083
  %8623 = vmatpush1.bf16.msra.mxu0 %v8082
  %8624 = vmatprep.subr.bf16.mxu0 %v8088
  %8625 = vmatpush1.bf16.msra.mxu0 %v8087
  %8626 = vmatprep.subr.bf16.mxu0 %v8093
  %8627 = vmatpush1.bf16.msra.mxu0 %v8092
  %8628 = vmatprep.subr.bf16.mxu0 0
  %8629 = vmatpush1.bf16.msra.mxu0 0
  %8630 = vmatprep.subr.bf16.mxu0 0
  %8631 = vmatpush1.bf16.msra.mxu0 0
  %8632 = vmatprep.subr.bf16.mxu0 0
  %8633 = vmatpush1.bf16.msra.mxu0 0
  %8634 = vmatprep.subr.bf16.mxu0 0
  %8635 = vmatpush1.bf16.msra.mxu0 0
  %8636 = vmatprep.subr.bf16.mxu0 0
  %8637 = vmatpush1.bf16.msra.mxu0 0
  %8638 = vmatprep.subr.bf16.mxu0 0
  %8639 = vmatpush1.bf16.msra.mxu0 0
  %8640 = vmatprep.subr.bf16.mxu0 0
  %8641 = vmatpush1.bf16.msra.mxu0 0
  %8642 = vmatprep.subr.bf16.mxu0 0
  %8643 = vmatpush1.bf16.msra.mxu0 0
  %8644 = vmatprep.subr.bf16.mxu0 0
  %8645 = vmatpush1.bf16.msra.mxu0 0
  %8646 = vmatprep.subr.bf16.mxu0 0
  %8647 = vmatpush1.bf16.msra.mxu0 0
  %8648 = vmatprep.subr.bf16.mxu0 0
  %8649 = vmatpush1.bf16.msra.mxu0 0
  %8650 = vmatprep.subr.bf16.mxu0 0
  %8651 = vmatpush1.bf16.msra.mxu0 0
  %8652 = vmatprep.mubr.bf16.mxu0 0
  %8653 = vmatmul.mubr.bf16.gmra.mrb[0].mxu0 %v8244
  %v8654 = vpop.f32.mrb[0].mxu0
  %v8655 = vadd.f32 %v8582, %v8654
  %v8656 = vpop.f32.mrb[0].mxu0
  %v8657 = vadd.f32 %v8584, %v8656
  %v8658 = vpop.f32.mrb[0].mxu0
  %v8659 = vadd.f32 %v8586, %v8658
  %v8660 = vpop.f32.mrb[0].mxu0
  %v8661 = vadd.f32 %v8588, %v8660
  %8662 = vmatprep.mubr.bf16.mxu0 0
  %8663 = vmatmul.mubr.bf16.gmra.mrb[0].mxu0 %v8247
  %v8664 = vpop.f32.mrb[0].mxu0
  %v8665 = vadd.f32 %v8592, %v8664
  %v8666 = vpop.f32.mrb[0].mxu0
  %v8667 = vadd.f32 %v8594, %v8666
  %v8668 = vpop.f32.mrb[0].mxu0
  %v8669 = vadd.f32 %v8596, %v8668
  %v8670 = vpop.f32.mrb[0].mxu0
  %v8671 = vadd.f32 %v8598, %v8670
  %8672 = vmatprep.mubr.bf16.mxu0 0
  %8673 = vmatmul.mubr.bf16.gmra.mrb[0].mxu0 %v8250
  %v8674 = vpop.f32.mrb[0].mxu0
  %v8675 = vadd.f32 %v8602, %v8674
  %v8676 = vpop.f32.mrb[0].mxu0
  %v8677 = vadd.f32 %v8604, %v8676
  %v8678 = vpop.f32.mrb[0].mxu0
  %v8679 = vadd.f32 %v8606, %v8678
  %v8680 = vpop.f32.mrb[0].mxu0
  %v8681 = vadd.f32 %v8608, %v8680
  %8682 = vmatprep.mubr.bf16.mxu0 0
  %8683 = vmatmul.mubr.bf16.gmra.mrb[0].mxu0 %v8253
  %v8684 = vpop.f32.mrb[0].mxu0
  %v8685 = vadd.f32 %v8612, %v8684
  %v8686 = vpop.f32.mrb[0].mxu0
  %v8687 = vadd.f32 %v8614, %v8686
  %v8688 = vpop.f32.mrb[0].mxu0
  %v8689 = vadd.f32 %v8616, %v8688
  %v8690 = vpop.f32.mrb[0].mxu0
  %v8691 = vadd.f32 %v8618, %v8690
  %8692 = vdwg.mxu0
  %8693 = vmatprep.subr.bf16.mxu0 0
  %8694 = vmatpush1.bf16.msra.mxu0 %v7919
  %8695 = vmatprep.subr.bf16.mxu0 0
  %8696 = vmatpush1.bf16.msra.mxu0 %v7924
  %8697 = vmatprep.subr.bf16.mxu0 0
  %8698 = vmatpush1.bf16.msra.mxu0 %v7929
  %8699 = vmatprep.subr.bf16.mxu0 0
  %8700 = vmatpush1.bf16.msra.mxu0 %v7934
  %8701 = vmatprep.subr.bf16.mxu0 0
  %8702 = vmatpush1.bf16.msra.mxu0 %v7939
  %8703 = vmatprep.subr.bf16.mxu0 0
  %8704 = vmatpush1.bf16.msra.mxu0 %v7944
  %8705 = vmatprep.subr.bf16.mxu0 0
  %8706 = vmatpush1.bf16.msra.mxu0 %v7949
  %8707 = vmatprep.subr.bf16.mxu0 0
  %8708 = vmatpush1.bf16.msra.mxu0 %v7954
  %8709 = vmatprep.subr.bf16.mxu0 0
  %8710 = vmatpush1.bf16.msra.mxu0 %v7959
  %8711 = vmatprep.subr.bf16.mxu0 0
  %8712 = vmatpush1.bf16.msra.mxu0 %v7964
  %8713 = vmatprep.subr.bf16.mxu0 0
  %8714 = vmatpush1.bf16.msra.mxu0 %v7969
  %8715 = vmatprep.subr.bf16.mxu0 0
  %8716 = vmatpush1.bf16.msra.mxu0 %v7974
  %8717 = vmatprep.subr.bf16.mxu0 0
  %8718 = vmatpush1.bf16.msra.mxu0 %v7979
  %8719 = vmatprep.subr.bf16.mxu0 0
  %8720 = vmatpush1.bf16.msra.mxu0 %v7984
  %8721 = vmatprep.subr.bf16.mxu0 0
  %8722 = vmatpush1.bf16.msra.mxu0 %v7989
  %8723 = vmatprep.subr.bf16.mxu0 0
  %8724 = vmatpush1.bf16.msra.mxu0 %v7994
  %8725 = vmatprep.mubr.bf16.mxu0 %v8208
  %8726 = vmatmul.mubr.bf16.gmra.mrb[0].mxu0 %v8207
  %v8727 = vpop.f32.mrb[0].mxu0
  %v8728 = vadd.f32 %v8106, %v8727
  %v8729 = vpop.f32.mrb[0].mxu0
  %v8730 = vpop.f32.mrb[0].mxu0
  %v8731 = vadd.f32 %v8111, %v8730
  %v8732 = vpop.f32.mrb[0].mxu0
  %8733 = vmatprep.mubr.bf16.mxu0 %v8213
  %8734 = vmatmul.mubr.bf16.gmra.mrb[0].mxu0 %v8212
  %v8735 = vpop.f32.mrb[0].mxu0
  %v8736 = vadd.f32 %v8116, %v8735
  %v8737 = vpop.f32.mrb[0].mxu0
  %v8738 = vpop.f32.mrb[0].mxu0
  %v8739 = vadd.f32 %v8121, %v8738
  %v8740 = vpop.f32.mrb[0].mxu0
  %8741 = vmatprep.mubr.bf16.mxu0 %v8218
  %8742 = vmatmul.mubr.bf16.gmra.mrb[0].mxu0 %v8217
  %v8743 = vpop.f32.mrb[0].mxu0
  %v8744 = vadd.f32 %v8126, %v8743
  %v8745 = vpop.f32.mrb[0].mxu0
  %v8746 = vpop.f32.mrb[0].mxu0
  %v8747 = vadd.f32 %v8131, %v8746
  %v8748 = vpop.f32.mrb[0].mxu0
  %8749 = vmatprep.mubr.bf16.mxu0 %v8223
  %8750 = vmatmul.mubr.bf16.gmra.mrb[0].mxu0 %v8222
  %v8751 = vpop.f32.mrb[0].mxu0
  %v8752 = vadd.f32 %v8136, %v8751
  %v8753 = vpop.f32.mrb[0].mxu0
  %v8754 = vpop.f32.mrb[0].mxu0
  %v8755 = vadd.f32 %v8141, %v8754
  %v8756 = vpop.f32.mrb[0].mxu0
  %8757 = vdwg.mxu0
  %8758 = vmatprep.subr.bf16.mxu0 0
  %8759 = vmatpush1.bf16.msra.mxu0 %v7999
  %8760 = vmatprep.subr.bf16.mxu0 0
  %8761 = vmatpush1.bf16.msra.mxu0 %v8004
  %8762 = vmatprep.subr.bf16.mxu0 0
  %8763 = vmatpush1.bf16.msra.mxu0 %v8009
  %8764 = vmatprep.subr.bf16.mxu0 0
  %8765 = vmatpush1.bf16.msra.mxu0 %v8014
  %8766 = vmatprep.subr.bf16.mxu0 0
  %8767 = vmatpush1.bf16.msra.mxu0 %v8019
  %8768 = vmatprep.subr.bf16.mxu0 0
  %8769 = vmatpush1.bf16.msra.mxu0 %v8024
  %8770 = vmatprep.subr.bf16.mxu0 0
  %8771 = vmatpush1.bf16.msra.mxu0 %v8029
  %8772 = vmatprep.subr.bf16.mxu0 0
  %8773 = vmatpush1.bf16.msra.mxu0 %v8034
  %8774 = vmatprep.subr.bf16.mxu0 0
  %8775 = vmatpush1.bf16.msra.mxu0 %v8039
  %8776 = vmatprep.subr.bf16.mxu0 0
  %8777 = vmatpush1.bf16.msra.mxu0 %v8044
  %8778 = vmatprep.subr.bf16.mxu0 0
  %8779 = vmatpush1.bf16.msra.mxu0 %v8049
  %8780 = vmatprep.subr.bf16.mxu0 0
  %8781 = vmatpush1.bf16.msra.mxu0 %v8054
  %8782 = vmatprep.subr.bf16.mxu0 0
  %8783 = vmatpush1.bf16.msra.mxu0 %v8059
  %8784 = vmatprep.subr.bf16.mxu0 0
  %8785 = vmatpush1.bf16.msra.mxu0 %v8064
  %8786 = vmatprep.subr.bf16.mxu0 0
  %8787 = vmatpush1.bf16.msra.mxu0 %v8069
  %8788 = vmatprep.subr.bf16.mxu0 0
  %8789 = vmatpush1.bf16.msra.mxu0 %v8074
  %8790 = vmatprep.mubr.bf16.mxu0 %v8210
  %8791 = vmatmul.mubr.bf16.gmra.mrb[0].mxu0 %v8209
  %v8792 = vpop.f32.mrb[0].mxu0
  %v8793 = vadd.f32 %v8728, %v8792
  %v8794 = vpop.f32.mrb[0].mxu0
  %v8795 = vpop.f32.mrb[0].mxu0
  %v8796 = vadd.f32 %v8731, %v8795
  %v8797 = vpop.f32.mrb[0].mxu0
  %8798 = vmatprep.mubr.bf16.mxu0 %v8215
  %8799 = vmatmul.mubr.bf16.gmra.mrb[0].mxu0 %v8214
  %v8800 = vpop.f32.mrb[0].mxu0
  %v8801 = vadd.f32 %v8736, %v8800
  %v8802 = vpop.f32.mrb[0].mxu0
  %v8803 = vpop.f32.mrb[0].mxu0
  %v8804 = vadd.f32 %v8739, %v8803
  %v8805 = vpop.f32.mrb[0].mxu0
  %8806 = vmatprep.mubr.bf16.mxu0 %v8220
  %8807 = vmatmul.mubr.bf16.gmra.mrb[0].mxu0 %v8219
  %v8808 = vpop.f32.mrb[0].mxu0
  %v8809 = vadd.f32 %v8744, %v8808
  %v8810 = vpop.f32.mrb[0].mxu0
  %v8811 = vpop.f32.mrb[0].mxu0
  %v8812 = vadd.f32 %v8747, %v8811
  %v8813 = vpop.f32.mrb[0].mxu0
  %8814 = vmatprep.mubr.bf16.mxu0 %v8225
  %8815 = vmatmul.mubr.bf16.gmra.mrb[0].mxu0 %v8224
  %v8816 = vpop.f32.mrb[0].mxu0
  %v8817 = vadd.f32 %v8752, %v8816
  %v8818 = vpop.f32.mrb[0].mxu0
  %v8819 = vpop.f32.mrb[0].mxu0
  %v8820 = vadd.f32 %v8755, %v8819
  %v8821 = vpop.f32.mrb[0].mxu0
  %8822 = vdwg.mxu0
  %8823 = vmatprep.subr.bf16.mxu0 0
  %8824 = vmatpush1.bf16.msra.mxu0 %v8079
  %8825 = vmatprep.subr.bf16.mxu0 0
  %8826 = vmatpush1.bf16.msra.mxu0 %v8084
  %8827 = vmatprep.subr.bf16.mxu0 0
  %8828 = vmatpush1.bf16.msra.mxu0 %v8089
  %8829 = vmatprep.subr.bf16.mxu0 0
  %8830 = vmatpush1.bf16.msra.mxu0 %v8094
  %8831 = vmatprep.subr.bf16.mxu0 0
  %8832 = vmatpush1.bf16.msra.mxu0 0
  %8833 = vmatprep.subr.bf16.mxu0 0
  %8834 = vmatpush1.bf16.msra.mxu0 0
  %8835 = vmatprep.subr.bf16.mxu0 0
  %8836 = vmatpush1.bf16.msra.mxu0 0
  %8837 = vmatprep.subr.bf16.mxu0 0
  %8838 = vmatpush1.bf16.msra.mxu0 0
  %8839 = vmatprep.subr.bf16.mxu0 0
  %8840 = vmatpush1.bf16.msra.mxu0 0
  %8841 = vmatprep.subr.bf16.mxu0 0
  %8842 = vmatpush1.bf16.msra.mxu0 0
  %8843 = vmatprep.subr.bf16.mxu0 0
  %8844 = vmatpush1.bf16.msra.mxu0 0
  %8845 = vmatprep.subr.bf16.mxu0 0
  %8846 = vmatpush1.bf16.msra.mxu0 0
  %8847 = vmatprep.subr.bf16.mxu0 0
  %8848 = vmatpush1.bf16.msra.mxu0 0
  %8849 = vmatprep.subr.bf16.mxu0 0
  %8850 = vmatpush1.bf16.msra.mxu0 0
  %8851 = vmatprep.subr.bf16.mxu0 0
  %8852 = vmatpush1.bf16.msra.mxu0 0
  %8853 = vmatprep.subr.bf16.mxu0 0
  %8854 = vmatpush1.bf16.msra.mxu0 0
  %8855 = vmatprep.mubr.bf16.mxu0 0
  %8856 = vmatmul.mubr.bf16.gmra.mrb[0].mxu0 %v8244
  %v8857 = vpop.f32.mrb[0].mxu0
  %v8858 = vadd.f32 %v8793, %v8857
  %v8859 = vpop.f32.mrb[0].mxu0
  %v8860 = vpop.f32.mrb[0].mxu0
  %v8861 = vadd.f32 %v8796, %v8860
  %v8862 = vpop.f32.mrb[0].mxu0
  %8863 = vmatprep.mubr.bf16.mxu0 0
  %8864 = vmatmul.mubr.bf16.gmra.mrb[0].mxu0 %v8247
  %v8865 = vpop.f32.mrb[0].mxu0
  %v8866 = vadd.f32 %v8801, %v8865
  %v8867 = vpop.f32.mrb[0].mxu0
  %v8868 = vpop.f32.mrb[0].mxu0
  %v8869 = vadd.f32 %v8804, %v8868
  %v8870 = vpop.f32.mrb[0].mxu0
  %8871 = vmatprep.mubr.bf16.mxu0 0
  %8872 = vmatmul.mubr.bf16.gmra.mrb[0].mxu0 %v8250
  %v8873 = vpop.f32.mrb[0].mxu0
  %v8874 = vadd.f32 %v8809, %v8873
  %v8875 = vpop.f32.mrb[0].mxu0
  %v8876 = vpop.f32.mrb[0].mxu0
  %v8877 = vadd.f32 %v8812, %v8876
  %v8878 = vpop.f32.mrb[0].mxu0
  %8879 = vmatprep.mubr.bf16.mxu0 0
  %8880 = vmatmul.mubr.bf16.gmra.mrb[0].mxu0 %v8253
  %v8881 = vpop.f32.mrb[0].mxu0
  %v8882 = vadd.f32 %v8817, %v8881
  %v8883 = vpop.f32.mrb[0].mxu0
  %v8884 = vpop.f32.mrb[0].mxu0
  %v8885 = vadd.f32 %v8820, %v8884
  %v8886 = vpop.f32.mrb[0].mxu0
  %8887 = vdwg.mxu0
  %v8888 = vmax.f32 %v8436, 0.0
  %v8889 = vmax.f32 %v8438, 0.0
  %v8890 = vmax.f32 %v8655, 0.0
  %v8891 = vmax.f32 %v8657, 0.0
  %v8892 = vmax.f32 %v8858, 0.0
  %v8893 = vmax.f32 %v8440, 0.0
  %v8894 = vmax.f32 %v8442, 0.0
  %v8895 = vmax.f32 %v8659, 0.0
  %v8896 = vmax.f32 %v8661, 0.0
  %v8897 = vmax.f32 %v8861, 0.0
  %v8898 = vmax.f32 %v8446, 0.0
  %v8899 = vmax.f32 %v8448, 0.0
  %v8900 = vmax.f32 %v8665, 0.0
  %v8901 = vmax.f32 %v8667, 0.0
  %v8902 = vmax.f32 %v8866, 0.0
  %v8903 = vmax.f32 %v8450, 0.0
  %v8904 = vmax.f32 %v8452, 0.0
  %v8905 = vmax.f32 %v8669, 0.0
  %v8906 = vmax.f32 %v8671, 0.0
  %v8907 = vmax.f32 %v8869, 0.0
  %v8908 = vmax.f32 %v8456, 0.0
  %v8909 = vmax.f32 %v8458, 0.0
  %v8910 = vmax.f32 %v8675, 0.0
  %v8911 = vmax.f32 %v8677, 0.0
  %v8912 = vmax.f32 %v8874, 0.0
  %v8913 = vmax.f32 %v8460, 0.0
  %v8914 = vmax.f32 %v8462, 0.0
  %v8915 = vmax.f32 %v8679, 0.0
  %v8916 = vmax.f32 %v8681, 0.0
  %v8917 = vmax.f32 %v8877, 0.0
  %v8918 = vmax.f32 %v8466, 0.0
  %v8919 = vmax.f32 %v8468, 0.0
  %v8920 = vmax.f32 %v8685, 0.0
  %v8921 = vmax.f32 %v8687, 0.0
  %v8922 = vmax.f32 %v8882, 0.0
  %v8923 = vmax.f32 %v8470, 0.0
  %v8924 = vmax.f32 %v8472, 0.0
  %v8925 = vmax.f32 %v8689, 0.0
  %v8926 = vmax.f32 %v8691, 0.0
  %v8927 = vmax.f32 %v8885, 0.0
  %v8928 = vmul.f32 %v8888, %v1799
  %v8929 = vmul.f32 %v8889, %v1803
  %v8930 = vmul.f32 %v8890, %v1807
  %v8931 = vmul.f32 %v8891, %v6247
  %v8932 = vmul.f32 %v8892, %v6251
  %v8933 = vmul.f32 %v8893, %v1799
  %v8934 = vmul.f32 %v8894, %v1803
  %v8935 = vmul.f32 %v8895, %v1807
  %v8936 = vmul.f32 %v8896, %v6247
  %v8937 = vmul.f32 %v8897, %v6251
  %v8938 = vmul.f32 %v8898, %v1799
  %v8939 = vmul.f32 %v8899, %v1803
  %v8940 = vmul.f32 %v8900, %v1807
  %v8941 = vmul.f32 %v8901, %v6247
  %v8942 = vmul.f32 %v8902, %v6251
  %v8943 = vmul.f32 %v8903, %v1799
  %v8944 = vmul.f32 %v8904, %v1803
  %v8945 = vmul.f32 %v8905, %v1807
  %v8946 = vmul.f32 %v8906, %v6247
  %v8947 = vmul.f32 %v8907, %v6251
  %v8948 = vmul.f32 %v8908, %v1799
  %v8949 = vmul.f32 %v8909, %v1803
  %v8950 = vmul.f32 %v8910, %v1807
  %v8951 = vmul.f32 %v8911, %v6247
  %v8952 = vmul.f32 %v8912, %v6251
  %v8953 = vmul.f32 %v8913, %v1799
  %v8954 = vmul.f32 %v8914, %v1803
  %v8955 = vmul.f32 %v8915, %v1807
  %v8956 = vmul.f32 %v8916, %v6247
  %v8957 = vmul.f32 %v8917, %v6251
  %v8958 = vmul.f32 %v8918, %v1799
  %v8959 = vmul.f32 %v8919, %v1803
  %v8960 = vmul.f32 %v8920, %v1807
  %v8961 = vmul.f32 %v8921, %v6247
  %v8962 = vmul.f32 %v8922, %v6251
  %v8963 = vmul.f32 %v8923, %v1799
  %v8964 = vmul.f32 %v8924, %v1803
  %v8965 = vmul.f32 %v8925, %v1807
  %v8966 = vmul.f32 %v8926, %v6247
  %v8967 = vmul.f32 %v8927, %v6251
  %v8968 = vpack.c.bf16 %v8933, %v8928
  %v8969 = vpack.c.bf16 %v8934, %v8929
  %v8970 = vpack.c.bf16 %v8935, %v8930
  %v8971 = vpack.c.bf16 %v8936, %v8931
  %v8972 = vpack.c.bf16 %v8937, %v8932
  %v8973 = vpack.c.bf16 %v8943, %v8938
  %v8974 = vpack.c.bf16 %v8944, %v8939
  %v8975 = vpack.c.bf16 %v8945, %v8940
  %v8976 = vpack.c.bf16 %v8946, %v8941
  %v8977 = vpack.c.bf16 %v8947, %v8942
  %v8978 = vpack.c.bf16 %v8953, %v8948
  %v8979 = vpack.c.bf16 %v8954, %v8949
  %v8980 = vpack.c.bf16 %v8955, %v8950
  %v8981 = vpack.c.bf16 %v8956, %v8951
  %v8982 = vpack.c.bf16 %v8957, %v8952
  %v8983 = vpack.c.bf16 %v8963, %v8958
  %v8984 = vpack.c.bf16 %v8964, %v8959
  %v8985 = vpack.c.bf16 %v8965, %v8960
  %v8986 = vpack.c.bf16 %v8966, %v8961
  %v8987 = vpack.c.bf16 %v8967, %v8962
  %9000 = vrot.lane.b32.xlu0 %v8968, 19
  %v9001 = vpop.permute.xlu0 %9000
  %9002 = vrot.lane.b32.xlu0 %v8969, 19
  %v9003 = vpop.permute.xlu0 %9002
  %9004 = vrot.lane.b32.xlu0 %v8970, 19
  %v9005 = vpop.permute.xlu0 %9004
  %9006 = vrot.lane.b32.xlu0 %v8973, 19
  %v9007 = vpop.permute.xlu0 %9006
  %9008 = vrot.lane.b32.xlu0 %v8974, 19
  %v9009 = vpop.permute.xlu0 %9008
  %9010 = vrot.lane.b32.xlu0 %v8975, 19
  %v9011 = vpop.permute.xlu0 %9010
  %9012 = vrot.lane.b32.xlu0 %v8978, 19
  %v9013 = vpop.permute.xlu0 %9012
  %9014 = vrot.lane.b32.xlu0 %v8979, 19
  %v9015 = vpop.permute.xlu0 %9014
  %9016 = vrot.lane.b32.xlu0 %v8980, 19
  %v9017 = vpop.permute.xlu0 %9016
  %9018 = vrot.lane.b32.xlu0 %v8983, 19
  %v9019 = vpop.permute.xlu0 %9018
  %9020 = vrot.lane.b32.xlu0 %v8984, 19
  %v9021 = vpop.permute.xlu0 %9020
  %9022 = vrot.lane.b32.xlu0 %v8985, 19
  %v9023 = vpop.permute.xlu0 %9022
  %v9024 = vsel %vm1883, %v9001, %v9003
  %v9025 = vsel %vm1883, %v9003, %v9005
  %v9026 = vsel %vm1883, %v9007, %v9009
  %v9027 = vsel %vm1883, %v9009, %v9011
  %v9028 = vsel %vm1883, %v9013, %v9015
  %v9029 = vsel %vm1883, %v9015, %v9017
  %v9030 = vsel %vm1883, %v9019, %v9021
  %v9031 = vsel %vm1883, %v9021, %v9023
  %9044 = vst.msk [vmem:[#allocation2] sm:$0xff] %vm1904, %v9001
  %9045 = vst [vmem:[#allocation2 + $0x8] sm:$0xff] %v9024
  %9046 = vst.msk [vmem:[#allocation2 + $0x10] sm:$0xff] %vm1907, %v9025
  %9047 = vst.msk [vmem:[#allocation2 + $0x30] sm:$0xff] %vm1904, %v9007
  %9048 = vst [vmem:[#allocation2 + $0x38] sm:$0xff] %v9026
  %9049 = vst.msk [vmem:[#allocation2 + $0x40] sm:$0xff] %vm1907, %v9027
  %9050 = vst.msk [vmem:[#allocation2 + $0x60] sm:$0xff] %vm1904, %v9013
  %9051 = vst [vmem:[#allocation2 + $0x68] sm:$0xff] %v9028
  %9052 = vst.msk [vmem:[#allocation2 + $0x70] sm:$0xff] %vm1907, %v9029
  %9053 = vst.msk [vmem:[#allocation2 + $0x90] sm:$0xff] %vm1904, %v9019
  %9054 = vst [vmem:[#allocation2 + $0x98] sm:$0xff] %v9030
  %9055 = vst.msk [vmem:[#allocation2 + $0xa0] sm:$0xff] %vm1907, %v9031
  %9064 = vrot.lane.b32.xlu0 %v8970, 57
  %v9065 = vpop.permute.xlu0 %9064
  %9066 = vrot.lane.b32.xlu0 %v8971, 57
  %v9067 = vpop.permute.xlu0 %9066
  %9068 = vrot.lane.b32.xlu0 %v8972, 57
  %v9069 = vpop.permute.xlu0 %9068
  %9070 = vrot.lane.b32.xlu0 %v8975, 57
  %v9071 = vpop.permute.xlu0 %9070
  %9072 = vrot.lane.b32.xlu0 %v8976, 57
  %v9073 = vpop.permute.xlu0 %9072
  %9074 = vrot.lane.b32.xlu0 %v8977, 57
  %v9075 = vpop.permute.xlu0 %9074
  %9076 = vrot.lane.b32.xlu0 %v8980, 57
  %v9077 = vpop.permute.xlu0 %9076
  %9078 = vrot.lane.b32.xlu0 %v8981, 57
  %v9079 = vpop.permute.xlu0 %9078
  %9080 = vrot.lane.b32.xlu0 %v8982, 57
  %v9081 = vpop.permute.xlu0 %9080
  %9082 = vrot.lane.b32.xlu0 %v8985, 57
  %v9083 = vpop.permute.xlu0 %9082
  %9084 = vrot.lane.b32.xlu0 %v8986, 57
  %v9085 = vpop.permute.xlu0 %9084
  %9086 = vrot.lane.b32.xlu0 %v8987, 57
  %v9087 = vpop.permute.xlu0 %9086
  %v9088 = vsel %vm6414, %v9065, %v9067
  %v9089 = vsel %vm6414, %v9067, %v9069
  %v9090 = vsel %vm6414, %v9071, %v9073
  %v9091 = vsel %vm6414, %v9073, %v9075
  %v9092 = vsel %vm6414, %v9077, %v9079
  %v9093 = vsel %vm6414, %v9079, %v9081
  %v9094 = vsel %vm6414, %v9083, %v9085
  %v9095 = vsel %vm6414, %v9085, %v9087
  %9108 = vst.msk [vmem:[#allocation2 + $0x10] sm:$0xff] %vm3731, %v9065
  %9109 = vst [vmem:[#allocation2 + $0x18] sm:$0xff] %v9088
  %9110 = vst.msk [vmem:[#allocation2 + $0x20] sm:$0xff] %vm3734, %v9089
  %9111 = vst.msk [vmem:[#allocation2 + $0x40] sm:$0xff] %vm3731, %v9071
  %9112 = vst [vmem:[#allocation2 + $0x48] sm:$0xff] %v9090
  %9113 = vst.msk [vmem:[#allocation2 + $0x50] sm:$0xff] %vm3734, %v9091
  %9114 = vst.msk [vmem:[#allocation2 + $0x70] sm:$0xff] %vm3731, %v9077
  %9115 = vst [vmem:[#allocation2 + $0x78] sm:$0xff] %v9092
  %9116 = vst.msk [vmem:[#allocation2 + $0x80] sm:$0xff] %vm3734, %v9093
  %9117 = vst.msk [vmem:[#allocation2 + $0xa0] sm:$0xff] %vm3731, %v9083
  %9118 = vst [vmem:[#allocation2 + $0xa8] sm:$0xff] %v9094
  %9119 = vst.msk [vmem:[#allocation2 + $0xb0] sm:$0xff] %vm3734, %v9095
  %v9120 = vld [vmem:[#allocation2] sm:$0xff]
  %v9121 = vld [vmem:[#allocation2 + $0x8] sm:$0xff]
  %v9122 = vld [vmem:[#allocation2 + $0x10] sm:$0xff]
  %v9123 = vld [vmem:[#allocation2 + $0x30] sm:$0xff]
  %v9124 = vld [vmem:[#allocation2 + $0x38] sm:$0xff]
  %v9125 = vld [vmem:[#allocation2 + $0x40] sm:$0xff]
  %v9126 = vld [vmem:[#allocation2 + $0x60] sm:$0xff]
  %v9127 = vld [vmem:[#allocation2 + $0x68] sm:$0xff]
  %v9128 = vld [vmem:[#allocation2 + $0x70] sm:$0xff]
  %v9129 = vld [vmem:[#allocation2 + $0x90] sm:$0xff]
  %v9130 = vld [vmem:[#allocation2 + $0x98] sm:$0xff]
  %v9131 = vld [vmem:[#allocation2 + $0xa0] sm:$0xff]
  %9132 = vst [vmem:[#allocation3] sm:$0xff] %v9120
  %9133 = vst [vmem:[#allocation3 + $0x8] sm:$0xff] %v9121
  %9134 = vst.msk [vmem:[#allocation3 + $0x10] sm:$0xff] %vm3759, %v9122
  %9135 = vst [vmem:[#allocation3 + $0x28] sm:$0xff] %v9123
  %9136 = vst [vmem:[#allocation3 + $0x30] sm:$0xff] %v9124
  %9137 = vst.msk [vmem:[#allocation3 + $0x38] sm:$0xff] %vm3759, %v9125
  %9138 = vst [vmem:[#allocation3 + $0x50] sm:$0xff] %v9126
  %9139 = vst [vmem:[#allocation3 + $0x58] sm:$0xff] %v9127
  %9140 = vst.msk [vmem:[#allocation3 + $0x60] sm:$0xff] %vm3759, %v9128
  %9141 = vst [vmem:[#allocation3 + $0x78] sm:$0xff] %v9129
  %9142 = vst [vmem:[#allocation3 + $0x80] sm:$0xff] %v9130
  %9143 = vst.msk [vmem:[#allocation3 + $0x88] sm:$0xff] %vm3759, %v9131
  %v9144 = vld [vmem:[#allocation2] sm:$0xff]
  %v9145 = vld [vmem:[#allocation2 + $0x8] sm:$0xff]
  %v9146 = vld [vmem:[#allocation2 + $0x10] sm:$0xff]
  %v9147 = vld [vmem:[#allocation2 + $0x30] sm:$0xff]
  %v9148 = vld [vmem:[#allocation2 + $0x38] sm:$0xff]
  %v9149 = vld [vmem:[#allocation2 + $0x40] sm:$0xff]
  %v9150 = vld [vmem:[#allocation2 + $0x60] sm:$0xff]
  %v9151 = vld [vmem:[#allocation2 + $0x68] sm:$0xff]
  %v9152 = vld [vmem:[#allocation2 + $0x70] sm:$0xff]
  %v9153 = vld [vmem:[#allocation2 + $0x90] sm:$0xff]
  %v9154 = vld [vmem:[#allocation2 + $0x98] sm:$0xff]
  %v9155 = vld [vmem:[#allocation2 + $0xa0] sm:$0xff]
  %9168 = vrot.lane.b32.xlu0 %v9144, 127
  %v9169 = vpop.permute.xlu0 %9168
  %9170 = vrot.lane.b32.xlu0 %v9145, 127
  %v9171 = vpop.permute.xlu0 %9170
  %9172 = vrot.lane.b32.xlu0 %v9146, 127
  %v9173 = vpop.permute.xlu0 %9172
  %9174 = vrot.lane.b32.xlu0 %v9147, 127
  %v9175 = vpop.permute.xlu0 %9174
  %9176 = vrot.lane.b32.xlu0 %v9148, 127
  %v9177 = vpop.permute.xlu0 %9176
  %9178 = vrot.lane.b32.xlu0 %v9149, 127
  %v9179 = vpop.permute.xlu0 %9178
  %9180 = vrot.lane.b32.xlu0 %v9150, 127
  %v9181 = vpop.permute.xlu0 %9180
  %9182 = vrot.lane.b32.xlu0 %v9151, 127
  %v9183 = vpop.permute.xlu0 %9182
  %9184 = vrot.lane.b32.xlu0 %v9152, 127
  %v9185 = vpop.permute.xlu0 %9184
  %9186 = vrot.lane.b32.xlu0 %v9153, 127
  %v9187 = vpop.permute.xlu0 %9186
  %9188 = vrot.lane.b32.xlu0 %v9154, 127
  %v9189 = vpop.permute.xlu0 %9188
  %9190 = vrot.lane.b32.xlu0 %v9155, 127
  %v9191 = vpop.permute.xlu0 %9190
  %v9192 = vsel %vm3818, %v9169, %v9171
  %v9193 = vsel %vm3818, %v9171, %v9173
  %v9194 = vsel %vm3818, %v9175, %v9177
  %v9195 = vsel %vm3818, %v9177, %v9179
  %v9196 = vsel %vm3818, %v9181, %v9183
  %v9197 = vsel %vm3818, %v9183, %v9185
  %v9198 = vsel %vm3818, %v9187, %v9189
  %v9199 = vsel %vm3818, %v9189, %v9191
  %9212 = vst [vmem:[#allocation3 + $0xa0] sm:$0xff] %v9192
  %9213 = vst [vmem:[#allocation3 + $0xa8] sm:$0xff] %v9193
  %9214 = vst.msk [vmem:[#allocation3 + $0xb0] sm:$0xff] %vm3759, %v9173
  %9215 = vst [vmem:[#allocation3 + $0xc8] sm:$0xff] %v9194
  %9216 = vst [vmem:[#allocation3 + $0xd0] sm:$0xff] %v9195
  %9217 = vst.msk [vmem:[#allocation3 + $0xd8] sm:$0xff] %vm3759, %v9179
  %9218 = vst [vmem:[#allocation3 + $0xf0] sm:$0xff] %v9196
  %9219 = vst [vmem:[#allocation3 + $0xf8] sm:$0xff] %v9197
  %9220 = vst.msk [vmem:[#allocation3 + $0x100] sm:$0xff] %vm3759, %v9185
  %9221 = vst [vmem:[#allocation3 + $0x118] sm:$0xff] %v9198
  %9222 = vst [vmem:[#allocation3 + $0x120] sm:$0xff] %v9199
  %9223 = vst.msk [vmem:[#allocation3 + $0x128] sm:$0xff] %vm3759, %v9191
  %v9224 = vld [vmem:[#allocation2] sm:$0xff]
  %v9225 = vld [vmem:[#allocation2 + $0x8] sm:$0xff]
  %v9226 = vld [vmem:[#allocation2 + $0x10] sm:$0xff]
  %v9227 = vld [vmem:[#allocation2 + $0x30] sm:$0xff]
  %v9228 = vld [vmem:[#allocation2 + $0x38] sm:$0xff]
  %v9229 = vld [vmem:[#allocation2 + $0x40] sm:$0xff]
  %v9230 = vld [vmem:[#allocation2 + $0x60] sm:$0xff]
  %v9231 = vld [vmem:[#allocation2 + $0x68] sm:$0xff]
  %v9232 = vld [vmem:[#allocation2 + $0x70] sm:$0xff]
  %v9233 = vld [vmem:[#allocation2 + $0x90] sm:$0xff]
  %v9234 = vld [vmem:[#allocation2 + $0x98] sm:$0xff]
  %v9235 = vld [vmem:[#allocation2 + $0xa0] sm:$0xff]
  %9248 = vrot.lane.b32.xlu0 %v9224, 126
  %v9249 = vpop.permute.xlu0 %9248
  %9250 = vrot.lane.b32.xlu0 %v9225, 126
  %v9251 = vpop.permute.xlu0 %9250
  %9252 = vrot.lane.b32.xlu0 %v9226, 126
  %v9253 = vpop.permute.xlu0 %9252
  %9254 = vrot.lane.b32.xlu0 %v9227, 126
  %v9255 = vpop.permute.xlu0 %9254
  %9256 = vrot.lane.b32.xlu0 %v9228, 126
  %v9257 = vpop.permute.xlu0 %9256
  %9258 = vrot.lane.b32.xlu0 %v9229, 126
  %v9259 = vpop.permute.xlu0 %9258
  %9260 = vrot.lane.b32.xlu0 %v9230, 126
  %v9261 = vpop.permute.xlu0 %9260
  %9262 = vrot.lane.b32.xlu0 %v9231, 126
  %v9263 = vpop.permute.xlu0 %9262
  %9264 = vrot.lane.b32.xlu0 %v9232, 126
  %v9265 = vpop.permute.xlu0 %9264
  %9266 = vrot.lane.b32.xlu0 %v9233, 126
  %v9267 = vpop.permute.xlu0 %9266
  %9268 = vrot.lane.b32.xlu0 %v9234, 126
  %v9269 = vpop.permute.xlu0 %9268
  %9270 = vrot.lane.b32.xlu0 %v9235, 126
  %v9271 = vpop.permute.xlu0 %9270
  %v9272 = vsel %vm3899, %v9249, %v9251
  %v9273 = vsel %vm3899, %v9251, %v9253
  %v9274 = vsel %vm3899, %v9255, %v9257
  %v9275 = vsel %vm3899, %v9257, %v9259
  %v9276 = vsel %vm3899, %v9261, %v9263
  %v9277 = vsel %vm3899, %v9263, %v9265
  %v9278 = vsel %vm3899, %v9267, %v9269
  %v9279 = vsel %vm3899, %v9269, %v9271
  %9292 = vst [vmem:[#allocation3 + $0x140] sm:$0xff] %v9272
  %9293 = vst [vmem:[#allocation3 + $0x148] sm:$0xff] %v9273
  %9294 = vst.msk [vmem:[#allocation3 + $0x150] sm:$0xff] %vm3759, %v9253
  %9295 = vst [vmem:[#allocation3 + $0x168] sm:$0xff] %v9274
  %9296 = vst [vmem:[#allocation3 + $0x170] sm:$0xff] %v9275
  %9297 = vst.msk [vmem:[#allocation3 + $0x178] sm:$0xff] %vm3759, %v9259
  %9298 = vst [vmem:[#allocation3 + $0x190] sm:$0xff] %v9276
  %9299 = vst [vmem:[#allocation3 + $0x198] sm:$0xff] %v9277
  %9300 = vst.msk [vmem:[#allocation3 + $0x1a0] sm:$0xff] %vm3759, %v9265
  %9301 = vst [vmem:[#allocation3 + $0x1b8] sm:$0xff] %v9278
  %9302 = vst [vmem:[#allocation3 + $0x1c0] sm:$0xff] %v9279
  %9303 = vst.msk [vmem:[#allocation3 + $0x1c8] sm:$0xff] %vm3759, %v9271
  %v9304 = vld [vmem:[#allocation2] sm:$0xff]
  %v9305 = vld [vmem:[#allocation2 + $0x8] sm:$0xff]
  %v9306 = vld [vmem:[#allocation2 + $0x10] sm:$0xff]
  %v9307 = vld [vmem:[#allocation2 + $0x30] sm:$0xff]
  %v9308 = vld [vmem:[#allocation2 + $0x38] sm:$0xff]
  %v9309 = vld [vmem:[#allocation2 + $0x40] sm:$0xff]
  %v9310 = vld [vmem:[#allocation2 + $0x60] sm:$0xff]
  %v9311 = vld [vmem:[#allocation2 + $0x68] sm:$0xff]
  %v9312 = vld [vmem:[#allocation2 + $0x70] sm:$0xff]
  %v9313 = vld [vmem:[#allocation2 + $0x90] sm:$0xff]
  %v9314 = vld [vmem:[#allocation2 + $0x98] sm:$0xff]
  %v9315 = vld [vmem:[#allocation2 + $0xa0] sm:$0xff]
  %9328 = vrot.lane.b32.xlu0 %v9304, 110
  %v9329 = vpop.permute.xlu0 %9328
  %9330 = vrot.lane.b32.xlu0 %v9305, 110
  %v9331 = vpop.permute.xlu0 %9330
  %9332 = vrot.lane.b32.xlu0 %v9306, 110
  %v9333 = vpop.permute.xlu0 %9332
  %9334 = vrot.lane.b32.xlu0 %v9307, 110
  %v9335 = vpop.permute.xlu0 %9334
  %9336 = vrot.lane.b32.xlu0 %v9308, 110
  %v9337 = vpop.permute.xlu0 %9336
  %9338 = vrot.lane.b32.xlu0 %v9309, 110
  %v9339 = vpop.permute.xlu0 %9338
  %9340 = vrot.lane.b32.xlu0 %v9310, 110
  %v9341 = vpop.permute.xlu0 %9340
  %9342 = vrot.lane.b32.xlu0 %v9311, 110
  %v9343 = vpop.permute.xlu0 %9342
  %9344 = vrot.lane.b32.xlu0 %v9312, 110
  %v9345 = vpop.permute.xlu0 %9344
  %9346 = vrot.lane.b32.xlu0 %v9313, 110
  %v9347 = vpop.permute.xlu0 %9346
  %9348 = vrot.lane.b32.xlu0 %v9314, 110
  %v9349 = vpop.permute.xlu0 %9348
  %9350 = vrot.lane.b32.xlu0 %v9315, 110
  %v9351 = vpop.permute.xlu0 %9350
  %v9352 = vsel %vm3980, %v9329, %v9331
  %v9353 = vsel %vm3980, %v9331, %v9333
  %v9354 = vsel %vm3980, %v9335, %v9337
  %v9355 = vsel %vm3980, %v9337, %v9339
  %v9356 = vsel %vm3980, %v9341, %v9343
  %v9357 = vsel %vm3980, %v9343, %v9345
  %v9358 = vsel %vm3980, %v9347, %v9349
  %v9359 = vsel %vm3980, %v9349, %v9351
  %9372 = vst [vmem:[#allocation3 + $0x1e0] sm:$0xff] %v9352
  %9373 = vst [vmem:[#allocation3 + $0x1e8] sm:$0xff] %v9353
  %9374 = vst.msk [vmem:[#allocation3 + $0x1f0] sm:$0xff] %vm3759, %v9333
  %9375 = vst [vmem:[#allocation3 + $0x208] sm:$0xff] %v9354
  %9376 = vst [vmem:[#allocation3 + $0x210] sm:$0xff] %v9355
  %9377 = vst.msk [vmem:[#allocation3 + $0x218] sm:$0xff] %vm3759, %v9339
  %9378 = vst [vmem:[#allocation3 + $0x230] sm:$0xff] %v9356
  %9379 = vst [vmem:[#allocation3 + $0x238] sm:$0xff] %v9357
  %9380 = vst.msk [vmem:[#allocation3 + $0x240] sm:$0xff] %vm3759, %v9345
  %9381 = vst [vmem:[#allocation3 + $0x258] sm:$0xff] %v9358
  %9382 = vst [vmem:[#allocation3 + $0x260] sm:$0xff] %v9359
  %9383 = vst.msk [vmem:[#allocation3 + $0x268] sm:$0xff] %vm3759, %v9351
  %v9384 = vld [vmem:[#allocation2] sm:$0xff]
  %v9385 = vld [vmem:[#allocation2 + $0x8] sm:$0xff]
  %v9386 = vld [vmem:[#allocation2 + $0x10] sm:$0xff]
  %v9387 = vld [vmem:[#allocation2 + $0x30] sm:$0xff]
  %v9388 = vld [vmem:[#allocation2 + $0x38] sm:$0xff]
  %v9389 = vld [vmem:[#allocation2 + $0x40] sm:$0xff]
  %v9390 = vld [vmem:[#allocation2 + $0x60] sm:$0xff]
  %v9391 = vld [vmem:[#allocation2 + $0x68] sm:$0xff]
  %v9392 = vld [vmem:[#allocation2 + $0x70] sm:$0xff]
  %v9393 = vld [vmem:[#allocation2 + $0x90] sm:$0xff]
  %v9394 = vld [vmem:[#allocation2 + $0x98] sm:$0xff]
  %v9395 = vld [vmem:[#allocation2 + $0xa0] sm:$0xff]
  %9408 = vrot.lane.b32.xlu0 %v9384, 109
  %v9409 = vpop.permute.xlu0 %9408
  %9410 = vrot.lane.b32.xlu0 %v9385, 109
  %v9411 = vpop.permute.xlu0 %9410
  %9412 = vrot.lane.b32.xlu0 %v9386, 109
  %v9413 = vpop.permute.xlu0 %9412
  %9414 = vrot.lane.b32.xlu0 %v9387, 109
  %v9415 = vpop.permute.xlu0 %9414
  %9416 = vrot.lane.b32.xlu0 %v9388, 109
  %v9417 = vpop.permute.xlu0 %9416
  %9418 = vrot.lane.b32.xlu0 %v9389, 109
  %v9419 = vpop.permute.xlu0 %9418
  %9420 = vrot.lane.b32.xlu0 %v9390, 109
  %v9421 = vpop.permute.xlu0 %9420
  %9422 = vrot.lane.b32.xlu0 %v9391, 109
  %v9423 = vpop.permute.xlu0 %9422
  %9424 = vrot.lane.b32.xlu0 %v9392, 109
  %v9425 = vpop.permute.xlu0 %9424
  %9426 = vrot.lane.b32.xlu0 %v9393, 109
  %v9427 = vpop.permute.xlu0 %9426
  %9428 = vrot.lane.b32.xlu0 %v9394, 109
  %v9429 = vpop.permute.xlu0 %9428
  %9430 = vrot.lane.b32.xlu0 %v9395, 109
  %v9431 = vpop.permute.xlu0 %9430
  %v9432 = vsel %vm4061, %v9409, %v9411
  %v9433 = vsel %vm4061, %v9411, %v9413
  %v9434 = vsel %vm4061, %v9415, %v9417
  %v9435 = vsel %vm4061, %v9417, %v9419
  %v9436 = vsel %vm4061, %v9421, %v9423
  %v9437 = vsel %vm4061, %v9423, %v9425
  %v9438 = vsel %vm4061, %v9427, %v9429
  %v9439 = vsel %vm4061, %v9429, %v9431
  %9452 = vst [vmem:[#allocation3 + $0x280] sm:$0xff] %v9432
  %9453 = vst [vmem:[#allocation3 + $0x288] sm:$0xff] %v9433
  %9454 = vst.msk [vmem:[#allocation3 + $0x290] sm:$0xff] %vm3759, %v9413
  %9455 = vst [vmem:[#allocation3 + $0x2a8] sm:$0xff] %v9434
  %9456 = vst [vmem:[#allocation3 + $0x2b0] sm:$0xff] %v9435
  %9457 = vst.msk [vmem:[#allocation3 + $0x2b8] sm:$0xff] %vm3759, %v9419
  %9458 = vst [vmem:[#allocation3 + $0x2d0] sm:$0xff] %v9436
  %9459 = vst [vmem:[#allocation3 + $0x2d8] sm:$0xff] %v9437
  %9460 = vst.msk [vmem:[#allocation3 + $0x2e0] sm:$0xff] %vm3759, %v9425
  %9461 = vst [vmem:[#allocation3 + $0x2f8] sm:$0xff] %v9438
  %9462 = vst [vmem:[#allocation3 + $0x300] sm:$0xff] %v9439
  %9463 = vst.msk [vmem:[#allocation3 + $0x308] sm:$0xff] %vm3759, %v9431
  %v9464 = vld [vmem:[#allocation2] sm:$0xff]
  %v9465 = vld [vmem:[#allocation2 + $0x8] sm:$0xff]
  %v9466 = vld [vmem:[#allocation2 + $0x10] sm:$0xff]
  %v9467 = vld [vmem:[#allocation2 + $0x30] sm:$0xff]
  %v9468 = vld [vmem:[#allocation2 + $0x38] sm:$0xff]
  %v9469 = vld [vmem:[#allocation2 + $0x40] sm:$0xff]
  %v9470 = vld [vmem:[#allocation2 + $0x60] sm:$0xff]
  %v9471 = vld [vmem:[#allocation2 + $0x68] sm:$0xff]
  %v9472 = vld [vmem:[#allocation2 + $0x70] sm:$0xff]
  %v9473 = vld [vmem:[#allocation2 + $0x90] sm:$0xff]
  %v9474 = vld [vmem:[#allocation2 + $0x98] sm:$0xff]
  %v9475 = vld [vmem:[#allocation2 + $0xa0] sm:$0xff]
  %9488 = vrot.lane.b32.xlu0 %v9464, 108
  %v9489 = vpop.permute.xlu0 %9488
  %9490 = vrot.lane.b32.xlu0 %v9465, 108
  %v9491 = vpop.permute.xlu0 %9490
  %9492 = vrot.lane.b32.xlu0 %v9466, 108
  %v9493 = vpop.permute.xlu0 %9492
  %9494 = vrot.lane.b32.xlu0 %v9467, 108
  %v9495 = vpop.permute.xlu0 %9494
  %9496 = vrot.lane.b32.xlu0 %v9468, 108
  %v9497 = vpop.permute.xlu0 %9496
  %9498 = vrot.lane.b32.xlu0 %v9469, 108
  %v9499 = vpop.permute.xlu0 %9498
  %9500 = vrot.lane.b32.xlu0 %v9470, 108
  %v9501 = vpop.permute.xlu0 %9500
  %9502 = vrot.lane.b32.xlu0 %v9471, 108
  %v9503 = vpop.permute.xlu0 %9502
  %9504 = vrot.lane.b32.xlu0 %v9472, 108
  %v9505 = vpop.permute.xlu0 %9504
  %9506 = vrot.lane.b32.xlu0 %v9473, 108
  %v9507 = vpop.permute.xlu0 %9506
  %9508 = vrot.lane.b32.xlu0 %v9474, 108
  %v9509 = vpop.permute.xlu0 %9508
  %9510 = vrot.lane.b32.xlu0 %v9475, 108
  %v9511 = vpop.permute.xlu0 %9510
  %v9512 = vsel %vm4142, %v9489, %v9491
  %v9513 = vsel %vm4142, %v9491, %v9493
  %v9514 = vsel %vm4142, %v9495, %v9497
  %v9515 = vsel %vm4142, %v9497, %v9499
  %v9516 = vsel %vm4142, %v9501, %v9503
  %v9517 = vsel %vm4142, %v9503, %v9505
  %v9518 = vsel %vm4142, %v9507, %v9509
  %v9519 = vsel %vm4142, %v9509, %v9511
  %9532 = vst [vmem:[#allocation3 + $0x320] sm:$0xff] %v9512
  %9533 = vst [vmem:[#allocation3 + $0x328] sm:$0xff] %v9513
  %9534 = vst.msk [vmem:[#allocation3 + $0x330] sm:$0xff] %vm3759, %v9493
  %9535 = vst [vmem:[#allocation3 + $0x348] sm:$0xff] %v9514
  %9536 = vst [vmem:[#allocation3 + $0x350] sm:$0xff] %v9515
  %9537 = vst.msk [vmem:[#allocation3 + $0x358] sm:$0xff] %vm3759, %v9499
  %9538 = vst [vmem:[#allocation3 + $0x370] sm:$0xff] %v9516
  %9539 = vst [vmem:[#allocation3 + $0x378] sm:$0xff] %v9517
  %9540 = vst.msk [vmem:[#allocation3 + $0x380] sm:$0xff] %vm3759, %v9505
  %9541 = vst [vmem:[#allocation3 + $0x398] sm:$0xff] %v9518
  %9542 = vst [vmem:[#allocation3 + $0x3a0] sm:$0xff] %v9519
  %9543 = vst.msk [vmem:[#allocation3 + $0x3a8] sm:$0xff] %vm3759, %v9511
  %v9544 = vld [vmem:[#allocation2] sm:$0xff]
  %v9545 = vld [vmem:[#allocation2 + $0x8] sm:$0xff]
  %v9546 = vld [vmem:[#allocation2 + $0x10] sm:$0xff]
  %v9547 = vld [vmem:[#allocation2 + $0x30] sm:$0xff]
  %v9548 = vld [vmem:[#allocation2 + $0x38] sm:$0xff]
  %v9549 = vld [vmem:[#allocation2 + $0x40] sm:$0xff]
  %v9550 = vld [vmem:[#allocation2 + $0x60] sm:$0xff]
  %v9551 = vld [vmem:[#allocation2 + $0x68] sm:$0xff]
  %v9552 = vld [vmem:[#allocation2 + $0x70] sm:$0xff]
  %v9553 = vld [vmem:[#allocation2 + $0x90] sm:$0xff]
  %v9554 = vld [vmem:[#allocation2 + $0x98] sm:$0xff]
  %v9555 = vld [vmem:[#allocation2 + $0xa0] sm:$0xff]
  %9568 = vrot.lane.b32.xlu0 %v9544, 92
  %v9569 = vpop.permute.xlu0 %9568
  %9570 = vrot.lane.b32.xlu0 %v9545, 92
  %v9571 = vpop.permute.xlu0 %9570
  %9572 = vrot.lane.b32.xlu0 %v9546, 92
  %v9573 = vpop.permute.xlu0 %9572
  %9574 = vrot.lane.b32.xlu0 %v9547, 92
  %v9575 = vpop.permute.xlu0 %9574
  %9576 = vrot.lane.b32.xlu0 %v9548, 92
  %v9577 = vpop.permute.xlu0 %9576
  %9578 = vrot.lane.b32.xlu0 %v9549, 92
  %v9579 = vpop.permute.xlu0 %9578
  %9580 = vrot.lane.b32.xlu0 %v9550, 92
  %v9581 = vpop.permute.xlu0 %9580
  %9582 = vrot.lane.b32.xlu0 %v9551, 92
  %v9583 = vpop.permute.xlu0 %9582
  %9584 = vrot.lane.b32.xlu0 %v9552, 92
  %v9585 = vpop.permute.xlu0 %9584
  %9586 = vrot.lane.b32.xlu0 %v9553, 92
  %v9587 = vpop.permute.xlu0 %9586
  %9588 = vrot.lane.b32.xlu0 %v9554, 92
  %v9589 = vpop.permute.xlu0 %9588
  %9590 = vrot.lane.b32.xlu0 %v9555, 92
  %v9591 = vpop.permute.xlu0 %9590
  %v9592 = vsel %vm4223, %v9569, %v9571
  %v9593 = vsel %vm4223, %v9571, %v9573
  %v9594 = vsel %vm4223, %v9575, %v9577
  %v9595 = vsel %vm4223, %v9577, %v9579
  %v9596 = vsel %vm4223, %v9581, %v9583
  %v9597 = vsel %vm4223, %v9583, %v9585
  %v9598 = vsel %vm4223, %v9587, %v9589
  %v9599 = vsel %vm4223, %v9589, %v9591
  %9612 = vst [vmem:[#allocation3 + $0x3c0] sm:$0xff] %v9592
  %9613 = vst [vmem:[#allocation3 + $0x3c8] sm:$0xff] %v9593
  %9614 = vst.msk [vmem:[#allocation3 + $0x3d0] sm:$0xff] %vm3759, %v9573
  %9615 = vst [vmem:[#allocation3 + $0x3e8] sm:$0xff] %v9594
  %9616 = vst [vmem:[#allocation3 + $0x3f0] sm:$0xff] %v9595
  %9617 = vst.msk [vmem:[#allocation3 + $0x3f8] sm:$0xff] %vm3759, %v9579
  %9618 = vst [vmem:[#allocation3 + $0x410] sm:$0xff] %v9596
  %9619 = vst [vmem:[#allocation3 + $0x418] sm:$0xff] %v9597
  %9620 = vst.msk [vmem:[#allocation3 + $0x420] sm:$0xff] %vm3759, %v9585
  %9621 = vst [vmem:[#allocation3 + $0x438] sm:$0xff] %v9598
  %9622 = vst [vmem:[#allocation3 + $0x440] sm:$0xff] %v9599
  %9623 = vst.msk [vmem:[#allocation3 + $0x448] sm:$0xff] %vm3759, %v9591
  %v9624 = vld [vmem:[#allocation2] sm:$0xff]
  %v9625 = vld [vmem:[#allocation2 + $0x8] sm:$0xff]
  %v9626 = vld [vmem:[#allocation2 + $0x10] sm:$0xff]
  %v9627 = vld [vmem:[#allocation2 + $0x30] sm:$0xff]
  %v9628 = vld [vmem:[#allocation2 + $0x38] sm:$0xff]
  %v9629 = vld [vmem:[#allocation2 + $0x40] sm:$0xff]
  %v9630 = vld [vmem:[#allocation2 + $0x60] sm:$0xff]
  %v9631 = vld [vmem:[#allocation2 + $0x68] sm:$0xff]
  %v9632 = vld [vmem:[#allocation2 + $0x70] sm:$0xff]
  %v9633 = vld [vmem:[#allocation2 + $0x90] sm:$0xff]
  %v9634 = vld [vmem:[#allocation2 + $0x98] sm:$0xff]
  %v9635 = vld [vmem:[#allocation2 + $0xa0] sm:$0xff]
  %9648 = vrot.lane.b32.xlu0 %v9624, 91
  %v9649 = vpop.permute.xlu0 %9648
  %9650 = vrot.lane.b32.xlu0 %v9625, 91
  %v9651 = vpop.permute.xlu0 %9650
  %9652 = vrot.lane.b32.xlu0 %v9626, 91
  %v9653 = vpop.permute.xlu0 %9652
  %9654 = vrot.lane.b32.xlu0 %v9627, 91
  %v9655 = vpop.permute.xlu0 %9654
  %9656 = vrot.lane.b32.xlu0 %v9628, 91
  %v9657 = vpop.permute.xlu0 %9656
  %9658 = vrot.lane.b32.xlu0 %v9629, 91
  %v9659 = vpop.permute.xlu0 %9658
  %9660 = vrot.lane.b32.xlu0 %v9630, 91
  %v9661 = vpop.permute.xlu0 %9660
  %9662 = vrot.lane.b32.xlu0 %v9631, 91
  %v9663 = vpop.permute.xlu0 %9662
  %9664 = vrot.lane.b32.xlu0 %v9632, 91
  %v9665 = vpop.permute.xlu0 %9664
  %9666 = vrot.lane.b32.xlu0 %v9633, 91
  %v9667 = vpop.permute.xlu0 %9666
  %9668 = vrot.lane.b32.xlu0 %v9634, 91
  %v9669 = vpop.permute.xlu0 %9668
  %9670 = vrot.lane.b32.xlu0 %v9635, 91
  %v9671 = vpop.permute.xlu0 %9670
  %v9672 = vsel %vm4304, %v9649, %v9651
  %v9673 = vsel %vm4304, %v9651, %v9653
  %v9674 = vsel %vm4304, %v9655, %v9657
  %v9675 = vsel %vm4304, %v9657, %v9659
  %v9676 = vsel %vm4304, %v9661, %v9663
  %v9677 = vsel %vm4304, %v9663, %v9665
  %v9678 = vsel %vm4304, %v9667, %v9669
  %v9679 = vsel %vm4304, %v9669, %v9671
  %9692 = vst [vmem:[#allocation3 + $0x460] sm:$0xff] %v9672
  %9693 = vst [vmem:[#allocation3 + $0x468] sm:$0xff] %v9673
  %9694 = vst.msk [vmem:[#allocation3 + $0x470] sm:$0xff] %vm3759, %v9653
  %9695 = vst [vmem:[#allocation3 + $0x488] sm:$0xff] %v9674
  %9696 = vst [vmem:[#allocation3 + $0x490] sm:$0xff] %v9675
  %9697 = vst.msk [vmem:[#allocation3 + $0x498] sm:$0xff] %vm3759, %v9659
  %9698 = vst [vmem:[#allocation3 + $0x4b0] sm:$0xff] %v9676
  %9699 = vst [vmem:[#allocation3 + $0x4b8] sm:$0xff] %v9677
  %9700 = vst.msk [vmem:[#allocation3 + $0x4c0] sm:$0xff] %vm3759, %v9665
  %9701 = vst [vmem:[#allocation3 + $0x4d8] sm:$0xff] %v9678
  %9702 = vst [vmem:[#allocation3 + $0x4e0] sm:$0xff] %v9679
  %9703 = vst.msk [vmem:[#allocation3 + $0x4e8] sm:$0xff] %vm3759, %v9671
  %v9704 = vld [vmem:[#allocation2] sm:$0xff]
  %v9705 = vld [vmem:[#allocation2 + $0x8] sm:$0xff]
  %v9706 = vld [vmem:[#allocation2 + $0x10] sm:$0xff]
  %v9707 = vld [vmem:[#allocation2 + $0x30] sm:$0xff]
  %v9708 = vld [vmem:[#allocation2 + $0x38] sm:$0xff]
  %v9709 = vld [vmem:[#allocation2 + $0x40] sm:$0xff]
  %v9710 = vld [vmem:[#allocation2 + $0x60] sm:$0xff]
  %v9711 = vld [vmem:[#allocation2 + $0x68] sm:$0xff]
  %v9712 = vld [vmem:[#allocation2 + $0x70] sm:$0xff]
  %v9713 = vld [vmem:[#allocation2 + $0x90] sm:$0xff]
  %v9714 = vld [vmem:[#allocation2 + $0x98] sm:$0xff]
  %v9715 = vld [vmem:[#allocation2 + $0xa0] sm:$0xff]
  %9728 = vrot.lane.b32.xlu0 %v9704, 90
  %v9729 = vpop.permute.xlu0 %9728
  %9730 = vrot.lane.b32.xlu0 %v9705, 90
  %v9731 = vpop.permute.xlu0 %9730
  %9732 = vrot.lane.b32.xlu0 %v9706, 90
  %v9733 = vpop.permute.xlu0 %9732
  %9734 = vrot.lane.b32.xlu0 %v9707, 90
  %v9735 = vpop.permute.xlu0 %9734
  %9736 = vrot.lane.b32.xlu0 %v9708, 90
  %v9737 = vpop.permute.xlu0 %9736
  %9738 = vrot.lane.b32.xlu0 %v9709, 90
  %v9739 = vpop.permute.xlu0 %9738
  %9740 = vrot.lane.b32.xlu0 %v9710, 90
  %v9741 = vpop.permute.xlu0 %9740
  %9742 = vrot.lane.b32.xlu0 %v9711, 90
  %v9743 = vpop.permute.xlu0 %9742
  %9744 = vrot.lane.b32.xlu0 %v9712, 90
  %v9745 = vpop.permute.xlu0 %9744
  %9746 = vrot.lane.b32.xlu0 %v9713, 90
  %v9747 = vpop.permute.xlu0 %9746
  %9748 = vrot.lane.b32.xlu0 %v9714, 90
  %v9749 = vpop.permute.xlu0 %9748
  %9750 = vrot.lane.b32.xlu0 %v9715, 90
  %v9751 = vpop.permute.xlu0 %9750
  %v9752 = vsel %vm4385, %v9729, %v9731
  %v9753 = vsel %vm4385, %v9731, %v9733
  %v9754 = vsel %vm4385, %v9735, %v9737
  %v9755 = vsel %vm4385, %v9737, %v9739
  %v9756 = vsel %vm4385, %v9741, %v9743
  %v9757 = vsel %vm4385, %v9743, %v9745
  %v9758 = vsel %vm4385, %v9747, %v9749
  %v9759 = vsel %vm4385, %v9749, %v9751
  %9772 = vst [vmem:[#allocation3 + $0x500] sm:$0xff] %v9752
  %9773 = vst [vmem:[#allocation3 + $0x508] sm:$0xff] %v9753
  %9774 = vst.msk [vmem:[#allocation3 + $0x510] sm:$0xff] %vm3759, %v9733
  %9775 = vst [vmem:[#allocation3 + $0x528] sm:$0xff] %v9754
  %9776 = vst [vmem:[#allocation3 + $0x530] sm:$0xff] %v9755
  %9777 = vst.msk [vmem:[#allocation3 + $0x538] sm:$0xff] %vm3759, %v9739
  %9778 = vst [vmem:[#allocation3 + $0x550] sm:$0xff] %v9756
  %9779 = vst [vmem:[#allocation3 + $0x558] sm:$0xff] %v9757
  %9780 = vst.msk [vmem:[#allocation3 + $0x560] sm:$0xff] %vm3759, %v9745
  %9781 = vst [vmem:[#allocation3 + $0x578] sm:$0xff] %v9758
  %9782 = vst [vmem:[#allocation3 + $0x580] sm:$0xff] %v9759
  %9783 = vst.msk [vmem:[#allocation3 + $0x588] sm:$0xff] %vm3759, %v9751
  %v9784 = vld [vmem:[#allocation2 + $0x10] sm:$0xff]
  %v9785 = vld [vmem:[#allocation2 + $0x18] sm:$0xff]
  %v9786 = vld [vmem:[#allocation2 + $0x20] sm:$0xff]
  %v9787 = vld [vmem:[#allocation2 + $0x40] sm:$0xff]
  %v9788 = vld [vmem:[#allocation2 + $0x48] sm:$0xff]
  %v9789 = vld [vmem:[#allocation2 + $0x50] sm:$0xff]
  %v9790 = vld [vmem:[#allocation2 + $0x70] sm:$0xff]
  %v9791 = vld [vmem:[#allocation2 + $0x78] sm:$0xff]
  %v9792 = vld [vmem:[#allocation2 + $0x80] sm:$0xff]
  %v9793 = vld [vmem:[#allocation2 + $0xa0] sm:$0xff]
  %v9794 = vld [vmem:[#allocation2 + $0xa8] sm:$0xff]
  %v9795 = vld [vmem:[#allocation2 + $0xb0] sm:$0xff]
  %9808 = vrot.lane.b32.xlu0 %v9784, 90
  %v9809 = vpop.permute.xlu0 %9808
  %9810 = vrot.lane.b32.xlu0 %v9785, 90
  %v9811 = vpop.permute.xlu0 %9810
  %9812 = vrot.lane.b32.xlu0 %v9786, 90
  %v9813 = vpop.permute.xlu0 %9812
  %9814 = vrot.lane.b32.xlu0 %v9787, 90
  %v9815 = vpop.permute.xlu0 %9814
  %9816 = vrot.lane.b32.xlu0 %v9788, 90
  %v9817 = vpop.permute.xlu0 %9816
  %9818 = vrot.lane.b32.xlu0 %v9789, 90
  %v9819 = vpop.permute.xlu0 %9818
  %9820 = vrot.lane.b32.xlu0 %v9790, 90
  %v9821 = vpop.permute.xlu0 %9820
  %9822 = vrot.lane.b32.xlu0 %v9791, 90
  %v9823 = vpop.permute.xlu0 %9822
  %9824 = vrot.lane.b32.xlu0 %v9792, 90
  %v9825 = vpop.permute.xlu0 %9824
  %9826 = vrot.lane.b32.xlu0 %v9793, 90
  %v9827 = vpop.permute.xlu0 %9826
  %9828 = vrot.lane.b32.xlu0 %v9794, 90
  %v9829 = vpop.permute.xlu0 %9828
  %9830 = vrot.lane.b32.xlu0 %v9795, 90
  %v9831 = vpop.permute.xlu0 %9830
  %v9832 = vsel %vm4385, %v9809, %v9811
  %v9833 = vsel %vm4385, %v9811, %v9813
  %v9834 = vsel %vm4385, %v9815, %v9817
  %v9835 = vsel %vm4385, %v9817, %v9819
  %v9836 = vsel %vm4385, %v9821, %v9823
  %v9837 = vsel %vm4385, %v9823, %v9825
  %v9838 = vsel %vm4385, %v9827, %v9829
  %v9839 = vsel %vm4385, %v9829, %v9831
  %9852 = vst.msk [vmem:[#allocation3 + $0x10] sm:$0xff] %vm4486, %v9832
  %9853 = vst [vmem:[#allocation3 + $0x18] sm:$0xff] %v9833
  %9854 = vst.msk [vmem:[#allocation3 + $0x20] sm:$0xff] %vm4489, %v9813
  %9855 = vst.msk [vmem:[#allocation3 + $0x38] sm:$0xff] %vm4486, %v9834
  %9856 = vst [vmem:[#allocation3 + $0x40] sm:$0xff] %v9835
  %9857 = vst.msk [vmem:[#allocation3 + $0x48] sm:$0xff] %vm4489, %v9819
  %9858 = vst.msk [vmem:[#allocation3 + $0x60] sm:$0xff] %vm4486, %v9836
  %9859 = vst [vmem:[#allocation3 + $0x68] sm:$0xff] %v9837
  %9860 = vst.msk [vmem:[#allocation3 + $0x70] sm:$0xff] %vm4489, %v9825
  %9861 = vst.msk [vmem:[#allocation3 + $0x88] sm:$0xff] %vm4486, %v9838
  %9862 = vst [vmem:[#allocation3 + $0x90] sm:$0xff] %v9839
  %9863 = vst.msk [vmem:[#allocation3 + $0x98] sm:$0xff] %vm4489, %v9831
  %v9864 = vld [vmem:[#allocation2 + $0x10] sm:$0xff]
  %v9865 = vld [vmem:[#allocation2 + $0x18] sm:$0xff]
  %v9866 = vld [vmem:[#allocation2 + $0x20] sm:$0xff]
  %v9867 = vld [vmem:[#allocation2 + $0x40] sm:$0xff]
  %v9868 = vld [vmem:[#allocation2 + $0x48] sm:$0xff]
  %v9869 = vld [vmem:[#allocation2 + $0x50] sm:$0xff]
  %v9870 = vld [vmem:[#allocation2 + $0x70] sm:$0xff]
  %v9871 = vld [vmem:[#allocation2 + $0x78] sm:$0xff]
  %v9872 = vld [vmem:[#allocation2 + $0x80] sm:$0xff]
  %v9873 = vld [vmem:[#allocation2 + $0xa0] sm:$0xff]
  %v9874 = vld [vmem:[#allocation2 + $0xa8] sm:$0xff]
  %v9875 = vld [vmem:[#allocation2 + $0xb0] sm:$0xff]
  %9888 = vrot.lane.b32.xlu0 %v9864, 89
  %v9889 = vpop.permute.xlu0 %9888
  %9890 = vrot.lane.b32.xlu0 %v9865, 89
  %v9891 = vpop.permute.xlu0 %9890
  %9892 = vrot.lane.b32.xlu0 %v9866, 89
  %v9893 = vpop.permute.xlu0 %9892
  %9894 = vrot.lane.b32.xlu0 %v9867, 89
  %v9895 = vpop.permute.xlu0 %9894
  %9896 = vrot.lane.b32.xlu0 %v9868, 89
  %v9897 = vpop.permute.xlu0 %9896
  %9898 = vrot.lane.b32.xlu0 %v9869, 89
  %v9899 = vpop.permute.xlu0 %9898
  %9900 = vrot.lane.b32.xlu0 %v9870, 89
  %v9901 = vpop.permute.xlu0 %9900
  %9902 = vrot.lane.b32.xlu0 %v9871, 89
  %v9903 = vpop.permute.xlu0 %9902
  %9904 = vrot.lane.b32.xlu0 %v9872, 89
  %v9905 = vpop.permute.xlu0 %9904
  %9906 = vrot.lane.b32.xlu0 %v9873, 89
  %v9907 = vpop.permute.xlu0 %9906
  %9908 = vrot.lane.b32.xlu0 %v9874, 89
  %v9909 = vpop.permute.xlu0 %9908
  %9910 = vrot.lane.b32.xlu0 %v9875, 89
  %v9911 = vpop.permute.xlu0 %9910
  %v9912 = vsel %vm3710, %v9889, %v9891
  %v9913 = vsel %vm3710, %v9891, %v9893
  %v9914 = vsel %vm3710, %v9895, %v9897
  %v9915 = vsel %vm3710, %v9897, %v9899
  %v9916 = vsel %vm3710, %v9901, %v9903
  %v9917 = vsel %vm3710, %v9903, %v9905
  %v9918 = vsel %vm3710, %v9907, %v9909
  %v9919 = vsel %vm3710, %v9909, %v9911
  %9932 = vst.msk [vmem:[#allocation3 + $0xb0] sm:$0xff] %vm4486, %v9912
  %9933 = vst [vmem:[#allocation3 + $0xb8] sm:$0xff] %v9913
  %9934 = vst.msk [vmem:[#allocation3 + $0xc0] sm:$0xff] %vm4489, %v9893
  %9935 = vst.msk [vmem:[#allocation3 + $0xd8] sm:$0xff] %vm4486, %v9914
  %9936 = vst [vmem:[#allocation3 + $0xe0] sm:$0xff] %v9915
  %9937 = vst.msk [vmem:[#allocation3 + $0xe8] sm:$0xff] %vm4489, %v9899
  %9938 = vst.msk [vmem:[#allocation3 + $0x100] sm:$0xff] %vm4486, %v9916
  %9939 = vst [vmem:[#allocation3 + $0x108] sm:$0xff] %v9917
  %9940 = vst.msk [vmem:[#allocation3 + $0x110] sm:$0xff] %vm4489, %v9905
  %9941 = vst.msk [vmem:[#allocation3 + $0x128] sm:$0xff] %vm4486, %v9918
  %9942 = vst [vmem:[#allocation3 + $0x130] sm:$0xff] %v9919
  %9943 = vst.msk [vmem:[#allocation3 + $0x138] sm:$0xff] %vm4489, %v9911
  %v9944 = vld [vmem:[#allocation2 + $0x10] sm:$0xff]
  %v9945 = vld [vmem:[#allocation2 + $0x18] sm:$0xff]
  %v9946 = vld [vmem:[#allocation2 + $0x20] sm:$0xff]
  %v9947 = vld [vmem:[#allocation2 + $0x40] sm:$0xff]
  %v9948 = vld [vmem:[#allocation2 + $0x48] sm:$0xff]
  %v9949 = vld [vmem:[#allocation2 + $0x50] sm:$0xff]
  %v9950 = vld [vmem:[#allocation2 + $0x70] sm:$0xff]
  %v9951 = vld [vmem:[#allocation2 + $0x78] sm:$0xff]
  %v9952 = vld [vmem:[#allocation2 + $0x80] sm:$0xff]
  %v9953 = vld [vmem:[#allocation2 + $0xa0] sm:$0xff]
  %v9954 = vld [vmem:[#allocation2 + $0xa8] sm:$0xff]
  %v9955 = vld [vmem:[#allocation2 + $0xb0] sm:$0xff]
  %9968 = vrot.lane.b32.xlu0 %v9944, 88
  %v9969 = vpop.permute.xlu0 %9968
  %9970 = vrot.lane.b32.xlu0 %v9945, 88
  %v9971 = vpop.permute.xlu0 %9970
  %9972 = vrot.lane.b32.xlu0 %v9946, 88
  %v9973 = vpop.permute.xlu0 %9972
  %9974 = vrot.lane.b32.xlu0 %v9947, 88
  %v9975 = vpop.permute.xlu0 %9974
  %9976 = vrot.lane.b32.xlu0 %v9948, 88
  %v9977 = vpop.permute.xlu0 %9976
  %9978 = vrot.lane.b32.xlu0 %v9949, 88
  %v9979 = vpop.permute.xlu0 %9978
  %9980 = vrot.lane.b32.xlu0 %v9950, 88
  %v9981 = vpop.permute.xlu0 %9980
  %9982 = vrot.lane.b32.xlu0 %v9951, 88
  %v9983 = vpop.permute.xlu0 %9982
  %9984 = vrot.lane.b32.xlu0 %v9952, 88
  %v9985 = vpop.permute.xlu0 %9984
  %9986 = vrot.lane.b32.xlu0 %v9953, 88
  %v9987 = vpop.permute.xlu0 %9986
  %9988 = vrot.lane.b32.xlu0 %v9954, 88
  %v9989 = vpop.permute.xlu0 %9988
  %9990 = vrot.lane.b32.xlu0 %v9955, 88
  %v9991 = vpop.permute.xlu0 %9990
  %v9992 = vsel %vm4628, %v9969, %v9971
  %v9993 = vsel %vm4628, %v9971, %v9973
  %v9994 = vsel %vm4628, %v9975, %v9977
  %v9995 = vsel %vm4628, %v9977, %v9979
  %v9996 = vsel %vm4628, %v9981, %v9983
  %v9997 = vsel %vm4628, %v9983, %v9985
  %v9998 = vsel %vm4628, %v9987, %v9989
  %v9999 = vsel %vm4628, %v9989, %v9991
  %10012 = vst.msk [vmem:[#allocation3 + $0x150] sm:$0xff] %vm4486, %v9992
  %10013 = vst [vmem:[#allocation3 + $0x158] sm:$0xff] %v9993
  %10014 = vst.msk [vmem:[#allocation3 + $0x160] sm:$0xff] %vm4489, %v9973
  %10015 = vst.msk [vmem:[#allocation3 + $0x178] sm:$0xff] %vm4486, %v9994
  %10016 = vst [vmem:[#allocation3 + $0x180] sm:$0xff] %v9995
  %10017 = vst.msk [vmem:[#allocation3 + $0x188] sm:$0xff] %vm4489, %v9979
  %10018 = vst.msk [vmem:[#allocation3 + $0x1a0] sm:$0xff] %vm4486, %v9996
  %10019 = vst [vmem:[#allocation3 + $0x1a8] sm:$0xff] %v9997
  %10020 = vst.msk [vmem:[#allocation3 + $0x1b0] sm:$0xff] %vm4489, %v9985
  %10021 = vst.msk [vmem:[#allocation3 + $0x1c8] sm:$0xff] %vm4486, %v9998
  %10022 = vst [vmem:[#allocation3 + $0x1d0] sm:$0xff] %v9999
  %10023 = vst.msk [vmem:[#allocation3 + $0x1d8] sm:$0xff] %vm4489, %v9991
  %v10024 = vld [vmem:[#allocation2 + $0x10] sm:$0xff]
  %v10025 = vld [vmem:[#allocation2 + $0x18] sm:$0xff]
  %v10026 = vld [vmem:[#allocation2 + $0x20] sm:$0xff]
  %v10027 = vld [vmem:[#allocation2 + $0x40] sm:$0xff]
  %v10028 = vld [vmem:[#allocation2 + $0x48] sm:$0xff]
  %v10029 = vld [vmem:[#allocation2 + $0x50] sm:$0xff]
  %v10030 = vld [vmem:[#allocation2 + $0x70] sm:$0xff]
  %v10031 = vld [vmem:[#allocation2 + $0x78] sm:$0xff]
  %v10032 = vld [vmem:[#allocation2 + $0x80] sm:$0xff]
  %v10033 = vld [vmem:[#allocation2 + $0xa0] sm:$0xff]
  %v10034 = vld [vmem:[#allocation2 + $0xa8] sm:$0xff]
  %v10035 = vld [vmem:[#allocation2 + $0xb0] sm:$0xff]
  %10048 = vrot.lane.b32.xlu0 %v10024, 72
  %v10049 = vpop.permute.xlu0 %10048
  %10050 = vrot.lane.b32.xlu0 %v10025, 72
  %v10051 = vpop.permute.xlu0 %10050
  %10052 = vrot.lane.b32.xlu0 %v10026, 72
  %v10053 = vpop.permute.xlu0 %10052
  %10054 = vrot.lane.b32.xlu0 %v10027, 72
  %v10055 = vpop.permute.xlu0 %10054
  %10056 = vrot.lane.b32.xlu0 %v10028, 72
  %v10057 = vpop.permute.xlu0 %10056
  %10058 = vrot.lane.b32.xlu0 %v10029, 72
  %v10059 = vpop.permute.xlu0 %10058
  %10060 = vrot.lane.b32.xlu0 %v10030, 72
  %v10061 = vpop.permute.xlu0 %10060
  %10062 = vrot.lane.b32.xlu0 %v10031, 72
  %v10063 = vpop.permute.xlu0 %10062
  %10064 = vrot.lane.b32.xlu0 %v10032, 72
  %v10065 = vpop.permute.xlu0 %10064
  %10066 = vrot.lane.b32.xlu0 %v10033, 72
  %v10067 = vpop.permute.xlu0 %10066
  %10068 = vrot.lane.b32.xlu0 %v10034, 72
  %v10069 = vpop.permute.xlu0 %10068
  %10070 = vrot.lane.b32.xlu0 %v10035, 72
  %v10071 = vpop.permute.xlu0 %10070
  %v10072 = vsel %vm4709, %v10049, %v10051
  %v10073 = vsel %vm4709, %v10051, %v10053
  %v10074 = vsel %vm4709, %v10055, %v10057
  %v10075 = vsel %vm4709, %v10057, %v10059
  %v10076 = vsel %vm4709, %v10061, %v10063
  %v10077 = vsel %vm4709, %v10063, %v10065
  %v10078 = vsel %vm4709, %v10067, %v10069
  %v10079 = vsel %vm4709, %v10069, %v10071
  %10092 = vst.msk [vmem:[#allocation3 + $0x1f0] sm:$0xff] %vm4486, %v10072
  %10093 = vst [vmem:[#allocation3 + $0x1f8] sm:$0xff] %v10073
  %10094 = vst.msk [vmem:[#allocation3 + $0x200] sm:$0xff] %vm4489, %v10053
  %10095 = vst.msk [vmem:[#allocation3 + $0x218] sm:$0xff] %vm4486, %v10074
  %10096 = vst [vmem:[#allocation3 + $0x220] sm:$0xff] %v10075
  %10097 = vst.msk [vmem:[#allocation3 + $0x228] sm:$0xff] %vm4489, %v10059
  %10098 = vst.msk [vmem:[#allocation3 + $0x240] sm:$0xff] %vm4486, %v10076
  %10099 = vst [vmem:[#allocation3 + $0x248] sm:$0xff] %v10077
  %10100 = vst.msk [vmem:[#allocation3 + $0x250] sm:$0xff] %vm4489, %v10065
  %10101 = vst.msk [vmem:[#allocation3 + $0x268] sm:$0xff] %vm4486, %v10078
  %10102 = vst [vmem:[#allocation3 + $0x270] sm:$0xff] %v10079
  %10103 = vst.msk [vmem:[#allocation3 + $0x278] sm:$0xff] %vm4489, %v10071
  %v10104 = vld [vmem:[#allocation2 + $0x10] sm:$0xff]
  %v10105 = vld [vmem:[#allocation2 + $0x18] sm:$0xff]
  %v10106 = vld [vmem:[#allocation2 + $0x20] sm:$0xff]
  %v10107 = vld [vmem:[#allocation2 + $0x40] sm:$0xff]
  %v10108 = vld [vmem:[#allocation2 + $0x48] sm:$0xff]
  %v10109 = vld [vmem:[#allocation2 + $0x50] sm:$0xff]
  %v10110 = vld [vmem:[#allocation2 + $0x70] sm:$0xff]
  %v10111 = vld [vmem:[#allocation2 + $0x78] sm:$0xff]
  %v10112 = vld [vmem:[#allocation2 + $0x80] sm:$0xff]
  %v10113 = vld [vmem:[#allocation2 + $0xa0] sm:$0xff]
  %v10114 = vld [vmem:[#allocation2 + $0xa8] sm:$0xff]
  %v10115 = vld [vmem:[#allocation2 + $0xb0] sm:$0xff]
  %10128 = vrot.lane.b32.xlu0 %v10104, 71
  %v10129 = vpop.permute.xlu0 %10128
  %10130 = vrot.lane.b32.xlu0 %v10105, 71
  %v10131 = vpop.permute.xlu0 %10130
  %10132 = vrot.lane.b32.xlu0 %v10106, 71
  %v10133 = vpop.permute.xlu0 %10132
  %10134 = vrot.lane.b32.xlu0 %v10107, 71
  %v10135 = vpop.permute.xlu0 %10134
  %10136 = vrot.lane.b32.xlu0 %v10108, 71
  %v10137 = vpop.permute.xlu0 %10136
  %10138 = vrot.lane.b32.xlu0 %v10109, 71
  %v10139 = vpop.permute.xlu0 %10138
  %10140 = vrot.lane.b32.xlu0 %v10110, 71
  %v10141 = vpop.permute.xlu0 %10140
  %10142 = vrot.lane.b32.xlu0 %v10111, 71
  %v10143 = vpop.permute.xlu0 %10142
  %10144 = vrot.lane.b32.xlu0 %v10112, 71
  %v10145 = vpop.permute.xlu0 %10144
  %10146 = vrot.lane.b32.xlu0 %v10113, 71
  %v10147 = vpop.permute.xlu0 %10146
  %10148 = vrot.lane.b32.xlu0 %v10114, 71
  %v10149 = vpop.permute.xlu0 %10148
  %10150 = vrot.lane.b32.xlu0 %v10115, 71
  %v10151 = vpop.permute.xlu0 %10150
  %v10152 = vsel %vm4790, %v10129, %v10131
  %v10153 = vsel %vm4790, %v10131, %v10133
  %v10154 = vsel %vm4790, %v10135, %v10137
  %v10155 = vsel %vm4790, %v10137, %v10139
  %v10156 = vsel %vm4790, %v10141, %v10143
  %v10157 = vsel %vm4790, %v10143, %v10145
  %v10158 = vsel %vm4790, %v10147, %v10149
  %v10159 = vsel %vm4790, %v10149, %v10151
  %10172 = vst.msk [vmem:[#allocation3 + $0x290] sm:$0xff] %vm4486, %v10152
  %10173 = vst [vmem:[#allocation3 + $0x298] sm:$0xff] %v10153
  %10174 = vst.msk [vmem:[#allocation3 + $0x2a0] sm:$0xff] %vm4489, %v10133
  %10175 = vst.msk [vmem:[#allocation3 + $0x2b8] sm:$0xff] %vm4486, %v10154
  %10176 = vst [vmem:[#allocation3 + $0x2c0] sm:$0xff] %v10155
  %10177 = vst.msk [vmem:[#allocation3 + $0x2c8] sm:$0xff] %vm4489, %v10139
  %10178 = vst.msk [vmem:[#allocation3 + $0x2e0] sm:$0xff] %vm4486, %v10156
  %10179 = vst [vmem:[#allocation3 + $0x2e8] sm:$0xff] %v10157
  %10180 = vst.msk [vmem:[#allocation3 + $0x2f0] sm:$0xff] %vm4489, %v10145
  %10181 = vst.msk [vmem:[#allocation3 + $0x308] sm:$0xff] %vm4486, %v10158
  %10182 = vst [vmem:[#allocation3 + $0x310] sm:$0xff] %v10159
  %10183 = vst.msk [vmem:[#allocation3 + $0x318] sm:$0xff] %vm4489, %v10151
  %v10184 = vld [vmem:[#allocation2 + $0x10] sm:$0xff]
  %v10185 = vld [vmem:[#allocation2 + $0x18] sm:$0xff]
  %v10186 = vld [vmem:[#allocation2 + $0x20] sm:$0xff]
  %v10187 = vld [vmem:[#allocation2 + $0x40] sm:$0xff]
  %v10188 = vld [vmem:[#allocation2 + $0x48] sm:$0xff]
  %v10189 = vld [vmem:[#allocation2 + $0x50] sm:$0xff]
  %v10190 = vld [vmem:[#allocation2 + $0x70] sm:$0xff]
  %v10191 = vld [vmem:[#allocation2 + $0x78] sm:$0xff]
  %v10192 = vld [vmem:[#allocation2 + $0x80] sm:$0xff]
  %v10193 = vld [vmem:[#allocation2 + $0xa0] sm:$0xff]
  %v10194 = vld [vmem:[#allocation2 + $0xa8] sm:$0xff]
  %v10195 = vld [vmem:[#allocation2 + $0xb0] sm:$0xff]
  %10208 = vrot.lane.b32.xlu0 %v10184, 70
  %v10209 = vpop.permute.xlu0 %10208
  %10210 = vrot.lane.b32.xlu0 %v10185, 70
  %v10211 = vpop.permute.xlu0 %10210
  %10212 = vrot.lane.b32.xlu0 %v10186, 70
  %v10213 = vpop.permute.xlu0 %10212
  %10214 = vrot.lane.b32.xlu0 %v10187, 70
  %v10215 = vpop.permute.xlu0 %10214
  %10216 = vrot.lane.b32.xlu0 %v10188, 70
  %v10217 = vpop.permute.xlu0 %10216
  %10218 = vrot.lane.b32.xlu0 %v10189, 70
  %v10219 = vpop.permute.xlu0 %10218
  %10220 = vrot.lane.b32.xlu0 %v10190, 70
  %v10221 = vpop.permute.xlu0 %10220
  %10222 = vrot.lane.b32.xlu0 %v10191, 70
  %v10223 = vpop.permute.xlu0 %10222
  %10224 = vrot.lane.b32.xlu0 %v10192, 70
  %v10225 = vpop.permute.xlu0 %10224
  %10226 = vrot.lane.b32.xlu0 %v10193, 70
  %v10227 = vpop.permute.xlu0 %10226
  %10228 = vrot.lane.b32.xlu0 %v10194, 70
  %v10229 = vpop.permute.xlu0 %10228
  %10230 = vrot.lane.b32.xlu0 %v10195, 70
  %v10231 = vpop.permute.xlu0 %10230
  %v10232 = vsel %vm4871, %v10209, %v10211
  %v10233 = vsel %vm4871, %v10211, %v10213
  %v10234 = vsel %vm4871, %v10215, %v10217
  %v10235 = vsel %vm4871, %v10217, %v10219
  %v10236 = vsel %vm4871, %v10221, %v10223
  %v10237 = vsel %vm4871, %v10223, %v10225
  %v10238 = vsel %vm4871, %v10227, %v10229
  %v10239 = vsel %vm4871, %v10229, %v10231
  %10252 = vst.msk [vmem:[#allocation3 + $0x330] sm:$0xff] %vm4486, %v10232
  %10253 = vst [vmem:[#allocation3 + $0x338] sm:$0xff] %v10233
  %10254 = vst.msk [vmem:[#allocation3 + $0x340] sm:$0xff] %vm4489, %v10213
  %10255 = vst.msk [vmem:[#allocation3 + $0x358] sm:$0xff] %vm4486, %v10234
  %10256 = vst [vmem:[#allocation3 + $0x360] sm:$0xff] %v10235
  %10257 = vst.msk [vmem:[#allocation3 + $0x368] sm:$0xff] %vm4489, %v10219
  %10258 = vst.msk [vmem:[#allocation3 + $0x380] sm:$0xff] %vm4486, %v10236
  %10259 = vst [vmem:[#allocation3 + $0x388] sm:$0xff] %v10237
  %10260 = vst.msk [vmem:[#allocation3 + $0x390] sm:$0xff] %vm4489, %v10225
  %10261 = vst.msk [vmem:[#allocation3 + $0x3a8] sm:$0xff] %vm4486, %v10238
  %10262 = vst [vmem:[#allocation3 + $0x3b0] sm:$0xff] %v10239
  %10263 = vst.msk [vmem:[#allocation3 + $0x3b8] sm:$0xff] %vm4489, %v10231
  %v10264 = vld [vmem:[#allocation2 + $0x10] sm:$0xff]
  %v10265 = vld [vmem:[#allocation2 + $0x18] sm:$0xff]
  %v10266 = vld [vmem:[#allocation2 + $0x20] sm:$0xff]
  %v10267 = vld [vmem:[#allocation2 + $0x28] sm:$0xff]
  %v10268 = vld [vmem:[#allocation2 + $0x40] sm:$0xff]
  %v10269 = vld [vmem:[#allocation2 + $0x48] sm:$0xff]
  %v10270 = vld [vmem:[#allocation2 + $0x50] sm:$0xff]
  %v10271 = vld [vmem:[#allocation2 + $0x58] sm:$0xff]
  %v10272 = vld [vmem:[#allocation2 + $0x70] sm:$0xff]
  %v10273 = vld [vmem:[#allocation2 + $0x78] sm:$0xff]
  %v10274 = vld [vmem:[#allocation2 + $0x80] sm:$0xff]
  %v10275 = vld [vmem:[#allocation2 + $0x88] sm:$0xff]
  %v10276 = vld [vmem:[#allocation2 + $0xa0] sm:$0xff]
  %v10277 = vld [vmem:[#allocation2 + $0xa8] sm:$0xff]
  %v10278 = vld [vmem:[#allocation2 + $0xb0] sm:$0xff]
  %v10279 = vld [vmem:[#allocation2 + $0xb8] sm:$0xff]
  %10296 = vrot.lane.b32.xlu0 %v10264, 54
  %v10297 = vpop.permute.xlu0 %10296
  %10298 = vrot.lane.b32.xlu0 %v10265, 54
  %v10299 = vpop.permute.xlu0 %10298
  %10300 = vrot.lane.b32.xlu0 %v10266, 54
  %v10301 = vpop.permute.xlu0 %10300
  %10302 = vrot.lane.b32.xlu0 %v10267, 54
  %v10303 = vpop.permute.xlu0 %10302
  %10304 = vrot.lane.b32.xlu0 %v10268, 54
  %v10305 = vpop.permute.xlu0 %10304
  %10306 = vrot.lane.b32.xlu0 %v10269, 54
  %v10307 = vpop.permute.xlu0 %10306
  %10308 = vrot.lane.b32.xlu0 %v10270, 54
  %v10309 = vpop.permute.xlu0 %10308
  %10310 = vrot.lane.b32.xlu0 %v10271, 54
  %v10311 = vpop.permute.xlu0 %10310
  %10312 = vrot.lane.b32.xlu0 %v10272, 54
  %v10313 = vpop.permute.xlu0 %10312
  %10314 = vrot.lane.b32.xlu0 %v10273, 54
  %v10315 = vpop.permute.xlu0 %10314
  %10316 = vrot.lane.b32.xlu0 %v10274, 54
  %v10317 = vpop.permute.xlu0 %10316
  %10318 = vrot.lane.b32.xlu0 %v10275, 54
  %v10319 = vpop.permute.xlu0 %10318
  %10320 = vrot.lane.b32.xlu0 %v10276, 54
  %v10321 = vpop.permute.xlu0 %10320
  %10322 = vrot.lane.b32.xlu0 %v10277, 54
  %v10323 = vpop.permute.xlu0 %10322
  %10324 = vrot.lane.b32.xlu0 %v10278, 54
  %v10325 = vpop.permute.xlu0 %10324
  %10326 = vrot.lane.b32.xlu0 %v10279, 54
  %v10327 = vpop.permute.xlu0 %10326
  %v10328 = vsel %vm4968, %v10297, %v10299
  %v10329 = vsel %vm4968, %v10299, %v10301
  %v10330 = vsel %vm4968, %v10301, %v10303
  %v10331 = vsel %vm4968, %v10305, %v10307
  %v10332 = vsel %vm4968, %v10307, %v10309
  %v10333 = vsel %vm4968, %v10309, %v10311
  %v10334 = vsel %vm4968, %v10313, %v10315
  %v10335 = vsel %vm4968, %v10315, %v10317
  %v10336 = vsel %vm4968, %v10317, %v10319
  %v10337 = vsel %vm4968, %v10321, %v10323
  %v10338 = vsel %vm4968, %v10323, %v10325
  %v10339 = vsel %vm4968, %v10325, %v10327
  %10352 = vst.msk [vmem:[#allocation3 + $0x3d0] sm:$0xff] %vm4486, %v10328
  %10353 = vst [vmem:[#allocation3 + $0x3d8] sm:$0xff] %v10329
  %10354 = vst.msk [vmem:[#allocation3 + $0x3e0] sm:$0xff] %vm4489, %v10330
  %10355 = vst.msk [vmem:[#allocation3 + $0x3f8] sm:$0xff] %vm4486, %v10331
  %10356 = vst [vmem:[#allocation3 + $0x400] sm:$0xff] %v10332
  %10357 = vst.msk [vmem:[#allocation3 + $0x408] sm:$0xff] %vm4489, %v10333
  %10358 = vst.msk [vmem:[#allocation3 + $0x420] sm:$0xff] %vm4486, %v10334
  %10359 = vst [vmem:[#allocation3 + $0x428] sm:$0xff] %v10335
  %10360 = vst.msk [vmem:[#allocation3 + $0x430] sm:$0xff] %vm4489, %v10336
  %10361 = vst.msk [vmem:[#allocation3 + $0x448] sm:$0xff] %vm4486, %v10337
  %10362 = vst [vmem:[#allocation3 + $0x450] sm:$0xff] %v10338
  %10363 = vst.msk [vmem:[#allocation3 + $0x458] sm:$0xff] %vm4489, %v10339
  %v10364 = vld [vmem:[#allocation2 + $0x10] sm:$0xff]
  %v10365 = vld [vmem:[#allocation2 + $0x18] sm:$0xff]
  %v10366 = vld [vmem:[#allocation2 + $0x20] sm:$0xff]
  %v10367 = vld [vmem:[#allocation2 + $0x28] sm:$0xff]
  %v10368 = vld [vmem:[#allocation2 + $0x40] sm:$0xff]
  %v10369 = vld [vmem:[#allocation2 + $0x48] sm:$0xff]
  %v10370 = vld [vmem:[#allocation2 + $0x50] sm:$0xff]
  %v10371 = vld [vmem:[#allocation2 + $0x58] sm:$0xff]
  %v10372 = vld [vmem:[#allocation2 + $0x70] sm:$0xff]
  %v10373 = vld [vmem:[#allocation2 + $0x78] sm:$0xff]
  %v10374 = vld [vmem:[#allocation2 + $0x80] sm:$0xff]
  %v10375 = vld [vmem:[#allocation2 + $0x88] sm:$0xff]
  %v10376 = vld [vmem:[#allocation2 + $0xa0] sm:$0xff]
  %v10377 = vld [vmem:[#allocation2 + $0xa8] sm:$0xff]
  %v10378 = vld [vmem:[#allocation2 + $0xb0] sm:$0xff]
  %v10379 = vld [vmem:[#allocation2 + $0xb8] sm:$0xff]
  %10396 = vrot.lane.b32.xlu0 %v10364, 53
  %v10397 = vpop.permute.xlu0 %10396
  %10398 = vrot.lane.b32.xlu0 %v10365, 53
  %v10399 = vpop.permute.xlu0 %10398
  %10400 = vrot.lane.b32.xlu0 %v10366, 53
  %v10401 = vpop.permute.xlu0 %10400
  %10402 = vrot.lane.b32.xlu0 %v10367, 53
  %v10403 = vpop.permute.xlu0 %10402
  %10404 = vrot.lane.b32.xlu0 %v10368, 53
  %v10405 = vpop.permute.xlu0 %10404
  %10406 = vrot.lane.b32.xlu0 %v10369, 53
  %v10407 = vpop.permute.xlu0 %10406
  %10408 = vrot.lane.b32.xlu0 %v10370, 53
  %v10409 = vpop.permute.xlu0 %10408
  %10410 = vrot.lane.b32.xlu0 %v10371, 53
  %v10411 = vpop.permute.xlu0 %10410
  %10412 = vrot.lane.b32.xlu0 %v10372, 53
  %v10413 = vpop.permute.xlu0 %10412
  %10414 = vrot.lane.b32.xlu0 %v10373, 53
  %v10415 = vpop.permute.xlu0 %10414
  %10416 = vrot.lane.b32.xlu0 %v10374, 53
  %v10417 = vpop.permute.xlu0 %10416
  %10418 = vrot.lane.b32.xlu0 %v10375, 53
  %v10419 = vpop.permute.xlu0 %10418
  %10420 = vrot.lane.b32.xlu0 %v10376, 53
  %v10421 = vpop.permute.xlu0 %10420
  %10422 = vrot.lane.b32.xlu0 %v10377, 53
  %v10423 = vpop.permute.xlu0 %10422
  %10424 = vrot.lane.b32.xlu0 %v10378, 53
  %v10425 = vpop.permute.xlu0 %10424
  %10426 = vrot.lane.b32.xlu0 %v10379, 53
  %v10427 = vpop.permute.xlu0 %10426
  %v10428 = vsel %vm5069, %v10397, %v10399
  %v10429 = vsel %vm5069, %v10399, %v10401
  %v10430 = vsel %vm5069, %v10401, %v10403
  %v10431 = vsel %vm5069, %v10405, %v10407
  %v10432 = vsel %vm5069, %v10407, %v10409
  %v10433 = vsel %vm5069, %v10409, %v10411
  %v10434 = vsel %vm5069, %v10413, %v10415
  %v10435 = vsel %vm5069, %v10415, %v10417
  %v10436 = vsel %vm5069, %v10417, %v10419
  %v10437 = vsel %vm5069, %v10421, %v10423
  %v10438 = vsel %vm5069, %v10423, %v10425
  %v10439 = vsel %vm5069, %v10425, %v10427
  %10452 = vst.msk [vmem:[#allocation3 + $0x470] sm:$0xff] %vm4486, %v10428
  %10453 = vst [vmem:[#allocation3 + $0x478] sm:$0xff] %v10429
  %10454 = vst.msk [vmem:[#allocation3 + $0x480] sm:$0xff] %vm4489, %v10430
  %10455 = vst.msk [vmem:[#allocation3 + $0x498] sm:$0xff] %vm4486, %v10431
  %10456 = vst [vmem:[#allocation3 + $0x4a0] sm:$0xff] %v10432
  %10457 = vst.msk [vmem:[#allocation3 + $0x4a8] sm:$0xff] %vm4489, %v10433
  %10458 = vst.msk [vmem:[#allocation3 + $0x4c0] sm:$0xff] %vm4486, %v10434
  %10459 = vst [vmem:[#allocation3 + $0x4c8] sm:$0xff] %v10435
  %10460 = vst.msk [vmem:[#allocation3 + $0x4d0] sm:$0xff] %vm4489, %v10436
  %10461 = vst.msk [vmem:[#allocation3 + $0x4e8] sm:$0xff] %vm4486, %v10437
  %10462 = vst [vmem:[#allocation3 + $0x4f0] sm:$0xff] %v10438
  %10463 = vst.msk [vmem:[#allocation3 + $0x4f8] sm:$0xff] %vm4489, %v10439
  %v10464 = vld [vmem:[#allocation2 + $0x10] sm:$0xff]
  %v10465 = vld [vmem:[#allocation2 + $0x18] sm:$0xff]
  %v10466 = vld [vmem:[#allocation2 + $0x20] sm:$0xff]
  %v10467 = vld [vmem:[#allocation2 + $0x28] sm:$0xff]
  %v10468 = vld [vmem:[#allocation2 + $0x40] sm:$0xff]
  %v10469 = vld [vmem:[#allocation2 + $0x48] sm:$0xff]
  %v10470 = vld [vmem:[#allocation2 + $0x50] sm:$0xff]
  %v10471 = vld [vmem:[#allocation2 + $0x58] sm:$0xff]
  %v10472 = vld [vmem:[#allocation2 + $0x70] sm:$0xff]
  %v10473 = vld [vmem:[#allocation2 + $0x78] sm:$0xff]
  %v10474 = vld [vmem:[#allocation2 + $0x80] sm:$0xff]
  %v10475 = vld [vmem:[#allocation2 + $0x88] sm:$0xff]
  %v10476 = vld [vmem:[#allocation2 + $0xa0] sm:$0xff]
  %v10477 = vld [vmem:[#allocation2 + $0xa8] sm:$0xff]
  %v10478 = vld [vmem:[#allocation2 + $0xb0] sm:$0xff]
  %v10479 = vld [vmem:[#allocation2 + $0xb8] sm:$0xff]
  %10496 = vrot.lane.b32.xlu0 %v10464, 52
  %v10497 = vpop.permute.xlu0 %10496
  %10498 = vrot.lane.b32.xlu0 %v10465, 52
  %v10499 = vpop.permute.xlu0 %10498
  %10500 = vrot.lane.b32.xlu0 %v10466, 52
  %v10501 = vpop.permute.xlu0 %10500
  %10502 = vrot.lane.b32.xlu0 %v10467, 52
  %v10503 = vpop.permute.xlu0 %10502
  %10504 = vrot.lane.b32.xlu0 %v10468, 52
  %v10505 = vpop.permute.xlu0 %10504
  %10506 = vrot.lane.b32.xlu0 %v10469, 52
  %v10507 = vpop.permute.xlu0 %10506
  %10508 = vrot.lane.b32.xlu0 %v10470, 52
  %v10509 = vpop.permute.xlu0 %10508
  %10510 = vrot.lane.b32.xlu0 %v10471, 52
  %v10511 = vpop.permute.xlu0 %10510
  %10512 = vrot.lane.b32.xlu0 %v10472, 52
  %v10513 = vpop.permute.xlu0 %10512
  %10514 = vrot.lane.b32.xlu0 %v10473, 52
  %v10515 = vpop.permute.xlu0 %10514
  %10516 = vrot.lane.b32.xlu0 %v10474, 52
  %v10517 = vpop.permute.xlu0 %10516
  %10518 = vrot.lane.b32.xlu0 %v10475, 52
  %v10519 = vpop.permute.xlu0 %10518
  %10520 = vrot.lane.b32.xlu0 %v10476, 52
  %v10521 = vpop.permute.xlu0 %10520
  %10522 = vrot.lane.b32.xlu0 %v10477, 52
  %v10523 = vpop.permute.xlu0 %10522
  %10524 = vrot.lane.b32.xlu0 %v10478, 52
  %v10525 = vpop.permute.xlu0 %10524
  %10526 = vrot.lane.b32.xlu0 %v10479, 52
  %v10527 = vpop.permute.xlu0 %10526
  %v10528 = vsel %vm5170, %v10497, %v10499
  %v10529 = vsel %vm5170, %v10499, %v10501
  %v10530 = vsel %vm5170, %v10501, %v10503
  %v10531 = vsel %vm5170, %v10505, %v10507
  %v10532 = vsel %vm5170, %v10507, %v10509
  %v10533 = vsel %vm5170, %v10509, %v10511
  %v10534 = vsel %vm5170, %v10513, %v10515
  %v10535 = vsel %vm5170, %v10515, %v10517
  %v10536 = vsel %vm5170, %v10517, %v10519
  %v10537 = vsel %vm5170, %v10521, %v10523
  %v10538 = vsel %vm5170, %v10523, %v10525
  %v10539 = vsel %vm5170, %v10525, %v10527
  %10552 = vst.msk [vmem:[#allocation3 + $0x510] sm:$0xff] %vm4486, %v10528
  %10553 = vst [vmem:[#allocation3 + $0x518] sm:$0xff] %v10529
  %10554 = vst.msk [vmem:[#allocation3 + $0x520] sm:$0xff] %vm4489, %v10530
  %10555 = vst.msk [vmem:[#allocation3 + $0x538] sm:$0xff] %vm4486, %v10531
  %10556 = vst [vmem:[#allocation3 + $0x540] sm:$0xff] %v10532
  %10557 = vst.msk [vmem:[#allocation3 + $0x548] sm:$0xff] %vm4489, %v10533
  %10558 = vst.msk [vmem:[#allocation3 + $0x560] sm:$0xff] %vm4486, %v10534
  %10559 = vst [vmem:[#allocation3 + $0x568] sm:$0xff] %v10535
  %10560 = vst.msk [vmem:[#allocation3 + $0x570] sm:$0xff] %vm4489, %v10536
  %10561 = vst.msk [vmem:[#allocation3 + $0x588] sm:$0xff] %vm4486, %v10537
  %10562 = vst [vmem:[#allocation3 + $0x590] sm:$0xff] %v10538
  %10563 = vst.msk [vmem:[#allocation3 + $0x598] sm:$0xff] %vm4489, %v10539
  %v10564 = vld [vmem:[%s8] sm:$0xff]
  %v10565 = vld [vmem:[%s8 + $0x8] sm:$0xff]
  %v10566 = vld [vmem:[%s8 + $0x10] sm:$0xf]
  %v10567 = vld [vmem:[#allocation3] sm:$0xff]
  %v10568 = vld [vmem:[#allocation3 + $0x8] sm:$0xff]
  %v10569 = vld [vmem:[#allocation3 + $0x10] sm:$0xff]
  %v10570 = vld [vmem:[#allocation3 + $0x18] sm:$0xff]
  %v10571 = vld [vmem:[#allocation3 + $0x20] sm:$0xff]
  %v10572 = vld [vmem:[#allocation3 + $0x28] sm:$0xff]
  %v10573 = vld [vmem:[#allocation3 + $0x30] sm:$0xff]
  %v10574 = vld [vmem:[#allocation3 + $0x38] sm:$0xff]
  %v10575 = vld [vmem:[#allocation3 + $0x40] sm:$0xff]
  %v10576 = vld [vmem:[#allocation3 + $0x48] sm:$0xff]
  %v10577 = vld [vmem:[#allocation3 + $0x50] sm:$0xff]
  %v10578 = vld [vmem:[#allocation3 + $0x58] sm:$0xff]
  %v10579 = vld [vmem:[#allocation3 + $0x60] sm:$0xff]
  %v10580 = vld [vmem:[#allocation3 + $0x68] sm:$0xff]
  %v10581 = vld [vmem:[#allocation3 + $0x70] sm:$0xff]
  %v10582 = vld [vmem:[#allocation3 + $0x78] sm:$0xff]
  %v10583 = vld [vmem:[#allocation3 + $0x80] sm:$0xff]
  %v10584 = vld [vmem:[#allocation3 + $0x88] sm:$0xff]
  %v10585 = vld [vmem:[#allocation3 + $0x90] sm:$0xff]
  %v10586 = vld [vmem:[#allocation3 + $0x98] sm:$0xff]
  %v10587 = vld [vmem:[#allocation3 + $0xa0] sm:$0xff]
  %v10588 = vld [vmem:[#allocation3 + $0xa8] sm:$0xff]
  %v10589 = vld [vmem:[#allocation3 + $0xb0] sm:$0xff]
  %v10590 = vld [vmem:[#allocation3 + $0xb8] sm:$0xff]
  %v10591 = vld [vmem:[#allocation3 + $0xc0] sm:$0xff]
  %v10592 = vld [vmem:[#allocation3 + $0xc8] sm:$0xff]
  %v10593 = vld [vmem:[#allocation3 + $0xd0] sm:$0xff]
  %v10594 = vld [vmem:[#allocation3 + $0xd8] sm:$0xff]
  %v10595 = vld [vmem:[#allocation3 + $0xe0] sm:$0xff]
  %v10596 = vld [vmem:[#allocation3 + $0xe8] sm:$0xff]
  %v10597 = vld [vmem:[#allocation3 + $0xf0] sm:$0xff]
  %v10598 = vld [vmem:[#allocation3 + $0xf8] sm:$0xff]
  %v10599 = vld [vmem:[#allocation3 + $0x100] sm:$0xff]
  %v10600 = vld [vmem:[#allocation3 + $0x108] sm:$0xff]
  %v10601 = vld [vmem:[#allocation3 + $0x110] sm:$0xff]
  %v10602 = vld [vmem:[#allocation3 + $0x118] sm:$0xff]
  %v10603 = vld [vmem:[#allocation3 + $0x120] sm:$0xff]
  %v10604 = vld [vmem:[#allocation3 + $0x128] sm:$0xff]
  %v10605 = vld [vmem:[#allocation3 + $0x130] sm:$0xff]
  %v10606 = vld [vmem:[#allocation3 + $0x138] sm:$0xff]
  %v10607 = vld [vmem:[#allocation3 + $0x140] sm:$0xff]
  %v10608 = vld [vmem:[#allocation3 + $0x148] sm:$0xff]
  %v10609 = vld [vmem:[#allocation3 + $0x150] sm:$0xff]
  %v10610 = vld [vmem:[#allocation3 + $0x158] sm:$0xff]
  %v10611 = vld [vmem:[#allocation3 + $0x160] sm:$0xff]
  %v10612 = vld [vmem:[#allocation3 + $0x168] sm:$0xff]
  %v10613 = vld [vmem:[#allocation3 + $0x170] sm:$0xff]
  %v10614 = vld [vmem:[#allocation3 + $0x178] sm:$0xff]
  %v10615 = vld [vmem:[#allocation3 + $0x180] sm:$0xff]
  %v10616 = vld [vmem:[#allocation3 + $0x188] sm:$0xff]
  %v10617 = vld [vmem:[#allocation3 + $0x190] sm:$0xff]
  %v10618 = vld [vmem:[#allocation3 + $0x198] sm:$0xff]
  %v10619 = vld [vmem:[#allocation3 + $0x1a0] sm:$0xff]
  %v10620 = vld [vmem:[#allocation3 + $0x1a8] sm:$0xff]
  %v10621 = vld [vmem:[#allocation3 + $0x1b0] sm:$0xff]
  %v10622 = vld [vmem:[#allocation3 + $0x1b8] sm:$0xff]
  %v10623 = vld [vmem:[#allocation3 + $0x1c0] sm:$0xff]
  %v10624 = vld [vmem:[#allocation3 + $0x1c8] sm:$0xff]
  %v10625 = vld [vmem:[#allocation3 + $0x1d0] sm:$0xff]
  %v10626 = vld [vmem:[#allocation3 + $0x1d8] sm:$0xff]
  %v10627 = vld [vmem:[#allocation3 + $0x1e0] sm:$0xff]
  %v10628 = vld [vmem:[#allocation3 + $0x1e8] sm:$0xff]
  %v10629 = vld [vmem:[#allocation3 + $0x1f0] sm:$0xff]
  %v10630 = vld [vmem:[#allocation3 + $0x1f8] sm:$0xff]
  %v10631 = vld [vmem:[#allocation3 + $0x200] sm:$0xff]
  %v10632 = vld [vmem:[#allocation3 + $0x208] sm:$0xff]
  %v10633 = vld [vmem:[#allocation3 + $0x210] sm:$0xff]
  %v10634 = vld [vmem:[#allocation3 + $0x218] sm:$0xff]
  %v10635 = vld [vmem:[#allocation3 + $0x220] sm:$0xff]
  %v10636 = vld [vmem:[#allocation3 + $0x228] sm:$0xff]
  %v10637 = vld [vmem:[#allocation3 + $0x230] sm:$0xff]
  %v10638 = vld [vmem:[#allocation3 + $0x238] sm:$0xff]
  %v10639 = vld [vmem:[#allocation3 + $0x240] sm:$0xff]
  %v10640 = vld [vmem:[#allocation3 + $0x248] sm:$0xff]
  %v10641 = vld [vmem:[#allocation3 + $0x250] sm:$0xff]
  %v10642 = vld [vmem:[#allocation3 + $0x258] sm:$0xff]
  %v10643 = vld [vmem:[#allocation3 + $0x260] sm:$0xff]
  %v10644 = vld [vmem:[#allocation3 + $0x268] sm:$0xff]
  %v10645 = vld [vmem:[#allocation3 + $0x270] sm:$0xff]
  %v10646 = vld [vmem:[#allocation3 + $0x278] sm:$0xff]
  %v10647 = vld [vmem:[#allocation3 + $0x280] sm:$0xff]
  %v10648 = vld [vmem:[#allocation3 + $0x288] sm:$0xff]
  %v10649 = vld [vmem:[#allocation3 + $0x290] sm:$0xff]
  %v10650 = vld [vmem:[#allocation3 + $0x298] sm:$0xff]
  %v10651 = vld [vmem:[#allocation3 + $0x2a0] sm:$0xff]
  %v10652 = vld [vmem:[#allocation3 + $0x2a8] sm:$0xff]
  %v10653 = vld [vmem:[#allocation3 + $0x2b0] sm:$0xff]
  %v10654 = vld [vmem:[#allocation3 + $0x2b8] sm:$0xff]
  %v10655 = vld [vmem:[#allocation3 + $0x2c0] sm:$0xff]
  %v10656 = vld [vmem:[#allocation3 + $0x2c8] sm:$0xff]
  %v10657 = vld [vmem:[#allocation3 + $0x2d0] sm:$0xff]
  %v10658 = vld [vmem:[#allocation3 + $0x2d8] sm:$0xff]
  %v10659 = vld [vmem:[#allocation3 + $0x2e0] sm:$0xff]
  %v10660 = vld [vmem:[#allocation3 + $0x2e8] sm:$0xff]
  %v10661 = vld [vmem:[#allocation3 + $0x2f0] sm:$0xff]
  %v10662 = vld [vmem:[#allocation3 + $0x2f8] sm:$0xff]
  %v10663 = vld [vmem:[#allocation3 + $0x300] sm:$0xff]
  %v10664 = vld [vmem:[#allocation3 + $0x308] sm:$0xff]
  %v10665 = vld [vmem:[#allocation3 + $0x310] sm:$0xff]
  %v10666 = vld [vmem:[#allocation3 + $0x318] sm:$0xff]
  %v10667 = vld [vmem:[#allocation3 + $0x320] sm:$0xff]
  %v10668 = vld [vmem:[#allocation3 + $0x328] sm:$0xff]
  %v10669 = vld [vmem:[#allocation3 + $0x330] sm:$0xff]
  %v10670 = vld [vmem:[#allocation3 + $0x338] sm:$0xff]
  %v10671 = vld [vmem:[#allocation3 + $0x340] sm:$0xff]
  %v10672 = vld [vmem:[#allocation3 + $0x348] sm:$0xff]
  %v10673 = vld [vmem:[#allocation3 + $0x350] sm:$0xff]
  %v10674 = vld [vmem:[#allocation3 + $0x358] sm:$0xff]
  %v10675 = vld [vmem:[#allocation3 + $0x360] sm:$0xff]
  %v10676 = vld [vmem:[#allocation3 + $0x368] sm:$0xff]
  %v10677 = vld [vmem:[#allocation3 + $0x370] sm:$0xff]
  %v10678 = vld [vmem:[#allocation3 + $0x378] sm:$0xff]
  %v10679 = vld [vmem:[#allocation3 + $0x380] sm:$0xff]
  %v10680 = vld [vmem:[#allocation3 + $0x388] sm:$0xff]
  %v10681 = vld [vmem:[#allocation3 + $0x390] sm:$0xff]
  %v10682 = vld [vmem:[#allocation3 + $0x398] sm:$0xff]
  %v10683 = vld [vmem:[#allocation3 + $0x3a0] sm:$0xff]
  %v10684 = vld [vmem:[#allocation3 + $0x3a8] sm:$0xff]
  %v10685 = vld [vmem:[#allocation3 + $0x3b0] sm:$0xff]
  %v10686 = vld [vmem:[#allocation3 + $0x3b8] sm:$0xff]
  %v10687 = vld [vmem:[#allocation3 + $0x3c0] sm:$0xff]
  %v10688 = vld [vmem:[#allocation3 + $0x3c8] sm:$0xff]
  %v10689 = vld [vmem:[#allocation3 + $0x3d0] sm:$0xff]
  %v10690 = vld [vmem:[#allocation3 + $0x3d8] sm:$0xff]
  %v10691 = vld [vmem:[#allocation3 + $0x3e0] sm:$0xff]
  %v10692 = vld [vmem:[#allocation3 + $0x3e8] sm:$0xff]
  %v10693 = vld [vmem:[#allocation3 + $0x3f0] sm:$0xff]
  %v10694 = vld [vmem:[#allocation3 + $0x3f8] sm:$0xff]
  %v10695 = vld [vmem:[#allocation3 + $0x400] sm:$0xff]
  %v10696 = vld [vmem:[#allocation3 + $0x408] sm:$0xff]
  %v10697 = vld [vmem:[#allocation3 + $0x410] sm:$0xff]
  %v10698 = vld [vmem:[#allocation3 + $0x418] sm:$0xff]
  %v10699 = vld [vmem:[#allocation3 + $0x420] sm:$0xff]
  %v10700 = vld [vmem:[#allocation3 + $0x428] sm:$0xff]
  %v10701 = vld [vmem:[#allocation3 + $0x430] sm:$0xff]
  %v10702 = vld [vmem:[#allocation3 + $0x438] sm:$0xff]
  %v10703 = vld [vmem:[#allocation3 + $0x440] sm:$0xff]
  %v10704 = vld [vmem:[#allocation3 + $0x448] sm:$0xff]
  %v10705 = vld [vmem:[#allocation3 + $0x450] sm:$0xff]
  %v10706 = vld [vmem:[#allocation3 + $0x458] sm:$0xff]
  %v10707 = vld [vmem:[#allocation3 + $0x460] sm:$0xff]
  %v10708 = vld [vmem:[#allocation3 + $0x468] sm:$0xff]
  %v10709 = vld [vmem:[#allocation3 + $0x470] sm:$0xff]
  %v10710 = vld [vmem:[#allocation3 + $0x478] sm:$0xff]
  %v10711 = vld [vmem:[#allocation3 + $0x480] sm:$0xff]
  %v10712 = vld [vmem:[#allocation3 + $0x488] sm:$0xff]
  %v10713 = vld [vmem:[#allocation3 + $0x490] sm:$0xff]
  %v10714 = vld [vmem:[#allocation3 + $0x498] sm:$0xff]
  %v10715 = vld [vmem:[#allocation3 + $0x4a0] sm:$0xff]
  %v10716 = vld [vmem:[#allocation3 + $0x4a8] sm:$0xff]
  %v10717 = vld [vmem:[#allocation3 + $0x4b0] sm:$0xff]
  %v10718 = vld [vmem:[#allocation3 + $0x4b8] sm:$0xff]
  %v10719 = vld [vmem:[#allocation3 + $0x4c0] sm:$0xff]
  %v10720 = vld [vmem:[#allocation3 + $0x4c8] sm:$0xff]
  %v10721 = vld [vmem:[#allocation3 + $0x4d0] sm:$0xff]
  %v10722 = vld [vmem:[#allocation3 + $0x4d8] sm:$0xff]
  %v10723 = vld [vmem:[#allocation3 + $0x4e0] sm:$0xff]
  %v10724 = vld [vmem:[#allocation3 + $0x4e8] sm:$0xff]
  %v10725 = vld [vmem:[#allocation3 + $0x4f0] sm:$0xff]
  %v10726 = vld [vmem:[#allocation3 + $0x4f8] sm:$0xff]
  %v10727 = vld [vmem:[#allocation3 + $0x500] sm:$0xff]
  %v10728 = vld [vmem:[#allocation3 + $0x508] sm:$0xff]
  %v10729 = vld [vmem:[#allocation3 + $0x510] sm:$0xff]
  %v10730 = vld [vmem:[#allocation3 + $0x518] sm:$0xff]
  %v10731 = vld [vmem:[#allocation3 + $0x520] sm:$0xff]
  %v10732 = vld [vmem:[#allocation3 + $0x528] sm:$0xff]
  %v10733 = vld [vmem:[#allocation3 + $0x530] sm:$0xff]
  %v10734 = vld [vmem:[#allocation3 + $0x538] sm:$0xff]
  %v10735 = vld [vmem:[#allocation3 + $0x540] sm:$0xff]
  %v10736 = vld [vmem:[#allocation3 + $0x548] sm:$0xff]
  %v10737 = vld [vmem:[#allocation3 + $0x550] sm:$0xff]
  %v10738 = vld [vmem:[#allocation3 + $0x558] sm:$0xff]
  %v10739 = vld [vmem:[#allocation3 + $0x560] sm:$0xff]
  %v10740 = vld [vmem:[#allocation3 + $0x568] sm:$0xff]
  %v10741 = vld [vmem:[#allocation3 + $0x570] sm:$0xff]
  %v10742 = vld [vmem:[#allocation3 + $0x578] sm:$0xff]
  %v10743 = vld [vmem:[#allocation3 + $0x580] sm:$0xff]
  %v10744 = vld [vmem:[#allocation3 + $0x588] sm:$0xff]
  %v10745 = vld [vmem:[#allocation3 + $0x590] sm:$0xff]
  %v10746 = vld [vmem:[#allocation3 + $0x598] sm:$0xff]
  %v10750 = vunpack.c.l.b16 %v10564
  %v10751 = vunpack.c.h.b16 %v10564
  %v10752 = vunpack.c.l.b16 %v10565
  %v10753 = vunpack.c.h.b16 %v10565
  %v10754 = vunpack.c.l.b16 %v10566
  %v10755 = vpack.c.b16 %v10750, %v10750
  %v10756 = vpack.c.b16 %v10751, %v10751
  %v10757 = vpack.c.b16 %v10752, %v10752
  %v10758 = vpack.c.b16 %v10753, %v10753
  %v10759 = vpack.c.b16 %v10754, %v10754
  %v10765 = vsel %vm4489, %v10759, 0
  %10767 = vmatprep.subr.bf16.mxu0 %v10568
  %10768 = vmatpush1.bf16.msra.mxu0 %v10567
  %10769 = vmatprep.subr.bf16.mxu0 %v10573
  %10770 = vmatpush1.bf16.msra.mxu0 %v10572
  %10771 = vmatprep.subr.bf16.mxu0 %v10578
  %10772 = vmatpush1.bf16.msra.mxu0 %v10577
  %10773 = vmatprep.subr.bf16.mxu0 %v10583
  %10774 = vmatpush1.bf16.msra.mxu0 %v10582
  %10775 = vmatprep.subr.bf16.mxu0 %v10588
  %10776 = vmatpush1.bf16.msra.mxu0 %v10587
  %10777 = vmatprep.subr.bf16.mxu0 %v10593
  %10778 = vmatpush1.bf16.msra.mxu0 %v10592
  %10779 = vmatprep.subr.bf16.mxu0 %v10598
  %10780 = vmatpush1.bf16.msra.mxu0 %v10597
  %10781 = vmatprep.subr.bf16.mxu0 %v10603
  %10782 = vmatpush1.bf16.msra.mxu0 %v10602
  %10783 = vmatprep.subr.bf16.mxu0 %v10608
  %10784 = vmatpush1.bf16.msra.mxu0 %v10607
  %10785 = vmatprep.subr.bf16.mxu0 %v10613
  %10786 = vmatpush1.bf16.msra.mxu0 %v10612
  %10787 = vmatprep.subr.bf16.mxu0 %v10618
  %10788 = vmatpush1.bf16.msra.mxu0 %v10617
  %10789 = vmatprep.subr.bf16.mxu0 %v10623
  %10790 = vmatpush1.bf16.msra.mxu0 %v10622
  %10791 = vmatprep.subr.bf16.mxu0 %v10628
  %10792 = vmatpush1.bf16.msra.mxu0 %v10627
  %10793 = vmatprep.subr.bf16.mxu0 %v10633
  %10794 = vmatpush1.bf16.msra.mxu0 %v10632
  %10795 = vmatprep.subr.bf16.mxu0 %v10638
  %10796 = vmatpush1.bf16.msra.mxu0 %v10637
  %10797 = vmatprep.subr.bf16.mxu0 %v10643
  %10798 = vmatpush1.bf16.msra.mxu0 %v10642
  %10799 = vmatprep.mubr.bf16.mxu0 %v10756
  %10800 = vmatmul.mubr.bf16.gmra.mrb[0].mxu0 %v10755
  %v10801 = vpop.f32.mrb[0].mxu0
  %v10802 = vadd.f32 0.0, %v10801
  %v10803 = vpop.f32.mrb[0].mxu0
  %v10804 = vadd.f32 0.0, %v10803
  %v10805 = vpop.f32.mrb[0].mxu0
  %v10806 = vpop.f32.mrb[0].mxu0
  %10807 = vdwg.mxu0
  %10808 = vmatprep.subr.bf16.mxu0 %v10648
  %10809 = vmatpush1.bf16.msra.mxu0 %v10647
  %10810 = vmatprep.subr.bf16.mxu0 %v10653
  %10811 = vmatpush1.bf16.msra.mxu0 %v10652
  %10812 = vmatprep.subr.bf16.mxu0 %v10658
  %10813 = vmatpush1.bf16.msra.mxu0 %v10657
  %10814 = vmatprep.subr.bf16.mxu0 %v10663
  %10815 = vmatpush1.bf16.msra.mxu0 %v10662
  %10816 = vmatprep.subr.bf16.mxu0 %v10668
  %10817 = vmatpush1.bf16.msra.mxu0 %v10667
  %10818 = vmatprep.subr.bf16.mxu0 %v10673
  %10819 = vmatpush1.bf16.msra.mxu0 %v10672
  %10820 = vmatprep.subr.bf16.mxu0 %v10678
  %10821 = vmatpush1.bf16.msra.mxu0 %v10677
  %10822 = vmatprep.subr.bf16.mxu0 %v10683
  %10823 = vmatpush1.bf16.msra.mxu0 %v10682
  %10824 = vmatprep.subr.bf16.mxu0 %v10688
  %10825 = vmatpush1.bf16.msra.mxu0 %v10687
  %10826 = vmatprep.subr.bf16.mxu0 %v10693
  %10827 = vmatpush1.bf16.msra.mxu0 %v10692
  %10828 = vmatprep.subr.bf16.mxu0 %v10698
  %10829 = vmatpush1.bf16.msra.mxu0 %v10697
  %10830 = vmatprep.subr.bf16.mxu0 %v10703
  %10831 = vmatpush1.bf16.msra.mxu0 %v10702
  %10832 = vmatprep.subr.bf16.mxu0 %v10708
  %10833 = vmatpush1.bf16.msra.mxu0 %v10707
  %10834 = vmatprep.subr.bf16.mxu0 %v10713
  %10835 = vmatpush1.bf16.msra.mxu0 %v10712
  %10836 = vmatprep.subr.bf16.mxu0 %v10718
  %10837 = vmatpush1.bf16.msra.mxu0 %v10717
  %10838 = vmatprep.subr.bf16.mxu0 %v10723
  %10839 = vmatpush1.bf16.msra.mxu0 %v10722
  %10840 = vmatprep.mubr.bf16.mxu0 %v10758
  %10841 = vmatmul.mubr.bf16.gmra.mrb[0].mxu0 %v10757
  %v10842 = vpop.f32.mrb[0].mxu0
  %v10843 = vadd.f32 %v10802, %v10842
  %v10844 = vpop.f32.mrb[0].mxu0
  %v10845 = vadd.f32 %v10804, %v10844
  %v10846 = vpop.f32.mrb[0].mxu0
  %v10847 = vpop.f32.mrb[0].mxu0
  %10848 = vdwg.mxu0
  %10849 = vmatprep.subr.bf16.mxu0 %v10728
  %10850 = vmatpush1.bf16.msra.mxu0 %v10727
  %10851 = vmatprep.subr.bf16.mxu0 %v10733
  %10852 = vmatpush1.bf16.msra.mxu0 %v10732
  %10853 = vmatprep.subr.bf16.mxu0 %v10738
  %10854 = vmatpush1.bf16.msra.mxu0 %v10737
  %10855 = vmatprep.subr.bf16.mxu0 %v10743
  %10856 = vmatpush1.bf16.msra.mxu0 %v10742
  %10857 = vmatprep.subr.bf16.mxu0 0
  %10858 = vmatpush1.bf16.msra.mxu0 0
  %10859 = vmatprep.subr.bf16.mxu0 0
  %10860 = vmatpush1.bf16.msra.mxu0 0
  %10861 = vmatprep.subr.bf16.mxu0 0
  %10862 = vmatpush1.bf16.msra.mxu0 0
  %10863 = vmatprep.subr.bf16.mxu0 0
  %10864 = vmatpush1.bf16.msra.mxu0 0
  %10865 = vmatprep.subr.bf16.mxu0 0
  %10866 = vmatpush1.bf16.msra.mxu0 0
  %10867 = vmatprep.subr.bf16.mxu0 0
  %10868 = vmatpush1.bf16.msra.mxu0 0
  %10869 = vmatprep.subr.bf16.mxu0 0
  %10870 = vmatpush1.bf16.msra.mxu0 0
  %10871 = vmatprep.subr.bf16.mxu0 0
  %10872 = vmatpush1.bf16.msra.mxu0 0
  %10873 = vmatprep.subr.bf16.mxu0 0
  %10874 = vmatpush1.bf16.msra.mxu0 0
  %10875 = vmatprep.subr.bf16.mxu0 0
  %10876 = vmatpush1.bf16.msra.mxu0 0
  %10877 = vmatprep.subr.bf16.mxu0 0
  %10878 = vmatpush1.bf16.msra.mxu0 0
  %10879 = vmatprep.subr.bf16.mxu0 0
  %10880 = vmatpush1.bf16.msra.mxu0 0
  %10881 = vmatprep.mubr.bf16.mxu0 0
  %10882 = vmatmul.mubr.bf16.gmra.mrb[0].mxu0 %v10765
  %v10883 = vpop.f32.mrb[0].mxu0
  %v10884 = vadd.f32 %v10843, %v10883
  %v10885 = vpop.f32.mrb[0].mxu0
  %v10886 = vadd.f32 %v10845, %v10885
  %v10887 = vpop.f32.mrb[0].mxu0
  %v10888 = vpop.f32.mrb[0].mxu0
  %10889 = vdwg.mxu0
  %10890 = vmatprep.subr.bf16.mxu0 %v10570
  %10891 = vmatpush1.bf16.msra.mxu0 %v10569
  %10892 = vmatprep.subr.bf16.mxu0 %v10575
  %10893 = vmatpush1.bf16.msra.mxu0 %v10574
  %10894 = vmatprep.subr.bf16.mxu0 %v10580
  %10895 = vmatpush1.bf16.msra.mxu0 %v10579
  %10896 = vmatprep.subr.bf16.mxu0 %v10585
  %10897 = vmatpush1.bf16.msra.mxu0 %v10584
  %10898 = vmatprep.subr.bf16.mxu0 %v10590
  %10899 = vmatpush1.bf16.msra.mxu0 %v10589
  %10900 = vmatprep.subr.bf16.mxu0 %v10595
  %10901 = vmatpush1.bf16.msra.mxu0 %v10594
  %10902 = vmatprep.subr.bf16.mxu0 %v10600
  %10903 = vmatpush1.bf16.msra.mxu0 %v10599
  %10904 = vmatprep.subr.bf16.mxu0 %v10605
  %10905 = vmatpush1.bf16.msra.mxu0 %v10604
  %10906 = vmatprep.subr.bf16.mxu0 %v10610
  %10907 = vmatpush1.bf16.msra.mxu0 %v10609
  %10908 = vmatprep.subr.bf16.mxu0 %v10615
  %10909 = vmatpush1.bf16.msra.mxu0 %v10614
  %10910 = vmatprep.subr.bf16.mxu0 %v10620
  %10911 = vmatpush1.bf16.msra.mxu0 %v10619
  %10912 = vmatprep.subr.bf16.mxu0 %v10625
  %10913 = vmatpush1.bf16.msra.mxu0 %v10624
  %10914 = vmatprep.subr.bf16.mxu0 %v10630
  %10915 = vmatpush1.bf16.msra.mxu0 %v10629
  %10916 = vmatprep.subr.bf16.mxu0 %v10635
  %10917 = vmatpush1.bf16.msra.mxu0 %v10634
  %10918 = vmatprep.subr.bf16.mxu0 %v10640
  %10919 = vmatpush1.bf16.msra.mxu0 %v10639
  %10920 = vmatprep.subr.bf16.mxu0 %v10645
  %10921 = vmatpush1.bf16.msra.mxu0 %v10644
  %10922 = vmatprep.mubr.bf16.mxu0 %v10756
  %10923 = vmatmul.mubr.bf16.gmra.mrb[0].mxu0 %v10755
  %v10924 = vpop.f32.mrb[0].mxu0
  %v10925 = vadd.f32 0.0, %v10924
  %v10926 = vpop.f32.mrb[0].mxu0
  %v10927 = vadd.f32 0.0, %v10926
  %v10928 = vpop.f32.mrb[0].mxu0
  %v10929 = vpop.f32.mrb[0].mxu0
  %10930 = vdwg.mxu0
  %10931 = vmatprep.subr.bf16.mxu0 %v10650
  %10932 = vmatpush1.bf16.msra.mxu0 %v10649
  %10933 = vmatprep.subr.bf16.mxu0 %v10655
  %10934 = vmatpush1.bf16.msra.mxu0 %v10654
  %10935 = vmatprep.subr.bf16.mxu0 %v10660
  %10936 = vmatpush1.bf16.msra.mxu0 %v10659
  %10937 = vmatprep.subr.bf16.mxu0 %v10665
  %10938 = vmatpush1.bf16.msra.mxu0 %v10664
  %10939 = vmatprep.subr.bf16.mxu0 %v10670
  %10940 = vmatpush1.bf16.msra.mxu0 %v10669
  %10941 = vmatprep.subr.bf16.mxu0 %v10675
  %10942 = vmatpush1.bf16.msra.mxu0 %v10674
  %10943 = vmatprep.subr.bf16.mxu0 %v10680
  %10944 = vmatpush1.bf16.msra.mxu0 %v10679
  %10945 = vmatprep.subr.bf16.mxu0 %v10685
  %10946 = vmatpush1.bf16.msra.mxu0 %v10684
  %10947 = vmatprep.subr.bf16.mxu0 %v10690
  %10948 = vmatpush1.bf16.msra.mxu0 %v10689
  %10949 = vmatprep.subr.bf16.mxu0 %v10695
  %10950 = vmatpush1.bf16.msra.mxu0 %v10694
  %10951 = vmatprep.subr.bf16.mxu0 %v10700
  %10952 = vmatpush1.bf16.msra.mxu0 %v10699
  %10953 = vmatprep.subr.bf16.mxu0 %v10705
  %10954 = vmatpush1.bf16.msra.mxu0 %v10704
  %10955 = vmatprep.subr.bf16.mxu0 %v10710
  %10956 = vmatpush1.bf16.msra.mxu0 %v10709
  %10957 = vmatprep.subr.bf16.mxu0 %v10715
  %10958 = vmatpush1.bf16.msra.mxu0 %v10714
  %10959 = vmatprep.subr.bf16.mxu0 %v10720
  %10960 = vmatpush1.bf16.msra.mxu0 %v10719
  %10961 = vmatprep.subr.bf16.mxu0 %v10725
  %10962 = vmatpush1.bf16.msra.mxu0 %v10724
  %10963 = vmatprep.mubr.bf16.mxu0 %v10758
  %10964 = vmatmul.mubr.bf16.gmra.mrb[0].mxu0 %v10757
  %v10965 = vpop.f32.mrb[0].mxu0
  %v10966 = vadd.f32 %v10925, %v10965
  %v10967 = vpop.f32.mrb[0].mxu0
  %v10968 = vadd.f32 %v10927, %v10967
  %v10969 = vpop.f32.mrb[0].mxu0
  %v10970 = vpop.f32.mrb[0].mxu0
  %10971 = vdwg.mxu0
  %10972 = vmatprep.subr.bf16.mxu0 %v10730
  %10973 = vmatpush1.bf16.msra.mxu0 %v10729
  %10974 = vmatprep.subr.bf16.mxu0 %v10735
  %10975 = vmatpush1.bf16.msra.mxu0 %v10734
  %10976 = vmatprep.subr.bf16.mxu0 %v10740
  %10977 = vmatpush1.bf16.msra.mxu0 %v10739
  %10978 = vmatprep.subr.bf16.mxu0 %v10745
  %10979 = vmatpush1.bf16.msra.mxu0 %v10744
  %10980 = vmatprep.subr.bf16.mxu0 0
  %10981 = vmatpush1.bf16.msra.mxu0 0
  %10982 = vmatprep.subr.bf16.mxu0 0
  %10983 = vmatpush1.bf16.msra.mxu0 0
  %10984 = vmatprep.subr.bf16.mxu0 0
  %10985 = vmatpush1.bf16.msra.mxu0 0
  %10986 = vmatprep.subr.bf16.mxu0 0
  %10987 = vmatpush1.bf16.msra.mxu0 0
  %10988 = vmatprep.subr.bf16.mxu0 0
  %10989 = vmatpush1.bf16.msra.mxu0 0
  %10990 = vmatprep.subr.bf16.mxu0 0
  %10991 = vmatpush1.bf16.msra.mxu0 0
  %10992 = vmatprep.subr.bf16.mxu0 0
  %10993 = vmatpush1.bf16.msra.mxu0 0
  %10994 = vmatprep.subr.bf16.mxu0 0
  %10995 = vmatpush1.bf16.msra.mxu0 0
  %10996 = vmatprep.subr.bf16.mxu0 0
  %10997 = vmatpush1.bf16.msra.mxu0 0
  %10998 = vmatprep.subr.bf16.mxu0 0
  %10999 = vmatpush1.bf16.msra.mxu0 0
  %11000 = vmatprep.subr.bf16.mxu0 0
  %11001 = vmatpush1.bf16.msra.mxu0 0
  %11002 = vmatprep.subr.bf16.mxu0 0
  %11003 = vmatpush1.bf16.msra.mxu0 0
  %11004 = vmatprep.mubr.bf16.mxu0 0
  %11005 = vmatmul.mubr.bf16.gmra.mrb[0].mxu0 %v10765
  %v11006 = vpop.f32.mrb[0].mxu0
  %v11007 = vadd.f32 %v10966, %v11006
  %v11008 = vpop.f32.mrb[0].mxu0
  %v11009 = vadd.f32 %v10968, %v11008
  %v11010 = vpop.f32.mrb[0].mxu0
  %v11011 = vpop.f32.mrb[0].mxu0
  %11012 = vdwg.mxu0
  %11013 = vmatprep.subr.bf16.mxu0 0
  %11014 = vmatpush1.bf16.msra.mxu0 %v10571
  %11015 = vmatprep.subr.bf16.mxu0 0
  %11016 = vmatpush1.bf16.msra.mxu0 %v10576
  %11017 = vmatprep.subr.bf16.mxu0 0
  %11018 = vmatpush1.bf16.msra.mxu0 %v10581
  %11019 = vmatprep.subr.bf16.mxu0 0
  %11020 = vmatpush1.bf16.msra.mxu0 %v10586
  %11021 = vmatprep.subr.bf16.mxu0 0
  %11022 = vmatpush1.bf16.msra.mxu0 %v10591
  %11023 = vmatprep.subr.bf16.mxu0 0
  %11024 = vmatpush1.bf16.msra.mxu0 %v10596
  %11025 = vmatprep.subr.bf16.mxu0 0
  %11026 = vmatpush1.bf16.msra.mxu0 %v10601
  %11027 = vmatprep.subr.bf16.mxu0 0
  %11028 = vmatpush1.bf16.msra.mxu0 %v10606
  %11029 = vmatprep.subr.bf16.mxu0 0
  %11030 = vmatpush1.bf16.msra.mxu0 %v10611
  %11031 = vmatprep.subr.bf16.mxu0 0
  %11032 = vmatpush1.bf16.msra.mxu0 %v10616
  %11033 = vmatprep.subr.bf16.mxu0 0
  %11034 = vmatpush1.bf16.msra.mxu0 %v10621
  %11035 = vmatprep.subr.bf16.mxu0 0
  %11036 = vmatpush1.bf16.msra.mxu0 %v10626
  %11037 = vmatprep.subr.bf16.mxu0 0
  %11038 = vmatpush1.bf16.msra.mxu0 %v10631
  %11039 = vmatprep.subr.bf16.mxu0 0
  %11040 = vmatpush1.bf16.msra.mxu0 %v10636
  %11041 = vmatprep.subr.bf16.mxu0 0
  %11042 = vmatpush1.bf16.msra.mxu0 %v10641
  %11043 = vmatprep.subr.bf16.mxu0 0
  %11044 = vmatpush1.bf16.msra.mxu0 %v10646
  %11045 = vmatprep.mubr.bf16.mxu0 %v10756
  %11046 = vmatmul.mubr.bf16.gmra.mrb[0].mxu0 %v10755
  %v11047 = vpop.f32.mrb[0].mxu0
  %v11048 = vadd.f32 0.0, %v11047
  %v11049 = vpop.f32.mrb[0].mxu0
  %v11050 = vpop.f32.mrb[0].mxu0
  %v11051 = vpop.f32.mrb[0].mxu0
  %11052 = vdwg.mxu0
  %11053 = vmatprep.subr.bf16.mxu0 0
  %11054 = vmatpush1.bf16.msra.mxu0 %v10651
  %11055 = vmatprep.subr.bf16.mxu0 0
  %11056 = vmatpush1.bf16.msra.mxu0 %v10656
  %11057 = vmatprep.subr.bf16.mxu0 0
  %11058 = vmatpush1.bf16.msra.mxu0 %v10661
  %11059 = vmatprep.subr.bf16.mxu0 0
  %11060 = vmatpush1.bf16.msra.mxu0 %v10666
  %11061 = vmatprep.subr.bf16.mxu0 0
  %11062 = vmatpush1.bf16.msra.mxu0 %v10671
  %11063 = vmatprep.subr.bf16.mxu0 0
  %11064 = vmatpush1.bf16.msra.mxu0 %v10676
  %11065 = vmatprep.subr.bf16.mxu0 0
  %11066 = vmatpush1.bf16.msra.mxu0 %v10681
  %11067 = vmatprep.subr.bf16.mxu0 0
  %11068 = vmatpush1.bf16.msra.mxu0 %v10686
  %11069 = vmatprep.subr.bf16.mxu0 0
  %11070 = vmatpush1.bf16.msra.mxu0 %v10691
  %11071 = vmatprep.subr.bf16.mxu0 0
  %11072 = vmatpush1.bf16.msra.mxu0 %v10696
  %11073 = vmatprep.subr.bf16.mxu0 0
  %11074 = vmatpush1.bf16.msra.mxu0 %v10701
  %11075 = vmatprep.subr.bf16.mxu0 0
  %11076 = vmatpush1.bf16.msra.mxu0 %v10706
  %11077 = vmatprep.subr.bf16.mxu0 0
  %11078 = vmatpush1.bf16.msra.mxu0 %v10711
  %11079 = vmatprep.subr.bf16.mxu0 0
  %11080 = vmatpush1.bf16.msra.mxu0 %v10716
  %11081 = vmatprep.subr.bf16.mxu0 0
  %11082 = vmatpush1.bf16.msra.mxu0 %v10721
  %11083 = vmatprep.subr.bf16.mxu0 0
  %11084 = vmatpush1.bf16.msra.mxu0 %v10726
  %11085 = vmatprep.mubr.bf16.mxu0 %v10758
  %11086 = vmatmul.mubr.bf16.gmra.mrb[0].mxu0 %v10757
  %v11087 = vpop.f32.mrb[0].mxu0
  %v11088 = vadd.f32 %v11048, %v11087
  %v11089 = vpop.f32.mrb[0].mxu0
  %v11090 = vpop.f32.mrb[0].mxu0
  %v11091 = vpop.f32.mrb[0].mxu0
  %11092 = vdwg.mxu0
  %11093 = vmatprep.subr.bf16.mxu0 0
  %11094 = vmatpush1.bf16.msra.mxu0 %v10731
  %11095 = vmatprep.subr.bf16.mxu0 0
  %11096 = vmatpush1.bf16.msra.mxu0 %v10736
  %11097 = vmatprep.subr.bf16.mxu0 0
  %11098 = vmatpush1.bf16.msra.mxu0 %v10741
  %11099 = vmatprep.subr.bf16.mxu0 0
  %11100 = vmatpush1.bf16.msra.mxu0 %v10746
  %11101 = vmatprep.subr.bf16.mxu0 0
  %11102 = vmatpush1.bf16.msra.mxu0 0
  %11103 = vmatprep.subr.bf16.mxu0 0
  %11104 = vmatpush1.bf16.msra.mxu0 0
  %11105 = vmatprep.subr.bf16.mxu0 0
  %11106 = vmatpush1.bf16.msra.mxu0 0
  %11107 = vmatprep.subr.bf16.mxu0 0
  %11108 = vmatpush1.bf16.msra.mxu0 0
  %11109 = vmatprep.subr.bf16.mxu0 0
  %11110 = vmatpush1.bf16.msra.mxu0 0
  %11111 = vmatprep.subr.bf16.mxu0 0
  %11112 = vmatpush1.bf16.msra.mxu0 0
  %11113 = vmatprep.subr.bf16.mxu0 0
  %11114 = vmatpush1.bf16.msra.mxu0 0
  %11115 = vmatprep.subr.bf16.mxu0 0
  %11116 = vmatpush1.bf16.msra.mxu0 0
  %11117 = vmatprep.subr.bf16.mxu0 0
  %11118 = vmatpush1.bf16.msra.mxu0 0
  %11119 = vmatprep.subr.bf16.mxu0 0
  %11120 = vmatpush1.bf16.msra.mxu0 0
  %11121 = vmatprep.subr.bf16.mxu0 0
  %11122 = vmatpush1.bf16.msra.mxu0 0
  %11123 = vmatprep.subr.bf16.mxu0 0
  %11124 = vmatpush1.bf16.msra.mxu0 0
  %11125 = vmatprep.mubr.bf16.mxu0 0
  %11126 = vmatmul.mubr.bf16.gmra.mrb[0].mxu0 %v10765
  %v11127 = vpop.f32.mrb[0].mxu0
  %v11128 = vadd.f32 %v11088, %v11127
  %v11129 = vpop.f32.mrb[0].mxu0
  %v11130 = vpop.f32.mrb[0].mxu0
  %v11131 = vpop.f32.mrb[0].mxu0
  %11132 = vdwg.mxu0
  %v11133 = vld [vmem:[#allocation4] sm:$0x1]
  %11135 = vset.pattern.permute.xlu0 0
  %11136 = vperm.xlu0 %11135, %v11133
  %v11137 = vpop.permute.xlu0 %11136
  %v11139 = vlaneseq
  %v11140 = vshrl.u32 %v11139, 7
  %v11141 = vsub.s32 0, %v11140
  %v11142 = vrot.slane %v11137, %v11141
  %v11143 = vadd.f32 %v10884, %v11142
  %v11144 = vadd.f32 %v10886, %v11142
  %v11145 = vadd.f32 %v11007, %v11142
  %v11146 = vadd.f32 %v11009, %v11142
  %v11147 = vadd.f32 %v11128, %v11142
  %11148 = vrot.lane.b32.xlu0 %v119, 109
  %v11149 = vpop.permute.xlu0 %11148
  %11150 = vrot.lane.b32.xlu0 %v123, 109
  %v11151 = vpop.permute.xlu0 %11150
  %11152 = vrot.lane.b32.xlu0 %v127, 109
  %v11153 = vpop.permute.xlu0 %11152
  %v11154 = vsel %vm862, %v11149, %v11151
  %v11155 = vsel %vm862, %v11151, %v11153
  %v11159 = vadd.f32 %v11143, %v11154
  %v11160 = vadd.f32 %v11144, %v11155
  %v11161 = vadd.f32 %v11145, %v11153
  %v11165 = vcombine.low %v11159, %v11160
  %v11167 = vunpack.c.l.s4 1966171168
  %v11168 = vunpack.c.0.s8 %v11167
  %v11169 = vlaneseq
  %v11170 = vshrl.u32 %v11169, 7
  %v11171 = vsub.s32 %v11168, %v11170
  %v11172 = vrot.slane %v11165, %v11171
  %v11174 = vunpack.c.l.s4 1966171168
  %v11175 = vunpack.c.0.s8 %v11174
  %v11176 = vlaneseq
  %v11177 = vshrl.u32 %v11176, 7
  %v11178 = vsub.s32 %v11175, %v11177
  %v11179 = vrot.slane %v11161, %v11178
  %v11180 = vcombine.low %v11172, %v11179
  %v11182 = vunpack.c.l.s4 1966171168
  %v11183 = vunpack.c.0.s8 %v11182
  %v11184 = vlaneseq
  %v11185 = vshrl.u32 %v11184, 7
  %v11186 = vsub.s32 %v11183, %v11185
  %v11187 = vrot.slane %v11180, %v11186
  %v11189 = vlaneseq
  %vm11190 = vcmp.ge.s32.totalorder %v11189, 0
  %vm11191 = vcmp.lt.s32.totalorder %v11189, 288
  %vm11192 = vmand %vm11190, %vm11191
  %11193 = vst.msk [vmem:[%s10] sm:$0x7] %vm11192, %v11187
  %11194 = vrot.lane.b32.xlu0 %v1970, 13
  %v11195 = vpop.permute.xlu0 %11194
  %11196 = vrot.lane.b32.xlu0 %v1974, 13
  %v11197 = vpop.permute.xlu0 %11196
  %11198 = vrot.lane.b32.xlu0 %v1978, 13
  %v11199 = vpop.permute.xlu0 %11198
  %vm11200 = vcmask 105472
  %v11201 = vsel %vm11200, %v11195, %v11197
  %v11202 = vsel %vm11200, %v11197, %v11199
  %v11206 = vadd.f32 %v11145, %v11195
  %v11207 = vadd.f32 %v11146, %v11201
  %v11208 = vadd.f32 %v11147, %v11202
  %v11212 = vcombine.low %v11206, %v11207
  %v11214 = vunpack.c.l.s4 1966171168
  %v11215 = vunpack.c.0.s8 %v11214
  %v11216 = vlaneseq
  %v11217 = vshrl.u32 %v11216, 7
  %v11218 = vsub.s32 %v11215, %v11217
  %v11219 = vrot.slane %v11212, %v11218
  %v11221 = vunpack.c.l.s4 1966171168
  %v11222 = vunpack.c.0.s8 %v11221
  %v11223 = vlaneseq
  %v11224 = vshrl.u32 %v11223, 7
  %v11225 = vsub.s32 %v11222, %v11224
  %v11226 = vrot.slane %v11208, %v11225
  %v11227 = vcombine.low %v11219, %v11226
  %v11229 = vunpack.c.l.s4 1966171168
  %v11230 = vunpack.c.0.s8 %v11229
  %v11231 = vlaneseq
  %v11232 = vshrl.u32 %v11231, 7
  %v11233 = vsub.s32 %v11230, %v11232
  %v11234 = vrot.slane %v11227, %v11233
  %11235 = vrot.lane.b32.xlu0 %v11234, 96
  %v11236 = vpop.permute.xlu0 %11235
  %v11237 = vrot.slane %v11236, 1
  %vm11238 = vcmask 785408
  %v11239 = vsel %vm11238, %v11236, %v11237
  %s11241 = scalar_lea.vmem %s10, 3
  %11242 = vst.msk [vmem:[%s11241] sm:$0x7] %vm11192, %v11239
  // Predicated region
  $region42: #{dcnn_forward.1} parent=0 // pred_check
    _
  $region43: #{dcnn_forward.1} parent=0 // pred_check_branch
    %11244 = sbr.rel (0) target = $region45
  $region44: #{dcnn_forward.1} parent=0 // pred_region
    _
  $region45: #{dcnn_forward.1} parent=0 // pred_fallthru
    _
  // Predicated region
  $region46: #{dcnn_forward.1} parent=0 // pred_check
    _
  $region47: #{dcnn_forward.1} parent=0 // pred_check_branch
    %11246 = sbr.rel (0) target = $region49
  $region48: #{dcnn_forward.1} parent=0 // pred_region
    _
  $region49: #{dcnn_forward.1} parent=0 // pred_fallthru
    _

</llo_original>
